<compile_context>
chip_gen: v6e
topology: v6e:2x2x1
jax: 0.10.0
libtpu: 0.0.40
codegen_flags: <defaults>
</compile_context>

<pallas_src>
import numpy as np
import jax
import jax.numpy as jnp
from jax.experimental import pallas as pl
from jax.experimental.pallas import tpu as pltpu


def _softplus(y):
    # numerically stable softplus (matches torch.nn.functional.softplus)
    return jnp.maximum(y, 0.0) + jnp.log1p(jnp.exp(-jnp.abs(y)))


# --------------------------------------------------------------------------
# Fused kernel (one grid step == one batch sample)
# --------------------------------------------------------------------------
def _make_fused_kernel(C, Hout, Wout):
    def kernel(x_ref, wh_ref, wwT_ref,
               w1_ref, s1_ref, b1_ref,
               w2_ref, s2_ref, b2_ref,
               w3_ref, b3_ref,
               o_ref,
               pad_a, pad_b):
        # x_ref  : (1, C, Hin, Win)    VMEM  -- one NCHW sample (W on lanes)
        # wh_ref : (Hout, Hin)         VMEM  -- bilinear row-interp matrix
        # wwT_ref: (Win, Wout)         VMEM  -- bilinear col-interp matrix^T
        # w*/s*/b* refs                SMEM  -- conv weights / folded-BN scalars
        # o_ref  : (1, Hout, Wout)     VMEM  -- lane-dense output slab
        # pad_a, pad_b: (C, Hout+2, Wout+2) VMEM scratch (zero-padded planes)

        # Zero the padded scratch: the 1-pixel border acts as the conv
        # "padding=1" zeros and is never overwritten afterwards.
        pad_a[...] = jnp.zeros_like(pad_a)
        pad_b[...] = jnp.zeros_like(pad_b)

        wh = wh_ref[...]      # (Hout, Hin)
        wwT = wwT_ref[...]    # (Win, Wout)

        # ---- Stage 1: bilinear resize (align_corners=False) ---------------
        # Separable resize as two small dense GEMMs per channel: wh@plane@wwT
        for c in range(C):
            plane = x_ref[0, c].astype(jnp.float32)                       # (Hin, Win)
            t = jnp.dot(plane, wwT, preferred_element_type=jnp.float32)   # (Hin, Wout)
            up = jnp.dot(wh, t, preferred_element_type=jnp.float32)       # (Hout, Wout)
            pad_a[c, pl.ds(1, Hout), pl.ds(1, Wout)] = up

        # ---- 3x3 conv as shifted VPU multiply-adds -------------------------
        # Weights flattened in [dy, dx, ci, co] order (see wrapper); each tap
        # slice is loaded once and reused for all output channels.
        def conv3x3(src, w_s):
            accs = [jnp.zeros((Hout, Wout), jnp.float32) for _ in range(C)]
            for ci in range(C):
                for dy in range(3):
                    for dx in range(3):
                        tap = src[ci, pl.ds(dy, Hout), pl.ds(dx, Wout)]
                        base = ((dy * 3 + dx) * C + ci) * C
                        for co in range(C):
                            accs[co] = accs[co] + w_s[base + co] * tap
            return accs

        # ---- Stage 2: conv1 + BN1 + Mish  (Dropout2d(p=0.0) == identity) ---
        accs = conv3x3(pad_a, w1_ref)
        for co in range(C):
            y = accs[co] * s1_ref[co] + b1_ref[co]
            y = y * jnp.tanh(_softplus(y))                     # Mish (EUP)
            pad_b[co, pl.ds(1, Hout), pl.ds(1, Wout)] = y

        # ---- Stage 3: conv2 + BN2 + Mish fused with conv1x1 + sigmoid ------
        accs = conv3x3(pad_b, w2_ref)
        out = jnp.zeros((Hout, Wout), jnp.float32) + b3_ref[0]
        for co in range(C):
            y = accs[co] * s2_ref[co] + b2_ref[co]
            y = y * jnp.tanh(_softplus(y))                     # Mish (EUP)
            out = out + w3_ref[co] * y                         # 1x1 conv
        o_ref[0] = 1.0 / (1.0 + jnp.exp(-out))                 # Sigmoid

    return kernel


# --------------------------------------------------------------------------
# Glue
# --------------------------------------------------------------------------
def _bilinear_matrix(out_size, in_size):
    """Row matrix reproducing F.interpolate(mode='bilinear',
    align_corners=False) along one axis."""
    o = np.arange(out_size, dtype=np.float64)
    src = (o + 0.5) * (in_size / out_size) - 0.5
    src = np.maximum(src, 0.0)                 # PyTorch clamps negative coords
    i0 = np.clip(np.floor(src).astype(np.int64), 0, in_size - 1)
    i1 = np.minimum(i0 + 1, in_size - 1)
    frac = (src - i0).astype(np.float32)
    M = np.zeros((out_size, in_size), np.float32)
    M[np.arange(out_size), i0] += 1.0 - frac
    M[np.arange(out_size), i1] += frac
    return M


def init_params(key, in_channels):
    ks = jax.random.split(key, 6)
    eps = 1e-5
    # Conv weights in HWIO layout: w[dy, dx, ci, co] == torch weight[co, ci, dy, dx]
    w1 = jax.random.normal(ks[0], (3, 3, in_channels, in_channels), jnp.float32) * 0.1
    b1 = jax.random.normal(ks[1], (in_channels,), jnp.float32) * 0.1
    w2 = jax.random.normal(ks[2], (3, 3, in_channels, in_channels), jnp.float32) * 0.1
    b2 = jax.random.normal(ks[3], (in_channels,), jnp.float32) * 0.1
    w3 = jax.random.normal(ks[4], (in_channels, 1), jnp.float32) * 0.1
    b3 = jax.random.normal(ks[5], (1,), jnp.float32) * 0.1

    # Deterministic (inference-mode) BatchNorm parameters / running stats.
    # TODO(synk): training-mode BN (batch statistics) is not modeled here.
    def bn(lo_g, hi_g):
        gamma = jnp.linspace(lo_g, hi_g, in_channels, dtype=jnp.float32)
        beta = jnp.linspace(-0.1, 0.1, in_channels, dtype=jnp.float32)
        mean = jnp.linspace(-0.05, 0.05, in_channels, dtype=jnp.float32)
        var = jnp.linspace(0.8, 1.2, in_channels, dtype=jnp.float32)
        return gamma, beta, mean, var

    g1, be1, m1, v1 = bn(0.9, 1.1)
    g2, be2, m2, v2 = bn(0.95, 1.05)
    scale1 = g1 / jnp.sqrt(v1 + eps)
    bias1 = (b1 - m1) * scale1 + be1          # conv bias folded into BN
    scale2 = g2 / jnp.sqrt(v2 + eps)
    bias2 = (b2 - m2) * scale2 + be2
    return dict(w1=w1, scale1=scale1, bias1=bias1,
                w2=w2, scale2=scale2, bias2=bias2,
                w3=w3, b3=b3)


def final_block_inter(params, x_nchw, input_size):
    N, C, Hin, Win = x_nchw.shape
    Hout, Wout = int(input_size[0]), int(input_size[1])
    x_nchw = x_nchw.astype(jnp.float32)

    wh = jnp.asarray(_bilinear_matrix(Hout, Hin))          # (Hout, Hin)
    wwT = jnp.asarray(_bilinear_matrix(Wout, Win).T)       # (Win, Wout)

    # Flatten conv weights to 1-D [dy, dx, ci, co] so the kernel reads them as
    # SMEM scalars (1-D SMEM avoids the 2-D [R,C]->[8,128] padding blow-up).
    w1f = params['w1'].reshape(-1).astype(jnp.float32)
    w2f = params['w2'].reshape(-1).astype(jnp.float32)
    w3f = params['w3'].reshape(-1).astype(jnp.float32)     # (C,)
    b3 = params['b3'].reshape(-1).astype(jnp.float32)      # (1,)

    smem = pl.BlockSpec(memory_space=pltpu.MemorySpace.SMEM)
    kernel = _make_fused_kernel(C, Hout, Wout)

    out = pl.pallas_call(
        kernel,
        out_shape=jax.ShapeDtypeStruct((N, Hout, Wout), jnp.float32),
        grid=(N,),
        in_specs=[
            pl.BlockSpec((1, C, Hin, Win), lambda n: (n, 0, 0, 0)),   # x (per sample)
            pl.BlockSpec((Hout, Hin), lambda n: (0, 0)),              # wh (resident)
            pl.BlockSpec((Win, Wout), lambda n: (0, 0)),              # wwT (resident)
            smem, smem, smem,                                         # w1, scale1, bias1
            smem, smem, smem,                                         # w2, scale2, bias2
            smem, smem,                                               # w3, b3
        ],
        out_specs=pl.BlockSpec((1, Hout, Wout), lambda n: (n, 0, 0)),
        scratch_shapes=[
            pltpu.VMEM((C, Hout + 2, Wout + 2), jnp.float32),         # padded stage buf A
            pltpu.VMEM((C, Hout + 2, Wout + 2), jnp.float32),         # padded stage buf B
        ],
        compiler_params=pltpu.CompilerParams(
            dimension_semantics=("parallel",),            # batch -> both TCs on v7x
            vmem_limit_bytes=32 * 1024 * 1024,            # safe on v5e/v6e/v7x
        ),
    )(x_nchw, wh, wwT,
      w1f, params['scale1'], params['bias1'],
      w2f, params['scale2'], params['bias2'],
      w3f, b3)

    # TODO(synk): for very large Hout*Wout add an output-row grid axis with a
    # 2-row halo so the per-sample scratch stays within the VMEM budget.
    return out[:, None, :, :]     # back to NCHW: (N, 1, Hout, Wout)


if __name__ == "__main__":
    key = jax.random.PRNGKey(0)
    kx, kp = jax.random.split(key)
    N, C, H, W = 2, 4, 16, 16
    input_size = (32, 32)

    x = jax.random.normal(kx, (N, C, H, W), jnp.float32)
    params = init_params(kp, C)

    out = final_block_inter(params, x, input_size)
    out = jax.block_until_ready(out)
    assert out.shape == (N, 1, input_size[0], input_size[1]), out.shape
    assert bool(jnp.all(jnp.isfinite(out)))
    assert bool(jnp.all((out >= 0.0) & (out <= 1.0)))   # sigmoid output range
    print("KERNEL_OK")
</pallas_src>

<mosaic_0001>
module attributes {stable_mosaic.version = 11 : i64} {
  func.func @kernel(%arg0: i32, %arg1: memref<1x4x16x16xf32, #tpu.memory_space<vmem>>, %arg2: memref<32x16xf32, #tpu.memory_space<vmem>>, %arg3: memref<16x32xf32, #tpu.memory_space<vmem>>, %arg4: memref<144xf32, #tpu.memory_space<smem>>, %arg5: memref<4xf32, #tpu.memory_space<smem>>, %arg6: memref<4xf32, #tpu.memory_space<smem>>, %arg7: memref<144xf32, #tpu.memory_space<smem>>, %arg8: memref<4xf32, #tpu.memory_space<smem>>, %arg9: memref<4xf32, #tpu.memory_space<smem>>, %arg10: memref<4xf32, #tpu.memory_space<smem>>, %arg11: memref<1xf32, #tpu.memory_space<smem>>, %arg12: memref<1x32x32xf32, #tpu.memory_space<vmem>>, %arg13: memref<4x34x34xf32, #tpu.memory_space<vmem>>, %arg14: memref<4x34x34xf32, #tpu.memory_space<vmem>>) attributes {dimension_semantics = [#tpu.dimension_semantics<parallel>], iteration_bounds = array<i64: 2>, scalar_prefetch = 0 : i64, scratch_operands = 2 : i64, tpu.core_type = #tpu.core_type<tc>, window_params = [{transform_indices = @transform_0, window_bounds = array<i64: 1, 4, 16, 16>}, {pipeline_mode = #tpu.pipeline_mode<synchronous>, transform_indices = @transform_1, window_bounds = array<i64: 32, 16>}, {pipeline_mode = #tpu.pipeline_mode<synchronous>, transform_indices = @transform_2, window_bounds = array<i64: 16, 32>}, {transform_indices = @transform_3, window_bounds = array<i64: 144>}, {transform_indices = @transform_4, window_bounds = array<i64: 4>}, {transform_indices = @transform_5, window_bounds = array<i64: 4>}, {transform_indices = @transform_6, window_bounds = array<i64: 144>}, {transform_indices = @transform_7, window_bounds = array<i64: 4>}, {transform_indices = @transform_8, window_bounds = array<i64: 4>}, {transform_indices = @transform_9, window_bounds = array<i64: 4>}, {transform_indices = @transform_10, window_bounds = array<i64: 1>}, {transform_indices = @transform_11, window_bounds = array<i64: 1, 32, 32>}]} {
    %cst = arith.constant 0.000000e+00 : f32
    %0 = vector.broadcast %cst : f32 to vector<4x34x34xf32>
    %c0 = arith.constant 0 : index
    %c0_0 = arith.constant 0 : index
    %c0_1 = arith.constant 0 : index
    %1 = vector.load %arg13[%c0, %c0_0, %c0_1] : memref<4x34x34xf32, #tpu.memory_space<vmem>>, vector<4x34x34xf32>
    tpu.vector_store %arg13[%c0, %c0_0, %c0_1], %0 {strides = array<i32>} : memref<4x34x34xf32, #tpu.memory_space<vmem>>, vector<4x34x34xf32>,
    %cst_2 = arith.constant 0.000000e+00 : f32
    %2 = vector.broadcast %cst_2 : f32 to vector<4x34x34xf32>
    %c0_3 = arith.constant 0 : index
    %c0_4 = arith.constant 0 : index
    %c0_5 = arith.constant 0 : index
    %3 = vector.load %arg14[%c0_3, %c0_4, %c0_5] : memref<4x34x34xf32, #tpu.memory_space<vmem>>, vector<4x34x34xf32>
    tpu.vector_store %arg14[%c0_3, %c0_4, %c0_5], %2 {strides = array<i32>} : memref<4x34x34xf32, #tpu.memory_space<vmem>>, vector<4x34x34xf32>,
    %c0_6 = arith.constant 0 : index
    %c0_7 = arith.constant 0 : index
    %4 = vector.load %arg2[%c0_6, %c0_7] : memref<32x16xf32, #tpu.memory_space<vmem>>, vector<32x16xf32>
    %c0_8 = arith.constant 0 : index
    %c0_9 = arith.constant 0 : index
    %5 = vector.load %arg3[%c0_8, %c0_9] : memref<16x32xf32, #tpu.memory_space<vmem>>, vector<16x32xf32>
    %c0_10 = arith.constant 0 : index
    %c0_11 = arith.constant 0 : index
    %c0_12 = arith.constant 0 : index
    %c0_13 = arith.constant 0 : index
    %6 = vector.load %arg1[%c0_10, %c0_11, %c0_12, %c0_13] : memref<1x4x16x16xf32, #tpu.memory_space<vmem>>, vector<1x1x16x16xf32>
    %7 = vector.shape_cast %6 : vector<1x1x16x16xf32> to vector<16x16xf32>
    %cst_14 = arith.constant dense<0.000000e+00> : vector<16x32xf32>
    %8 = tpu.matmul %7, %5, %cst_14 {dimension_numbers = #tpu.dot_dimension_numbers<[1], [0], [0], [1], [0, 0, 1, 1], [], []>} : vector<16x16xf32>, vector<16x32xf32>, vector<16x32xf32> -> vector<16x32xf32>
    %cst_15 = arith.constant dense<0.000000e+00> : vector<32x32xf32>
    %9 = tpu.matmul %4, %8, %cst_15 {dimension_numbers = #tpu.dot_dimension_numbers<[1], [0], [0], [1], [0, 0, 1, 1], [], []>} : vector<32x16xf32>, vector<16x32xf32>, vector<32x32xf32> -> vector<32x32xf32>
    %c0_16 = arith.constant 0 : index
    %c1 = arith.constant 1 : index
    %c1_17 = arith.constant 1 : index
    %10 = vector.load %arg13[%c0_16, %c1, %c1_17] : memref<4x34x34xf32, #tpu.memory_space<vmem>>, vector<1x32x32xf32>
    %11 = vector.shape_cast %10 : vector<1x32x32xf32> to vector<32x32xf32>
    %12 = vector.shape_cast %9 : vector<32x32xf32> to vector<1x32x32xf32>
    tpu.vector_store %arg13[%c0_16, %c1, %c1_17], %12 {strides = array<i32>} : memref<4x34x34xf32, #tpu.memory_space<vmem>>, vector<1x32x32xf32>,
    %c0_18 = arith.constant 0 : index
    %c1_19 = arith.constant 1 : index
    %c0_20 = arith.constant 0 : index
    %c0_21 = arith.constant 0 : index
    %13 = vector.load %arg1[%c0_18, %c1_19, %c0_20, %c0_21] : memref<1x4x16x16xf32, #tpu.memory_space<vmem>>, vector<1x1x16x16xf32>
    %14 = vector.shape_cast %13 : vector<1x1x16x16xf32> to vector<16x16xf32>
    %cst_22 = arith.constant dense<0.000000e+00> : vector<16x32xf32>
    %15 = tpu.matmul %14, %5, %cst_22 {dimension_numbers = #tpu.dot_dimension_numbers<[1], [0], [0], [1], [0, 0, 1, 1], [], []>} : vector<16x16xf32>, vector<16x32xf32>, vector<16x32xf32> -> vector<16x32xf32>
    %cst_23 = arith.constant dense<0.000000e+00> : vector<32x32xf32>
    %16 = tpu.matmul %4, %15, %cst_23 {dimension_numbers = #tpu.dot_dimension_numbers<[1], [0], [0], [1], [0, 0, 1, 1], [], []>} : vector<32x16xf32>, vector<16x32xf32>, vector<32x32xf32> -> vector<32x32xf32>
    %c1_24 = arith.constant 1 : index
    %c1_25 = arith.constant 1 : index
    %c1_26 = arith.constant 1 : index
    %17 = vector.load %arg13[%c1_24, %c1_25, %c1_26] : memref<4x34x34xf32, #tpu.memory_space<vmem>>, vector<1x32x32xf32>
    %18 = vector.shape_cast %17 : vector<1x32x32xf32> to vector<32x32xf32>
    %19 = vector.shape_cast %16 : vector<32x32xf32> to vector<1x32x32xf32>
    tpu.vector_store %arg13[%c1_24, %c1_25, %c1_26], %19 {strides = array<i32>} : memref<4x34x34xf32, #tpu.memory_space<vmem>>, vector<1x32x32xf32>,
    %c0_27 = arith.constant 0 : index
    %c2 = arith.constant 2 : index
    %c0_28 = arith.constant 0 : index
    %c0_29 = arith.constant 0 : index
    %20 = vector.load %arg1[%c0_27, %c2, %c0_28, %c0_29] : memref<1x4x16x16xf32, #tpu.memory_space<vmem>>, vector<1x1x16x16xf32>
    %21 = vector.shape_cast %20 : vector<1x1x16x16xf32> to vector<16x16xf32>
    %cst_30 = arith.constant dense<0.000000e+00> : vector<16x32xf32>
    %22 = tpu.matmul %21, %5, %cst_30 {dimension_numbers = #tpu.dot_dimension_numbers<[1], [0], [0], [1], [0, 0, 1, 1], [], []>} : vector<16x16xf32>, vector<16x32xf32>, vector<16x32xf32> -> vector<16x32xf32>
    %cst_31 = arith.constant dense<0.000000e+00> : vector<32x32xf32>
    %23 = tpu.matmul %4, %22, %cst_31 {dimension_numbers = #tpu.dot_dimension_numbers<[1], [0], [0], [1], [0, 0, 1, 1], [], []>} : vector<32x16xf32>, vector<16x32xf32>, vector<32x32xf32> -> vector<32x32xf32>
    %c2_32 = arith.constant 2 : index
    %c1_33 = arith.constant 1 : index
    %c1_34 = arith.constant 1 : index
    %24 = vector.load %arg13[%c2_32, %c1_33, %c1_34] : memref<4x34x34xf32, #tpu.memory_space<vmem>>, vector<1x32x32xf32>
    %25 = vector.shape_cast %24 : vector<1x32x32xf32> to vector<32x32xf32>
    %26 = vector.shape_cast %23 : vector<32x32xf32> to vector<1x32x32xf32>
    tpu.vector_store %arg13[%c2_32, %c1_33, %c1_34], %26 {strides = array<i32>} : memref<4x34x34xf32, #tpu.memory_space<vmem>>, vector<1x32x32xf32>,
    %c0_35 = arith.constant 0 : index
    %c3 = arith.constant 3 : index
    %c0_36 = arith.constant 0 : index
    %c0_37 = arith.constant 0 : index
    %27 = vector.load %arg1[%c0_35, %c3, %c0_36, %c0_37] : memref<1x4x16x16xf32, #tpu.memory_space<vmem>>, vector<1x1x16x16xf32>
    %28 = vector.shape_cast %27 : vector<1x1x16x16xf32> to vector<16x16xf32>
    %cst_38 = arith.constant dense<0.000000e+00> : vector<16x32xf32>
    %29 = tpu.matmul %28, %5, %cst_38 {dimension_numbers = #tpu.dot_dimension_numbers<[1], [0], [0], [1], [0, 0, 1, 1], [], []>} : vector<16x16xf32>, vector<16x32xf32>, vector<16x32xf32> -> vector<16x32xf32>
    %cst_39 = arith.constant dense<0.000000e+00> : vector<32x32xf32>
    %30 = tpu.matmul %4, %29, %cst_39 {dimension_numbers = #tpu.dot_dimension_numbers<[1], [0], [0], [1], [0, 0, 1, 1], [], []>} : vector<32x16xf32>, vector<16x32xf32>, vector<32x32xf32> -> vector<32x32xf32>
    %c3_40 = arith.constant 3 : index
    %c1_41 = arith.constant 1 : index
    %c1_42 = arith.constant 1 : index
    %31 = vector.load %arg13[%c3_40, %c1_41, %c1_42] : memref<4x34x34xf32, #tpu.memory_space<vmem>>, vector<1x32x32xf32>
    %32 = vector.shape_cast %31 : vector<1x32x32xf32> to vector<32x32xf32>
    %33 = vector.shape_cast %30 : vector<32x32xf32> to vector<1x32x32xf32>
    tpu.vector_store %arg13[%c3_40, %c1_41, %c1_42], %33 {strides = array<i32>} : memref<4x34x34xf32, #tpu.memory_space<vmem>>, vector<1x32x32xf32>,
    %cst_43 = arith.constant 0.000000e+00 : f32
    %34 = vector.broadcast %cst_43 : f32 to vector<32x32xf32>
    %cst_44 = arith.constant 0.000000e+00 : f32
    %35 = vector.broadcast %cst_44 : f32 to vector<32x32xf32>
    %cst_45 = arith.constant 0.000000e+00 : f32
    %36 = vector.broadcast %cst_45 : f32 to vector<32x32xf32>
    %cst_46 = arith.constant 0.000000e+00 : f32
    %37 = vector.broadcast %cst_46 : f32 to vector<32x32xf32>
    %c0_47 = arith.constant 0 : index
    %c0_48 = arith.constant 0 : index
    %c0_49 = arith.constant 0 : index
    %38 = vector.load %arg13[%c0_47, %c0_48, %c0_49] : memref<4x34x34xf32, #tpu.memory_space<vmem>>, vector<1x32x32xf32>
    %39 = vector.shape_cast %38 : vector<1x32x32xf32> to vector<32x32xf32>
    %c0_50 = arith.constant 0 : index
    %40 = memref.load %arg4[%c0_50] : memref<144xf32, #tpu.memory_space<smem>>
    %41 = vector.broadcast %40 : f32 to vector<32x32xf32>
    %42 = arith.mulf %41, %39 : vector<32x32xf32>
    %43 = arith.addf %34, %42 : vector<32x32xf32>
    %c1_51 = arith.constant 1 : index
    %44 = memref.load %arg4[%c1_51] : memref<144xf32, #tpu.memory_space<smem>>
    %45 = vector.broadcast %44 : f32 to vector<32x32xf32>
    %46 = arith.mulf %45, %39 : vector<32x32xf32>
    %47 = arith.addf %35, %46 : vector<32x32xf32>
    %c2_52 = arith.constant 2 : index
    %48 = memref.load %arg4[%c2_52] : memref<144xf32, #tpu.memory_space<smem>>
    %49 = vector.broadcast %48 : f32 to vector<32x32xf32>
    %50 = arith.mulf %49, %39 : vector<32x32xf32>
    %51 = arith.addf %36, %50 : vector<32x32xf32>
    %c3_53 = arith.constant 3 : index
    %52 = memref.load %arg4[%c3_53] : memref<144xf32, #tpu.memory_space<smem>>
    %53 = vector.broadcast %52 : f32 to vector<32x32xf32>
    %54 = arith.mulf %53, %39 : vector<32x32xf32>
    %55 = arith.addf %37, %54 : vector<32x32xf32>
    %c0_54 = arith.constant 0 : index
    %c0_55 = arith.constant 0 : index
    %c1_56 = arith.constant 1 : index
    %56 = vector.load %arg13[%c0_54, %c0_55, %c1_56] : memref<4x34x34xf32, #tpu.memory_space<vmem>>, vector<1x32x32xf32>
    %57 = vector.shape_cast %56 : vector<1x32x32xf32> to vector<32x32xf32>
    %c16 = arith.constant 16 : index
    %58 = memref.load %arg4[%c16] : memref<144xf32, #tpu.memory_space<smem>>
    %59 = vector.broadcast %58 : f32 to vector<32x32xf32>
    %60 = arith.mulf %59, %57 : vector<32x32xf32>
    %61 = arith.addf %43, %60 : vector<32x32xf32>
    %c17 = arith.constant 17 : index
    %62 = memref.load %arg4[%c17] : memref<144xf32, #tpu.memory_space<smem>>
    %63 = vector.broadcast %62 : f32 to vector<32x32xf32>
    %64 = arith.mulf %63, %57 : vector<32x32xf32>
    %65 = arith.addf %47, %64 : vector<32x32xf32>
    %c18 = arith.constant 18 : index
    %66 = memref.load %arg4[%c18] : memref<144xf32, #tpu.memory_space<smem>>
    %67 = vector.broadcast %66 : f32 to vector<32x32xf32>
    %68 = arith.mulf %67, %57 : vector<32x32xf32>
    %69 = arith.addf %51, %68 : vector<32x32xf32>
    %c19 = arith.constant 19 : index
    %70 = memref.load %arg4[%c19] : memref<144xf32, #tpu.memory_space<smem>>
    %71 = vector.broadcast %70 : f32 to vector<32x32xf32>
    %72 = arith.mulf %71, %57 : vector<32x32xf32>
    %73 = arith.addf %55, %72 : vector<32x32xf32>
    %c0_57 = arith.constant 0 : index
    %c0_58 = arith.constant 0 : index
    %c2_59 = arith.constant 2 : index
    %74 = vector.load %arg13[%c0_57, %c0_58, %c2_59] : memref<4x34x34xf32, #tpu.memory_space<vmem>>, vector<1x32x32xf32>
    %75 = vector.shape_cast %74 : vector<1x32x32xf32> to vector<32x32xf32>
    %c32 = arith.constant 32 : index
    %76 = memref.load %arg4[%c32] : memref<144xf32, #tpu.memory_space<smem>>
    %77 = vector.broadcast %76 : f32 to vector<32x32xf32>
    %78 = arith.mulf %77, %75 : vector<32x32xf32>
    %79 = arith.addf %61, %78 : vector<32x32xf32>
    %c33 = arith.constant 33 : index
    %80 = memref.load %arg4[%c33] : memref<144xf32, #tpu.memory_space<smem>>
    %81 = vector.broadcast %80 : f32 to vector<32x32xf32>
    %82 = arith.mulf %81, %75 : vector<32x32xf32>
    %83 = arith.addf %65, %82 : vector<32x32xf32>
    %c34 = arith.constant 34 : index
    %84 = memref.load %arg4[%c34] : memref<144xf32, #tpu.memory_space<smem>>
    %85 = vector.broadcast %84 : f32 to vector<32x32xf32>
    %86 = arith.mulf %85, %75 : vector<32x32xf32>
    %87 = arith.addf %69, %86 : vector<32x32xf32>
    %c35 = arith.constant 35 : index
    %88 = memref.load %arg4[%c35] : memref<144xf32, #tpu.memory_space<smem>>
    %89 = vector.broadcast %88 : f32 to vector<32x32xf32>
    %90 = arith.mulf %89, %75 : vector<32x32xf32>
    %91 = arith.addf %73, %90 : vector<32x32xf32>
    %c0_60 = arith.constant 0 : index
    %c1_61 = arith.constant 1 : index
    %c0_62 = arith.constant 0 : index
    %92 = vector.load %arg13[%c0_60, %c1_61, %c0_62] : memref<4x34x34xf32, #tpu.memory_space<vmem>>, vector<1x32x32xf32>
    %93 = vector.shape_cast %92 : vector<1x32x32xf32> to vector<32x32xf32>
    %c48 = arith.constant 48 : index
    %94 = memref.load %arg4[%c48] : memref<144xf32, #tpu.memory_space<smem>>
    %95 = vector.broadcast %94 : f32 to vector<32x32xf32>
    %96 = arith.mulf %95, %93 : vector<32x32xf32>
    %97 = arith.addf %79, %96 : vector<32x32xf32>
    %c49 = arith.constant 49 : index
    %98 = memref.load %arg4[%c49] : memref<144xf32, #tpu.memory_space<smem>>
    %99 = vector.broadcast %98 : f32 to vector<32x32xf32>
    %100 = arith.mulf %99, %93 : vector<32x32xf32>
    %101 = arith.addf %83, %100 : vector<32x32xf32>
    %c50 = arith.constant 50 : index
    %102 = memref.load %arg4[%c50] : memref<144xf32, #tpu.memory_space<smem>>
    %103 = vector.broadcast %102 : f32 to vector<32x32xf32>
    %104 = arith.mulf %103, %93 : vector<32x32xf32>
    %105 = arith.addf %87, %104 : vector<32x32xf32>
    %c51 = arith.constant 51 : index
    %106 = memref.load %arg4[%c51] : memref<144xf32, #tpu.memory_space<smem>>
    %107 = vector.broadcast %106 : f32 to vector<32x32xf32>
    %108 = arith.mulf %107, %93 : vector<32x32xf32>
    %109 = arith.addf %91, %108 : vector<32x32xf32>
    %c0_63 = arith.constant 0 : index
    %c1_64 = arith.constant 1 : index
    %c1_65 = arith.constant 1 : index
    %110 = vector.load %arg13[%c0_63, %c1_64, %c1_65] : memref<4x34x34xf32, #tpu.memory_space<vmem>>, vector<1x32x32xf32>
    %111 = vector.shape_cast %110 : vector<1x32x32xf32> to vector<32x32xf32>
    %c64 = arith.constant 64 : index
    %112 = memref.load %arg4[%c64] : memref<144xf32, #tpu.memory_space<smem>>
    %113 = vector.broadcast %112 : f32 to vector<32x32xf32>
    %114 = arith.mulf %113, %111 : vector<32x32xf32>
    %115 = arith.addf %97, %114 : vector<32x32xf32>
    %c65 = arith.constant 65 : index
    %116 = memref.load %arg4[%c65] : memref<144xf32, #tpu.memory_space<smem>>
    %117 = vector.broadcast %116 : f32 to vector<32x32xf32>
    %118 = arith.mulf %117, %111 : vector<32x32xf32>
    %119 = arith.addf %101, %118 : vector<32x32xf32>
    %c66 = arith.constant 66 : index
    %120 = memref.load %arg4[%c66] : memref<144xf32, #tpu.memory_space<smem>>
    %121 = vector.broadcast %120 : f32 to vector<32x32xf32>
    %122 = arith.mulf %121, %111 : vector<32x32xf32>
    %123 = arith.addf %105, %122 : vector<32x32xf32>
    %c67 = arith.constant 67 : index
    %124 = memref.load %arg4[%c67] : memref<144xf32, #tpu.memory_space<smem>>
    %125 = vector.broadcast %124 : f32 to vector<32x32xf32>
    %126 = arith.mulf %125, %111 : vector<32x32xf32>
    %127 = arith.addf %109, %126 : vector<32x32xf32>
    %c0_66 = arith.constant 0 : index
    %c1_67 = arith.constant 1 : index
    %c2_68 = arith.constant 2 : index
    %128 = vector.load %arg13[%c0_66, %c1_67, %c2_68] : memref<4x34x34xf32, #tpu.memory_space<vmem>>, vector<1x32x32xf32>
    %129 = vector.shape_cast %128 : vector<1x32x32xf32> to vector<32x32xf32>
    %c80 = arith.constant 80 : index
    %130 = memref.load %arg4[%c80] : memref<144xf32, #tpu.memory_space<smem>>
    %131 = vector.broadcast %130 : f32 to vector<32x32xf32>
    %132 = arith.mulf %131, %129 : vector<32x32xf32>
    %133 = arith.addf %115, %132 : vector<32x32xf32>
    %c81 = arith.constant 81 : index
    %134 = memref.load %arg4[%c81] : memref<144xf32, #tpu.memory_space<smem>>
    %135 = vector.broadcast %134 : f32 to vector<32x32xf32>
    %136 = arith.mulf %135, %129 : vector<32x32xf32>
    %137 = arith.addf %119, %136 : vector<32x32xf32>
    %c82 = arith.constant 82 : index
    %138 = memref.load %arg4[%c82] : memref<144xf32, #tpu.memory_space<smem>>
    %139 = vector.broadcast %138 : f32 to vector<32x32xf32>
    %140 = arith.mulf %139, %129 : vector<32x32xf32>
    %141 = arith.addf %123, %140 : vector<32x32xf32>
    %c83 = arith.constant 83 : index
    %142 = memref.load %arg4[%c83] : memref<144xf32, #tpu.memory_space<smem>>
    %143 = vector.broadcast %142 : f32 to vector<32x32xf32>
    %144 = arith.mulf %143, %129 : vector<32x32xf32>
    %145 = arith.addf %127, %144 : vector<32x32xf32>
    %c0_69 = arith.constant 0 : index
    %c2_70 = arith.constant 2 : index
    %c0_71 = arith.constant 0 : index
    %146 = vector.load %arg13[%c0_69, %c2_70, %c0_71] : memref<4x34x34xf32, #tpu.memory_space<vmem>>, vector<1x32x32xf32>
    %147 = vector.shape_cast %146 : vector<1x32x32xf32> to vector<32x32xf32>
    %c96 = arith.constant 96 : index
    %148 = memref.load %arg4[%c96] : memref<144xf32, #tpu.memory_space<smem>>
    %149 = vector.broadcast %148 : f32 to vector<32x32xf32>
    %150 = arith.mulf %149, %147 : vector<32x32xf32>
    %151 = arith.addf %133, %150 : vector<32x32xf32>
    %c97 = arith.constant 97 : index
    %152 = memref.load %arg4[%c97] : memref<144xf32, #tpu.memory_space<smem>>
    %153 = vector.broadcast %152 : f32 to vector<32x32xf32>
    %154 = arith.mulf %153, %147 : vector<32x32xf32>
    %155 = arith.addf %137, %154 : vector<32x32xf32>
    %c98 = arith.constant 98 : index
    %156 = memref.load %arg4[%c98] : memref<144xf32, #tpu.memory_space<smem>>
    %157 = vector.broadcast %156 : f32 to vector<32x32xf32>
    %158 = arith.mulf %157, %147 : vector<32x32xf32>
    %159 = arith.addf %141, %158 : vector<32x32xf32>
    %c99 = arith.constant 99 : index
    %160 = memref.load %arg4[%c99] : memref<144xf32, #tpu.memory_space<smem>>
    %161 = vector.broadcast %160 : f32 to vector<32x32xf32>
    %162 = arith.mulf %161, %147 : vector<32x32xf32>
    %163 = arith.addf %145, %162 : vector<32x32xf32>
    %c0_72 = arith.constant 0 : index
    %c2_73 = arith.constant 2 : index
    %c1_74 = arith.constant 1 : index
    %164 = vector.load %arg13[%c0_72, %c2_73, %c1_74] : memref<4x34x34xf32, #tpu.memory_space<vmem>>, vector<1x32x32xf32>
    %165 = vector.shape_cast %164 : vector<1x32x32xf32> to vector<32x32xf32>
    %c112 = arith.constant 112 : index
    %166 = memref.load %arg4[%c112] : memref<144xf32, #tpu.memory_space<smem>>
    %167 = vector.broadcast %166 : f32 to vector<32x32xf32>
    %168 = arith.mulf %167, %165 : vector<32x32xf32>
    %169 = arith.addf %151, %168 : vector<32x32xf32>
    %c113 = arith.constant 113 : index
    %170 = memref.load %arg4[%c113] : memref<144xf32, #tpu.memory_space<smem>>
    %171 = vector.broadcast %170 : f32 to vector<32x32xf32>
    %172 = arith.mulf %171, %165 : vector<32x32xf32>
    %173 = arith.addf %155, %172 : vector<32x32xf32>
    %c114 = arith.constant 114 : index
    %174 = memref.load %arg4[%c114] : memref<144xf32, #tpu.memory_space<smem>>
    %175 = vector.broadcast %174 : f32 to vector<32x32xf32>
    %176 = arith.mulf %175, %165 : vector<32x32xf32>
    %177 = arith.addf %159, %176 : vector<32x32xf32>
    %c115 = arith.constant 115 : index
    %178 = memref.load %arg4[%c115] : memref<144xf32, #tpu.memory_space<smem>>
    %179 = vector.broadcast %178 : f32 to vector<32x32xf32>
    %180 = arith.mulf %179, %165 : vector<32x32xf32>
    %181 = arith.addf %163, %180 : vector<32x32xf32>
    %c0_75 = arith.constant 0 : index
    %c2_76 = arith.constant 2 : index
    %c2_77 = arith.constant 2 : index
    %182 = vector.load %arg13[%c0_75, %c2_76, %c2_77] : memref<4x34x34xf32, #tpu.memory_space<vmem>>, vector<1x32x32xf32>
    %183 = vector.shape_cast %182 : vector<1x32x32xf32> to vector<32x32xf32>
    %c128 = arith.constant 128 : index
    %184 = memref.load %arg4[%c128] : memref<144xf32, #tpu.memory_space<smem>>
    %185 = vector.broadcast %184 : f32 to vector<32x32xf32>
    %186 = arith.mulf %185, %183 : vector<32x32xf32>
    %187 = arith.addf %169, %186 : vector<32x32xf32>
    %c129 = arith.constant 129 : index
    %188 = memref.load %arg4[%c129] : memref<144xf32, #tpu.memory_space<smem>>
    %189 = vector.broadcast %188 : f32 to vector<32x32xf32>
    %190 = arith.mulf %189, %183 : vector<32x32xf32>
    %191 = arith.addf %173, %190 : vector<32x32xf32>
    %c130 = arith.constant 130 : index
    %192 = memref.load %arg4[%c130] : memref<144xf32, #tpu.memory_space<smem>>
    %193 = vector.broadcast %192 : f32 to vector<32x32xf32>
    %194 = arith.mulf %193, %183 : vector<32x32xf32>
    %195 = arith.addf %177, %194 : vector<32x32xf32>
    %c131 = arith.constant 131 : index
    %196 = memref.load %arg4[%c131] : memref<144xf32, #tpu.memory_space<smem>>
    %197 = vector.broadcast %196 : f32 to vector<32x32xf32>
    %198 = arith.mulf %197, %183 : vector<32x32xf32>
    %199 = arith.addf %181, %198 : vector<32x32xf32>
    %c1_78 = arith.constant 1 : index
    %c0_79 = arith.constant 0 : index
    %c0_80 = arith.constant 0 : index
    %200 = vector.load %arg13[%c1_78, %c0_79, %c0_80] : memref<4x34x34xf32, #tpu.memory_space<vmem>>, vector<1x32x32xf32>
    %201 = vector.shape_cast %200 : vector<1x32x32xf32> to vector<32x32xf32>
    %c4 = arith.constant 4 : index
    %202 = memref.load %arg4[%c4] : memref<144xf32, #tpu.memory_space<smem>>
    %203 = vector.broadcast %202 : f32 to vector<32x32xf32>
    %204 = arith.mulf %203, %201 : vector<32x32xf32>
    %205 = arith.addf %187, %204 : vector<32x32xf32>
    %c5 = arith.constant 5 : index
    %206 = memref.load %arg4[%c5] : memref<144xf32, #tpu.memory_space<smem>>
    %207 = vector.broadcast %206 : f32 to vector<32x32xf32>
    %208 = arith.mulf %207, %201 : vector<32x32xf32>
    %209 = arith.addf %191, %208 : vector<32x32xf32>
    %c6 = arith.constant 6 : index
    %210 = memref.load %arg4[%c6] : memref<144xf32, #tpu.memory_space<smem>>
    %211 = vector.broadcast %210 : f32 to vector<32x32xf32>
    %212 = arith.mulf %211, %201 : vector<32x32xf32>
    %213 = arith.addf %195, %212 : vector<32x32xf32>
    %c7 = arith.constant 7 : index
    %214 = memref.load %arg4[%c7] : memref<144xf32, #tpu.memory_space<smem>>
    %215 = vector.broadcast %214 : f32 to vector<32x32xf32>
    %216 = arith.mulf %215, %201 : vector<32x32xf32>
    %217 = arith.addf %199, %216 : vector<32x32xf32>
    %c1_81 = arith.constant 1 : index
    %c0_82 = arith.constant 0 : index
    %c1_83 = arith.constant 1 : index
    %218 = vector.load %arg13[%c1_81, %c0_82, %c1_83] : memref<4x34x34xf32, #tpu.memory_space<vmem>>, vector<1x32x32xf32>
    %219 = vector.shape_cast %218 : vector<1x32x32xf32> to vector<32x32xf32>
    %c20 = arith.constant 20 : index
    %220 = memref.load %arg4[%c20] : memref<144xf32, #tpu.memory_space<smem>>
    %221 = vector.broadcast %220 : f32 to vector<32x32xf32>
    %222 = arith.mulf %221, %219 : vector<32x32xf32>
    %223 = arith.addf %205, %222 : vector<32x32xf32>
    %c21 = arith.constant 21 : index
    %224 = memref.load %arg4[%c21] : memref<144xf32, #tpu.memory_space<smem>>
    %225 = vector.broadcast %224 : f32 to vector<32x32xf32>
    %226 = arith.mulf %225, %219 : vector<32x32xf32>
    %227 = arith.addf %209, %226 : vector<32x32xf32>
    %c22 = arith.constant 22 : index
    %228 = memref.load %arg4[%c22] : memref<144xf32, #tpu.memory_space<smem>>
    %229 = vector.broadcast %228 : f32 to vector<32x32xf32>
    %230 = arith.mulf %229, %219 : vector<32x32xf32>
    %231 = arith.addf %213, %230 : vector<32x32xf32>
    %c23 = arith.constant 23 : index
    %232 = memref.load %arg4[%c23] : memref<144xf32, #tpu.memory_space<smem>>
    %233 = vector.broadcast %232 : f32 to vector<32x32xf32>
    %234 = arith.mulf %233, %219 : vector<32x32xf32>
    %235 = arith.addf %217, %234 : vector<32x32xf32>
    %c1_84 = arith.constant 1 : index
    %c0_85 = arith.constant 0 : index
    %c2_86 = arith.constant 2 : index
    %236 = vector.load %arg13[%c1_84, %c0_85, %c2_86] : memref<4x34x34xf32, #tpu.memory_space<vmem>>, vector<1x32x32xf32>
    %237 = vector.shape_cast %236 : vector<1x32x32xf32> to vector<32x32xf32>
    %c36 = arith.constant 36 : index
    %238 = memref.load %arg4[%c36] : memref<144xf32, #tpu.memory_space<smem>>
    %239 = vector.broadcast %238 : f32 to vector<32x32xf32>
    %240 = arith.mulf %239, %237 : vector<32x32xf32>
    %241 = arith.addf %223, %240 : vector<32x32xf32>
    %c37 = arith.constant 37 : index
    %242 = memref.load %arg4[%c37] : memref<144xf32, #tpu.memory_space<smem>>
    %243 = vector.broadcast %242 : f32 to vector<32x32xf32>
    %244 = arith.mulf %243, %237 : vector<32x32xf32>
    %245 = arith.addf %227, %244 : vector<32x32xf32>
    %c38 = arith.constant 38 : index
    %246 = memref.load %arg4[%c38] : memref<144xf32, #tpu.memory_space<smem>>
    %247 = vector.broadcast %246 : f32 to vector<32x32xf32>
    %248 = arith.mulf %247, %237 : vector<32x32xf32>
    %249 = arith.addf %231, %248 : vector<32x32xf32>
    %c39 = arith.constant 39 : index
    %250 = memref.load %arg4[%c39] : memref<144xf32, #tpu.memory_space<smem>>
    %251 = vector.broadcast %250 : f32 to vector<32x32xf32>
    %252 = arith.mulf %251, %237 : vector<32x32xf32>
    %253 = arith.addf %235, %252 : vector<32x32xf32>
    %c1_87 = arith.constant 1 : index
    %c1_88 = arith.constant 1 : index
    %c0_89 = arith.constant 0 : index
    %254 = vector.load %arg13[%c1_87, %c1_88, %c0_89] : memref<4x34x34xf32, #tpu.memory_space<vmem>>, vector<1x32x32xf32>
    %255 = vector.shape_cast %254 : vector<1x32x32xf32> to vector<32x32xf32>
    %c52 = arith.constant 52 : index
    %256 = memref.load %arg4[%c52] : memref<144xf32, #tpu.memory_space<smem>>
    %257 = vector.broadcast %256 : f32 to vector<32x32xf32>
    %258 = arith.mulf %257, %255 : vector<32x32xf32>
    %259 = arith.addf %241, %258 : vector<32x32xf32>
    %c53 = arith.constant 53 : index
    %260 = memref.load %arg4[%c53] : memref<144xf32, #tpu.memory_space<smem>>
    %261 = vector.broadcast %260 : f32 to vector<32x32xf32>
    %262 = arith.mulf %261, %255 : vector<32x32xf32>
    %263 = arith.addf %245, %262 : vector<32x32xf32>
    %c54 = arith.constant 54 : index
    %264 = memref.load %arg4[%c54] : memref<144xf32, #tpu.memory_space<smem>>
    %265 = vector.broadcast %264 : f32 to vector<32x32xf32>
    %266 = arith.mulf %265, %255 : vector<32x32xf32>
    %267 = arith.addf %249, %266 : vector<32x32xf32>
    %c55 = arith.constant 55 : index
    %268 = memref.load %arg4[%c55] : memref<144xf32, #tpu.memory_space<smem>>
    %269 = vector.broadcast %268 : f32 to vector<32x32xf32>
    %270 = arith.mulf %269, %255 : vector<32x32xf32>
    %271 = arith.addf %253, %270 : vector<32x32xf32>
    %c1_90 = arith.constant 1 : index
    %c1_91 = arith.constant 1 : index
    %c1_92 = arith.constant 1 : index
    %272 = vector.load %arg13[%c1_90, %c1_91, %c1_92] : memref<4x34x34xf32, #tpu.memory_space<vmem>>, vector<1x32x32xf32>
    %273 = vector.shape_cast %272 : vector<1x32x32xf32> to vector<32x32xf32>
    %c68 = arith.constant 68 : index
    %274 = memref.load %arg4[%c68] : memref<144xf32, #tpu.memory_space<smem>>
    %275 = vector.broadcast %274 : f32 to vector<32x32xf32>
    %276 = arith.mulf %275, %273 : vector<32x32xf32>
    %277 = arith.addf %259, %276 : vector<32x32xf32>
    %c69 = arith.constant 69 : index
    %278 = memref.load %arg4[%c69] : memref<144xf32, #tpu.memory_space<smem>>
    %279 = vector.broadcast %278 : f32 to vector<32x32xf32>
    %280 = arith.mulf %279, %273 : vector<32x32xf32>
    %281 = arith.addf %263, %280 : vector<32x32xf32>
    %c70 = arith.constant 70 : index
    %282 = memref.load %arg4[%c70] : memref<144xf32, #tpu.memory_space<smem>>
    %283 = vector.broadcast %282 : f32 to vector<32x32xf32>
    %284 = arith.mulf %283, %273 : vector<32x32xf32>
    %285 = arith.addf %267, %284 : vector<32x32xf32>
    %c71 = arith.constant 71 : index
    %286 = memref.load %arg4[%c71] : memref<144xf32, #tpu.memory_space<smem>>
    %287 = vector.broadcast %286 : f32 to vector<32x32xf32>
    %288 = arith.mulf %287, %273 : vector<32x32xf32>
    %289 = arith.addf %271, %288 : vector<32x32xf32>
    %c1_93 = arith.constant 1 : index
    %c1_94 = arith.constant 1 : index
    %c2_95 = arith.constant 2 : index
    %290 = vector.load %arg13[%c1_93, %c1_94, %c2_95] : memref<4x34x34xf32, #tpu.memory_space<vmem>>, vector<1x32x32xf32>
    %291 = vector.shape_cast %290 : vector<1x32x32xf32> to vector<32x32xf32>
    %c84 = arith.constant 84 : index
    %292 = memref.load %arg4[%c84] : memref<144xf32, #tpu.memory_space<smem>>
    %293 = vector.broadcast %292 : f32 to vector<32x32xf32>
    %294 = arith.mulf %293, %291 : vector<32x32xf32>
    %295 = arith.addf %277, %294 : vector<32x32xf32>
    %c85 = arith.constant 85 : index
    %296 = memref.load %arg4[%c85] : memref<144xf32, #tpu.memory_space<smem>>
    %297 = vector.broadcast %296 : f32 to vector<32x32xf32>
    %298 = arith.mulf %297, %291 : vector<32x32xf32>
    %299 = arith.addf %281, %298 : vector<32x32xf32>
    %c86 = arith.constant 86 : index
    %300 = memref.load %arg4[%c86] : memref<144xf32, #tpu.memory_space<smem>>
    %301 = vector.broadcast %300 : f32 to vector<32x32xf32>
    %302 = arith.mulf %301, %291 : vector<32x32xf32>
    %303 = arith.addf %285, %302 : vector<32x32xf32>
    %c87 = arith.constant 87 : index
    %304 = memref.load %arg4[%c87] : memref<144xf32, #tpu.memory_space<smem>>
    %305 = vector.broadcast %304 : f32 to vector<32x32xf32>
    %306 = arith.mulf %305, %291 : vector<32x32xf32>
    %307 = arith.addf %289, %306 : vector<32x32xf32>
    %c1_96 = arith.constant 1 : index
    %c2_97 = arith.constant 2 : index
    %c0_98 = arith.constant 0 : index
    %308 = vector.load %arg13[%c1_96, %c2_97, %c0_98] : memref<4x34x34xf32, #tpu.memory_space<vmem>>, vector<1x32x32xf32>
    %309 = vector.shape_cast %308 : vector<1x32x32xf32> to vector<32x32xf32>
    %c100 = arith.constant 100 : index
    %310 = memref.load %arg4[%c100] : memref<144xf32, #tpu.memory_space<smem>>
    %311 = vector.broadcast %310 : f32 to vector<32x32xf32>
    %312 = arith.mulf %311, %309 : vector<32x32xf32>
    %313 = arith.addf %295, %312 : vector<32x32xf32>
    %c101 = arith.constant 101 : index
    %314 = memref.load %arg4[%c101] : memref<144xf32, #tpu.memory_space<smem>>
    %315 = vector.broadcast %314 : f32 to vector<32x32xf32>
    %316 = arith.mulf %315, %309 : vector<32x32xf32>
    %317 = arith.addf %299, %316 : vector<32x32xf32>
    %c102 = arith.constant 102 : index
    %318 = memref.load %arg4[%c102] : memref<144xf32, #tpu.memory_space<smem>>
    %319 = vector.broadcast %318 : f32 to vector<32x32xf32>
    %320 = arith.mulf %319, %309 : vector<32x32xf32>
    %321 = arith.addf %303, %320 : vector<32x32xf32>
    %c103 = arith.constant 103 : index
    %322 = memref.load %arg4[%c103] : memref<144xf32, #tpu.memory_space<smem>>
    %323 = vector.broadcast %322 : f32 to vector<32x32xf32>
    %324 = arith.mulf %323, %309 : vector<32x32xf32>
    %325 = arith.addf %307, %324 : vector<32x32xf32>
    %c1_99 = arith.constant 1 : index
    %c2_100 = arith.constant 2 : index
    %c1_101 = arith.constant 1 : index
    %326 = vector.load %arg13[%c1_99, %c2_100, %c1_101] : memref<4x34x34xf32, #tpu.memory_space<vmem>>, vector<1x32x32xf32>
    %327 = vector.shape_cast %326 : vector<1x32x32xf32> to vector<32x32xf32>
    %c116 = arith.constant 116 : index
    %328 = memref.load %arg4[%c116] : memref<144xf32, #tpu.memory_space<smem>>
    %329 = vector.broadcast %328 : f32 to vector<32x32xf32>
    %330 = arith.mulf %329, %327 : vector<32x32xf32>
    %331 = arith.addf %313, %330 : vector<32x32xf32>
    %c117 = arith.constant 117 : index
    %332 = memref.load %arg4[%c117] : memref<144xf32, #tpu.memory_space<smem>>
    %333 = vector.broadcast %332 : f32 to vector<32x32xf32>
    %334 = arith.mulf %333, %327 : vector<32x32xf32>
    %335 = arith.addf %317, %334 : vector<32x32xf32>
    %c118 = arith.constant 118 : index
    %336 = memref.load %arg4[%c118] : memref<144xf32, #tpu.memory_space<smem>>
    %337 = vector.broadcast %336 : f32 to vector<32x32xf32>
    %338 = arith.mulf %337, %327 : vector<32x32xf32>
    %339 = arith.addf %321, %338 : vector<32x32xf32>
    %c119 = arith.constant 119 : index
    %340 = memref.load %arg4[%c119] : memref<144xf32, #tpu.memory_space<smem>>
    %341 = vector.broadcast %340 : f32 to vector<32x32xf32>
    %342 = arith.mulf %341, %327 : vector<32x32xf32>
    %343 = arith.addf %325, %342 : vector<32x32xf32>
    %c1_102 = arith.constant 1 : index
    %c2_103 = arith.constant 2 : index
    %c2_104 = arith.constant 2 : index
    %344 = vector.load %arg13[%c1_102, %c2_103, %c2_104] : memref<4x34x34xf32, #tpu.memory_space<vmem>>, vector<1x32x32xf32>
    %345 = vector.shape_cast %344 : vector<1x32x32xf32> to vector<32x32xf32>
    %c132 = arith.constant 132 : index
    %346 = memref.load %arg4[%c132] : memref<144xf32, #tpu.memory_space<smem>>
    %347 = vector.broadcast %346 : f32 to vector<32x32xf32>
    %348 = arith.mulf %347, %345 : vector<32x32xf32>
    %349 = arith.addf %331, %348 : vector<32x32xf32>
    %c133 = arith.constant 133 : index
    %350 = memref.load %arg4[%c133] : memref<144xf32, #tpu.memory_space<smem>>
    %351 = vector.broadcast %350 : f32 to vector<32x32xf32>
    %352 = arith.mulf %351, %345 : vector<32x32xf32>
    %353 = arith.addf %335, %352 : vector<32x32xf32>
    %c134 = arith.constant 134 : index
    %354 = memref.load %arg4[%c134] : memref<144xf32, #tpu.memory_space<smem>>
    %355 = vector.broadcast %354 : f32 to vector<32x32xf32>
    %356 = arith.mulf %355, %345 : vector<32x32xf32>
    %357 = arith.addf %339, %356 : vector<32x32xf32>
    %c135 = arith.constant 135 : index
    %358 = memref.load %arg4[%c135] : memref<144xf32, #tpu.memory_space<smem>>
    %359 = vector.broadcast %358 : f32 to vector<32x32xf32>
    %360 = arith.mulf %359, %345 : vector<32x32xf32>
    %361 = arith.addf %343, %360 : vector<32x32xf32>
    %c2_105 = arith.constant 2 : index
    %c0_106 = arith.constant 0 : index
    %c0_107 = arith.constant 0 : index
    %362 = vector.load %arg13[%c2_105, %c0_106, %c0_107] : memref<4x34x34xf32, #tpu.memory_space<vmem>>, vector<1x32x32xf32>
    %363 = vector.shape_cast %362 : vector<1x32x32xf32> to vector<32x32xf32>
    %c8 = arith.constant 8 : index
    %364 = memref.load %arg4[%c8] : memref<144xf32, #tpu.memory_space<smem>>
    %365 = vector.broadcast %364 : f32 to vector<32x32xf32>
    %366 = arith.mulf %365, %363 : vector<32x32xf32>
    %367 = arith.addf %349, %366 : vector<32x32xf32>
    %c9 = arith.constant 9 : index
    %368 = memref.load %arg4[%c9] : memref<144xf32, #tpu.memory_space<smem>>
    %369 = vector.broadcast %368 : f32 to vector<32x32xf32>
    %370 = arith.mulf %369, %363 : vector<32x32xf32>
    %371 = arith.addf %353, %370 : vector<32x32xf32>
    %c10 = arith.constant 10 : index
    %372 = memref.load %arg4[%c10] : memref<144xf32, #tpu.memory_space<smem>>
    %373 = vector.broadcast %372 : f32 to vector<32x32xf32>
    %374 = arith.mulf %373, %363 : vector<32x32xf32>
    %375 = arith.addf %357, %374 : vector<32x32xf32>
    %c11 = arith.constant 11 : index
    %376 = memref.load %arg4[%c11] : memref<144xf32, #tpu.memory_space<smem>>
    %377 = vector.broadcast %376 : f32 to vector<32x32xf32>
    %378 = arith.mulf %377, %363 : vector<32x32xf32>
    %379 = arith.addf %361, %378 : vector<32x32xf32>
    %c2_108 = arith.constant 2 : index
    %c0_109 = arith.constant 0 : index
    %c1_110 = arith.constant 1 : index
    %380 = vector.load %arg13[%c2_108, %c0_109, %c1_110] : memref<4x34x34xf32, #tpu.memory_space<vmem>>, vector<1x32x32xf32>
    %381 = vector.shape_cast %380 : vector<1x32x32xf32> to vector<32x32xf32>
    %c24 = arith.constant 24 : index
    %382 = memref.load %arg4[%c24] : memref<144xf32, #tpu.memory_space<smem>>
    %383 = vector.broadcast %382 : f32 to vector<32x32xf32>
    %384 = arith.mulf %383, %381 : vector<32x32xf32>
    %385 = arith.addf %367, %384 : vector<32x32xf32>
    %c25 = arith.constant 25 : index
    %386 = memref.load %arg4[%c25] : memref<144xf32, #tpu.memory_space<smem>>
    %387 = vector.broadcast %386 : f32 to vector<32x32xf32>
    %388 = arith.mulf %387, %381 : vector<32x32xf32>
    %389 = arith.addf %371, %388 : vector<32x32xf32>
    %c26 = arith.constant 26 : index
    %390 = memref.load %arg4[%c26] : memref<144xf32, #tpu.memory_space<smem>>
    %391 = vector.broadcast %390 : f32 to vector<32x32xf32>
    %392 = arith.mulf %391, %381 : vector<32x32xf32>
    %393 = arith.addf %375, %392 : vector<32x32xf32>
    %c27 = arith.constant 27 : index
    %394 = memref.load %arg4[%c27] : memref<144xf32, #tpu.memory_space<smem>>
    %395 = vector.broadcast %394 : f32 to vector<32x32xf32>
    %396 = arith.mulf %395, %381 : vector<32x32xf32>
    %397 = arith.addf %379, %396 : vector<32x32xf32>
    %c2_111 = arith.constant 2 : index
    %c0_112 = arith.constant 0 : index
    %c2_113 = arith.constant 2 : index
    %398 = vector.load %arg13[%c2_111, %c0_112, %c2_113] : memref<4x34x34xf32, #tpu.memory_space<vmem>>, vector<1x32x32xf32>
    %399 = vector.shape_cast %398 : vector<1x32x32xf32> to vector<32x32xf32>
    %c40 = arith.constant 40 : index
    %400 = memref.load %arg4[%c40] : memref<144xf32, #tpu.memory_space<smem>>
    %401 = vector.broadcast %400 : f32 to vector<32x32xf32>
    %402 = arith.mulf %401, %399 : vector<32x32xf32>
    %403 = arith.addf %385, %402 : vector<32x32xf32>
    %c41 = arith.constant 41 : index
    %404 = memref.load %arg4[%c41] : memref<144xf32, #tpu.memory_space<smem>>
    %405 = vector.broadcast %404 : f32 to vector<32x32xf32>
    %406 = arith.mulf %405, %399 : vector<32x32xf32>
    %407 = arith.addf %389, %406 : vector<32x32xf32>
    %c42 = arith.constant 42 : index
    %408 = memref.load %arg4[%c42] : memref<144xf32, #tpu.memory_space<smem>>
    %409 = vector.broadcast %408 : f32 to vector<32x32xf32>
    %410 = arith.mulf %409, %399 : vector<32x32xf32>
    %411 = arith.addf %393, %410 : vector<32x32xf32>
    %c43 = arith.constant 43 : index
    %412 = memref.load %arg4[%c43] : memref<144xf32, #tpu.memory_space<smem>>
    %413 = vector.broadcast %412 : f32 to vector<32x32xf32>
    %414 = arith.mulf %413, %399 : vector<32x32xf32>
    %415 = arith.addf %397, %414 : vector<32x32xf32>
    %c2_114 = arith.constant 2 : index
    %c1_115 = arith.constant 1 : index
    %c0_116 = arith.constant 0 : index
    %416 = vector.load %arg13[%c2_114, %c1_115, %c0_116] : memref<4x34x34xf32, #tpu.memory_space<vmem>>, vector<1x32x32xf32>
    %417 = vector.shape_cast %416 : vector<1x32x32xf32> to vector<32x32xf32>
    %c56 = arith.constant 56 : index
    %418 = memref.load %arg4[%c56] : memref<144xf32, #tpu.memory_space<smem>>
    %419 = vector.broadcast %418 : f32 to vector<32x32xf32>
    %420 = arith.mulf %419, %417 : vector<32x32xf32>
    %421 = arith.addf %403, %420 : vector<32x32xf32>
    %c57 = arith.constant 57 : index
    %422 = memref.load %arg4[%c57] : memref<144xf32, #tpu.memory_space<smem>>
    %423 = vector.broadcast %422 : f32 to vector<32x32xf32>
    %424 = arith.mulf %423, %417 : vector<32x32xf32>
    %425 = arith.addf %407, %424 : vector<32x32xf32>
    %c58 = arith.constant 58 : index
    %426 = memref.load %arg4[%c58] : memref<144xf32, #tpu.memory_space<smem>>
    %427 = vector.broadcast %426 : f32 to vector<32x32xf32>
    %428 = arith.mulf %427, %417 : vector<32x32xf32>
    %429 = arith.addf %411, %428 : vector<32x32xf32>
    %c59 = arith.constant 59 : index
    %430 = memref.load %arg4[%c59] : memref<144xf32, #tpu.memory_space<smem>>
    %431 = vector.broadcast %430 : f32 to vector<32x32xf32>
    %432 = arith.mulf %431, %417 : vector<32x32xf32>
    %433 = arith.addf %415, %432 : vector<32x32xf32>
    %c2_117 = arith.constant 2 : index
    %c1_118 = arith.constant 1 : index
    %c1_119 = arith.constant 1 : index
    %434 = vector.load %arg13[%c2_117, %c1_118, %c1_119] : memref<4x34x34xf32, #tpu.memory_space<vmem>>, vector<1x32x32xf32>
    %435 = vector.shape_cast %434 : vector<1x32x32xf32> to vector<32x32xf32>
    %c72 = arith.constant 72 : index
    %436 = memref.load %arg4[%c72] : memref<144xf32, #tpu.memory_space<smem>>
    %437 = vector.broadcast %436 : f32 to vector<32x32xf32>
    %438 = arith.mulf %437, %435 : vector<32x32xf32>
    %439 = arith.addf %421, %438 : vector<32x32xf32>
    %c73 = arith.constant 73 : index
    %440 = memref.load %arg4[%c73] : memref<144xf32, #tpu.memory_space<smem>>
    %441 = vector.broadcast %440 : f32 to vector<32x32xf32>
    %442 = arith.mulf %441, %435 : vector<32x32xf32>
    %443 = arith.addf %425, %442 : vector<32x32xf32>
    %c74 = arith.constant 74 : index
    %444 = memref.load %arg4[%c74] : memref<144xf32, #tpu.memory_space<smem>>
    %445 = vector.broadcast %444 : f32 to vector<32x32xf32>
    %446 = arith.mulf %445, %435 : vector<32x32xf32>
    %447 = arith.addf %429, %446 : vector<32x32xf32>
    %c75 = arith.constant 75 : index
    %448 = memref.load %arg4[%c75] : memref<144xf32, #tpu.memory_space<smem>>
    %449 = vector.broadcast %448 : f32 to vector<32x32xf32>
    %450 = arith.mulf %449, %435 : vector<32x32xf32>
    %451 = arith.addf %433, %450 : vector<32x32xf32>
    %c2_120 = arith.constant 2 : index
    %c1_121 = arith.constant 1 : index
    %c2_122 = arith.constant 2 : index
    %452 = vector.load %arg13[%c2_120, %c1_121, %c2_122] : memref<4x34x34xf32, #tpu.memory_space<vmem>>, vector<1x32x32xf32>
    %453 = vector.shape_cast %452 : vector<1x32x32xf32> to vector<32x32xf32>
    %c88 = arith.constant 88 : index
    %454 = memref.load %arg4[%c88] : memref<144xf32, #tpu.memory_space<smem>>
    %455 = vector.broadcast %454 : f32 to vector<32x32xf32>
    %456 = arith.mulf %455, %453 : vector<32x32xf32>
    %457 = arith.addf %439, %456 : vector<32x32xf32>
    %c89 = arith.constant 89 : index
    %458 = memref.load %arg4[%c89] : memref<144xf32, #tpu.memory_space<smem>>
    %459 = vector.broadcast %458 : f32 to vector<32x32xf32>
    %460 = arith.mulf %459, %453 : vector<32x32xf32>
    %461 = arith.addf %443, %460 : vector<32x32xf32>
    %c90 = arith.constant 90 : index
    %462 = memref.load %arg4[%c90] : memref<144xf32, #tpu.memory_space<smem>>
    %463 = vector.broadcast %462 : f32 to vector<32x32xf32>
    %464 = arith.mulf %463, %453 : vector<32x32xf32>
    %465 = arith.addf %447, %464 : vector<32x32xf32>
    %c91 = arith.constant 91 : index
    %466 = memref.load %arg4[%c91] : memref<144xf32, #tpu.memory_space<smem>>
    %467 = vector.broadcast %466 : f32 to vector<32x32xf32>
    %468 = arith.mulf %467, %453 : vector<32x32xf32>
    %469 = arith.addf %451, %468 : vector<32x32xf32>
    %c2_123 = arith.constant 2 : index
    %c2_124 = arith.constant 2 : index
    %c0_125 = arith.constant 0 : index
    %470 = vector.load %arg13[%c2_123, %c2_124, %c0_125] : memref<4x34x34xf32, #tpu.memory_space<vmem>>, vector<1x32x32xf32>
    %471 = vector.shape_cast %470 : vector<1x32x32xf32> to vector<32x32xf32>
    %c104 = arith.constant 104 : index
    %472 = memref.load %arg4[%c104] : memref<144xf32, #tpu.memory_space<smem>>
    %473 = vector.broadcast %472 : f32 to vector<32x32xf32>
    %474 = arith.mulf %473, %471 : vector<32x32xf32>
    %475 = arith.addf %457, %474 : vector<32x32xf32>
    %c105 = arith.constant 105 : index
    %476 = memref.load %arg4[%c105] : memref<144xf32, #tpu.memory_space<smem>>
    %477 = vector.broadcast %476 : f32 to vector<32x32xf32>
    %478 = arith.mulf %477, %471 : vector<32x32xf32>
    %479 = arith.addf %461, %478 : vector<32x32xf32>
    %c106 = arith.constant 106 : index
    %480 = memref.load %arg4[%c106] : memref<144xf32, #tpu.memory_space<smem>>
    %481 = vector.broadcast %480 : f32 to vector<32x32xf32>
    %482 = arith.mulf %481, %471 : vector<32x32xf32>
    %483 = arith.addf %465, %482 : vector<32x32xf32>
    %c107 = arith.constant 107 : index
    %484 = memref.load %arg4[%c107] : memref<144xf32, #tpu.memory_space<smem>>
    %485 = vector.broadcast %484 : f32 to vector<32x32xf32>
    %486 = arith.mulf %485, %471 : vector<32x32xf32>
    %487 = arith.addf %469, %486 : vector<32x32xf32>
    %c2_126 = arith.constant 2 : index
    %c2_127 = arith.constant 2 : index
    %c1_128 = arith.constant 1 : index
    %488 = vector.load %arg13[%c2_126, %c2_127, %c1_128] : memref<4x34x34xf32, #tpu.memory_space<vmem>>, vector<1x32x32xf32>
    %489 = vector.shape_cast %488 : vector<1x32x32xf32> to vector<32x32xf32>
    %c120 = arith.constant 120 : index
    %490 = memref.load %arg4[%c120] : memref<144xf32, #tpu.memory_space<smem>>
    %491 = vector.broadcast %490 : f32 to vector<32x32xf32>
    %492 = arith.mulf %491, %489 : vector<32x32xf32>
    %493 = arith.addf %475, %492 : vector<32x32xf32>
    %c121 = arith.constant 121 : index
    %494 = memref.load %arg4[%c121] : memref<144xf32, #tpu.memory_space<smem>>
    %495 = vector.broadcast %494 : f32 to vector<32x32xf32>
    %496 = arith.mulf %495, %489 : vector<32x32xf32>
    %497 = arith.addf %479, %496 : vector<32x32xf32>
    %c122 = arith.constant 122 : index
    %498 = memref.load %arg4[%c122] : memref<144xf32, #tpu.memory_space<smem>>
    %499 = vector.broadcast %498 : f32 to vector<32x32xf32>
    %500 = arith.mulf %499, %489 : vector<32x32xf32>
    %501 = arith.addf %483, %500 : vector<32x32xf32>
    %c123 = arith.constant 123 : index
    %502 = memref.load %arg4[%c123] : memref<144xf32, #tpu.memory_space<smem>>
    %503 = vector.broadcast %502 : f32 to vector<32x32xf32>
    %504 = arith.mulf %503, %489 : vector<32x32xf32>
    %505 = arith.addf %487, %504 : vector<32x32xf32>
    %c2_129 = arith.constant 2 : index
    %c2_130 = arith.constant 2 : index
    %c2_131 = arith.constant 2 : index
    %506 = vector.load %arg13[%c2_129, %c2_130, %c2_131] : memref<4x34x34xf32, #tpu.memory_space<vmem>>, vector<1x32x32xf32>
    %507 = vector.shape_cast %506 : vector<1x32x32xf32> to vector<32x32xf32>
    %c136 = arith.constant 136 : index
    %508 = memref.load %arg4[%c136] : memref<144xf32, #tpu.memory_space<smem>>
    %509 = vector.broadcast %508 : f32 to vector<32x32xf32>
    %510 = arith.mulf %509, %507 : vector<32x32xf32>
    %511 = arith.addf %493, %510 : vector<32x32xf32>
    %c137 = arith.constant 137 : index
    %512 = memref.load %arg4[%c137] : memref<144xf32, #tpu.memory_space<smem>>
    %513 = vector.broadcast %512 : f32 to vector<32x32xf32>
    %514 = arith.mulf %513, %507 : vector<32x32xf32>
    %515 = arith.addf %497, %514 : vector<32x32xf32>
    %c138 = arith.constant 138 : index
    %516 = memref.load %arg4[%c138] : memref<144xf32, #tpu.memory_space<smem>>
    %517 = vector.broadcast %516 : f32 to vector<32x32xf32>
    %518 = arith.mulf %517, %507 : vector<32x32xf32>
    %519 = arith.addf %501, %518 : vector<32x32xf32>
    %c139 = arith.constant 139 : index
    %520 = memref.load %arg4[%c139] : memref<144xf32, #tpu.memory_space<smem>>
    %521 = vector.broadcast %520 : f32 to vector<32x32xf32>
    %522 = arith.mulf %521, %507 : vector<32x32xf32>
    %523 = arith.addf %505, %522 : vector<32x32xf32>
    %c3_132 = arith.constant 3 : index
    %c0_133 = arith.constant 0 : index
    %c0_134 = arith.constant 0 : index
    %524 = vector.load %arg13[%c3_132, %c0_133, %c0_134] : memref<4x34x34xf32, #tpu.memory_space<vmem>>, vector<1x32x32xf32>
    %525 = vector.shape_cast %524 : vector<1x32x32xf32> to vector<32x32xf32>
    %c12 = arith.constant 12 : index
    %526 = memref.load %arg4[%c12] : memref<144xf32, #tpu.memory_space<smem>>
    %527 = vector.broadcast %526 : f32 to vector<32x32xf32>
    %528 = arith.mulf %527, %525 : vector<32x32xf32>
    %529 = arith.addf %511, %528 : vector<32x32xf32>
    %c13 = arith.constant 13 : index
    %530 = memref.load %arg4[%c13] : memref<144xf32, #tpu.memory_space<smem>>
    %531 = vector.broadcast %530 : f32 to vector<32x32xf32>
    %532 = arith.mulf %531, %525 : vector<32x32xf32>
    %533 = arith.addf %515, %532 : vector<32x32xf32>
    %c14 = arith.constant 14 : index
    %534 = memref.load %arg4[%c14] : memref<144xf32, #tpu.memory_space<smem>>
    %535 = vector.broadcast %534 : f32 to vector<32x32xf32>
    %536 = arith.mulf %535, %525 : vector<32x32xf32>
    %537 = arith.addf %519, %536 : vector<32x32xf32>
    %c15 = arith.constant 15 : index
    %538 = memref.load %arg4[%c15] : memref<144xf32, #tpu.memory_space<smem>>
    %539 = vector.broadcast %538 : f32 to vector<32x32xf32>
    %540 = arith.mulf %539, %525 : vector<32x32xf32>
    %541 = arith.addf %523, %540 : vector<32x32xf32>
    %c3_135 = arith.constant 3 : index
    %c0_136 = arith.constant 0 : index
    %c1_137 = arith.constant 1 : index
    %542 = vector.load %arg13[%c3_135, %c0_136, %c1_137] : memref<4x34x34xf32, #tpu.memory_space<vmem>>, vector<1x32x32xf32>
    %543 = vector.shape_cast %542 : vector<1x32x32xf32> to vector<32x32xf32>
    %c28 = arith.constant 28 : index
    %544 = memref.load %arg4[%c28] : memref<144xf32, #tpu.memory_space<smem>>
    %545 = vector.broadcast %544 : f32 to vector<32x32xf32>
    %546 = arith.mulf %545, %543 : vector<32x32xf32>
    %547 = arith.addf %529, %546 : vector<32x32xf32>
    %c29 = arith.constant 29 : index
    %548 = memref.load %arg4[%c29] : memref<144xf32, #tpu.memory_space<smem>>
    %549 = vector.broadcast %548 : f32 to vector<32x32xf32>
    %550 = arith.mulf %549, %543 : vector<32x32xf32>
    %551 = arith.addf %533, %550 : vector<32x32xf32>
    %c30 = arith.constant 30 : index
    %552 = memref.load %arg4[%c30] : memref<144xf32, #tpu.memory_space<smem>>
    %553 = vector.broadcast %552 : f32 to vector<32x32xf32>
    %554 = arith.mulf %553, %543 : vector<32x32xf32>
    %555 = arith.addf %537, %554 : vector<32x32xf32>
    %c31 = arith.constant 31 : index
    %556 = memref.load %arg4[%c31] : memref<144xf32, #tpu.memory_space<smem>>
    %557 = vector.broadcast %556 : f32 to vector<32x32xf32>
    %558 = arith.mulf %557, %543 : vector<32x32xf32>
    %559 = arith.addf %541, %558 : vector<32x32xf32>
    %c3_138 = arith.constant 3 : index
    %c0_139 = arith.constant 0 : index
    %c2_140 = arith.constant 2 : index
    %560 = vector.load %arg13[%c3_138, %c0_139, %c2_140] : memref<4x34x34xf32, #tpu.memory_space<vmem>>, vector<1x32x32xf32>
    %561 = vector.shape_cast %560 : vector<1x32x32xf32> to vector<32x32xf32>
    %c44 = arith.constant 44 : index
    %562 = memref.load %arg4[%c44] : memref<144xf32, #tpu.memory_space<smem>>
    %563 = vector.broadcast %562 : f32 to vector<32x32xf32>
    %564 = arith.mulf %563, %561 : vector<32x32xf32>
    %565 = arith.addf %547, %564 : vector<32x32xf32>
    %c45 = arith.constant 45 : index
    %566 = memref.load %arg4[%c45] : memref<144xf32, #tpu.memory_space<smem>>
    %567 = vector.broadcast %566 : f32 to vector<32x32xf32>
    %568 = arith.mulf %567, %561 : vector<32x32xf32>
    %569 = arith.addf %551, %568 : vector<32x32xf32>
    %c46 = arith.constant 46 : index
    %570 = memref.load %arg4[%c46] : memref<144xf32, #tpu.memory_space<smem>>
    %571 = vector.broadcast %570 : f32 to vector<32x32xf32>
    %572 = arith.mulf %571, %561 : vector<32x32xf32>
    %573 = arith.addf %555, %572 : vector<32x32xf32>
    %c47 = arith.constant 47 : index
    %574 = memref.load %arg4[%c47] : memref<144xf32, #tpu.memory_space<smem>>
    %575 = vector.broadcast %574 : f32 to vector<32x32xf32>
    %576 = arith.mulf %575, %561 : vector<32x32xf32>
    %577 = arith.addf %559, %576 : vector<32x32xf32>
    %c3_141 = arith.constant 3 : index
    %c1_142 = arith.constant 1 : index
    %c0_143 = arith.constant 0 : index
    %578 = vector.load %arg13[%c3_141, %c1_142, %c0_143] : memref<4x34x34xf32, #tpu.memory_space<vmem>>, vector<1x32x32xf32>
    %579 = vector.shape_cast %578 : vector<1x32x32xf32> to vector<32x32xf32>
    %c60 = arith.constant 60 : index
    %580 = memref.load %arg4[%c60] : memref<144xf32, #tpu.memory_space<smem>>
    %581 = vector.broadcast %580 : f32 to vector<32x32xf32>
    %582 = arith.mulf %581, %579 : vector<32x32xf32>
    %583 = arith.addf %565, %582 : vector<32x32xf32>
    %c61 = arith.constant 61 : index
    %584 = memref.load %arg4[%c61] : memref<144xf32, #tpu.memory_space<smem>>
    %585 = vector.broadcast %584 : f32 to vector<32x32xf32>
    %586 = arith.mulf %585, %579 : vector<32x32xf32>
    %587 = arith.addf %569, %586 : vector<32x32xf32>
    %c62 = arith.constant 62 : index
    %588 = memref.load %arg4[%c62] : memref<144xf32, #tpu.memory_space<smem>>
    %589 = vector.broadcast %588 : f32 to vector<32x32xf32>
    %590 = arith.mulf %589, %579 : vector<32x32xf32>
    %591 = arith.addf %573, %590 : vector<32x32xf32>
    %c63 = arith.constant 63 : index
    %592 = memref.load %arg4[%c63] : memref<144xf32, #tpu.memory_space<smem>>
    %593 = vector.broadcast %592 : f32 to vector<32x32xf32>
    %594 = arith.mulf %593, %579 : vector<32x32xf32>
    %595 = arith.addf %577, %594 : vector<32x32xf32>
    %c3_144 = arith.constant 3 : index
    %c1_145 = arith.constant 1 : index
    %c1_146 = arith.constant 1 : index
    %596 = vector.load %arg13[%c3_144, %c1_145, %c1_146] : memref<4x34x34xf32, #tpu.memory_space<vmem>>, vector<1x32x32xf32>
    %597 = vector.shape_cast %596 : vector<1x32x32xf32> to vector<32x32xf32>
    %c76 = arith.constant 76 : index
    %598 = memref.load %arg4[%c76] : memref<144xf32, #tpu.memory_space<smem>>
    %599 = vector.broadcast %598 : f32 to vector<32x32xf32>
    %600 = arith.mulf %599, %597 : vector<32x32xf32>
    %601 = arith.addf %583, %600 : vector<32x32xf32>
    %c77 = arith.constant 77 : index
    %602 = memref.load %arg4[%c77] : memref<144xf32, #tpu.memory_space<smem>>
    %603 = vector.broadcast %602 : f32 to vector<32x32xf32>
    %604 = arith.mulf %603, %597 : vector<32x32xf32>
    %605 = arith.addf %587, %604 : vector<32x32xf32>
    %c78 = arith.constant 78 : index
    %606 = memref.load %arg4[%c78] : memref<144xf32, #tpu.memory_space<smem>>
    %607 = vector.broadcast %606 : f32 to vector<32x32xf32>
    %608 = arith.mulf %607, %597 : vector<32x32xf32>
    %609 = arith.addf %591, %608 : vector<32x32xf32>
    %c79 = arith.constant 79 : index
    %610 = memref.load %arg4[%c79] : memref<144xf32, #tpu.memory_space<smem>>
    %611 = vector.broadcast %610 : f32 to vector<32x32xf32>
    %612 = arith.mulf %611, %597 : vector<32x32xf32>
    %613 = arith.addf %595, %612 : vector<32x32xf32>
    %c3_147 = arith.constant 3 : index
    %c1_148 = arith.constant 1 : index
    %c2_149 = arith.constant 2 : index
    %614 = vector.load %arg13[%c3_147, %c1_148, %c2_149] : memref<4x34x34xf32, #tpu.memory_space<vmem>>, vector<1x32x32xf32>
    %615 = vector.shape_cast %614 : vector<1x32x32xf32> to vector<32x32xf32>
    %c92 = arith.constant 92 : index
    %616 = memref.load %arg4[%c92] : memref<144xf32, #tpu.memory_space<smem>>
    %617 = vector.broadcast %616 : f32 to vector<32x32xf32>
    %618 = arith.mulf %617, %615 : vector<32x32xf32>
    %619 = arith.addf %601, %618 : vector<32x32xf32>
    %c93 = arith.constant 93 : index
    %620 = memref.load %arg4[%c93] : memref<144xf32, #tpu.memory_space<smem>>
    %621 = vector.broadcast %620 : f32 to vector<32x32xf32>
    %622 = arith.mulf %621, %615 : vector<32x32xf32>
    %623 = arith.addf %605, %622 : vector<32x32xf32>
    %c94 = arith.constant 94 : index
    %624 = memref.load %arg4[%c94] : memref<144xf32, #tpu.memory_space<smem>>
    %625 = vector.broadcast %624 : f32 to vector<32x32xf32>
    %626 = arith.mulf %625, %615 : vector<32x32xf32>
    %627 = arith.addf %609, %626 : vector<32x32xf32>
    %c95 = arith.constant 95 : index
    %628 = memref.load %arg4[%c95] : memref<144xf32, #tpu.memory_space<smem>>
    %629 = vector.broadcast %628 : f32 to vector<32x32xf32>
    %630 = arith.mulf %629, %615 : vector<32x32xf32>
    %631 = arith.addf %613, %630 : vector<32x32xf32>
    %c3_150 = arith.constant 3 : index
    %c2_151 = arith.constant 2 : index
    %c0_152 = arith.constant 0 : index
    %632 = vector.load %arg13[%c3_150, %c2_151, %c0_152] : memref<4x34x34xf32, #tpu.memory_space<vmem>>, vector<1x32x32xf32>
    %633 = vector.shape_cast %632 : vector<1x32x32xf32> to vector<32x32xf32>
    %c108 = arith.constant 108 : index
    %634 = memref.load %arg4[%c108] : memref<144xf32, #tpu.memory_space<smem>>
    %635 = vector.broadcast %634 : f32 to vector<32x32xf32>
    %636 = arith.mulf %635, %633 : vector<32x32xf32>
    %637 = arith.addf %619, %636 : vector<32x32xf32>
    %c109 = arith.constant 109 : index
    %638 = memref.load %arg4[%c109] : memref<144xf32, #tpu.memory_space<smem>>
    %639 = vector.broadcast %638 : f32 to vector<32x32xf32>
    %640 = arith.mulf %639, %633 : vector<32x32xf32>
    %641 = arith.addf %623, %640 : vector<32x32xf32>
    %c110 = arith.constant 110 : index
    %642 = memref.load %arg4[%c110] : memref<144xf32, #tpu.memory_space<smem>>
    %643 = vector.broadcast %642 : f32 to vector<32x32xf32>
    %644 = arith.mulf %643, %633 : vector<32x32xf32>
    %645 = arith.addf %627, %644 : vector<32x32xf32>
    %c111 = arith.constant 111 : index
    %646 = memref.load %arg4[%c111] : memref<144xf32, #tpu.memory_space<smem>>
    %647 = vector.broadcast %646 : f32 to vector<32x32xf32>
    %648 = arith.mulf %647, %633 : vector<32x32xf32>
    %649 = arith.addf %631, %648 : vector<32x32xf32>
    %c3_153 = arith.constant 3 : index
    %c2_154 = arith.constant 2 : index
    %c1_155 = arith.constant 1 : index
    %650 = vector.load %arg13[%c3_153, %c2_154, %c1_155] : memref<4x34x34xf32, #tpu.memory_space<vmem>>, vector<1x32x32xf32>
    %651 = vector.shape_cast %650 : vector<1x32x32xf32> to vector<32x32xf32>
    %c124 = arith.constant 124 : index
    %652 = memref.load %arg4[%c124] : memref<144xf32, #tpu.memory_space<smem>>
    %653 = vector.broadcast %652 : f32 to vector<32x32xf32>
    %654 = arith.mulf %653, %651 : vector<32x32xf32>
    %655 = arith.addf %637, %654 : vector<32x32xf32>
    %c125 = arith.constant 125 : index
    %656 = memref.load %arg4[%c125] : memref<144xf32, #tpu.memory_space<smem>>
    %657 = vector.broadcast %656 : f32 to vector<32x32xf32>
    %658 = arith.mulf %657, %651 : vector<32x32xf32>
    %659 = arith.addf %641, %658 : vector<32x32xf32>
    %c126 = arith.constant 126 : index
    %660 = memref.load %arg4[%c126] : memref<144xf32, #tpu.memory_space<smem>>
    %661 = vector.broadcast %660 : f32 to vector<32x32xf32>
    %662 = arith.mulf %661, %651 : vector<32x32xf32>
    %663 = arith.addf %645, %662 : vector<32x32xf32>
    %c127 = arith.constant 127 : index
    %664 = memref.load %arg4[%c127] : memref<144xf32, #tpu.memory_space<smem>>
    %665 = vector.broadcast %664 : f32 to vector<32x32xf32>
    %666 = arith.mulf %665, %651 : vector<32x32xf32>
    %667 = arith.addf %649, %666 : vector<32x32xf32>
    %c3_156 = arith.constant 3 : index
    %c2_157 = arith.constant 2 : index
    %c2_158 = arith.constant 2 : index
    %668 = vector.load %arg13[%c3_156, %c2_157, %c2_158] : memref<4x34x34xf32, #tpu.memory_space<vmem>>, vector<1x32x32xf32>
    %669 = vector.shape_cast %668 : vector<1x32x32xf32> to vector<32x32xf32>
    %c140 = arith.constant 140 : index
    %670 = memref.load %arg4[%c140] : memref<144xf32, #tpu.memory_space<smem>>
    %671 = vector.broadcast %670 : f32 to vector<32x32xf32>
    %672 = arith.mulf %671, %669 : vector<32x32xf32>
    %673 = arith.addf %655, %672 : vector<32x32xf32>
    %c141 = arith.constant 141 : index
    %674 = memref.load %arg4[%c141] : memref<144xf32, #tpu.memory_space<smem>>
    %675 = vector.broadcast %674 : f32 to vector<32x32xf32>
    %676 = arith.mulf %675, %669 : vector<32x32xf32>
    %677 = arith.addf %659, %676 : vector<32x32xf32>
    %c142 = arith.constant 142 : index
    %678 = memref.load %arg4[%c142] : memref<144xf32, #tpu.memory_space<smem>>
    %679 = vector.broadcast %678 : f32 to vector<32x32xf32>
    %680 = arith.mulf %679, %669 : vector<32x32xf32>
    %681 = arith.addf %663, %680 : vector<32x32xf32>
    %c143 = arith.constant 143 : index
    %682 = memref.load %arg4[%c143] : memref<144xf32, #tpu.memory_space<smem>>
    %683 = vector.broadcast %682 : f32 to vector<32x32xf32>
    %684 = arith.mulf %683, %669 : vector<32x32xf32>
    %685 = arith.addf %667, %684 : vector<32x32xf32>
    %c0_159 = arith.constant 0 : index
    %686 = memref.load %arg5[%c0_159] : memref<4xf32, #tpu.memory_space<smem>>
    %687 = vector.broadcast %686 : f32 to vector<32x32xf32>
    %688 = arith.mulf %673, %687 : vector<32x32xf32>
    %c0_160 = arith.constant 0 : index
    %689 = memref.load %arg6[%c0_160] : memref<4xf32, #tpu.memory_space<smem>>
    %690 = vector.broadcast %689 : f32 to vector<32x32xf32>
    %691 = arith.addf %688, %690 : vector<32x32xf32>
    %cst_161 = arith.constant 0.000000e+00 : f32
    %692 = vector.broadcast %cst_161 : f32 to vector<32x32xf32>
    %693 = arith.maximumf %691, %692 : vector<32x32xf32>
    %694 = math.absf %691 : vector<32x32xf32>
    %cst_162 = arith.constant 0.000000e+00 : f32
    %695 = vector.broadcast %cst_162 : f32 to vector<32x32xf32>
    %696 = arith.subf %695, %694 : vector<32x32xf32>
    %697 = math.exp %696 : vector<32x32xf32>
    %698 = math.log1p %697 : vector<32x32xf32>
    %699 = arith.addf %693, %698 : vector<32x32xf32>
    %700 = math.tanh %699 : vector<32x32xf32>
    %701 = arith.mulf %691, %700 : vector<32x32xf32>
    %c0_163 = arith.constant 0 : index
    %c1_164 = arith.constant 1 : index
    %c1_165 = arith.constant 1 : index
    %702 = vector.load %arg14[%c0_163, %c1_164, %c1_165] : memref<4x34x34xf32, #tpu.memory_space<vmem>>, vector<1x32x32xf32>
    %703 = vector.shape_cast %702 : vector<1x32x32xf32> to vector<32x32xf32>
    %704 = vector.shape_cast %701 : vector<32x32xf32> to vector<1x32x32xf32>
    tpu.vector_store %arg14[%c0_163, %c1_164, %c1_165], %704 {strides = array<i32>} : memref<4x34x34xf32, #tpu.memory_space<vmem>>, vector<1x32x32xf32>,
    %c1_166 = arith.constant 1 : index
    %705 = memref.load %arg5[%c1_166] : memref<4xf32, #tpu.memory_space<smem>>
    %706 = vector.broadcast %705 : f32 to vector<32x32xf32>
    %707 = arith.mulf %677, %706 : vector<32x32xf32>
    %c1_167 = arith.constant 1 : index
    %708 = memref.load %arg6[%c1_167] : memref<4xf32, #tpu.memory_space<smem>>
    %709 = vector.broadcast %708 : f32 to vector<32x32xf32>
    %710 = arith.addf %707, %709 : vector<32x32xf32>
    %cst_168 = arith.constant 0.000000e+00 : f32
    %711 = vector.broadcast %cst_168 : f32 to vector<32x32xf32>
    %712 = arith.maximumf %710, %711 : vector<32x32xf32>
    %713 = math.absf %710 : vector<32x32xf32>
    %cst_169 = arith.constant 0.000000e+00 : f32
    %714 = vector.broadcast %cst_169 : f32 to vector<32x32xf32>
    %715 = arith.subf %714, %713 : vector<32x32xf32>
    %716 = math.exp %715 : vector<32x32xf32>
    %717 = math.log1p %716 : vector<32x32xf32>
    %718 = arith.addf %712, %717 : vector<32x32xf32>
    %719 = math.tanh %718 : vector<32x32xf32>
    %720 = arith.mulf %710, %719 : vector<32x32xf32>
    %c1_170 = arith.constant 1 : index
    %c1_171 = arith.constant 1 : index
    %c1_172 = arith.constant 1 : index
    %721 = vector.load %arg14[%c1_170, %c1_171, %c1_172] : memref<4x34x34xf32, #tpu.memory_space<vmem>>, vector<1x32x32xf32>
    %722 = vector.shape_cast %721 : vector<1x32x32xf32> to vector<32x32xf32>
    %723 = vector.shape_cast %720 : vector<32x32xf32> to vector<1x32x32xf32>
    tpu.vector_store %arg14[%c1_170, %c1_171, %c1_172], %723 {strides = array<i32>} : memref<4x34x34xf32, #tpu.memory_space<vmem>>, vector<1x32x32xf32>,
    %c2_173 = arith.constant 2 : index
    %724 = memref.load %arg5[%c2_173] : memref<4xf32, #tpu.memory_space<smem>>
    %725 = vector.broadcast %724 : f32 to vector<32x32xf32>
    %726 = arith.mulf %681, %725 : vector<32x32xf32>
    %c2_174 = arith.constant 2 : index
    %727 = memref.load %arg6[%c2_174] : memref<4xf32, #tpu.memory_space<smem>>
    %728 = vector.broadcast %727 : f32 to vector<32x32xf32>
    %729 = arith.addf %726, %728 : vector<32x32xf32>
    %cst_175 = arith.constant 0.000000e+00 : f32
    %730 = vector.broadcast %cst_175 : f32 to vector<32x32xf32>
    %731 = arith.maximumf %729, %730 : vector<32x32xf32>
    %732 = math.absf %729 : vector<32x32xf32>
    %cst_176 = arith.constant 0.000000e+00 : f32
    %733 = vector.broadcast %cst_176 : f32 to vector<32x32xf32>
    %734 = arith.subf %733, %732 : vector<32x32xf32>
    %735 = math.exp %734 : vector<32x32xf32>
    %736 = math.log1p %735 : vector<32x32xf32>
    %737 = arith.addf %731, %736 : vector<32x32xf32>
    %738 = math.tanh %737 : vector<32x32xf32>
    %739 = arith.mulf %729, %738 : vector<32x32xf32>
    %c2_177 = arith.constant 2 : index
    %c1_178 = arith.constant 1 : index
    %c1_179 = arith.constant 1 : index
    %740 = vector.load %arg14[%c2_177, %c1_178, %c1_179] : memref<4x34x34xf32, #tpu.memory_space<vmem>>, vector<1x32x32xf32>
    %741 = vector.shape_cast %740 : vector<1x32x32xf32> to vector<32x32xf32>
    %742 = vector.shape_cast %739 : vector<32x32xf32> to vector<1x32x32xf32>
    tpu.vector_store %arg14[%c2_177, %c1_178, %c1_179], %742 {strides = array<i32>} : memref<4x34x34xf32, #tpu.memory_space<vmem>>, vector<1x32x32xf32>,
    %c3_180 = arith.constant 3 : index
    %743 = memref.load %arg5[%c3_180] : memref<4xf32, #tpu.memory_space<smem>>
    %744 = vector.broadcast %743 : f32 to vector<32x32xf32>
    %745 = arith.mulf %685, %744 : vector<32x32xf32>
    %c3_181 = arith.constant 3 : index
    %746 = memref.load %arg6[%c3_181] : memref<4xf32, #tpu.memory_space<smem>>
    %747 = vector.broadcast %746 : f32 to vector<32x32xf32>
    %748 = arith.addf %745, %747 : vector<32x32xf32>
    %cst_182 = arith.constant 0.000000e+00 : f32
    %749 = vector.broadcast %cst_182 : f32 to vector<32x32xf32>
    %750 = arith.maximumf %748, %749 : vector<32x32xf32>
    %751 = math.absf %748 : vector<32x32xf32>
    %cst_183 = arith.constant 0.000000e+00 : f32
    %752 = vector.broadcast %cst_183 : f32 to vector<32x32xf32>
    %753 = arith.subf %752, %751 : vector<32x32xf32>
    %754 = math.exp %753 : vector<32x32xf32>
    %755 = math.log1p %754 : vector<32x32xf32>
    %756 = arith.addf %750, %755 : vector<32x32xf32>
    %757 = math.tanh %756 : vector<32x32xf32>
    %758 = arith.mulf %748, %757 : vector<32x32xf32>
    %c3_184 = arith.constant 3 : index
    %c1_185 = arith.constant 1 : index
    %c1_186 = arith.constant 1 : index
    %759 = vector.load %arg14[%c3_184, %c1_185, %c1_186] : memref<4x34x34xf32, #tpu.memory_space<vmem>>, vector<1x32x32xf32>
    %760 = vector.shape_cast %759 : vector<1x32x32xf32> to vector<32x32xf32>
    %761 = vector.shape_cast %758 : vector<32x32xf32> to vector<1x32x32xf32>
    tpu.vector_store %arg14[%c3_184, %c1_185, %c1_186], %761 {strides = array<i32>} : memref<4x34x34xf32, #tpu.memory_space<vmem>>, vector<1x32x32xf32>,
    %cst_187 = arith.constant 0.000000e+00 : f32
    %762 = vector.broadcast %cst_187 : f32 to vector<32x32xf32>
    %cst_188 = arith.constant 0.000000e+00 : f32
    %763 = vector.broadcast %cst_188 : f32 to vector<32x32xf32>
    %cst_189 = arith.constant 0.000000e+00 : f32
    %764 = vector.broadcast %cst_189 : f32 to vector<32x32xf32>
    %cst_190 = arith.constant 0.000000e+00 : f32
    %765 = vector.broadcast %cst_190 : f32 to vector<32x32xf32>
    %c0_191 = arith.constant 0 : index
    %c0_192 = arith.constant 0 : index
    %c0_193 = arith.constant 0 : index
    %766 = vector.load %arg14[%c0_191, %c0_192, %c0_193] : memref<4x34x34xf32, #tpu.memory_space<vmem>>, vector<1x32x32xf32>
    %767 = vector.shape_cast %766 : vector<1x32x32xf32> to vector<32x32xf32>
    %c0_194 = arith.constant 0 : index
    %768 = memref.load %arg7[%c0_194] : memref<144xf32, #tpu.memory_space<smem>>
    %769 = vector.broadcast %768 : f32 to vector<32x32xf32>
    %770 = arith.mulf %769, %767 : vector<32x32xf32>
    %771 = arith.addf %762, %770 : vector<32x32xf32>
    %c1_195 = arith.constant 1 : index
    %772 = memref.load %arg7[%c1_195] : memref<144xf32, #tpu.memory_space<smem>>
    %773 = vector.broadcast %772 : f32 to vector<32x32xf32>
    %774 = arith.mulf %773, %767 : vector<32x32xf32>
    %775 = arith.addf %763, %774 : vector<32x32xf32>
    %c2_196 = arith.constant 2 : index
    %776 = memref.load %arg7[%c2_196] : memref<144xf32, #tpu.memory_space<smem>>
    %777 = vector.broadcast %776 : f32 to vector<32x32xf32>
    %778 = arith.mulf %777, %767 : vector<32x32xf32>
    %779 = arith.addf %764, %778 : vector<32x32xf32>
    %c3_197 = arith.constant 3 : index
    %780 = memref.load %arg7[%c3_197] : memref<144xf32, #tpu.memory_space<smem>>
    %781 = vector.broadcast %780 : f32 to vector<32x32xf32>
    %782 = arith.mulf %781, %767 : vector<32x32xf32>
    %783 = arith.addf %765, %782 : vector<32x32xf32>
    %c0_198 = arith.constant 0 : index
    %c0_199 = arith.constant 0 : index
    %c1_200 = arith.constant 1 : index
    %784 = vector.load %arg14[%c0_198, %c0_199, %c1_200] : memref<4x34x34xf32, #tpu.memory_space<vmem>>, vector<1x32x32xf32>
    %785 = vector.shape_cast %784 : vector<1x32x32xf32> to vector<32x32xf32>
    %c16_201 = arith.constant 16 : index
    %786 = memref.load %arg7[%c16_201] : memref<144xf32, #tpu.memory_space<smem>>
    %787 = vector.broadcast %786 : f32 to vector<32x32xf32>
    %788 = arith.mulf %787, %785 : vector<32x32xf32>
    %789 = arith.addf %771, %788 : vector<32x32xf32>
    %c17_202 = arith.constant 17 : index
    %790 = memref.load %arg7[%c17_202] : memref<144xf32, #tpu.memory_space<smem>>
    %791 = vector.broadcast %790 : f32 to vector<32x32xf32>
    %792 = arith.mulf %791, %785 : vector<32x32xf32>
    %793 = arith.addf %775, %792 : vector<32x32xf32>
    %c18_203 = arith.constant 18 : index
    %794 = memref.load %arg7[%c18_203] : memref<144xf32, #tpu.memory_space<smem>>
    %795 = vector.broadcast %794 : f32 to vector<32x32xf32>
    %796 = arith.mulf %795, %785 : vector<32x32xf32>
    %797 = arith.addf %779, %796 : vector<32x32xf32>
    %c19_204 = arith.constant 19 : index
    %798 = memref.load %arg7[%c19_204] : memref<144xf32, #tpu.memory_space<smem>>
    %799 = vector.broadcast %798 : f32 to vector<32x32xf32>
    %800 = arith.mulf %799, %785 : vector<32x32xf32>
    %801 = arith.addf %783, %800 : vector<32x32xf32>
    %c0_205 = arith.constant 0 : index
    %c0_206 = arith.constant 0 : index
    %c2_207 = arith.constant 2 : index
    %802 = vector.load %arg14[%c0_205, %c0_206, %c2_207] : memref<4x34x34xf32, #tpu.memory_space<vmem>>, vector<1x32x32xf32>
    %803 = vector.shape_cast %802 : vector<1x32x32xf32> to vector<32x32xf32>
    %c32_208 = arith.constant 32 : index
    %804 = memref.load %arg7[%c32_208] : memref<144xf32, #tpu.memory_space<smem>>
    %805 = vector.broadcast %804 : f32 to vector<32x32xf32>
    %806 = arith.mulf %805, %803 : vector<32x32xf32>
    %807 = arith.addf %789, %806 : vector<32x32xf32>
    %c33_209 = arith.constant 33 : index
    %808 = memref.load %arg7[%c33_209] : memref<144xf32, #tpu.memory_space<smem>>
    %809 = vector.broadcast %808 : f32 to vector<32x32xf32>
    %810 = arith.mulf %809, %803 : vector<32x32xf32>
    %811 = arith.addf %793, %810 : vector<32x32xf32>
    %c34_210 = arith.constant 34 : index
    %812 = memref.load %arg7[%c34_210] : memref<144xf32, #tpu.memory_space<smem>>
    %813 = vector.broadcast %812 : f32 to vector<32x32xf32>
    %814 = arith.mulf %813, %803 : vector<32x32xf32>
    %815 = arith.addf %797, %814 : vector<32x32xf32>
    %c35_211 = arith.constant 35 : index
    %816 = memref.load %arg7[%c35_211] : memref<144xf32, #tpu.memory_space<smem>>
    %817 = vector.broadcast %816 : f32 to vector<32x32xf32>
    %818 = arith.mulf %817, %803 : vector<32x32xf32>
    %819 = arith.addf %801, %818 : vector<32x32xf32>
    %c0_212 = arith.constant 0 : index
    %c1_213 = arith.constant 1 : index
    %c0_214 = arith.constant 0 : index
    %820 = vector.load %arg14[%c0_212, %c1_213, %c0_214] : memref<4x34x34xf32, #tpu.memory_space<vmem>>, vector<1x32x32xf32>
    %821 = vector.shape_cast %820 : vector<1x32x32xf32> to vector<32x32xf32>
    %c48_215 = arith.constant 48 : index
    %822 = memref.load %arg7[%c48_215] : memref<144xf32, #tpu.memory_space<smem>>
    %823 = vector.broadcast %822 : f32 to vector<32x32xf32>
    %824 = arith.mulf %823, %821 : vector<32x32xf32>
    %825 = arith.addf %807, %824 : vector<32x32xf32>
    %c49_216 = arith.constant 49 : index
    %826 = memref.load %arg7[%c49_216] : memref<144xf32, #tpu.memory_space<smem>>
    %827 = vector.broadcast %826 : f32 to vector<32x32xf32>
    %828 = arith.mulf %827, %821 : vector<32x32xf32>
    %829 = arith.addf %811, %828 : vector<32x32xf32>
    %c50_217 = arith.constant 50 : index
    %830 = memref.load %arg7[%c50_217] : memref<144xf32, #tpu.memory_space<smem>>
    %831 = vector.broadcast %830 : f32 to vector<32x32xf32>
    %832 = arith.mulf %831, %821 : vector<32x32xf32>
    %833 = arith.addf %815, %832 : vector<32x32xf32>
    %c51_218 = arith.constant 51 : index
    %834 = memref.load %arg7[%c51_218] : memref<144xf32, #tpu.memory_space<smem>>
    %835 = vector.broadcast %834 : f32 to vector<32x32xf32>
    %836 = arith.mulf %835, %821 : vector<32x32xf32>
    %837 = arith.addf %819, %836 : vector<32x32xf32>
    %c0_219 = arith.constant 0 : index
    %c1_220 = arith.constant 1 : index
    %c1_221 = arith.constant 1 : index
    %838 = vector.load %arg14[%c0_219, %c1_220, %c1_221] : memref<4x34x34xf32, #tpu.memory_space<vmem>>, vector<1x32x32xf32>
    %839 = vector.shape_cast %838 : vector<1x32x32xf32> to vector<32x32xf32>
    %c64_222 = arith.constant 64 : index
    %840 = memref.load %arg7[%c64_222] : memref<144xf32, #tpu.memory_space<smem>>
    %841 = vector.broadcast %840 : f32 to vector<32x32xf32>
    %842 = arith.mulf %841, %839 : vector<32x32xf32>
    %843 = arith.addf %825, %842 : vector<32x32xf32>
    %c65_223 = arith.constant 65 : index
    %844 = memref.load %arg7[%c65_223] : memref<144xf32, #tpu.memory_space<smem>>
    %845 = vector.broadcast %844 : f32 to vector<32x32xf32>
    %846 = arith.mulf %845, %839 : vector<32x32xf32>
    %847 = arith.addf %829, %846 : vector<32x32xf32>
    %c66_224 = arith.constant 66 : index
    %848 = memref.load %arg7[%c66_224] : memref<144xf32, #tpu.memory_space<smem>>
    %849 = vector.broadcast %848 : f32 to vector<32x32xf32>
    %850 = arith.mulf %849, %839 : vector<32x32xf32>
    %851 = arith.addf %833, %850 : vector<32x32xf32>
    %c67_225 = arith.constant 67 : index
    %852 = memref.load %arg7[%c67_225] : memref<144xf32, #tpu.memory_space<smem>>
    %853 = vector.broadcast %852 : f32 to vector<32x32xf32>
    %854 = arith.mulf %853, %839 : vector<32x32xf32>
    %855 = arith.addf %837, %854 : vector<32x32xf32>
    %c0_226 = arith.constant 0 : index
    %c1_227 = arith.constant 1 : index
    %c2_228 = arith.constant 2 : index
    %856 = vector.load %arg14[%c0_226, %c1_227, %c2_228] : memref<4x34x34xf32, #tpu.memory_space<vmem>>, vector<1x32x32xf32>
    %857 = vector.shape_cast %856 : vector<1x32x32xf32> to vector<32x32xf32>
    %c80_229 = arith.constant 80 : index
    %858 = memref.load %arg7[%c80_229] : memref<144xf32, #tpu.memory_space<smem>>
    %859 = vector.broadcast %858 : f32 to vector<32x32xf32>
    %860 = arith.mulf %859, %857 : vector<32x32xf32>
    %861 = arith.addf %843, %860 : vector<32x32xf32>
    %c81_230 = arith.constant 81 : index
    %862 = memref.load %arg7[%c81_230] : memref<144xf32, #tpu.memory_space<smem>>
    %863 = vector.broadcast %862 : f32 to vector<32x32xf32>
    %864 = arith.mulf %863, %857 : vector<32x32xf32>
    %865 = arith.addf %847, %864 : vector<32x32xf32>
    %c82_231 = arith.constant 82 : index
    %866 = memref.load %arg7[%c82_231] : memref<144xf32, #tpu.memory_space<smem>>
    %867 = vector.broadcast %866 : f32 to vector<32x32xf32>
    %868 = arith.mulf %867, %857 : vector<32x32xf32>
    %869 = arith.addf %851, %868 : vector<32x32xf32>
    %c83_232 = arith.constant 83 : index
    %870 = memref.load %arg7[%c83_232] : memref<144xf32, #tpu.memory_space<smem>>
    %871 = vector.broadcast %870 : f32 to vector<32x32xf32>
    %872 = arith.mulf %871, %857 : vector<32x32xf32>
    %873 = arith.addf %855, %872 : vector<32x32xf32>
    %c0_233 = arith.constant 0 : index
    %c2_234 = arith.constant 2 : index
    %c0_235 = arith.constant 0 : index
    %874 = vector.load %arg14[%c0_233, %c2_234, %c0_235] : memref<4x34x34xf32, #tpu.memory_space<vmem>>, vector<1x32x32xf32>
    %875 = vector.shape_cast %874 : vector<1x32x32xf32> to vector<32x32xf32>
    %c96_236 = arith.constant 96 : index
    %876 = memref.load %arg7[%c96_236] : memref<144xf32, #tpu.memory_space<smem>>
    %877 = vector.broadcast %876 : f32 to vector<32x32xf32>
    %878 = arith.mulf %877, %875 : vector<32x32xf32>
    %879 = arith.addf %861, %878 : vector<32x32xf32>
    %c97_237 = arith.constant 97 : index
    %880 = memref.load %arg7[%c97_237] : memref<144xf32, #tpu.memory_space<smem>>
    %881 = vector.broadcast %880 : f32 to vector<32x32xf32>
    %882 = arith.mulf %881, %875 : vector<32x32xf32>
    %883 = arith.addf %865, %882 : vector<32x32xf32>
    %c98_238 = arith.constant 98 : index
    %884 = memref.load %arg7[%c98_238] : memref<144xf32, #tpu.memory_space<smem>>
    %885 = vector.broadcast %884 : f32 to vector<32x32xf32>
    %886 = arith.mulf %885, %875 : vector<32x32xf32>
    %887 = arith.addf %869, %886 : vector<32x32xf32>
    %c99_239 = arith.constant 99 : index
    %888 = memref.load %arg7[%c99_239] : memref<144xf32, #tpu.memory_space<smem>>
    %889 = vector.broadcast %888 : f32 to vector<32x32xf32>
    %890 = arith.mulf %889, %875 : vector<32x32xf32>
    %891 = arith.addf %873, %890 : vector<32x32xf32>
    %c0_240 = arith.constant 0 : index
    %c2_241 = arith.constant 2 : index
    %c1_242 = arith.constant 1 : index
    %892 = vector.load %arg14[%c0_240, %c2_241, %c1_242] : memref<4x34x34xf32, #tpu.memory_space<vmem>>, vector<1x32x32xf32>
    %893 = vector.shape_cast %892 : vector<1x32x32xf32> to vector<32x32xf32>
    %c112_243 = arith.constant 112 : index
    %894 = memref.load %arg7[%c112_243] : memref<144xf32, #tpu.memory_space<smem>>
    %895 = vector.broadcast %894 : f32 to vector<32x32xf32>
    %896 = arith.mulf %895, %893 : vector<32x32xf32>
    %897 = arith.addf %879, %896 : vector<32x32xf32>
    %c113_244 = arith.constant 113 : index
    %898 = memref.load %arg7[%c113_244] : memref<144xf32, #tpu.memory_space<smem>>
    %899 = vector.broadcast %898 : f32 to vector<32x32xf32>
    %900 = arith.mulf %899, %893 : vector<32x32xf32>
    %901 = arith.addf %883, %900 : vector<32x32xf32>
    %c114_245 = arith.constant 114 : index
    %902 = memref.load %arg7[%c114_245] : memref<144xf32, #tpu.memory_space<smem>>
    %903 = vector.broadcast %902 : f32 to vector<32x32xf32>
    %904 = arith.mulf %903, %893 : vector<32x32xf32>
    %905 = arith.addf %887, %904 : vector<32x32xf32>
    %c115_246 = arith.constant 115 : index
    %906 = memref.load %arg7[%c115_246] : memref<144xf32, #tpu.memory_space<smem>>
    %907 = vector.broadcast %906 : f32 to vector<32x32xf32>
    %908 = arith.mulf %907, %893 : vector<32x32xf32>
    %909 = arith.addf %891, %908 : vector<32x32xf32>
    %c0_247 = arith.constant 0 : index
    %c2_248 = arith.constant 2 : index
    %c2_249 = arith.constant 2 : index
    %910 = vector.load %arg14[%c0_247, %c2_248, %c2_249] : memref<4x34x34xf32, #tpu.memory_space<vmem>>, vector<1x32x32xf32>
    %911 = vector.shape_cast %910 : vector<1x32x32xf32> to vector<32x32xf32>
    %c128_250 = arith.constant 128 : index
    %912 = memref.load %arg7[%c128_250] : memref<144xf32, #tpu.memory_space<smem>>
    %913 = vector.broadcast %912 : f32 to vector<32x32xf32>
    %914 = arith.mulf %913, %911 : vector<32x32xf32>
    %915 = arith.addf %897, %914 : vector<32x32xf32>
    %c129_251 = arith.constant 129 : index
    %916 = memref.load %arg7[%c129_251] : memref<144xf32, #tpu.memory_space<smem>>
    %917 = vector.broadcast %916 : f32 to vector<32x32xf32>
    %918 = arith.mulf %917, %911 : vector<32x32xf32>
    %919 = arith.addf %901, %918 : vector<32x32xf32>
    %c130_252 = arith.constant 130 : index
    %920 = memref.load %arg7[%c130_252] : memref<144xf32, #tpu.memory_space<smem>>
    %921 = vector.broadcast %920 : f32 to vector<32x32xf32>
    %922 = arith.mulf %921, %911 : vector<32x32xf32>
    %923 = arith.addf %905, %922 : vector<32x32xf32>
    %c131_253 = arith.constant 131 : index
    %924 = memref.load %arg7[%c131_253] : memref<144xf32, #tpu.memory_space<smem>>
    %925 = vector.broadcast %924 : f32 to vector<32x32xf32>
    %926 = arith.mulf %925, %911 : vector<32x32xf32>
    %927 = arith.addf %909, %926 : vector<32x32xf32>
    %c1_254 = arith.constant 1 : index
    %c0_255 = arith.constant 0 : index
    %c0_256 = arith.constant 0 : index
    %928 = vector.load %arg14[%c1_254, %c0_255, %c0_256] : memref<4x34x34xf32, #tpu.memory_space<vmem>>, vector<1x32x32xf32>
    %929 = vector.shape_cast %928 : vector<1x32x32xf32> to vector<32x32xf32>
    %c4_257 = arith.constant 4 : index
    %930 = memref.load %arg7[%c4_257] : memref<144xf32, #tpu.memory_space<smem>>
    %931 = vector.broadcast %930 : f32 to vector<32x32xf32>
    %932 = arith.mulf %931, %929 : vector<32x32xf32>
    %933 = arith.addf %915, %932 : vector<32x32xf32>
    %c5_258 = arith.constant 5 : index
    %934 = memref.load %arg7[%c5_258] : memref<144xf32, #tpu.memory_space<smem>>
    %935 = vector.broadcast %934 : f32 to vector<32x32xf32>
    %936 = arith.mulf %935, %929 : vector<32x32xf32>
    %937 = arith.addf %919, %936 : vector<32x32xf32>
    %c6_259 = arith.constant 6 : index
    %938 = memref.load %arg7[%c6_259] : memref<144xf32, #tpu.memory_space<smem>>
    %939 = vector.broadcast %938 : f32 to vector<32x32xf32>
    %940 = arith.mulf %939, %929 : vector<32x32xf32>
    %941 = arith.addf %923, %940 : vector<32x32xf32>
    %c7_260 = arith.constant 7 : index
    %942 = memref.load %arg7[%c7_260] : memref<144xf32, #tpu.memory_space<smem>>
    %943 = vector.broadcast %942 : f32 to vector<32x32xf32>
    %944 = arith.mulf %943, %929 : vector<32x32xf32>
    %945 = arith.addf %927, %944 : vector<32x32xf32>
    %c1_261 = arith.constant 1 : index
    %c0_262 = arith.constant 0 : index
    %c1_263 = arith.constant 1 : index
    %946 = vector.load %arg14[%c1_261, %c0_262, %c1_263] : memref<4x34x34xf32, #tpu.memory_space<vmem>>, vector<1x32x32xf32>
    %947 = vector.shape_cast %946 : vector<1x32x32xf32> to vector<32x32xf32>
    %c20_264 = arith.constant 20 : index
    %948 = memref.load %arg7[%c20_264] : memref<144xf32, #tpu.memory_space<smem>>
    %949 = vector.broadcast %948 : f32 to vector<32x32xf32>
    %950 = arith.mulf %949, %947 : vector<32x32xf32>
    %951 = arith.addf %933, %950 : vector<32x32xf32>
    %c21_265 = arith.constant 21 : index
    %952 = memref.load %arg7[%c21_265] : memref<144xf32, #tpu.memory_space<smem>>
    %953 = vector.broadcast %952 : f32 to vector<32x32xf32>
    %954 = arith.mulf %953, %947 : vector<32x32xf32>
    %955 = arith.addf %937, %954 : vector<32x32xf32>
    %c22_266 = arith.constant 22 : index
    %956 = memref.load %arg7[%c22_266] : memref<144xf32, #tpu.memory_space<smem>>
    %957 = vector.broadcast %956 : f32 to vector<32x32xf32>
    %958 = arith.mulf %957, %947 : vector<32x32xf32>
    %959 = arith.addf %941, %958 : vector<32x32xf32>
    %c23_267 = arith.constant 23 : index
    %960 = memref.load %arg7[%c23_267] : memref<144xf32, #tpu.memory_space<smem>>
    %961 = vector.broadcast %960 : f32 to vector<32x32xf32>
    %962 = arith.mulf %961, %947 : vector<32x32xf32>
    %963 = arith.addf %945, %962 : vector<32x32xf32>
    %c1_268 = arith.constant 1 : index
    %c0_269 = arith.constant 0 : index
    %c2_270 = arith.constant 2 : index
    %964 = vector.load %arg14[%c1_268, %c0_269, %c2_270] : memref<4x34x34xf32, #tpu.memory_space<vmem>>, vector<1x32x32xf32>
    %965 = vector.shape_cast %964 : vector<1x32x32xf32> to vector<32x32xf32>
    %c36_271 = arith.constant 36 : index
    %966 = memref.load %arg7[%c36_271] : memref<144xf32, #tpu.memory_space<smem>>
    %967 = vector.broadcast %966 : f32 to vector<32x32xf32>
    %968 = arith.mulf %967, %965 : vector<32x32xf32>
    %969 = arith.addf %951, %968 : vector<32x32xf32>
    %c37_272 = arith.constant 37 : index
    %970 = memref.load %arg7[%c37_272] : memref<144xf32, #tpu.memory_space<smem>>
    %971 = vector.broadcast %970 : f32 to vector<32x32xf32>
    %972 = arith.mulf %971, %965 : vector<32x32xf32>
    %973 = arith.addf %955, %972 : vector<32x32xf32>
    %c38_273 = arith.constant 38 : index
    %974 = memref.load %arg7[%c38_273] : memref<144xf32, #tpu.memory_space<smem>>
    %975 = vector.broadcast %974 : f32 to vector<32x32xf32>
    %976 = arith.mulf %975, %965 : vector<32x32xf32>
    %977 = arith.addf %959, %976 : vector<32x32xf32>
    %c39_274 = arith.constant 39 : index
    %978 = memref.load %arg7[%c39_274] : memref<144xf32, #tpu.memory_space<smem>>
    %979 = vector.broadcast %978 : f32 to vector<32x32xf32>
    %980 = arith.mulf %979, %965 : vector<32x32xf32>
    %981 = arith.addf %963, %980 : vector<32x32xf32>
    %c1_275 = arith.constant 1 : index
    %c1_276 = arith.constant 1 : index
    %c0_277 = arith.constant 0 : index
    %982 = vector.load %arg14[%c1_275, %c1_276, %c0_277] : memref<4x34x34xf32, #tpu.memory_space<vmem>>, vector<1x32x32xf32>
    %983 = vector.shape_cast %982 : vector<1x32x32xf32> to vector<32x32xf32>
    %c52_278 = arith.constant 52 : index
    %984 = memref.load %arg7[%c52_278] : memref<144xf32, #tpu.memory_space<smem>>
    %985 = vector.broadcast %984 : f32 to vector<32x32xf32>
    %986 = arith.mulf %985, %983 : vector<32x32xf32>
    %987 = arith.addf %969, %986 : vector<32x32xf32>
    %c53_279 = arith.constant 53 : index
    %988 = memref.load %arg7[%c53_279] : memref<144xf32, #tpu.memory_space<smem>>
    %989 = vector.broadcast %988 : f32 to vector<32x32xf32>
    %990 = arith.mulf %989, %983 : vector<32x32xf32>
    %991 = arith.addf %973, %990 : vector<32x32xf32>
    %c54_280 = arith.constant 54 : index
    %992 = memref.load %arg7[%c54_280] : memref<144xf32, #tpu.memory_space<smem>>
    %993 = vector.broadcast %992 : f32 to vector<32x32xf32>
    %994 = arith.mulf %993, %983 : vector<32x32xf32>
    %995 = arith.addf %977, %994 : vector<32x32xf32>
    %c55_281 = arith.constant 55 : index
    %996 = memref.load %arg7[%c55_281] : memref<144xf32, #tpu.memory_space<smem>>
    %997 = vector.broadcast %996 : f32 to vector<32x32xf32>
    %998 = arith.mulf %997, %983 : vector<32x32xf32>
    %999 = arith.addf %981, %998 : vector<32x32xf32>
    %c1_282 = arith.constant 1 : index
    %c1_283 = arith.constant 1 : index
    %c1_284 = arith.constant 1 : index
    %1000 = vector.load %arg14[%c1_282, %c1_283, %c1_284] : memref<4x34x34xf32, #tpu.memory_space<vmem>>, vector<1x32x32xf32>
    %1001 = vector.shape_cast %1000 : vector<1x32x32xf32> to vector<32x32xf32>
    %c68_285 = arith.constant 68 : index
    %1002 = memref.load %arg7[%c68_285] : memref<144xf32, #tpu.memory_space<smem>>
    %1003 = vector.broadcast %1002 : f32 to vector<32x32xf32>
    %1004 = arith.mulf %1003, %1001 : vector<32x32xf32>
    %1005 = arith.addf %987, %1004 : vector<32x32xf32>
    %c69_286 = arith.constant 69 : index
    %1006 = memref.load %arg7[%c69_286] : memref<144xf32, #tpu.memory_space<smem>>
    %1007 = vector.broadcast %1006 : f32 to vector<32x32xf32>
    %1008 = arith.mulf %1007, %1001 : vector<32x32xf32>
    %1009 = arith.addf %991, %1008 : vector<32x32xf32>
    %c70_287 = arith.constant 70 : index
    %1010 = memref.load %arg7[%c70_287] : memref<144xf32, #tpu.memory_space<smem>>
    %1011 = vector.broadcast %1010 : f32 to vector<32x32xf32>
    %1012 = arith.mulf %1011, %1001 : vector<32x32xf32>
    %1013 = arith.addf %995, %1012 : vector<32x32xf32>
    %c71_288 = arith.constant 71 : index
    %1014 = memref.load %arg7[%c71_288] : memref<144xf32, #tpu.memory_space<smem>>
    %1015 = vector.broadcast %1014 : f32 to vector<32x32xf32>
    %1016 = arith.mulf %1015, %1001 : vector<32x32xf32>
    %1017 = arith.addf %999, %1016 : vector<32x32xf32>
    %c1_289 = arith.constant 1 : index
    %c1_290 = arith.constant 1 : index
    %c2_291 = arith.constant 2 : index
    %1018 = vector.load %arg14[%c1_289, %c1_290, %c2_291] : memref<4x34x34xf32, #tpu.memory_space<vmem>>, vector<1x32x32xf32>
    %1019 = vector.shape_cast %1018 : vector<1x32x32xf32> to vector<32x32xf32>
    %c84_292 = arith.constant 84 : index
    %1020 = memref.load %arg7[%c84_292] : memref<144xf32, #tpu.memory_space<smem>>
    %1021 = vector.broadcast %1020 : f32 to vector<32x32xf32>
    %1022 = arith.mulf %1021, %1019 : vector<32x32xf32>
    %1023 = arith.addf %1005, %1022 : vector<32x32xf32>
    %c85_293 = arith.constant 85 : index
    %1024 = memref.load %arg7[%c85_293] : memref<144xf32, #tpu.memory_space<smem>>
    %1025 = vector.broadcast %1024 : f32 to vector<32x32xf32>
    %1026 = arith.mulf %1025, %1019 : vector<32x32xf32>
    %1027 = arith.addf %1009, %1026 : vector<32x32xf32>
    %c86_294 = arith.constant 86 : index
    %1028 = memref.load %arg7[%c86_294] : memref<144xf32, #tpu.memory_space<smem>>
    %1029 = vector.broadcast %1028 : f32 to vector<32x32xf32>
    %1030 = arith.mulf %1029, %1019 : vector<32x32xf32>
    %1031 = arith.addf %1013, %1030 : vector<32x32xf32>
    %c87_295 = arith.constant 87 : index
    %1032 = memref.load %arg7[%c87_295] : memref<144xf32, #tpu.memory_space<smem>>
    %1033 = vector.broadcast %1032 : f32 to vector<32x32xf32>
    %1034 = arith.mulf %1033, %1019 : vector<32x32xf32>
    %1035 = arith.addf %1017, %1034 : vector<32x32xf32>
    %c1_296 = arith.constant 1 : index
    %c2_297 = arith.constant 2 : index
    %c0_298 = arith.constant 0 : index
    %1036 = vector.load %arg14[%c1_296, %c2_297, %c0_298] : memref<4x34x34xf32, #tpu.memory_space<vmem>>, vector<1x32x32xf32>
    %1037 = vector.shape_cast %1036 : vector<1x32x32xf32> to vector<32x32xf32>
    %c100_299 = arith.constant 100 : index
    %1038 = memref.load %arg7[%c100_299] : memref<144xf32, #tpu.memory_space<smem>>
    %1039 = vector.broadcast %1038 : f32 to vector<32x32xf32>
    %1040 = arith.mulf %1039, %1037 : vector<32x32xf32>
    %1041 = arith.addf %1023, %1040 : vector<32x32xf32>
    %c101_300 = arith.constant 101 : index
    %1042 = memref.load %arg7[%c101_300] : memref<144xf32, #tpu.memory_space<smem>>
    %1043 = vector.broadcast %1042 : f32 to vector<32x32xf32>
    %1044 = arith.mulf %1043, %1037 : vector<32x32xf32>
    %1045 = arith.addf %1027, %1044 : vector<32x32xf32>
    %c102_301 = arith.constant 102 : index
    %1046 = memref.load %arg7[%c102_301] : memref<144xf32, #tpu.memory_space<smem>>
    %1047 = vector.broadcast %1046 : f32 to vector<32x32xf32>
    %1048 = arith.mulf %1047, %1037 : vector<32x32xf32>
    %1049 = arith.addf %1031, %1048 : vector<32x32xf32>
    %c103_302 = arith.constant 103 : index
    %1050 = memref.load %arg7[%c103_302] : memref<144xf32, #tpu.memory_space<smem>>
    %1051 = vector.broadcast %1050 : f32 to vector<32x32xf32>
    %1052 = arith.mulf %1051, %1037 : vector<32x32xf32>
    %1053 = arith.addf %1035, %1052 : vector<32x32xf32>
    %c1_303 = arith.constant 1 : index
    %c2_304 = arith.constant 2 : index
    %c1_305 = arith.constant 1 : index
    %1054 = vector.load %arg14[%c1_303, %c2_304, %c1_305] : memref<4x34x34xf32, #tpu.memory_space<vmem>>, vector<1x32x32xf32>
    %1055 = vector.shape_cast %1054 : vector<1x32x32xf32> to vector<32x32xf32>
    %c116_306 = arith.constant 116 : index
    %1056 = memref.load %arg7[%c116_306] : memref<144xf32, #tpu.memory_space<smem>>
    %1057 = vector.broadcast %1056 : f32 to vector<32x32xf32>
    %1058 = arith.mulf %1057, %1055 : vector<32x32xf32>
    %1059 = arith.addf %1041, %1058 : vector<32x32xf32>
    %c117_307 = arith.constant 117 : index
    %1060 = memref.load %arg7[%c117_307] : memref<144xf32, #tpu.memory_space<smem>>
    %1061 = vector.broadcast %1060 : f32 to vector<32x32xf32>
    %1062 = arith.mulf %1061, %1055 : vector<32x32xf32>
    %1063 = arith.addf %1045, %1062 : vector<32x32xf32>
    %c118_308 = arith.constant 118 : index
    %1064 = memref.load %arg7[%c118_308] : memref<144xf32, #tpu.memory_space<smem>>
    %1065 = vector.broadcast %1064 : f32 to vector<32x32xf32>
    %1066 = arith.mulf %1065, %1055 : vector<32x32xf32>
    %1067 = arith.addf %1049, %1066 : vector<32x32xf32>
    %c119_309 = arith.constant 119 : index
    %1068 = memref.load %arg7[%c119_309] : memref<144xf32, #tpu.memory_space<smem>>
    %1069 = vector.broadcast %1068 : f32 to vector<32x32xf32>
    %1070 = arith.mulf %1069, %1055 : vector<32x32xf32>
    %1071 = arith.addf %1053, %1070 : vector<32x32xf32>
    %c1_310 = arith.constant 1 : index
    %c2_311 = arith.constant 2 : index
    %c2_312 = arith.constant 2 : index
    %1072 = vector.load %arg14[%c1_310, %c2_311, %c2_312] : memref<4x34x34xf32, #tpu.memory_space<vmem>>, vector<1x32x32xf32>
    %1073 = vector.shape_cast %1072 : vector<1x32x32xf32> to vector<32x32xf32>
    %c132_313 = arith.constant 132 : index
    %1074 = memref.load %arg7[%c132_313] : memref<144xf32, #tpu.memory_space<smem>>
    %1075 = vector.broadcast %1074 : f32 to vector<32x32xf32>
    %1076 = arith.mulf %1075, %1073 : vector<32x32xf32>
    %1077 = arith.addf %1059, %1076 : vector<32x32xf32>
    %c133_314 = arith.constant 133 : index
    %1078 = memref.load %arg7[%c133_314] : memref<144xf32, #tpu.memory_space<smem>>
    %1079 = vector.broadcast %1078 : f32 to vector<32x32xf32>
    %1080 = arith.mulf %1079, %1073 : vector<32x32xf32>
    %1081 = arith.addf %1063, %1080 : vector<32x32xf32>
    %c134_315 = arith.constant 134 : index
    %1082 = memref.load %arg7[%c134_315] : memref<144xf32, #tpu.memory_space<smem>>
    %1083 = vector.broadcast %1082 : f32 to vector<32x32xf32>
    %1084 = arith.mulf %1083, %1073 : vector<32x32xf32>
    %1085 = arith.addf %1067, %1084 : vector<32x32xf32>
    %c135_316 = arith.constant 135 : index
    %1086 = memref.load %arg7[%c135_316] : memref<144xf32, #tpu.memory_space<smem>>
    %1087 = vector.broadcast %1086 : f32 to vector<32x32xf32>
    %1088 = arith.mulf %1087, %1073 : vector<32x32xf32>
    %1089 = arith.addf %1071, %1088 : vector<32x32xf32>
    %c2_317 = arith.constant 2 : index
    %c0_318 = arith.constant 0 : index
    %c0_319 = arith.constant 0 : index
    %1090 = vector.load %arg14[%c2_317, %c0_318, %c0_319] : memref<4x34x34xf32, #tpu.memory_space<vmem>>, vector<1x32x32xf32>
    %1091 = vector.shape_cast %1090 : vector<1x32x32xf32> to vector<32x32xf32>
    %c8_320 = arith.constant 8 : index
    %1092 = memref.load %arg7[%c8_320] : memref<144xf32, #tpu.memory_space<smem>>
    %1093 = vector.broadcast %1092 : f32 to vector<32x32xf32>
    %1094 = arith.mulf %1093, %1091 : vector<32x32xf32>
    %1095 = arith.addf %1077, %1094 : vector<32x32xf32>
    %c9_321 = arith.constant 9 : index
    %1096 = memref.load %arg7[%c9_321] : memref<144xf32, #tpu.memory_space<smem>>
    %1097 = vector.broadcast %1096 : f32 to vector<32x32xf32>
    %1098 = arith.mulf %1097, %1091 : vector<32x32xf32>
    %1099 = arith.addf %1081, %1098 : vector<32x32xf32>
    %c10_322 = arith.constant 10 : index
    %1100 = memref.load %arg7[%c10_322] : memref<144xf32, #tpu.memory_space<smem>>
    %1101 = vector.broadcast %1100 : f32 to vector<32x32xf32>
    %1102 = arith.mulf %1101, %1091 : vector<32x32xf32>
    %1103 = arith.addf %1085, %1102 : vector<32x32xf32>
    %c11_323 = arith.constant 11 : index
    %1104 = memref.load %arg7[%c11_323] : memref<144xf32, #tpu.memory_space<smem>>
    %1105 = vector.broadcast %1104 : f32 to vector<32x32xf32>
    %1106 = arith.mulf %1105, %1091 : vector<32x32xf32>
    %1107 = arith.addf %1089, %1106 : vector<32x32xf32>
    %c2_324 = arith.constant 2 : index
    %c0_325 = arith.constant 0 : index
    %c1_326 = arith.constant 1 : index
    %1108 = vector.load %arg14[%c2_324, %c0_325, %c1_326] : memref<4x34x34xf32, #tpu.memory_space<vmem>>, vector<1x32x32xf32>
    %1109 = vector.shape_cast %1108 : vector<1x32x32xf32> to vector<32x32xf32>
    %c24_327 = arith.constant 24 : index
    %1110 = memref.load %arg7[%c24_327] : memref<144xf32, #tpu.memory_space<smem>>
    %1111 = vector.broadcast %1110 : f32 to vector<32x32xf32>
    %1112 = arith.mulf %1111, %1109 : vector<32x32xf32>
    %1113 = arith.addf %1095, %1112 : vector<32x32xf32>
    %c25_328 = arith.constant 25 : index
    %1114 = memref.load %arg7[%c25_328] : memref<144xf32, #tpu.memory_space<smem>>
    %1115 = vector.broadcast %1114 : f32 to vector<32x32xf32>
    %1116 = arith.mulf %1115, %1109 : vector<32x32xf32>
    %1117 = arith.addf %1099, %1116 : vector<32x32xf32>
    %c26_329 = arith.constant 26 : index
    %1118 = memref.load %arg7[%c26_329] : memref<144xf32, #tpu.memory_space<smem>>
    %1119 = vector.broadcast %1118 : f32 to vector<32x32xf32>
    %1120 = arith.mulf %1119, %1109 : vector<32x32xf32>
    %1121 = arith.addf %1103, %1120 : vector<32x32xf32>
    %c27_330 = arith.constant 27 : index
    %1122 = memref.load %arg7[%c27_330] : memref<144xf32, #tpu.memory_space<smem>>
    %1123 = vector.broadcast %1122 : f32 to vector<32x32xf32>
    %1124 = arith.mulf %1123, %1109 : vector<32x32xf32>
    %1125 = arith.addf %1107, %1124 : vector<32x32xf32>
    %c2_331 = arith.constant 2 : index
    %c0_332 = arith.constant 0 : index
    %c2_333 = arith.constant 2 : index
    %1126 = vector.load %arg14[%c2_331, %c0_332, %c2_333] : memref<4x34x34xf32, #tpu.memory_space<vmem>>, vector<1x32x32xf32>
    %1127 = vector.shape_cast %1126 : vector<1x32x32xf32> to vector<32x32xf32>
    %c40_334 = arith.constant 40 : index
    %1128 = memref.load %arg7[%c40_334] : memref<144xf32, #tpu.memory_space<smem>>
    %1129 = vector.broadcast %1128 : f32 to vector<32x32xf32>
    %1130 = arith.mulf %1129, %1127 : vector<32x32xf32>
    %1131 = arith.addf %1113, %1130 : vector<32x32xf32>
    %c41_335 = arith.constant 41 : index
    %1132 = memref.load %arg7[%c41_335] : memref<144xf32, #tpu.memory_space<smem>>
    %1133 = vector.broadcast %1132 : f32 to vector<32x32xf32>
    %1134 = arith.mulf %1133, %1127 : vector<32x32xf32>
    %1135 = arith.addf %1117, %1134 : vector<32x32xf32>
    %c42_336 = arith.constant 42 : index
    %1136 = memref.load %arg7[%c42_336] : memref<144xf32, #tpu.memory_space<smem>>
    %1137 = vector.broadcast %1136 : f32 to vector<32x32xf32>
    %1138 = arith.mulf %1137, %1127 : vector<32x32xf32>
    %1139 = arith.addf %1121, %1138 : vector<32x32xf32>
    %c43_337 = arith.constant 43 : index
    %1140 = memref.load %arg7[%c43_337] : memref<144xf32, #tpu.memory_space<smem>>
    %1141 = vector.broadcast %1140 : f32 to vector<32x32xf32>
    %1142 = arith.mulf %1141, %1127 : vector<32x32xf32>
    %1143 = arith.addf %1125, %1142 : vector<32x32xf32>
    %c2_338 = arith.constant 2 : index
    %c1_339 = arith.constant 1 : index
    %c0_340 = arith.constant 0 : index
    %1144 = vector.load %arg14[%c2_338, %c1_339, %c0_340] : memref<4x34x34xf32, #tpu.memory_space<vmem>>, vector<1x32x32xf32>
    %1145 = vector.shape_cast %1144 : vector<1x32x32xf32> to vector<32x32xf32>
    %c56_341 = arith.constant 56 : index
    %1146 = memref.load %arg7[%c56_341] : memref<144xf32, #tpu.memory_space<smem>>
    %1147 = vector.broadcast %1146 : f32 to vector<32x32xf32>
    %1148 = arith.mulf %1147, %1145 : vector<32x32xf32>
    %1149 = arith.addf %1131, %1148 : vector<32x32xf32>
    %c57_342 = arith.constant 57 : index
    %1150 = memref.load %arg7[%c57_342] : memref<144xf32, #tpu.memory_space<smem>>
    %1151 = vector.broadcast %1150 : f32 to vector<32x32xf32>
    %1152 = arith.mulf %1151, %1145 : vector<32x32xf32>
    %1153 = arith.addf %1135, %1152 : vector<32x32xf32>
    %c58_343 = arith.constant 58 : index
    %1154 = memref.load %arg7[%c58_343] : memref<144xf32, #tpu.memory_space<smem>>
    %1155 = vector.broadcast %1154 : f32 to vector<32x32xf32>
    %1156 = arith.mulf %1155, %1145 : vector<32x32xf32>
    %1157 = arith.addf %1139, %1156 : vector<32x32xf32>
    %c59_344 = arith.constant 59 : index
    %1158 = memref.load %arg7[%c59_344] : memref<144xf32, #tpu.memory_space<smem>>
    %1159 = vector.broadcast %1158 : f32 to vector<32x32xf32>
    %1160 = arith.mulf %1159, %1145 : vector<32x32xf32>
    %1161 = arith.addf %1143, %1160 : vector<32x32xf32>
    %c2_345 = arith.constant 2 : index
    %c1_346 = arith.constant 1 : index
    %c1_347 = arith.constant 1 : index
    %1162 = vector.load %arg14[%c2_345, %c1_346, %c1_347] : memref<4x34x34xf32, #tpu.memory_space<vmem>>, vector<1x32x32xf32>
    %1163 = vector.shape_cast %1162 : vector<1x32x32xf32> to vector<32x32xf32>
    %c72_348 = arith.constant 72 : index
    %1164 = memref.load %arg7[%c72_348] : memref<144xf32, #tpu.memory_space<smem>>
    %1165 = vector.broadcast %1164 : f32 to vector<32x32xf32>
    %1166 = arith.mulf %1165, %1163 : vector<32x32xf32>
    %1167 = arith.addf %1149, %1166 : vector<32x32xf32>
    %c73_349 = arith.constant 73 : index
    %1168 = memref.load %arg7[%c73_349] : memref<144xf32, #tpu.memory_space<smem>>
    %1169 = vector.broadcast %1168 : f32 to vector<32x32xf32>
    %1170 = arith.mulf %1169, %1163 : vector<32x32xf32>
    %1171 = arith.addf %1153, %1170 : vector<32x32xf32>
    %c74_350 = arith.constant 74 : index
    %1172 = memref.load %arg7[%c74_350] : memref<144xf32, #tpu.memory_space<smem>>
    %1173 = vector.broadcast %1172 : f32 to vector<32x32xf32>
    %1174 = arith.mulf %1173, %1163 : vector<32x32xf32>
    %1175 = arith.addf %1157, %1174 : vector<32x32xf32>
    %c75_351 = arith.constant 75 : index
    %1176 = memref.load %arg7[%c75_351] : memref<144xf32, #tpu.memory_space<smem>>
    %1177 = vector.broadcast %1176 : f32 to vector<32x32xf32>
    %1178 = arith.mulf %1177, %1163 : vector<32x32xf32>
    %1179 = arith.addf %1161, %1178 : vector<32x32xf32>
    %c2_352 = arith.constant 2 : index
    %c1_353 = arith.constant 1 : index
    %c2_354 = arith.constant 2 : index
    %1180 = vector.load %arg14[%c2_352, %c1_353, %c2_354] : memref<4x34x34xf32, #tpu.memory_space<vmem>>, vector<1x32x32xf32>
    %1181 = vector.shape_cast %1180 : vector<1x32x32xf32> to vector<32x32xf32>
    %c88_355 = arith.constant 88 : index
    %1182 = memref.load %arg7[%c88_355] : memref<144xf32, #tpu.memory_space<smem>>
    %1183 = vector.broadcast %1182 : f32 to vector<32x32xf32>
    %1184 = arith.mulf %1183, %1181 : vector<32x32xf32>
    %1185 = arith.addf %1167, %1184 : vector<32x32xf32>
    %c89_356 = arith.constant 89 : index
    %1186 = memref.load %arg7[%c89_356] : memref<144xf32, #tpu.memory_space<smem>>
    %1187 = vector.broadcast %1186 : f32 to vector<32x32xf32>
    %1188 = arith.mulf %1187, %1181 : vector<32x32xf32>
    %1189 = arith.addf %1171, %1188 : vector<32x32xf32>
    %c90_357 = arith.constant 90 : index
    %1190 = memref.load %arg7[%c90_357] : memref<144xf32, #tpu.memory_space<smem>>
    %1191 = vector.broadcast %1190 : f32 to vector<32x32xf32>
    %1192 = arith.mulf %1191, %1181 : vector<32x32xf32>
    %1193 = arith.addf %1175, %1192 : vector<32x32xf32>
    %c91_358 = arith.constant 91 : index
    %1194 = memref.load %arg7[%c91_358] : memref<144xf32, #tpu.memory_space<smem>>
    %1195 = vector.broadcast %1194 : f32 to vector<32x32xf32>
    %1196 = arith.mulf %1195, %1181 : vector<32x32xf32>
    %1197 = arith.addf %1179, %1196 : vector<32x32xf32>
    %c2_359 = arith.constant 2 : index
    %c2_360 = arith.constant 2 : index
    %c0_361 = arith.constant 0 : index
    %1198 = vector.load %arg14[%c2_359, %c2_360, %c0_361] : memref<4x34x34xf32, #tpu.memory_space<vmem>>, vector<1x32x32xf32>
    %1199 = vector.shape_cast %1198 : vector<1x32x32xf32> to vector<32x32xf32>
    %c104_362 = arith.constant 104 : index
    %1200 = memref.load %arg7[%c104_362] : memref<144xf32, #tpu.memory_space<smem>>
    %1201 = vector.broadcast %1200 : f32 to vector<32x32xf32>
    %1202 = arith.mulf %1201, %1199 : vector<32x32xf32>
    %1203 = arith.addf %1185, %1202 : vector<32x32xf32>
    %c105_363 = arith.constant 105 : index
    %1204 = memref.load %arg7[%c105_363] : memref<144xf32, #tpu.memory_space<smem>>
    %1205 = vector.broadcast %1204 : f32 to vector<32x32xf32>
    %1206 = arith.mulf %1205, %1199 : vector<32x32xf32>
    %1207 = arith.addf %1189, %1206 : vector<32x32xf32>
    %c106_364 = arith.constant 106 : index
    %1208 = memref.load %arg7[%c106_364] : memref<144xf32, #tpu.memory_space<smem>>
    %1209 = vector.broadcast %1208 : f32 to vector<32x32xf32>
    %1210 = arith.mulf %1209, %1199 : vector<32x32xf32>
    %1211 = arith.addf %1193, %1210 : vector<32x32xf32>
    %c107_365 = arith.constant 107 : index
    %1212 = memref.load %arg7[%c107_365] : memref<144xf32, #tpu.memory_space<smem>>
    %1213 = vector.broadcast %1212 : f32 to vector<32x32xf32>
    %1214 = arith.mulf %1213, %1199 : vector<32x32xf32>
    %1215 = arith.addf %1197, %1214 : vector<32x32xf32>
    %c2_366 = arith.constant 2 : index
    %c2_367 = arith.constant 2 : index
    %c1_368 = arith.constant 1 : index
    %1216 = vector.load %arg14[%c2_366, %c2_367, %c1_368] : memref<4x34x34xf32, #tpu.memory_space<vmem>>, vector<1x32x32xf32>
    %1217 = vector.shape_cast %1216 : vector<1x32x32xf32> to vector<32x32xf32>
    %c120_369 = arith.constant 120 : index
    %1218 = memref.load %arg7[%c120_369] : memref<144xf32, #tpu.memory_space<smem>>
    %1219 = vector.broadcast %1218 : f32 to vector<32x32xf32>
    %1220 = arith.mulf %1219, %1217 : vector<32x32xf32>
    %1221 = arith.addf %1203, %1220 : vector<32x32xf32>
    %c121_370 = arith.constant 121 : index
    %1222 = memref.load %arg7[%c121_370] : memref<144xf32, #tpu.memory_space<smem>>
    %1223 = vector.broadcast %1222 : f32 to vector<32x32xf32>
    %1224 = arith.mulf %1223, %1217 : vector<32x32xf32>
    %1225 = arith.addf %1207, %1224 : vector<32x32xf32>
    %c122_371 = arith.constant 122 : index
    %1226 = memref.load %arg7[%c122_371] : memref<144xf32, #tpu.memory_space<smem>>
    %1227 = vector.broadcast %1226 : f32 to vector<32x32xf32>
    %1228 = arith.mulf %1227, %1217 : vector<32x32xf32>
    %1229 = arith.addf %1211, %1228 : vector<32x32xf32>
    %c123_372 = arith.constant 123 : index
    %1230 = memref.load %arg7[%c123_372] : memref<144xf32, #tpu.memory_space<smem>>
    %1231 = vector.broadcast %1230 : f32 to vector<32x32xf32>
    %1232 = arith.mulf %1231, %1217 : vector<32x32xf32>
    %1233 = arith.addf %1215, %1232 : vector<32x32xf32>
    %c2_373 = arith.constant 2 : index
    %c2_374 = arith.constant 2 : index
    %c2_375 = arith.constant 2 : index
    %1234 = vector.load %arg14[%c2_373, %c2_374, %c2_375] : memref<4x34x34xf32, #tpu.memory_space<vmem>>, vector<1x32x32xf32>
    %1235 = vector.shape_cast %1234 : vector<1x32x32xf32> to vector<32x32xf32>
    %c136_376 = arith.constant 136 : index
    %1236 = memref.load %arg7[%c136_376] : memref<144xf32, #tpu.memory_space<smem>>
    %1237 = vector.broadcast %1236 : f32 to vector<32x32xf32>
    %1238 = arith.mulf %1237, %1235 : vector<32x32xf32>
    %1239 = arith.addf %1221, %1238 : vector<32x32xf32>
    %c137_377 = arith.constant 137 : index
    %1240 = memref.load %arg7[%c137_377] : memref<144xf32, #tpu.memory_space<smem>>
    %1241 = vector.broadcast %1240 : f32 to vector<32x32xf32>
    %1242 = arith.mulf %1241, %1235 : vector<32x32xf32>
    %1243 = arith.addf %1225, %1242 : vector<32x32xf32>
    %c138_378 = arith.constant 138 : index
    %1244 = memref.load %arg7[%c138_378] : memref<144xf32, #tpu.memory_space<smem>>
    %1245 = vector.broadcast %1244 : f32 to vector<32x32xf32>
    %1246 = arith.mulf %1245, %1235 : vector<32x32xf32>
    %1247 = arith.addf %1229, %1246 : vector<32x32xf32>
    %c139_379 = arith.constant 139 : index
    %1248 = memref.load %arg7[%c139_379] : memref<144xf32, #tpu.memory_space<smem>>
    %1249 = vector.broadcast %1248 : f32 to vector<32x32xf32>
    %1250 = arith.mulf %1249, %1235 : vector<32x32xf32>
    %1251 = arith.addf %1233, %1250 : vector<32x32xf32>
    %c3_380 = arith.constant 3 : index
    %c0_381 = arith.constant 0 : index
    %c0_382 = arith.constant 0 : index
    %1252 = vector.load %arg14[%c3_380, %c0_381, %c0_382] : memref<4x34x34xf32, #tpu.memory_space<vmem>>, vector<1x32x32xf32>
    %1253 = vector.shape_cast %1252 : vector<1x32x32xf32> to vector<32x32xf32>
    %c12_383 = arith.constant 12 : index
    %1254 = memref.load %arg7[%c12_383] : memref<144xf32, #tpu.memory_space<smem>>
    %1255 = vector.broadcast %1254 : f32 to vector<32x32xf32>
    %1256 = arith.mulf %1255, %1253 : vector<32x32xf32>
    %1257 = arith.addf %1239, %1256 : vector<32x32xf32>
    %c13_384 = arith.constant 13 : index
    %1258 = memref.load %arg7[%c13_384] : memref<144xf32, #tpu.memory_space<smem>>
    %1259 = vector.broadcast %1258 : f32 to vector<32x32xf32>
    %1260 = arith.mulf %1259, %1253 : vector<32x32xf32>
    %1261 = arith.addf %1243, %1260 : vector<32x32xf32>
    %c14_385 = arith.constant 14 : index
    %1262 = memref.load %arg7[%c14_385] : memref<144xf32, #tpu.memory_space<smem>>
    %1263 = vector.broadcast %1262 : f32 to vector<32x32xf32>
    %1264 = arith.mulf %1263, %1253 : vector<32x32xf32>
    %1265 = arith.addf %1247, %1264 : vector<32x32xf32>
    %c15_386 = arith.constant 15 : index
    %1266 = memref.load %arg7[%c15_386] : memref<144xf32, #tpu.memory_space<smem>>
    %1267 = vector.broadcast %1266 : f32 to vector<32x32xf32>
    %1268 = arith.mulf %1267, %1253 : vector<32x32xf32>
    %1269 = arith.addf %1251, %1268 : vector<32x32xf32>
    %c3_387 = arith.constant 3 : index
    %c0_388 = arith.constant 0 : index
    %c1_389 = arith.constant 1 : index
    %1270 = vector.load %arg14[%c3_387, %c0_388, %c1_389] : memref<4x34x34xf32, #tpu.memory_space<vmem>>, vector<1x32x32xf32>
    %1271 = vector.shape_cast %1270 : vector<1x32x32xf32> to vector<32x32xf32>
    %c28_390 = arith.constant 28 : index
    %1272 = memref.load %arg7[%c28_390] : memref<144xf32, #tpu.memory_space<smem>>
    %1273 = vector.broadcast %1272 : f32 to vector<32x32xf32>
    %1274 = arith.mulf %1273, %1271 : vector<32x32xf32>
    %1275 = arith.addf %1257, %1274 : vector<32x32xf32>
    %c29_391 = arith.constant 29 : index
    %1276 = memref.load %arg7[%c29_391] : memref<144xf32, #tpu.memory_space<smem>>
    %1277 = vector.broadcast %1276 : f32 to vector<32x32xf32>
    %1278 = arith.mulf %1277, %1271 : vector<32x32xf32>
    %1279 = arith.addf %1261, %1278 : vector<32x32xf32>
    %c30_392 = arith.constant 30 : index
    %1280 = memref.load %arg7[%c30_392] : memref<144xf32, #tpu.memory_space<smem>>
    %1281 = vector.broadcast %1280 : f32 to vector<32x32xf32>
    %1282 = arith.mulf %1281, %1271 : vector<32x32xf32>
    %1283 = arith.addf %1265, %1282 : vector<32x32xf32>
    %c31_393 = arith.constant 31 : index
    %1284 = memref.load %arg7[%c31_393] : memref<144xf32, #tpu.memory_space<smem>>
    %1285 = vector.broadcast %1284 : f32 to vector<32x32xf32>
    %1286 = arith.mulf %1285, %1271 : vector<32x32xf32>
    %1287 = arith.addf %1269, %1286 : vector<32x32xf32>
    %c3_394 = arith.constant 3 : index
    %c0_395 = arith.constant 0 : index
    %c2_396 = arith.constant 2 : index
    %1288 = vector.load %arg14[%c3_394, %c0_395, %c2_396] : memref<4x34x34xf32, #tpu.memory_space<vmem>>, vector<1x32x32xf32>
    %1289 = vector.shape_cast %1288 : vector<1x32x32xf32> to vector<32x32xf32>
    %c44_397 = arith.constant 44 : index
    %1290 = memref.load %arg7[%c44_397] : memref<144xf32, #tpu.memory_space<smem>>
    %1291 = vector.broadcast %1290 : f32 to vector<32x32xf32>
    %1292 = arith.mulf %1291, %1289 : vector<32x32xf32>
    %1293 = arith.addf %1275, %1292 : vector<32x32xf32>
    %c45_398 = arith.constant 45 : index
    %1294 = memref.load %arg7[%c45_398] : memref<144xf32, #tpu.memory_space<smem>>
    %1295 = vector.broadcast %1294 : f32 to vector<32x32xf32>
    %1296 = arith.mulf %1295, %1289 : vector<32x32xf32>
    %1297 = arith.addf %1279, %1296 : vector<32x32xf32>
    %c46_399 = arith.constant 46 : index
    %1298 = memref.load %arg7[%c46_399] : memref<144xf32, #tpu.memory_space<smem>>
    %1299 = vector.broadcast %1298 : f32 to vector<32x32xf32>
    %1300 = arith.mulf %1299, %1289 : vector<32x32xf32>
    %1301 = arith.addf %1283, %1300 : vector<32x32xf32>
    %c47_400 = arith.constant 47 : index
    %1302 = memref.load %arg7[%c47_400] : memref<144xf32, #tpu.memory_space<smem>>
    %1303 = vector.broadcast %1302 : f32 to vector<32x32xf32>
    %1304 = arith.mulf %1303, %1289 : vector<32x32xf32>
    %1305 = arith.addf %1287, %1304 : vector<32x32xf32>
    %c3_401 = arith.constant 3 : index
    %c1_402 = arith.constant 1 : index
    %c0_403 = arith.constant 0 : index
    %1306 = vector.load %arg14[%c3_401, %c1_402, %c0_403] : memref<4x34x34xf32, #tpu.memory_space<vmem>>, vector<1x32x32xf32>
    %1307 = vector.shape_cast %1306 : vector<1x32x32xf32> to vector<32x32xf32>
    %c60_404 = arith.constant 60 : index
    %1308 = memref.load %arg7[%c60_404] : memref<144xf32, #tpu.memory_space<smem>>
    %1309 = vector.broadcast %1308 : f32 to vector<32x32xf32>
    %1310 = arith.mulf %1309, %1307 : vector<32x32xf32>
    %1311 = arith.addf %1293, %1310 : vector<32x32xf32>
    %c61_405 = arith.constant 61 : index
    %1312 = memref.load %arg7[%c61_405] : memref<144xf32, #tpu.memory_space<smem>>
    %1313 = vector.broadcast %1312 : f32 to vector<32x32xf32>
    %1314 = arith.mulf %1313, %1307 : vector<32x32xf32>
    %1315 = arith.addf %1297, %1314 : vector<32x32xf32>
    %c62_406 = arith.constant 62 : index
    %1316 = memref.load %arg7[%c62_406] : memref<144xf32, #tpu.memory_space<smem>>
    %1317 = vector.broadcast %1316 : f32 to vector<32x32xf32>
    %1318 = arith.mulf %1317, %1307 : vector<32x32xf32>
    %1319 = arith.addf %1301, %1318 : vector<32x32xf32>
    %c63_407 = arith.constant 63 : index
    %1320 = memref.load %arg7[%c63_407] : memref<144xf32, #tpu.memory_space<smem>>
    %1321 = vector.broadcast %1320 : f32 to vector<32x32xf32>
    %1322 = arith.mulf %1321, %1307 : vector<32x32xf32>
    %1323 = arith.addf %1305, %1322 : vector<32x32xf32>
    %c3_408 = arith.constant 3 : index
    %c1_409 = arith.constant 1 : index
    %c1_410 = arith.constant 1 : index
    %1324 = vector.load %arg14[%c3_408, %c1_409, %c1_410] : memref<4x34x34xf32, #tpu.memory_space<vmem>>, vector<1x32x32xf32>
    %1325 = vector.shape_cast %1324 : vector<1x32x32xf32> to vector<32x32xf32>
    %c76_411 = arith.constant 76 : index
    %1326 = memref.load %arg7[%c76_411] : memref<144xf32, #tpu.memory_space<smem>>
    %1327 = vector.broadcast %1326 : f32 to vector<32x32xf32>
    %1328 = arith.mulf %1327, %1325 : vector<32x32xf32>
    %1329 = arith.addf %1311, %1328 : vector<32x32xf32>
    %c77_412 = arith.constant 77 : index
    %1330 = memref.load %arg7[%c77_412] : memref<144xf32, #tpu.memory_space<smem>>
    %1331 = vector.broadcast %1330 : f32 to vector<32x32xf32>
    %1332 = arith.mulf %1331, %1325 : vector<32x32xf32>
    %1333 = arith.addf %1315, %1332 : vector<32x32xf32>
    %c78_413 = arith.constant 78 : index
    %1334 = memref.load %arg7[%c78_413] : memref<144xf32, #tpu.memory_space<smem>>
    %1335 = vector.broadcast %1334 : f32 to vector<32x32xf32>
    %1336 = arith.mulf %1335, %1325 : vector<32x32xf32>
    %1337 = arith.addf %1319, %1336 : vector<32x32xf32>
    %c79_414 = arith.constant 79 : index
    %1338 = memref.load %arg7[%c79_414] : memref<144xf32, #tpu.memory_space<smem>>
    %1339 = vector.broadcast %1338 : f32 to vector<32x32xf32>
    %1340 = arith.mulf %1339, %1325 : vector<32x32xf32>
    %1341 = arith.addf %1323, %1340 : vector<32x32xf32>
    %c3_415 = arith.constant 3 : index
    %c1_416 = arith.constant 1 : index
    %c2_417 = arith.constant 2 : index
    %1342 = vector.load %arg14[%c3_415, %c1_416, %c2_417] : memref<4x34x34xf32, #tpu.memory_space<vmem>>, vector<1x32x32xf32>
    %1343 = vector.shape_cast %1342 : vector<1x32x32xf32> to vector<32x32xf32>
    %c92_418 = arith.constant 92 : index
    %1344 = memref.load %arg7[%c92_418] : memref<144xf32, #tpu.memory_space<smem>>
    %1345 = vector.broadcast %1344 : f32 to vector<32x32xf32>
    %1346 = arith.mulf %1345, %1343 : vector<32x32xf32>
    %1347 = arith.addf %1329, %1346 : vector<32x32xf32>
    %c93_419 = arith.constant 93 : index
    %1348 = memref.load %arg7[%c93_419] : memref<144xf32, #tpu.memory_space<smem>>
    %1349 = vector.broadcast %1348 : f32 to vector<32x32xf32>
    %1350 = arith.mulf %1349, %1343 : vector<32x32xf32>
    %1351 = arith.addf %1333, %1350 : vector<32x32xf32>
    %c94_420 = arith.constant 94 : index
    %1352 = memref.load %arg7[%c94_420] : memref<144xf32, #tpu.memory_space<smem>>
    %1353 = vector.broadcast %1352 : f32 to vector<32x32xf32>
    %1354 = arith.mulf %1353, %1343 : vector<32x32xf32>
    %1355 = arith.addf %1337, %1354 : vector<32x32xf32>
    %c95_421 = arith.constant 95 : index
    %1356 = memref.load %arg7[%c95_421] : memref<144xf32, #tpu.memory_space<smem>>
    %1357 = vector.broadcast %1356 : f32 to vector<32x32xf32>
    %1358 = arith.mulf %1357, %1343 : vector<32x32xf32>
    %1359 = arith.addf %1341, %1358 : vector<32x32xf32>
    %c3_422 = arith.constant 3 : index
    %c2_423 = arith.constant 2 : index
    %c0_424 = arith.constant 0 : index
    %1360 = vector.load %arg14[%c3_422, %c2_423, %c0_424] : memref<4x34x34xf32, #tpu.memory_space<vmem>>, vector<1x32x32xf32>
    %1361 = vector.shape_cast %1360 : vector<1x32x32xf32> to vector<32x32xf32>
    %c108_425 = arith.constant 108 : index
    %1362 = memref.load %arg7[%c108_425] : memref<144xf32, #tpu.memory_space<smem>>
    %1363 = vector.broadcast %1362 : f32 to vector<32x32xf32>
    %1364 = arith.mulf %1363, %1361 : vector<32x32xf32>
    %1365 = arith.addf %1347, %1364 : vector<32x32xf32>
    %c109_426 = arith.constant 109 : index
    %1366 = memref.load %arg7[%c109_426] : memref<144xf32, #tpu.memory_space<smem>>
    %1367 = vector.broadcast %1366 : f32 to vector<32x32xf32>
    %1368 = arith.mulf %1367, %1361 : vector<32x32xf32>
    %1369 = arith.addf %1351, %1368 : vector<32x32xf32>
    %c110_427 = arith.constant 110 : index
    %1370 = memref.load %arg7[%c110_427] : memref<144xf32, #tpu.memory_space<smem>>
    %1371 = vector.broadcast %1370 : f32 to vector<32x32xf32>
    %1372 = arith.mulf %1371, %1361 : vector<32x32xf32>
    %1373 = arith.addf %1355, %1372 : vector<32x32xf32>
    %c111_428 = arith.constant 111 : index
    %1374 = memref.load %arg7[%c111_428] : memref<144xf32, #tpu.memory_space<smem>>
    %1375 = vector.broadcast %1374 : f32 to vector<32x32xf32>
    %1376 = arith.mulf %1375, %1361 : vector<32x32xf32>
    %1377 = arith.addf %1359, %1376 : vector<32x32xf32>
    %c3_429 = arith.constant 3 : index
    %c2_430 = arith.constant 2 : index
    %c1_431 = arith.constant 1 : index
    %1378 = vector.load %arg14[%c3_429, %c2_430, %c1_431] : memref<4x34x34xf32, #tpu.memory_space<vmem>>, vector<1x32x32xf32>
    %1379 = vector.shape_cast %1378 : vector<1x32x32xf32> to vector<32x32xf32>
    %c124_432 = arith.constant 124 : index
    %1380 = memref.load %arg7[%c124_432] : memref<144xf32, #tpu.memory_space<smem>>
    %1381 = vector.broadcast %1380 : f32 to vector<32x32xf32>
    %1382 = arith.mulf %1381, %1379 : vector<32x32xf32>
    %1383 = arith.addf %1365, %1382 : vector<32x32xf32>
    %c125_433 = arith.constant 125 : index
    %1384 = memref.load %arg7[%c125_433] : memref<144xf32, #tpu.memory_space<smem>>
    %1385 = vector.broadcast %1384 : f32 to vector<32x32xf32>
    %1386 = arith.mulf %1385, %1379 : vector<32x32xf32>
    %1387 = arith.addf %1369, %1386 : vector<32x32xf32>
    %c126_434 = arith.constant 126 : index
    %1388 = memref.load %arg7[%c126_434] : memref<144xf32, #tpu.memory_space<smem>>
    %1389 = vector.broadcast %1388 : f32 to vector<32x32xf32>
    %1390 = arith.mulf %1389, %1379 : vector<32x32xf32>
    %1391 = arith.addf %1373, %1390 : vector<32x32xf32>
    %c127_435 = arith.constant 127 : index
    %1392 = memref.load %arg7[%c127_435] : memref<144xf32, #tpu.memory_space<smem>>
    %1393 = vector.broadcast %1392 : f32 to vector<32x32xf32>
    %1394 = arith.mulf %1393, %1379 : vector<32x32xf32>
    %1395 = arith.addf %1377, %1394 : vector<32x32xf32>
    %c3_436 = arith.constant 3 : index
    %c2_437 = arith.constant 2 : index
    %c2_438 = arith.constant 2 : index
    %1396 = vector.load %arg14[%c3_436, %c2_437, %c2_438] : memref<4x34x34xf32, #tpu.memory_space<vmem>>, vector<1x32x32xf32>
    %1397 = vector.shape_cast %1396 : vector<1x32x32xf32> to vector<32x32xf32>
    %c140_439 = arith.constant 140 : index
    %1398 = memref.load %arg7[%c140_439] : memref<144xf32, #tpu.memory_space<smem>>
    %1399 = vector.broadcast %1398 : f32 to vector<32x32xf32>
    %1400 = arith.mulf %1399, %1397 : vector<32x32xf32>
    %1401 = arith.addf %1383, %1400 : vector<32x32xf32>
    %c141_440 = arith.constant 141 : index
    %1402 = memref.load %arg7[%c141_440] : memref<144xf32, #tpu.memory_space<smem>>
    %1403 = vector.broadcast %1402 : f32 to vector<32x32xf32>
    %1404 = arith.mulf %1403, %1397 : vector<32x32xf32>
    %1405 = arith.addf %1387, %1404 : vector<32x32xf32>
    %c142_441 = arith.constant 142 : index
    %1406 = memref.load %arg7[%c142_441] : memref<144xf32, #tpu.memory_space<smem>>
    %1407 = vector.broadcast %1406 : f32 to vector<32x32xf32>
    %1408 = arith.mulf %1407, %1397 : vector<32x32xf32>
    %1409 = arith.addf %1391, %1408 : vector<32x32xf32>
    %c143_442 = arith.constant 143 : index
    %1410 = memref.load %arg7[%c143_442] : memref<144xf32, #tpu.memory_space<smem>>
    %1411 = vector.broadcast %1410 : f32 to vector<32x32xf32>
    %1412 = arith.mulf %1411, %1397 : vector<32x32xf32>
    %1413 = arith.addf %1395, %1412 : vector<32x32xf32>
    %cst_443 = arith.constant 0.000000e+00 : f32
    %1414 = vector.broadcast %cst_443 : f32 to vector<32x32xf32>
    %c0_444 = arith.constant 0 : index
    %1415 = memref.load %arg11[%c0_444] : memref<1xf32, #tpu.memory_space<smem>>
    %1416 = vector.broadcast %1415 : f32 to vector<32x32xf32>
    %1417 = arith.addf %1414, %1416 : vector<32x32xf32>
    %c0_445 = arith.constant 0 : index
    %1418 = memref.load %arg8[%c0_445] : memref<4xf32, #tpu.memory_space<smem>>
    %1419 = vector.broadcast %1418 : f32 to vector<32x32xf32>
    %1420 = arith.mulf %1401, %1419 : vector<32x32xf32>
    %c0_446 = arith.constant 0 : index
    %1421 = memref.load %arg9[%c0_446] : memref<4xf32, #tpu.memory_space<smem>>
    %1422 = vector.broadcast %1421 : f32 to vector<32x32xf32>
    %1423 = arith.addf %1420, %1422 : vector<32x32xf32>
    %cst_447 = arith.constant 0.000000e+00 : f32
    %1424 = vector.broadcast %cst_447 : f32 to vector<32x32xf32>
    %1425 = arith.maximumf %1423, %1424 : vector<32x32xf32>
    %1426 = math.absf %1423 : vector<32x32xf32>
    %cst_448 = arith.constant 0.000000e+00 : f32
    %1427 = vector.broadcast %cst_448 : f32 to vector<32x32xf32>
    %1428 = arith.subf %1427, %1426 : vector<32x32xf32>
    %1429 = math.exp %1428 : vector<32x32xf32>
    %1430 = math.log1p %1429 : vector<32x32xf32>
    %1431 = arith.addf %1425, %1430 : vector<32x32xf32>
    %1432 = math.tanh %1431 : vector<32x32xf32>
    %1433 = arith.mulf %1423, %1432 : vector<32x32xf32>
    %c0_449 = arith.constant 0 : index
    %1434 = memref.load %arg10[%c0_449] : memref<4xf32, #tpu.memory_space<smem>>
    %1435 = vector.broadcast %1434 : f32 to vector<32x32xf32>
    %1436 = arith.mulf %1435, %1433 : vector<32x32xf32>
    %1437 = arith.addf %1417, %1436 : vector<32x32xf32>
    %c1_450 = arith.constant 1 : index
    %1438 = memref.load %arg8[%c1_450] : memref<4xf32, #tpu.memory_space<smem>>
    %1439 = vector.broadcast %1438 : f32 to vector<32x32xf32>
    %1440 = arith.mulf %1405, %1439 : vector<32x32xf32>
    %c1_451 = arith.constant 1 : index
    %1441 = memref.load %arg9[%c1_451] : memref<4xf32, #tpu.memory_space<smem>>
    %1442 = vector.broadcast %1441 : f32 to vector<32x32xf32>
    %1443 = arith.addf %1440, %1442 : vector<32x32xf32>
    %cst_452 = arith.constant 0.000000e+00 : f32
    %1444 = vector.broadcast %cst_452 : f32 to vector<32x32xf32>
    %1445 = arith.maximumf %1443, %1444 : vector<32x32xf32>
    %1446 = math.absf %1443 : vector<32x32xf32>
    %cst_453 = arith.constant 0.000000e+00 : f32
    %1447 = vector.broadcast %cst_453 : f32 to vector<32x32xf32>
    %1448 = arith.subf %1447, %1446 : vector<32x32xf32>
    %1449 = math.exp %1448 : vector<32x32xf32>
    %1450 = math.log1p %1449 : vector<32x32xf32>
    %1451 = arith.addf %1445, %1450 : vector<32x32xf32>
    %1452 = math.tanh %1451 : vector<32x32xf32>
    %1453 = arith.mulf %1443, %1452 : vector<32x32xf32>
    %c1_454 = arith.constant 1 : index
    %1454 = memref.load %arg10[%c1_454] : memref<4xf32, #tpu.memory_space<smem>>
    %1455 = vector.broadcast %1454 : f32 to vector<32x32xf32>
    %1456 = arith.mulf %1455, %1453 : vector<32x32xf32>
    %1457 = arith.addf %1437, %1456 : vector<32x32xf32>
    %c2_455 = arith.constant 2 : index
    %1458 = memref.load %arg8[%c2_455] : memref<4xf32, #tpu.memory_space<smem>>
    %1459 = vector.broadcast %1458 : f32 to vector<32x32xf32>
    %1460 = arith.mulf %1409, %1459 : vector<32x32xf32>
    %c2_456 = arith.constant 2 : index
    %1461 = memref.load %arg9[%c2_456] : memref<4xf32, #tpu.memory_space<smem>>
    %1462 = vector.broadcast %1461 : f32 to vector<32x32xf32>
    %1463 = arith.addf %1460, %1462 : vector<32x32xf32>
    %cst_457 = arith.constant 0.000000e+00 : f32
    %1464 = vector.broadcast %cst_457 : f32 to vector<32x32xf32>
    %1465 = arith.maximumf %1463, %1464 : vector<32x32xf32>
    %1466 = math.absf %1463 : vector<32x32xf32>
    %cst_458 = arith.constant 0.000000e+00 : f32
    %1467 = vector.broadcast %cst_458 : f32 to vector<32x32xf32>
    %1468 = arith.subf %1467, %1466 : vector<32x32xf32>
    %1469 = math.exp %1468 : vector<32x32xf32>
    %1470 = math.log1p %1469 : vector<32x32xf32>
    %1471 = arith.addf %1465, %1470 : vector<32x32xf32>
    %1472 = math.tanh %1471 : vector<32x32xf32>
    %1473 = arith.mulf %1463, %1472 : vector<32x32xf32>
    %c2_459 = arith.constant 2 : index
    %1474 = memref.load %arg10[%c2_459] : memref<4xf32, #tpu.memory_space<smem>>
    %1475 = vector.broadcast %1474 : f32 to vector<32x32xf32>
    %1476 = arith.mulf %1475, %1473 : vector<32x32xf32>
    %1477 = arith.addf %1457, %1476 : vector<32x32xf32>
    %c3_460 = arith.constant 3 : index
    %1478 = memref.load %arg8[%c3_460] : memref<4xf32, #tpu.memory_space<smem>>
    %1479 = vector.broadcast %1478 : f32 to vector<32x32xf32>
    %1480 = arith.mulf %1413, %1479 : vector<32x32xf32>
    %c3_461 = arith.constant 3 : index
    %1481 = memref.load %arg9[%c3_461] : memref<4xf32, #tpu.memory_space<smem>>
    %1482 = vector.broadcast %1481 : f32 to vector<32x32xf32>
    %1483 = arith.addf %1480, %1482 : vector<32x32xf32>
    %cst_462 = arith.constant 0.000000e+00 : f32
    %1484 = vector.broadcast %cst_462 : f32 to vector<32x32xf32>
    %1485 = arith.maximumf %1483, %1484 : vector<32x32xf32>
    %1486 = math.absf %1483 : vector<32x32xf32>
    %cst_463 = arith.constant 0.000000e+00 : f32
    %1487 = vector.broadcast %cst_463 : f32 to vector<32x32xf32>
    %1488 = arith.subf %1487, %1486 : vector<32x32xf32>
    %1489 = math.exp %1488 : vector<32x32xf32>
    %1490 = math.log1p %1489 : vector<32x32xf32>
    %1491 = arith.addf %1485, %1490 : vector<32x32xf32>
    %1492 = math.tanh %1491 : vector<32x32xf32>
    %1493 = arith.mulf %1483, %1492 : vector<32x32xf32>
    %c3_464 = arith.constant 3 : index
    %1494 = memref.load %arg10[%c3_464] : memref<4xf32, #tpu.memory_space<smem>>
    %1495 = vector.broadcast %1494 : f32 to vector<32x32xf32>
    %1496 = arith.mulf %1495, %1493 : vector<32x32xf32>
    %1497 = arith.addf %1477, %1496 : vector<32x32xf32>
    %cst_465 = arith.constant 0.000000e+00 : f32
    %1498 = vector.broadcast %cst_465 : f32 to vector<32x32xf32>
    %1499 = arith.subf %1498, %1497 : vector<32x32xf32>
    %1500 = math.exp %1499 : vector<32x32xf32>
    %cst_466 = arith.constant 1.000000e+00 : f32
    %1501 = vector.broadcast %cst_466 : f32 to vector<32x32xf32>
    %1502 = arith.addf %1501, %1500 : vector<32x32xf32>
    %cst_467 = arith.constant 1.000000e+00 : f32
    %1503 = vector.broadcast %cst_467 : f32 to vector<32x32xf32>
    %1504 = arith.divf %1503, %1502 : vector<32x32xf32>
    %c0_468 = arith.constant 0 : index
    %c0_469 = arith.constant 0 : index
    %c0_470 = arith.constant 0 : index
    %1505 = vector.load %arg12[%c0_468, %c0_469, %c0_470] : memref<1x32x32xf32, #tpu.memory_space<vmem>>, vector<1x32x32xf32>
    %1506 = vector.shape_cast %1505 : vector<1x32x32xf32> to vector<32x32xf32>
    %1507 = vector.shape_cast %1504 : vector<32x32xf32> to vector<1x32x32xf32>
    tpu.vector_store %arg12[%c0_468, %c0_469, %c0_470], %1507 {strides = array<i32>} : memref<1x32x32xf32, #tpu.memory_space<vmem>>, vector<1x32x32xf32>,
    return
  }
  func.func @transform_0(%arg0: i32) -> (i32, i32, i32, i32) {
    %c0_i32 = arith.constant 0 : i32
    %c0_i32_0 = arith.constant 0 : i32
    %c0_i32_1 = arith.constant 0 : i32
    %c0_i32_2 = arith.constant 0 : i32
    return %arg0, %c0_i32, %c0_i32_0, %c0_i32_1 : i32, i32, i32, i32
  }
  func.func @transform_1(%arg0: i32) -> (i32, i32) {
    %c0_i32 = arith.constant 0 : i32
    %c0_i32_0 = arith.constant 0 : i32
    %c0_i32_1 = arith.constant 0 : i32
    return %c0_i32, %c0_i32_0 : i32, i32
  }
  func.func @transform_2(%arg0: i32) -> (i32, i32) {
    %c0_i32 = arith.constant 0 : i32
    %c0_i32_0 = arith.constant 0 : i32
    %c0_i32_1 = arith.constant 0 : i32
    return %c0_i32, %c0_i32_0 : i32, i32
  }
  func.func @transform_3(%arg0: i32) -> i32 {
    %c0_i32 = arith.constant 0 : i32
    %c0_i32_0 = arith.constant 0 : i32
    return %c0_i32 : i32
  }
  func.func @transform_4(%arg0: i32) -> i32 {
    %c0_i32 = arith.constant 0 : i32
    %c0_i32_0 = arith.constant 0 : i32
    return %c0_i32 : i32
  }
  func.func @transform_5(%arg0: i32) -> i32 {
    %c0_i32 = arith.constant 0 : i32
    %c0_i32_0 = arith.constant 0 : i32
    return %c0_i32 : i32
  }
  func.func @transform_6(%arg0: i32) -> i32 {
    %c0_i32 = arith.constant 0 : i32
    %c0_i32_0 = arith.constant 0 : i32
    return %c0_i32 : i32
  }
  func.func @transform_7(%arg0: i32) -> i32 {
    %c0_i32 = arith.constant 0 : i32
    %c0_i32_0 = arith.constant 0 : i32
    return %c0_i32 : i32
  }
  func.func @transform_8(%arg0: i32) -> i32 {
    %c0_i32 = arith.constant 0 : i32
    %c0_i32_0 = arith.constant 0 : i32
    return %c0_i32 : i32
  }
  func.func @transform_9(%arg0: i32) -> i32 {
    %c0_i32 = arith.constant 0 : i32
    %c0_i32_0 = arith.constant 0 : i32
    return %c0_i32 : i32
  }
  func.func @transform_10(%arg0: i32) -> i32 {
    %c0_i32 = arith.constant 0 : i32
    %c0_i32_0 = arith.constant 0 : i32
    return %c0_i32 : i32
  }
  func.func @transform_11(%arg0: i32) -> (i32, i32, i32) {
    %c0_i32 = arith.constant 0 : i32
    %c0_i32_0 = arith.constant 0 : i32
    %c0_i32_1 = arith.constant 0 : i32
    return %arg0, %c0_i32, %c0_i32_0 : i32, i32, i32
  }
}

</mosaic_0001>

<llo_original>
// kernel: tpu_custom_call.1
$region0: #{tpu_custom_call.1}
  #allocation0 [shape = 'u32[]', space=smem, size = 0x4, offset = 0x4, fixed_abs, tag = 'smem constant byte address 0x4 - core index']
  #allocation1 [shape = 'u32[144,128]{1,0:T(1,128)}', space=vmem, size = 0x12000, scoped, tag = 'internal scratch']
  #allocation2 [shape = 'f32[4,34,34]{2,1,0:T(8,128)}', space=vmem, size = 0x14000, scoped, tag = 'scratch operand']
  #allocation3 [shape = 'f32[4,34,34]{2,1,0:T(8,128)}', space=vmem, size = 0x14000, scoped, tag = 'scratch operand']
  #allocation4 [shape = 'f32[1]{0:T(128)S(6)}', space=smem, size = 0x200, scoped, tag = 'scoped memory for tpu_custom_call.1']
  %s0 = inlined_call_operand.hbm [shape: f32[2,4,16,16], index: 0, kind: input, shape index: {}]
  %s1 = inlined_call_operand.vmem [shape: f32[32,16], index: 1, kind: input, shape index: {}]
  %s2 = inlined_call_operand.vmem [shape: f32[16,32], index: 2, kind: input, shape index: {}]
  %s3 = inlined_call_operand.vmem [shape: f32[144], index: 3, kind: input, shape index: {}]
  %s4 = inlined_call_operand.vmem [shape: f32[4], index: 4, kind: input, shape index: {}]
  %s5 = inlined_call_operand.vmem [shape: f32[4], index: 5, kind: input, shape index: {}]
  %s6 = inlined_call_operand.vmem [shape: f32[144], index: 6, kind: input, shape index: {}]
  %s7 = inlined_call_operand.vmem [shape: f32[4], index: 7, kind: input, shape index: {}]
  %s8 = inlined_call_operand.vmem [shape: f32[4], index: 8, kind: input, shape index: {}]
  %s9 = inlined_call_operand.vmem [shape: f32[4], index: 9, kind: input, shape index: {}]
  %s10 = inlined_call_operand.<no memory space> [shape: f32[1], index: 10, kind: input, shape index: {}]
  %s11 = inlined_call_operand.hbm [shape: f32[2,32,32], index: 11, kind: output, shape index: {}]
  %s12 = sld [smem:[#allocation0]]
  $region109: #{tpu_custom_call.1} parent=0
    _
  %s14 = ssub.s32 1, %s12
  %s15 = scalar_select 0, %s14, %s12
  %16 = sst [smem:[#allocation4]] %s10
  $region1: #{tpu_custom_call.1} parent=0
    #allocation5 [shape = 'u8[65536]{0}', space=vmem, size = 0x10000, scoped, tag = 'input window, operand 0']
    #allocation6 [shape = 's32[2]{0}', space=sflag, size = 0x8, scoped, tag = 'scoped memory for tpu_custom_call.1']
    #allocation7 [shape = 's32[2]{0}', space=sflag, size = 0x8, scoped, tag = 'scoped memory for tpu_custom_call.1']
    #allocation8 [shape = 's32[2]{0}', space=sflag, size = 0x8, scoped, tag = 'scoped memory for tpu_custom_call.1']
    #allocation9 [shape = 'u8[1024]{0}', space=smem, size = 0x400, scoped, tag = 'input window, operand 3, single buffered']
    #allocation10 [shape = 'u8[512]{0}', space=smem, size = 0x200, scoped, tag = 'input window, operand 4, single buffered']
    #allocation11 [shape = 's32[1]{0}', space=sflag, size = 0x4, scoped, tag = 'scoped memory for tpu_custom_call.1']
    #allocation12 [shape = 'u8[512]{0}', space=smem, size = 0x200, scoped, tag = 'input window, operand 5, single buffered']
    #allocation13 [shape = 'u8[1024]{0}', space=smem, size = 0x400, scoped, tag = 'input window, operand 6, single buffered']
    #allocation14 [shape = 's32[1]{0}', space=sflag, size = 0x4, scoped, tag = 'scoped memory for tpu_custom_call.1']
    #allocation15 [shape = 'u8[512]{0}', space=smem, size = 0x200, scoped, tag = 'input window, operand 7, single buffered']
    #allocation16 [shape = 'u8[512]{0}', space=smem, size = 0x200, scoped, tag = 'input window, operand 8, single buffered']
    #allocation17 [shape = 's32[1]{0}', space=sflag, size = 0x4, scoped, tag = 'scoped memory for tpu_custom_call.1']
    #allocation18 [shape = 'u8[512]{0}', space=smem, size = 0x200, scoped, tag = 'input window, operand 9, single buffered']
    #allocation19 [shape = 'u8[32768]{0}', space=vmem, size = 0x8000, scoped, tag = 'output window, operand 0']
    %17 = vsyncpa [#allocation6], 0
    %s18 = scalar_lea.sflag [#allocation6], 1
    %19 = vsyncpa %s18, 0
    %20 = vsyncpa [#allocation8], 0
    %21 = vsyncpa [#allocation11], 0
    %22 = vsyncpa [#allocation14], 0
    %23 = vsyncpa [#allocation17], 0
    %24 = vsyncpa [#allocation7], 0
    %s25 = scalar_lea.sflag [#allocation7], 1
    %26 = vsyncpa %s25, 0
    loop: start=0, step=1, limit=4
    $region2: #{tpu_custom_call.1} parent=1 // loop_pre_header
      _
    $region3: #{tpu_custom_call.1} parent=1 // loop_header
      %s28 = sphi 0, %s32
      %p29 = scmp.ge.s32.totalorder %s28, 4
      %s38 = sphi 0, %s40
      %s41 = sphi 0, %s38
      %s42 = sphi 0, %s41
      %s58 = sphi 0, %s42
      %s62 = sphi 0, %s62
      %s64 = sphi 0, %s62
      %s65 = sphi 0, %s64
      %s79 = sphi 0, %s65
      %s83 = sphi 0, %s83
      %s85 = sphi 0, %s83
      %s86 = sphi 0, %s85
      %s100 = sphi 0, %s86
      %s104 = sphi 0, %s104
      %s106 = sphi 0, %s104
      %s107 = sphi 0, %s106
      %s121 = sphi 0, %s107
      %s125 = sphi 0, %s125
      %s127 = sphi 0, %s125
      %s128 = sphi 0, %s127
      %s142 = sphi 0, %s128
      %s146 = sphi 0, %s146
      %s148 = sphi 0, %s146
      %s149 = sphi 0, %s148
      %s163 = sphi 0, %s149
      %s167 = sphi 0, %s167
      %s169 = sphi 0, %s167
      %s170 = sphi 0, %s169
      %s184 = sphi 0, %s170
      %s188 = sphi 0, %s188
      %s190 = sphi 0, %s188
      %s191 = sphi 0, %s190
      %s205 = sphi 0, %s191
      %s209 = sphi 0, %s209
      %s211 = sphi 0, %s209
      %s212 = sphi 0, %s211
      %s226 = sphi 0, %s212
      %s230 = sphi 0, %s230
      %s232 = sphi 0, %s230
      %s233 = sphi 0, %s232
      %s247 = sphi 0, %s233
      %s251 = sphi 0, %s251
      %s253 = sphi 0, %s251
      %s254 = sphi 0, %s253
      %s268 = sphi 0, %s254
      %s274 = sphi 0, %s276
      %s277 = sphi 0, %s274
      %s278 = sphi 0, %s277
      %s294 = sphi 0, %s278
    $region4: #{tpu_custom_call.1} parent=1 // loop_header_branch
      %31 = sbr.rel (%p29) target = $region8
    $region5: #{tpu_custom_call.1} parent=1 // loop_body
      %s33 = ssub.s32 %s28, 1
      %s34 = ssub.s32 %s28, 2
      %s35 = sadd.s32 %s28, 1
      %s36 = ssub.s32 %s28, %s35
      %p37 = scmp.eq.s32.totalorder %s36, 0
      %s39 = sadd.s32 %s38, 1
      %s40 = scalar_select %p37, %s38, %s39
      %p43 = pneg %p37
      %p44 = scmp.eq.s32.totalorder %s28, 1
      %p45 = por %p43, %p44
      %p46 = scmp.ne.s32.totalorder %s38, %s41
      %p47 = scmp.eq.s32.totalorder %s28, 0
      %p48 = por %p46, %p47
      %p49 = scmp.ne.s32.totalorder %s38, %s41
      %p50 = scmp.eq.s32.totalorder %s33, 1
      %p51 = por %p49, %p50
      %p52 = scmp.ne.s32.totalorder %s41, %s42
      %p53 = scmp.eq.s32.totalorder %s33, 0
      %p54 = por %p52, %p53
      %p55 = scmp.ne.s32.totalorder %s41, %s42
      %p56 = scmp.eq.s32.totalorder %s34, 1
      %p57 = por %p55, %p56
      %p59 = scmp.ne.s32.totalorder %s42, %s58
      %p60 = scmp.eq.s32.totalorder %s34, 0
      %p61 = por %p59, %p60
      %s63 = sadd.s32 %s62, 1
      %p66 = scmp.eq.s32.totalorder %s28, 1
      %p67 = scmp.ne.s32.totalorder %s62, %s64
      %p68 = scmp.eq.s32.totalorder %s28, 0
      %p69 = por %p67, %p68
      %p70 = scmp.ne.s32.totalorder %s62, %s64
      %p71 = scmp.eq.s32.totalorder %s33, 1
      %p72 = por %p70, %p71
      %p73 = scmp.ne.s32.totalorder %s64, %s65
      %p74 = scmp.eq.s32.totalorder %s33, 0
      %p75 = por %p73, %p74
      %p76 = scmp.ne.s32.totalorder %s64, %s65
      %p77 = scmp.eq.s32.totalorder %s34, 1
      %p78 = por %p76, %p77
      %p80 = scmp.ne.s32.totalorder %s65, %s79
      %p81 = scmp.eq.s32.totalorder %s34, 0
      %p82 = por %p80, %p81
      %s84 = sadd.s32 %s83, 1
      %p87 = scmp.eq.s32.totalorder %s28, 1
      %p88 = scmp.ne.s32.totalorder %s83, %s85
      %p89 = scmp.eq.s32.totalorder %s28, 0
      %p90 = por %p88, %p89
      %p91 = scmp.ne.s32.totalorder %s83, %s85
      %p92 = scmp.eq.s32.totalorder %s33, 1
      %p93 = por %p91, %p92
      %p94 = scmp.ne.s32.totalorder %s85, %s86
      %p95 = scmp.eq.s32.totalorder %s33, 0
      %p96 = por %p94, %p95
      %p97 = scmp.ne.s32.totalorder %s85, %s86
      %p98 = scmp.eq.s32.totalorder %s34, 1
      %p99 = por %p97, %p98
      %p101 = scmp.ne.s32.totalorder %s86, %s100
      %p102 = scmp.eq.s32.totalorder %s34, 0
      %p103 = por %p101, %p102
      %s105 = sadd.s32 %s104, 1
      %p108 = scmp.eq.s32.totalorder %s28, 1
      %p109 = scmp.ne.s32.totalorder %s104, %s106
      %p110 = scmp.eq.s32.totalorder %s28, 0
      %p111 = por %p109, %p110
      %p112 = scmp.ne.s32.totalorder %s104, %s106
      %p113 = scmp.eq.s32.totalorder %s33, 1
      %p114 = por %p112, %p113
      %p115 = scmp.ne.s32.totalorder %s106, %s107
      %p116 = scmp.eq.s32.totalorder %s33, 0
      %p117 = por %p115, %p116
      %p118 = scmp.ne.s32.totalorder %s106, %s107
      %p119 = scmp.eq.s32.totalorder %s34, 1
      %p120 = por %p118, %p119
      %p122 = scmp.ne.s32.totalorder %s107, %s121
      %p123 = scmp.eq.s32.totalorder %s34, 0
      %p124 = por %p122, %p123
      %s126 = sadd.s32 %s125, 1
      %p129 = scmp.eq.s32.totalorder %s28, 1
      %p130 = scmp.ne.s32.totalorder %s125, %s127
      %p131 = scmp.eq.s32.totalorder %s28, 0
      %p132 = por %p130, %p131
      %p133 = scmp.ne.s32.totalorder %s125, %s127
      %p134 = scmp.eq.s32.totalorder %s33, 1
      %p135 = por %p133, %p134
      %p136 = scmp.ne.s32.totalorder %s127, %s128
      %p137 = scmp.eq.s32.totalorder %s33, 0
      %p138 = por %p136, %p137
      %p139 = scmp.ne.s32.totalorder %s127, %s128
      %p140 = scmp.eq.s32.totalorder %s34, 1
      %p141 = por %p139, %p140
      %p143 = scmp.ne.s32.totalorder %s128, %s142
      %p144 = scmp.eq.s32.totalorder %s34, 0
      %p145 = por %p143, %p144
      %s147 = sadd.s32 %s146, 1
      %p150 = scmp.eq.s32.totalorder %s28, 1
      %p151 = scmp.ne.s32.totalorder %s146, %s148
      %p152 = scmp.eq.s32.totalorder %s28, 0
      %p153 = por %p151, %p152
      %p154 = scmp.ne.s32.totalorder %s146, %s148
      %p155 = scmp.eq.s32.totalorder %s33, 1
      %p156 = por %p154, %p155
      %p157 = scmp.ne.s32.totalorder %s148, %s149
      %p158 = scmp.eq.s32.totalorder %s33, 0
      %p159 = por %p157, %p158
      %p160 = scmp.ne.s32.totalorder %s148, %s149
      %p161 = scmp.eq.s32.totalorder %s34, 1
      %p162 = por %p160, %p161
      %p164 = scmp.ne.s32.totalorder %s149, %s163
      %p165 = scmp.eq.s32.totalorder %s34, 0
      %p166 = por %p164, %p165
      %s168 = sadd.s32 %s167, 1
      %p171 = scmp.eq.s32.totalorder %s28, 1
      %p172 = scmp.ne.s32.totalorder %s167, %s169
      %p173 = scmp.eq.s32.totalorder %s28, 0
      %p174 = por %p172, %p173
      %p175 = scmp.ne.s32.totalorder %s167, %s169
      %p176 = scmp.eq.s32.totalorder %s33, 1
      %p177 = por %p175, %p176
      %p178 = scmp.ne.s32.totalorder %s169, %s170
      %p179 = scmp.eq.s32.totalorder %s33, 0
      %p180 = por %p178, %p179
      %p181 = scmp.ne.s32.totalorder %s169, %s170
      %p182 = scmp.eq.s32.totalorder %s34, 1
      %p183 = por %p181, %p182
      %p185 = scmp.ne.s32.totalorder %s170, %s184
      %p186 = scmp.eq.s32.totalorder %s34, 0
      %p187 = por %p185, %p186
      %s189 = sadd.s32 %s188, 1
      %p192 = scmp.eq.s32.totalorder %s28, 1
      %p193 = scmp.ne.s32.totalorder %s188, %s190
      %p194 = scmp.eq.s32.totalorder %s28, 0
      %p195 = por %p193, %p194
      %p196 = scmp.ne.s32.totalorder %s188, %s190
      %p197 = scmp.eq.s32.totalorder %s33, 1
      %p198 = por %p196, %p197
      %p199 = scmp.ne.s32.totalorder %s190, %s191
      %p200 = scmp.eq.s32.totalorder %s33, 0
      %p201 = por %p199, %p200
      %p202 = scmp.ne.s32.totalorder %s190, %s191
      %p203 = scmp.eq.s32.totalorder %s34, 1
      %p204 = por %p202, %p203
      %p206 = scmp.ne.s32.totalorder %s191, %s205
      %p207 = scmp.eq.s32.totalorder %s34, 0
      %p208 = por %p206, %p207
      %s210 = sadd.s32 %s209, 1
      %p213 = scmp.eq.s32.totalorder %s28, 1
      %p214 = scmp.ne.s32.totalorder %s209, %s211
      %p215 = scmp.eq.s32.totalorder %s28, 0
      %p216 = por %p214, %p215
      %p217 = scmp.ne.s32.totalorder %s209, %s211
      %p218 = scmp.eq.s32.totalorder %s33, 1
      %p219 = por %p217, %p218
      %p220 = scmp.ne.s32.totalorder %s211, %s212
      %p221 = scmp.eq.s32.totalorder %s33, 0
      %p222 = por %p220, %p221
      %p223 = scmp.ne.s32.totalorder %s211, %s212
      %p224 = scmp.eq.s32.totalorder %s34, 1
      %p225 = por %p223, %p224
      %p227 = scmp.ne.s32.totalorder %s212, %s226
      %p228 = scmp.eq.s32.totalorder %s34, 0
      %p229 = por %p227, %p228
      %s231 = sadd.s32 %s230, 1
      %p234 = scmp.eq.s32.totalorder %s28, 1
      %p235 = scmp.ne.s32.totalorder %s230, %s232
      %p236 = scmp.eq.s32.totalorder %s28, 0
      %p237 = por %p235, %p236
      %p238 = scmp.ne.s32.totalorder %s230, %s232
      %p239 = scmp.eq.s32.totalorder %s33, 1
      %p240 = por %p238, %p239
      %p241 = scmp.ne.s32.totalorder %s232, %s233
      %p242 = scmp.eq.s32.totalorder %s33, 0
      %p243 = por %p241, %p242
      %p244 = scmp.ne.s32.totalorder %s232, %s233
      %p245 = scmp.eq.s32.totalorder %s34, 1
      %p246 = por %p244, %p245
      %p248 = scmp.ne.s32.totalorder %s233, %s247
      %p249 = scmp.eq.s32.totalorder %s34, 0
      %p250 = por %p248, %p249
      %s252 = sadd.s32 %s251, 1
      %p255 = scmp.eq.s32.totalorder %s28, 1
      %p256 = scmp.ne.s32.totalorder %s251, %s253
      %p257 = scmp.eq.s32.totalorder %s28, 0
      %p258 = por %p256, %p257
      %p259 = scmp.ne.s32.totalorder %s251, %s253
      %p260 = scmp.eq.s32.totalorder %s33, 1
      %p261 = por %p259, %p260
      %p262 = scmp.ne.s32.totalorder %s253, %s254
      %p263 = scmp.eq.s32.totalorder %s33, 0
      %p264 = por %p262, %p263
      %p265 = scmp.ne.s32.totalorder %s253, %s254
      %p266 = scmp.eq.s32.totalorder %s34, 1
      %p267 = por %p265, %p266
      %p269 = scmp.ne.s32.totalorder %s254, %s268
      %p270 = scmp.eq.s32.totalorder %s34, 0
      %p271 = por %p269, %p270
      %s272 = ssub.s32 %s28, %s35
      %p273 = scmp.eq.s32.totalorder %s272, 0
      %s275 = sadd.s32 %s274, 1
      %s276 = scalar_select %p273, %s274, %s275
      %p279 = pneg %p273
      %p280 = scmp.eq.s32.totalorder %s28, 1
      %p281 = por %p279, %p280
      %p282 = scmp.ne.s32.totalorder %s274, %s277
      %p283 = scmp.eq.s32.totalorder %s28, 0
      %p284 = por %p282, %p283
      %p285 = scmp.ne.s32.totalorder %s274, %s277
      %p286 = scmp.eq.s32.totalorder %s33, 1
      %p287 = por %p285, %p286
      %p288 = scmp.ne.s32.totalorder %s277, %s278
      %p289 = scmp.eq.s32.totalorder %s33, 0
      %p290 = por %p288, %p289
      %p291 = scmp.ne.s32.totalorder %s277, %s278
      %p292 = scmp.eq.s32.totalorder %s34, 1
      %p293 = por %p291, %p292
      %p295 = scmp.ne.s32.totalorder %s278, %s294
      %p296 = scmp.eq.s32.totalorder %s34, 0
      %p297 = por %p295, %p296
      %p298 = scmp.le.s32.totalorder 1, %s28
      %p299 = scmp.lt.s32.totalorder %s28, 3
      %p300 = pnand %p298, %p299
      %p301 = pneg %p300
      // Predicated region
      $region9: #{tpu_custom_call.1} parent=5 // pred_check
        _
      $region10: #{tpu_custom_call.1} parent=5 // pred_check_branch
        %303 = sbr.rel (%p300) target = $region12
      $region11: #{tpu_custom_call.1} parent=5 // pred_region
        %s304 = ssub.s32 %s28, 1
        // Predicated region
        $region13: #{tpu_custom_call.1} parent=11 // pred_check
          %p305 = pneg %p75
        $region14: #{tpu_custom_call.1} parent=11 // pred_check_branch
          %307 = sbr.rel (%p305) target = $region16
        $region15: #{tpu_custom_call.1} parent=11 // pred_region
          _
        $region16: #{tpu_custom_call.1} parent=11 // pred_fallthru
          _
        // Predicated region
        $region17: #{tpu_custom_call.1} parent=11 // pred_check
          %p308 = pneg %p96
        $region18: #{tpu_custom_call.1} parent=11 // pred_check_branch
          %310 = sbr.rel (%p308) target = $region20
        $region19: #{tpu_custom_call.1} parent=11 // pred_region
          _
        $region20: #{tpu_custom_call.1} parent=11 // pred_fallthru
          _
        // Predicated region
        $region21: #{tpu_custom_call.1} parent=11 // pred_check
          %p311 = pneg %p117
        $region22: #{tpu_custom_call.1} parent=11 // pred_check_branch
          %313 = sbr.rel (%p311) target = $region24
        $region23: #{tpu_custom_call.1} parent=11 // pred_region
          %s315 = ssub.s32 32, 32
          %316 = vsyncadd [#allocation8], %s315
          %s318 = sshll.u32 %s3, 4
          %s319 = int_to_ptr.vmem [resolvable:$true] %s318
          %321 = dma.vmem_to_smem %s319, 32, [#allocation9], [#allocation8]
        $region24: #{tpu_custom_call.1} parent=11 // pred_fallthru
          _
        // Predicated region
        $region25: #{tpu_custom_call.1} parent=11 // pred_check
          %p322 = pneg %p138
        $region26: #{tpu_custom_call.1} parent=11 // pred_check_branch
          %324 = sbr.rel (%p322) target = $region28
        $region27: #{tpu_custom_call.1} parent=11 // pred_region
          %s326 = ssub.s32 16, 16
          %327 = vsyncadd [#allocation11], %s326
          %s329 = sshll.u32 %s4, 4
          %s330 = int_to_ptr.vmem [resolvable:$true] %s329
          %332 = dma.vmem_to_smem %s330, 16, [#allocation10], [#allocation11]
        $region28: #{tpu_custom_call.1} parent=11 // pred_fallthru
          _
        // Predicated region
        $region29: #{tpu_custom_call.1} parent=11 // pred_check
          %p333 = pneg %p159
        $region30: #{tpu_custom_call.1} parent=11 // pred_check_branch
          %335 = sbr.rel (%p333) target = $region32
        $region31: #{tpu_custom_call.1} parent=11 // pred_region
          %s337 = ssub.s32 16, 16
          %338 = vsyncadd [#allocation11], %s337
          %s340 = sshll.u32 %s5, 4
          %s341 = int_to_ptr.vmem [resolvable:$true] %s340
          %343 = dma.vmem_to_smem %s341, 16, [#allocation12], [#allocation11]
        $region32: #{tpu_custom_call.1} parent=11 // pred_fallthru
          _
        // Predicated region
        $region33: #{tpu_custom_call.1} parent=11 // pred_check
          %p344 = pneg %p180
        $region34: #{tpu_custom_call.1} parent=11 // pred_check_branch
          %346 = sbr.rel (%p344) target = $region36
        $region35: #{tpu_custom_call.1} parent=11 // pred_region
          %s348 = ssub.s32 32, 32
          %349 = vsyncadd [#allocation14], %s348
          %s351 = sshll.u32 %s6, 4
          %s352 = int_to_ptr.vmem [resolvable:$true] %s351
          %354 = dma.vmem_to_smem %s352, 32, [#allocation13], [#allocation14]
        $region36: #{tpu_custom_call.1} parent=11 // pred_fallthru
          _
        // Predicated region
        $region37: #{tpu_custom_call.1} parent=11 // pred_check
          %p355 = pneg %p201
        $region38: #{tpu_custom_call.1} parent=11 // pred_check_branch
          %357 = sbr.rel (%p355) target = $region40
        $region39: #{tpu_custom_call.1} parent=11 // pred_region
          %s359 = ssub.s32 16, 16
          %360 = vsyncadd [#allocation14], %s359
          %s362 = sshll.u32 %s7, 4
          %s363 = int_to_ptr.vmem [resolvable:$true] %s362
          %365 = dma.vmem_to_smem %s363, 16, [#allocation15], [#allocation14]
        $region40: #{tpu_custom_call.1} parent=11 // pred_fallthru
          _
        // Predicated region
        $region41: #{tpu_custom_call.1} parent=11 // pred_check
          %p366 = pneg %p222
        $region42: #{tpu_custom_call.1} parent=11 // pred_check_branch
          %368 = sbr.rel (%p366) target = $region44
        $region43: #{tpu_custom_call.1} parent=11 // pred_region
          %s370 = ssub.s32 16, 16
          %371 = vsyncadd [#allocation17], %s370
          %s373 = sshll.u32 %s8, 4
          %s374 = int_to_ptr.vmem [resolvable:$true] %s373
          %376 = dma.vmem_to_smem %s374, 16, [#allocation16], [#allocation17]
        $region44: #{tpu_custom_call.1} parent=11 // pred_fallthru
          _
        // Predicated region
        $region45: #{tpu_custom_call.1} parent=11 // pred_check
          %p377 = pneg %p243
        $region46: #{tpu_custom_call.1} parent=11 // pred_check_branch
          %379 = sbr.rel (%p377) target = $region48
        $region47: #{tpu_custom_call.1} parent=11 // pred_region
          %s381 = ssub.s32 16, 16
          %382 = vsyncadd [#allocation17], %s381
          %s384 = sshll.u32 %s9, 4
          %s385 = int_to_ptr.vmem [resolvable:$true] %s384
          %387 = dma.vmem_to_smem %s385, 16, [#allocation18], [#allocation17]
        $region48: #{tpu_custom_call.1} parent=11 // pred_fallthru
          _
        // Predicated region
        $region49: #{tpu_custom_call.1} parent=11 // pred_check
          %p388 = pneg %p264
        $region50: #{tpu_custom_call.1} parent=11 // pred_check_branch
          %390 = sbr.rel (%p388) target = $region52
        $region51: #{tpu_custom_call.1} parent=11 // pred_region
          _
        $region52: #{tpu_custom_call.1} parent=11 // pred_fallthru
          _
      $region12: #{tpu_custom_call.1} parent=5 // pred_fallthru
        _
      %p391 = scmp.lt.s32.totalorder %s28, 2
      // Predicated region
      $region53: #{tpu_custom_call.1} parent=5 // pred_check
        %p392 = pneg %p391
      $region54: #{tpu_custom_call.1} parent=5 // pred_check_branch
        %394 = sbr.rel (%p392) target = $region56
      $region55: #{tpu_custom_call.1} parent=5 // pred_region
        // Predicated region
        $region57: #{tpu_custom_call.1} parent=55 // pred_check
          %p395 = pneg %p48
        $region58: #{tpu_custom_call.1} parent=55 // pred_check_branch
          %397 = sbr.rel (%p395) target = $region60
        $region59: #{tpu_custom_call.1} parent=55 // pred_region
          %s398 = sand.u32 %s38, 1
          %s399 = scalar_lea.sflag [#allocation6], %s398
          %s400 = sand.u32 %s38, 1
          %s401 = smul.addr %s400, 64
          %s402 = scalar_lea.vmem [#allocation5], %s401
          %s404 = ssub.s32 1024, 1024
          %405 = vsyncadd %s399, %s404
          %s406 = smul.addr %s28, 8
          %s407 = smul.addr %s406, 128
          %s408 = scalar_lea.hbm %s0, %s407
          %s409 = sshll.u32 %s402, 4
          %s410 = int_to_ptr.vmem [resolvable:$true] %s409
          %415 = dma.hbm_to_vmem [thread:$0]  %s408, 1024, %s410, %s399, 128, 128, 8
        $region60: #{tpu_custom_call.1} parent=55 // pred_fallthru
          _
      $region56: #{tpu_custom_call.1} parent=5 // pred_fallthru
        _
      %p416 = scmp.le.s32.totalorder 1, %s28
      %p417 = scmp.lt.s32.totalorder %s28, 3
      %p418 = pnand %p416, %p417
      %p419 = pneg %p418
      // Predicated region
      $region61: #{tpu_custom_call.1} parent=5 // pred_check
        _
      $region62: #{tpu_custom_call.1} parent=5 // pred_check_branch
        %421 = sbr.rel (%p418) target = $region64
      $region63: #{tpu_custom_call.1} parent=5 // pred_region
        %s422 = ssub.s32 %s28, 1
        %s423 = sand.u32 %s41, 1
        %s424 = scalar_lea.sflag [#allocation6], %s423
        %s425 = sand.u32 %s41, 1
        %s426 = smul.addr %s425, 64
        %s427 = scalar_lea.vmem [#allocation5], %s426
        // Predicated region
        $region65: #{tpu_custom_call.1} parent=63 // pred_check
          %p428 = pneg %p54
        $region66: #{tpu_custom_call.1} parent=63 // pred_check_branch
          %430 = sbr.rel (%p428) target = $region68
        $region67: #{tpu_custom_call.1} parent=63 // pred_region
          %431 = dma.done %s424, 1024
        $region68: #{tpu_custom_call.1} parent=63 // pred_fallthru
          _
        // Predicated region
        $region69: #{tpu_custom_call.1} parent=63 // pred_check
          %p432 = pneg %p117
        $region70: #{tpu_custom_call.1} parent=63 // pred_check_branch
          %434 = sbr.rel (%p432) target = $region72
        $region71: #{tpu_custom_call.1} parent=63 // pred_region
          %435 = dma.done [#allocation8], 32
        $region72: #{tpu_custom_call.1} parent=63 // pred_fallthru
          _
        // Predicated region
        $region73: #{tpu_custom_call.1} parent=63 // pred_check
          %p436 = pneg %p138
        $region74: #{tpu_custom_call.1} parent=63 // pred_check_branch
          %438 = sbr.rel (%p436) target = $region76
        $region75: #{tpu_custom_call.1} parent=63 // pred_region
          %439 = dma.done [#allocation11], 16
        $region76: #{tpu_custom_call.1} parent=63 // pred_fallthru
          _
        // Predicated region
        $region77: #{tpu_custom_call.1} parent=63 // pred_check
          %p440 = pneg %p159
        $region78: #{tpu_custom_call.1} parent=63 // pred_check_branch
          %442 = sbr.rel (%p440) target = $region80
        $region79: #{tpu_custom_call.1} parent=63 // pred_region
          %443 = dma.done [#allocation11], 16
        $region80: #{tpu_custom_call.1} parent=63 // pred_fallthru
          _
        // Predicated region
        $region81: #{tpu_custom_call.1} parent=63 // pred_check
          %p444 = pneg %p180
        $region82: #{tpu_custom_call.1} parent=63 // pred_check_branch
          %446 = sbr.rel (%p444) target = $region84
        $region83: #{tpu_custom_call.1} parent=63 // pred_region
          %447 = dma.done [#allocation14], 32
        $region84: #{tpu_custom_call.1} parent=63 // pred_fallthru
          _
        // Predicated region
        $region85: #{tpu_custom_call.1} parent=63 // pred_check
          %p448 = pneg %p201
        $region86: #{tpu_custom_call.1} parent=63 // pred_check_branch
          %450 = sbr.rel (%p448) target = $region88
        $region87: #{tpu_custom_call.1} parent=63 // pred_region
          %451 = dma.done [#allocation14], 16
        $region88: #{tpu_custom_call.1} parent=63 // pred_fallthru
          _
        // Predicated region
        $region89: #{tpu_custom_call.1} parent=63 // pred_check
          %p452 = pneg %p222
        $region90: #{tpu_custom_call.1} parent=63 // pred_check_branch
          %454 = sbr.rel (%p452) target = $region92
        $region91: #{tpu_custom_call.1} parent=63 // pred_region
          %455 = dma.done [#allocation17], 16
        $region92: #{tpu_custom_call.1} parent=63 // pred_fallthru
          _
        // Predicated region
        $region93: #{tpu_custom_call.1} parent=63 // pred_check
          %p456 = pneg %p243
        $region94: #{tpu_custom_call.1} parent=63 // pred_check_branch
          %458 = sbr.rel (%p456) target = $region96
        $region95: #{tpu_custom_call.1} parent=63 // pred_region
          %459 = dma.done [#allocation17], 16
        $region96: #{tpu_custom_call.1} parent=63 // pred_fallthru
          _
        %460 = sfence
        %s461 = sand.u32 %s41, 1
        %s462 = scalar_lea.sflag [#allocation6], %s461
        %s463 = sand.u32 %s41, 1
        %s464 = smul.addr %s463, 64
        %s465 = scalar_lea.vmem [#allocation5], %s464
        %p466 = pneg %p54
        %p467 = pneg %p51
        %p468 = pneg %p75
        %p469 = pneg %p72
        %p470 = pneg %p96
        %p471 = pneg %p93
        %p472 = pneg %p117
        %p473 = pneg %p114
        %p474 = pneg %p138
        %p475 = pneg %p135
        %p476 = pneg %p159
        %p477 = pneg %p156
        %p478 = pneg %p180
        %p479 = pneg %p177
        %p480 = pneg %p201
        %p481 = pneg %p198
        %p482 = pneg %p222
        %p483 = pneg %p219
        %p484 = pneg %p243
        %p485 = pneg %p240
        %p486 = pneg %p264
        %p487 = pneg %p261
        %p488 = pneg %p290
        %p489 = pneg %p287
        %s490 = sand.u32 %s277, 1
        %s491 = scalar_lea.sflag [#allocation7], %s490
        %s492 = sand.u32 %s277, 1
        %s493 = smul.addr %s492, 32
        %s494 = scalar_lea.vmem [#allocation19], %s493
        %vm495 = vcmask 277504
        %496 = vst.msk [vmem:[#allocation2] sm:$0xff] %vm495, 0.0
        %497 = vst.msk [vmem:[#allocation2 + $0x8] sm:$0xff] %vm495, 0.0
        %498 = vst.msk [vmem:[#allocation2 + $0x10] sm:$0xff] %vm495, 0.0
        %499 = vst.msk [vmem:[#allocation2 + $0x18] sm:$0xff] %vm495, 0.0
        %vm500 = vcmask 271360
        %501 = vst.msk [vmem:[#allocation2 + $0x20] sm:$0x3] %vm500, 0.0
        %502 = vst.msk [vmem:[#allocation2 + $0x28] sm:$0xff] %vm495, 0.0
        %503 = vst.msk [vmem:[#allocation2 + $0x30] sm:$0xff] %vm495, 0.0
        %504 = vst.msk [vmem:[#allocation2 + $0x38] sm:$0xff] %vm495, 0.0
        %505 = vst.msk [vmem:[#allocation2 + $0x40] sm:$0xff] %vm495, 0.0
        %506 = vst.msk [vmem:[#allocation2 + $0x48] sm:$0x3] %vm500, 0.0
        %507 = vst.msk [vmem:[#allocation2 + $0x50] sm:$0xff] %vm495, 0.0
        %508 = vst.msk [vmem:[#allocation2 + $0x58] sm:$0xff] %vm495, 0.0
        %509 = vst.msk [vmem:[#allocation2 + $0x60] sm:$0xff] %vm495, 0.0
        %510 = vst.msk [vmem:[#allocation2 + $0x68] sm:$0xff] %vm495, 0.0
        %511 = vst.msk [vmem:[#allocation2 + $0x70] sm:$0x3] %vm500, 0.0
        %512 = vst.msk [vmem:[#allocation2 + $0x78] sm:$0xff] %vm495, 0.0
        %513 = vst.msk [vmem:[#allocation2 + $0x80] sm:$0xff] %vm495, 0.0
        %514 = vst.msk [vmem:[#allocation2 + $0x88] sm:$0xff] %vm495, 0.0
        %515 = vst.msk [vmem:[#allocation2 + $0x90] sm:$0xff] %vm495, 0.0
        %516 = vst.msk [vmem:[#allocation2 + $0x98] sm:$0x3] %vm500, 0.0
        %517 = vst.msk [vmem:[#allocation3] sm:$0xff] %vm495, 0.0
        %518 = vst.msk [vmem:[#allocation3 + $0x8] sm:$0xff] %vm495, 0.0
        %519 = vst.msk [vmem:[#allocation3 + $0x10] sm:$0xff] %vm495, 0.0
        %520 = vst.msk [vmem:[#allocation3 + $0x18] sm:$0xff] %vm495, 0.0
        %521 = vst.msk [vmem:[#allocation3 + $0x20] sm:$0x3] %vm500, 0.0
        %522 = vst.msk [vmem:[#allocation3 + $0x28] sm:$0xff] %vm495, 0.0
        %523 = vst.msk [vmem:[#allocation3 + $0x30] sm:$0xff] %vm495, 0.0
        %524 = vst.msk [vmem:[#allocation3 + $0x38] sm:$0xff] %vm495, 0.0
        %525 = vst.msk [vmem:[#allocation3 + $0x40] sm:$0xff] %vm495, 0.0
        %526 = vst.msk [vmem:[#allocation3 + $0x48] sm:$0x3] %vm500, 0.0
        %527 = vst.msk [vmem:[#allocation3 + $0x50] sm:$0xff] %vm495, 0.0
        %528 = vst.msk [vmem:[#allocation3 + $0x58] sm:$0xff] %vm495, 0.0
        %529 = vst.msk [vmem:[#allocation3 + $0x60] sm:$0xff] %vm495, 0.0
        %530 = vst.msk [vmem:[#allocation3 + $0x68] sm:$0xff] %vm495, 0.0
        %531 = vst.msk [vmem:[#allocation3 + $0x70] sm:$0x3] %vm500, 0.0
        %532 = vst.msk [vmem:[#allocation3 + $0x78] sm:$0xff] %vm495, 0.0
        %533 = vst.msk [vmem:[#allocation3 + $0x80] sm:$0xff] %vm495, 0.0
        %534 = vst.msk [vmem:[#allocation3 + $0x88] sm:$0xff] %vm495, 0.0
        %535 = vst.msk [vmem:[#allocation3 + $0x90] sm:$0xff] %vm495, 0.0
        %536 = vst.msk [vmem:[#allocation3 + $0x98] sm:$0x3] %vm500, 0.0
        %v537 = vld [vmem:[%s1] sm:$0xff]
        %v538 = vld [vmem:[%s1 + $0x8] sm:$0xff]
        %v539 = vld [vmem:[%s1 + $0x10] sm:$0xff]
        %v540 = vld [vmem:[%s1 + $0x18] sm:$0xff]
        %v541 = vld [vmem:[%s2] sm:$0xff]
        %v542 = vld [vmem:[%s2 + $0x8] sm:$0xff]
        %v543 = vld [vmem:[%s427] sm:$0xff]
        %v544 = vld [vmem:[%s427 + $0x8] sm:$0xff]
        %vm545 = vcmask 130048
        %v547 = vsel %vm545, %v543, 0
        %v550 = vsel %vm545, %v544, 0
        %552 = vmatprep.subr.mxu0 0.0
        %553 = vmatpush1.msra.mxu0 0.0
        %554 = vmatprep.subr.mxu0 0.0
        %555 = vmatpush1.msra.mxu0 0.0
        %556 = vmatprep.subr.mxu0 0.0
        %557 = vmatpush1.msra.mxu0 0.0
        %558 = vmatprep.subr.mxu0 0.0
        %559 = vmatpush1.msra.mxu0 0.0
        %560 = vmatprep.subr.mxu0 0.0
        %561 = vmatpush1.msra.mxu0 0.0
        %562 = vmatprep.subr.mxu0 0.0
        %563 = vmatpush1.msra.mxu0 0.0
        %564 = vmatprep.subr.mxu0 0.0
        %565 = vmatpush1.msra.mxu0 0.0
        %566 = vmatprep.subr.mxu0 0.0
        %567 = vmatpush1.msra.mxu0 0.0
        %568 = vmatprep.subr.mxu0 0.0
        %569 = vmatpush1.msra.mxu0 0.0
        %570 = vmatprep.subr.mxu0 0.0
        %571 = vmatpush1.msra.mxu0 0.0
        %572 = vmatprep.subr.mxu0 0.0
        %573 = vmatpush1.msra.mxu0 0.0
        %574 = vmatprep.subr.mxu0 0.0
        %575 = vmatpush1.msra.mxu0 0.0
        %576 = vmatprep.subr.mxu0 0.0
        %577 = vmatpush1.msra.mxu0 0.0
        %578 = vmatprep.subr.mxu0 0.0
        %579 = vmatpush1.msra.mxu0 0.0
        %580 = vmatprep.subr.mxu0 0.0
        %581 = vmatpush1.msra.mxu0 %v542
        %582 = vmatprep.subr.mxu0 0.0
        %583 = vmatpush1.msra.mxu0 %v541
        %584 = vmatprep.subr.mxu0 0.0
        %585 = vmatpush2.msra.mxu0 0.0
        %586 = vmatprep.subr.mxu0 0.0
        %587 = vmatpush2.msra.mxu0 0.0
        %588 = vmatprep.subr.mxu0 0.0
        %589 = vmatpush2.msra.mxu0 0.0
        %590 = vmatprep.subr.mxu0 0.0
        %591 = vmatpush2.msra.mxu0 0.0
        %592 = vmatprep.subr.mxu0 0.0
        %593 = vmatpush2.msra.mxu0 0.0
        %594 = vmatprep.subr.mxu0 0.0
        %595 = vmatpush2.msra.mxu0 0.0
        %596 = vmatprep.subr.mxu0 0.0
        %597 = vmatpush2.msra.mxu0 0.0
        %598 = vmatprep.subr.mxu0 0.0
        %599 = vmatpush2.msra.mxu0 0.0
        %600 = vmatprep.subr.mxu0 0.0
        %601 = vmatpush2.msra.mxu0 0.0
        %602 = vmatprep.subr.mxu0 0.0
        %603 = vmatpush2.msra.mxu0 0.0
        %604 = vmatprep.subr.mxu0 0.0
        %605 = vmatpush2.msra.mxu0 0.0
        %606 = vmatprep.subr.mxu0 0.0
        %607 = vmatpush2.msra.mxu0 0.0
        %608 = vmatprep.subr.mxu0 0.0
        %609 = vmatpush2.msra.mxu0 0.0
        %610 = vmatprep.subr.mxu0 0.0
        %611 = vmatpush2.msra.mxu0 0.0
        %612 = vmatprep.subr.mxu0 0.0
        %613 = vmatpush2.msra.mxu0 0.0
        %614 = vmatprep.subr.mxu0 0.0
        %615 = vmatpush2.msra.mxu0 0.0
        %616 = vmatprep.mubr.f32.mxu0 0.0
        %617 = vmatmul.mubr.f32.gmra.mxu0 %v547
        %v618 = vpop.f32.mrf.mxu0
        %v619 = vadd.f32 0.0, %v618
        %v620 = vpop.f32.mrf.mxu0
        %621 = vmatprep.mubr.f32.mxu0 0.0
        %622 = vmatmul.mubr.f32.gmra.mxu0 %v550
        %v623 = vpop.f32.mrf.mxu0
        %v624 = vadd.f32 0.0, %v623
        %v625 = vpop.f32.mrf.mxu0
        %626 = vdwg.mxu0
        %v628 = vsel %vm545, %v537, 0
        %v631 = vsel %vm545, %v538, 0
        %v634 = vsel %vm545, %v539, 0
        %v637 = vsel %vm545, %v540, 0
        %639 = vmatprep.subr.mxu0 0.0
        %640 = vmatpush1.msra.mxu0 0.0
        %641 = vmatprep.subr.mxu0 0.0
        %642 = vmatpush1.msra.mxu0 0.0
        %643 = vmatprep.subr.mxu0 0.0
        %644 = vmatpush1.msra.mxu0 0.0
        %645 = vmatprep.subr.mxu0 0.0
        %646 = vmatpush1.msra.mxu0 0.0
        %647 = vmatprep.subr.mxu0 0.0
        %648 = vmatpush1.msra.mxu0 0.0
        %649 = vmatprep.subr.mxu0 0.0
        %650 = vmatpush1.msra.mxu0 0.0
        %651 = vmatprep.subr.mxu0 0.0
        %652 = vmatpush1.msra.mxu0 0.0
        %653 = vmatprep.subr.mxu0 0.0
        %654 = vmatpush1.msra.mxu0 0.0
        %655 = vmatprep.subr.mxu0 0.0
        %656 = vmatpush1.msra.mxu0 0.0
        %657 = vmatprep.subr.mxu0 0.0
        %658 = vmatpush1.msra.mxu0 0.0
        %659 = vmatprep.subr.mxu0 0.0
        %660 = vmatpush1.msra.mxu0 0.0
        %661 = vmatprep.subr.mxu0 0.0
        %662 = vmatpush1.msra.mxu0 0.0
        %663 = vmatprep.subr.mxu0 0.0
        %664 = vmatpush1.msra.mxu0 0.0
        %665 = vmatprep.subr.mxu0 0.0
        %666 = vmatpush1.msra.mxu0 0.0
        %667 = vmatprep.subr.mxu0 0.0
        %668 = vmatpush1.msra.mxu0 %v624
        %669 = vmatprep.subr.mxu0 0.0
        %670 = vmatpush1.msra.mxu0 %v619
        %671 = vmatprep.subr.mxu0 0.0
        %672 = vmatpush2.msra.mxu0 0.0
        %673 = vmatprep.subr.mxu0 0.0
        %674 = vmatpush2.msra.mxu0 0.0
        %675 = vmatprep.subr.mxu0 0.0
        %676 = vmatpush2.msra.mxu0 0.0
        %677 = vmatprep.subr.mxu0 0.0
        %678 = vmatpush2.msra.mxu0 0.0
        %679 = vmatprep.subr.mxu0 0.0
        %680 = vmatpush2.msra.mxu0 0.0
        %681 = vmatprep.subr.mxu0 0.0
        %682 = vmatpush2.msra.mxu0 0.0
        %683 = vmatprep.subr.mxu0 0.0
        %684 = vmatpush2.msra.mxu0 0.0
        %685 = vmatprep.subr.mxu0 0.0
        %686 = vmatpush2.msra.mxu0 0.0
        %687 = vmatprep.subr.mxu0 0.0
        %688 = vmatpush2.msra.mxu0 0.0
        %689 = vmatprep.subr.mxu0 0.0
        %690 = vmatpush2.msra.mxu0 0.0
        %691 = vmatprep.subr.mxu0 0.0
        %692 = vmatpush2.msra.mxu0 0.0
        %693 = vmatprep.subr.mxu0 0.0
        %694 = vmatpush2.msra.mxu0 0.0
        %695 = vmatprep.subr.mxu0 0.0
        %696 = vmatpush2.msra.mxu0 0.0
        %697 = vmatprep.subr.mxu0 0.0
        %698 = vmatpush2.msra.mxu0 0.0
        %699 = vmatprep.subr.mxu0 0.0
        %700 = vmatpush2.msra.mxu0 0.0
        %701 = vmatprep.subr.mxu0 0.0
        %702 = vmatpush2.msra.mxu0 0.0
        %703 = vmatprep.mubr.f32.mxu0 0.0
        %704 = vmatmul.mubr.f32.gmra.mxu0 %v628
        %v705 = vpop.f32.mrf.mxu0
        %v706 = vadd.f32 0.0, %v705
        %v707 = vpop.f32.mrf.mxu0
        %708 = vmatprep.mubr.f32.mxu0 0.0
        %709 = vmatmul.mubr.f32.gmra.mxu0 %v631
        %v710 = vpop.f32.mrf.mxu0
        %v711 = vadd.f32 0.0, %v710
        %v712 = vpop.f32.mrf.mxu0
        %713 = vmatprep.mubr.f32.mxu0 0.0
        %714 = vmatmul.mubr.f32.gmra.mxu0 %v634
        %v715 = vpop.f32.mrf.mxu0
        %v716 = vadd.f32 0.0, %v715
        %v717 = vpop.f32.mrf.mxu0
        %718 = vmatprep.mubr.f32.mxu0 0.0
        %719 = vmatmul.mubr.f32.gmra.mxu0 %v637
        %v720 = vpop.f32.mrf.mxu0
        %v721 = vadd.f32 0.0, %v720
        %v722 = vpop.f32.mrf.mxu0
        %723 = vdwg.mxu0
        %728 = vrot.lane.b32.xlu0 %v706, 1
        %v729 = vpop.permute.xlu0 %728
        %730 = vrot.lane.b32.xlu0 %v711, 1
        %v731 = vpop.permute.xlu0 %730
        %732 = vrot.lane.b32.xlu0 %v716, 1
        %v733 = vpop.permute.xlu0 %732
        %734 = vrot.lane.b32.xlu0 %v721, 1
        %v735 = vpop.permute.xlu0 %734
        %vm740 = vcmask 269320
        %741 = vst.msk [vmem:[#allocation2 + $0x1] sm:$0xff] %vm740, %v729
        %742 = vst.msk [vmem:[#allocation2 + $0x9] sm:$0xff] %vm740, %v731
        %743 = vst.msk [vmem:[#allocation2 + $0x11] sm:$0xff] %vm740, %v733
        %744 = vst.msk [vmem:[#allocation2 + $0x19] sm:$0xff] %vm740, %v735
        %s745 = scalar_lea.vmem %s427, 16 [#allocation5]
        %v746 = vld [vmem:[%s745] sm:$0xff]
        %v747 = vld [vmem:[%s745 + $0x8] sm:$0xff]
        %v749 = vsel %vm545, %v746, 0
        %v752 = vsel %vm545, %v747, 0
        %754 = vmatprep.subr.mxu0 0.0
        %755 = vmatpush1.msra.mxu0 0.0
        %756 = vmatprep.subr.mxu0 0.0
        %757 = vmatpush1.msra.mxu0 0.0
        %758 = vmatprep.subr.mxu0 0.0
        %759 = vmatpush1.msra.mxu0 0.0
        %760 = vmatprep.subr.mxu0 0.0
        %761 = vmatpush1.msra.mxu0 0.0
        %762 = vmatprep.subr.mxu0 0.0
        %763 = vmatpush1.msra.mxu0 0.0
        %764 = vmatprep.subr.mxu0 0.0
        %765 = vmatpush1.msra.mxu0 0.0
        %766 = vmatprep.subr.mxu0 0.0
        %767 = vmatpush1.msra.mxu0 0.0
        %768 = vmatprep.subr.mxu0 0.0
        %769 = vmatpush1.msra.mxu0 0.0
        %770 = vmatprep.subr.mxu0 0.0
        %771 = vmatpush1.msra.mxu0 0.0
        %772 = vmatprep.subr.mxu0 0.0
        %773 = vmatpush1.msra.mxu0 0.0
        %774 = vmatprep.subr.mxu0 0.0
        %775 = vmatpush1.msra.mxu0 0.0
        %776 = vmatprep.subr.mxu0 0.0
        %777 = vmatpush1.msra.mxu0 0.0
        %778 = vmatprep.subr.mxu0 0.0
        %779 = vmatpush1.msra.mxu0 0.0
        %780 = vmatprep.subr.mxu0 0.0
        %781 = vmatpush1.msra.mxu0 0.0
        %782 = vmatprep.subr.mxu0 0.0
        %783 = vmatpush1.msra.mxu0 %v542
        %784 = vmatprep.subr.mxu0 0.0
        %785 = vmatpush1.msra.mxu0 %v541
        %786 = vmatprep.subr.mxu0 0.0
        %787 = vmatpush2.msra.mxu0 0.0
        %788 = vmatprep.subr.mxu0 0.0
        %789 = vmatpush2.msra.mxu0 0.0
        %790 = vmatprep.subr.mxu0 0.0
        %791 = vmatpush2.msra.mxu0 0.0
        %792 = vmatprep.subr.mxu0 0.0
        %793 = vmatpush2.msra.mxu0 0.0
        %794 = vmatprep.subr.mxu0 0.0
        %795 = vmatpush2.msra.mxu0 0.0
        %796 = vmatprep.subr.mxu0 0.0
        %797 = vmatpush2.msra.mxu0 0.0
        %798 = vmatprep.subr.mxu0 0.0
        %799 = vmatpush2.msra.mxu0 0.0
        %800 = vmatprep.subr.mxu0 0.0
        %801 = vmatpush2.msra.mxu0 0.0
        %802 = vmatprep.subr.mxu0 0.0
        %803 = vmatpush2.msra.mxu0 0.0
        %804 = vmatprep.subr.mxu0 0.0
        %805 = vmatpush2.msra.mxu0 0.0
        %806 = vmatprep.subr.mxu0 0.0
        %807 = vmatpush2.msra.mxu0 0.0
        %808 = vmatprep.subr.mxu0 0.0
        %809 = vmatpush2.msra.mxu0 0.0
        %810 = vmatprep.subr.mxu0 0.0
        %811 = vmatpush2.msra.mxu0 0.0
        %812 = vmatprep.subr.mxu0 0.0
        %813 = vmatpush2.msra.mxu0 0.0
        %814 = vmatprep.subr.mxu0 0.0
        %815 = vmatpush2.msra.mxu0 0.0
        %816 = vmatprep.subr.mxu0 0.0
        %817 = vmatpush2.msra.mxu0 0.0
        %818 = vmatprep.mubr.f32.mxu0 0.0
        %819 = vmatmul.mubr.f32.gmra.mxu0 %v749
        %v820 = vpop.f32.mrf.mxu0
        %v821 = vadd.f32 0.0, %v820
        %v822 = vpop.f32.mrf.mxu0
        %823 = vmatprep.mubr.f32.mxu0 0.0
        %824 = vmatmul.mubr.f32.gmra.mxu0 %v752
        %v825 = vpop.f32.mrf.mxu0
        %v826 = vadd.f32 0.0, %v825
        %v827 = vpop.f32.mrf.mxu0
        %828 = vdwg.mxu0
        %829 = vmatprep.subr.mxu0 0.0
        %830 = vmatpush1.msra.mxu0 0.0
        %831 = vmatprep.subr.mxu0 0.0
        %832 = vmatpush1.msra.mxu0 0.0
        %833 = vmatprep.subr.mxu0 0.0
        %834 = vmatpush1.msra.mxu0 0.0
        %835 = vmatprep.subr.mxu0 0.0
        %836 = vmatpush1.msra.mxu0 0.0
        %837 = vmatprep.subr.mxu0 0.0
        %838 = vmatpush1.msra.mxu0 0.0
        %839 = vmatprep.subr.mxu0 0.0
        %840 = vmatpush1.msra.mxu0 0.0
        %841 = vmatprep.subr.mxu0 0.0
        %842 = vmatpush1.msra.mxu0 0.0
        %843 = vmatprep.subr.mxu0 0.0
        %844 = vmatpush1.msra.mxu0 0.0
        %845 = vmatprep.subr.mxu0 0.0
        %846 = vmatpush1.msra.mxu0 0.0
        %847 = vmatprep.subr.mxu0 0.0
        %848 = vmatpush1.msra.mxu0 0.0
        %849 = vmatprep.subr.mxu0 0.0
        %850 = vmatpush1.msra.mxu0 0.0
        %851 = vmatprep.subr.mxu0 0.0
        %852 = vmatpush1.msra.mxu0 0.0
        %853 = vmatprep.subr.mxu0 0.0
        %854 = vmatpush1.msra.mxu0 0.0
        %855 = vmatprep.subr.mxu0 0.0
        %856 = vmatpush1.msra.mxu0 0.0
        %857 = vmatprep.subr.mxu0 0.0
        %858 = vmatpush1.msra.mxu0 %v826
        %859 = vmatprep.subr.mxu0 0.0
        %860 = vmatpush1.msra.mxu0 %v821
        %861 = vmatprep.subr.mxu0 0.0
        %862 = vmatpush2.msra.mxu0 0.0
        %863 = vmatprep.subr.mxu0 0.0
        %864 = vmatpush2.msra.mxu0 0.0
        %865 = vmatprep.subr.mxu0 0.0
        %866 = vmatpush2.msra.mxu0 0.0
        %867 = vmatprep.subr.mxu0 0.0
        %868 = vmatpush2.msra.mxu0 0.0
        %869 = vmatprep.subr.mxu0 0.0
        %870 = vmatpush2.msra.mxu0 0.0
        %871 = vmatprep.subr.mxu0 0.0
        %872 = vmatpush2.msra.mxu0 0.0
        %873 = vmatprep.subr.mxu0 0.0
        %874 = vmatpush2.msra.mxu0 0.0
        %875 = vmatprep.subr.mxu0 0.0
        %876 = vmatpush2.msra.mxu0 0.0
        %877 = vmatprep.subr.mxu0 0.0
        %878 = vmatpush2.msra.mxu0 0.0
        %879 = vmatprep.subr.mxu0 0.0
        %880 = vmatpush2.msra.mxu0 0.0
        %881 = vmatprep.subr.mxu0 0.0
        %882 = vmatpush2.msra.mxu0 0.0
        %883 = vmatprep.subr.mxu0 0.0
        %884 = vmatpush2.msra.mxu0 0.0
        %885 = vmatprep.subr.mxu0 0.0
        %886 = vmatpush2.msra.mxu0 0.0
        %887 = vmatprep.subr.mxu0 0.0
        %888 = vmatpush2.msra.mxu0 0.0
        %889 = vmatprep.subr.mxu0 0.0
        %890 = vmatpush2.msra.mxu0 0.0
        %891 = vmatprep.subr.mxu0 0.0
        %892 = vmatpush2.msra.mxu0 0.0
        %893 = vmatprep.mubr.f32.mxu0 0.0
        %894 = vmatmul.mubr.f32.gmra.mxu0 %v628
        %v895 = vpop.f32.mrf.mxu0
        %v896 = vadd.f32 0.0, %v895
        %v897 = vpop.f32.mrf.mxu0
        %898 = vmatprep.mubr.f32.mxu0 0.0
        %899 = vmatmul.mubr.f32.gmra.mxu0 %v631
        %v900 = vpop.f32.mrf.mxu0
        %v901 = vadd.f32 0.0, %v900
        %v902 = vpop.f32.mrf.mxu0
        %903 = vmatprep.mubr.f32.mxu0 0.0
        %904 = vmatmul.mubr.f32.gmra.mxu0 %v634
        %v905 = vpop.f32.mrf.mxu0
        %v906 = vadd.f32 0.0, %v905
        %v907 = vpop.f32.mrf.mxu0
        %908 = vmatprep.mubr.f32.mxu0 0.0
        %909 = vmatmul.mubr.f32.gmra.mxu0 %v637
        %v910 = vpop.f32.mrf.mxu0
        %v911 = vadd.f32 0.0, %v910
        %v912 = vpop.f32.mrf.mxu0
        %913 = vdwg.mxu0
        %918 = vrot.lane.b32.xlu0 %v896, 1
        %v919 = vpop.permute.xlu0 %918
        %920 = vrot.lane.b32.xlu0 %v901, 1
        %v921 = vpop.permute.xlu0 %920
        %922 = vrot.lane.b32.xlu0 %v906, 1
        %v923 = vpop.permute.xlu0 %922
        %924 = vrot.lane.b32.xlu0 %v911, 1
        %v925 = vpop.permute.xlu0 %924
        %s930 = scalar_lea.vmem [#allocation2], 40
        %931 = vst.msk [vmem:[%s930 + $0x1] sm:$0xff] %vm740, %v919
        %932 = vst.msk [vmem:[%s930 + $0x9] sm:$0xff] %vm740, %v921
        %933 = vst.msk [vmem:[%s930 + $0x11] sm:$0xff] %vm740, %v923
        %934 = vst.msk [vmem:[%s930 + $0x19] sm:$0xff] %vm740, %v925
        %s935 = scalar_lea.vmem %s427, 32 [#allocation5]
        %v936 = vld [vmem:[%s935] sm:$0xff]
        %v937 = vld [vmem:[%s935 + $0x8] sm:$0xff]
        %v939 = vsel %vm545, %v936, 0
        %v942 = vsel %vm545, %v937, 0
        %944 = vmatprep.subr.mxu0 0.0
        %945 = vmatpush1.msra.mxu0 0.0
        %946 = vmatprep.subr.mxu0 0.0
        %947 = vmatpush1.msra.mxu0 0.0
        %948 = vmatprep.subr.mxu0 0.0
        %949 = vmatpush1.msra.mxu0 0.0
        %950 = vmatprep.subr.mxu0 0.0
        %951 = vmatpush1.msra.mxu0 0.0
        %952 = vmatprep.subr.mxu0 0.0
        %953 = vmatpush1.msra.mxu0 0.0
        %954 = vmatprep.subr.mxu0 0.0
        %955 = vmatpush1.msra.mxu0 0.0
        %956 = vmatprep.subr.mxu0 0.0
        %957 = vmatpush1.msra.mxu0 0.0
        %958 = vmatprep.subr.mxu0 0.0
        %959 = vmatpush1.msra.mxu0 0.0
        %960 = vmatprep.subr.mxu0 0.0
        %961 = vmatpush1.msra.mxu0 0.0
        %962 = vmatprep.subr.mxu0 0.0
        %963 = vmatpush1.msra.mxu0 0.0
        %964 = vmatprep.subr.mxu0 0.0
        %965 = vmatpush1.msra.mxu0 0.0
        %966 = vmatprep.subr.mxu0 0.0
        %967 = vmatpush1.msra.mxu0 0.0
        %968 = vmatprep.subr.mxu0 0.0
        %969 = vmatpush1.msra.mxu0 0.0
        %970 = vmatprep.subr.mxu0 0.0
        %971 = vmatpush1.msra.mxu0 0.0
        %972 = vmatprep.subr.mxu0 0.0
        %973 = vmatpush1.msra.mxu0 %v542
        %974 = vmatprep.subr.mxu0 0.0
        %975 = vmatpush1.msra.mxu0 %v541
        %976 = vmatprep.subr.mxu0 0.0
        %977 = vmatpush2.msra.mxu0 0.0
        %978 = vmatprep.subr.mxu0 0.0
        %979 = vmatpush2.msra.mxu0 0.0
        %980 = vmatprep.subr.mxu0 0.0
        %981 = vmatpush2.msra.mxu0 0.0
        %982 = vmatprep.subr.mxu0 0.0
        %983 = vmatpush2.msra.mxu0 0.0
        %984 = vmatprep.subr.mxu0 0.0
        %985 = vmatpush2.msra.mxu0 0.0
        %986 = vmatprep.subr.mxu0 0.0
        %987 = vmatpush2.msra.mxu0 0.0
        %988 = vmatprep.subr.mxu0 0.0
        %989 = vmatpush2.msra.mxu0 0.0
        %990 = vmatprep.subr.mxu0 0.0
        %991 = vmatpush2.msra.mxu0 0.0
        %992 = vmatprep.subr.mxu0 0.0
        %993 = vmatpush2.msra.mxu0 0.0
        %994 = vmatprep.subr.mxu0 0.0
        %995 = vmatpush2.msra.mxu0 0.0
        %996 = vmatprep.subr.mxu0 0.0
        %997 = vmatpush2.msra.mxu0 0.0
        %998 = vmatprep.subr.mxu0 0.0
        %999 = vmatpush2.msra.mxu0 0.0
        %1000 = vmatprep.subr.mxu0 0.0
        %1001 = vmatpush2.msra.mxu0 0.0
        %1002 = vmatprep.subr.mxu0 0.0
        %1003 = vmatpush2.msra.mxu0 0.0
        %1004 = vmatprep.subr.mxu0 0.0
        %1005 = vmatpush2.msra.mxu0 0.0
        %1006 = vmatprep.subr.mxu0 0.0
        %1007 = vmatpush2.msra.mxu0 0.0
        %1008 = vmatprep.mubr.f32.mxu0 0.0
        %1009 = vmatmul.mubr.f32.gmra.mxu0 %v939
        %v1010 = vpop.f32.mrf.mxu0
        %v1011 = vadd.f32 0.0, %v1010
        %v1012 = vpop.f32.mrf.mxu0
        %1013 = vmatprep.mubr.f32.mxu0 0.0
        %1014 = vmatmul.mubr.f32.gmra.mxu0 %v942
        %v1015 = vpop.f32.mrf.mxu0
        %v1016 = vadd.f32 0.0, %v1015
        %v1017 = vpop.f32.mrf.mxu0
        %1018 = vdwg.mxu0
        %1019 = vmatprep.subr.mxu0 0.0
        %1020 = vmatpush1.msra.mxu0 0.0
        %1021 = vmatprep.subr.mxu0 0.0
        %1022 = vmatpush1.msra.mxu0 0.0
        %1023 = vmatprep.subr.mxu0 0.0
        %1024 = vmatpush1.msra.mxu0 0.0
        %1025 = vmatprep.subr.mxu0 0.0
        %1026 = vmatpush1.msra.mxu0 0.0
        %1027 = vmatprep.subr.mxu0 0.0
        %1028 = vmatpush1.msra.mxu0 0.0
        %1029 = vmatprep.subr.mxu0 0.0
        %1030 = vmatpush1.msra.mxu0 0.0
        %1031 = vmatprep.subr.mxu0 0.0
        %1032 = vmatpush1.msra.mxu0 0.0
        %1033 = vmatprep.subr.mxu0 0.0
        %1034 = vmatpush1.msra.mxu0 0.0
        %1035 = vmatprep.subr.mxu0 0.0
        %1036 = vmatpush1.msra.mxu0 0.0
        %1037 = vmatprep.subr.mxu0 0.0
        %1038 = vmatpush1.msra.mxu0 0.0
        %1039 = vmatprep.subr.mxu0 0.0
        %1040 = vmatpush1.msra.mxu0 0.0
        %1041 = vmatprep.subr.mxu0 0.0
        %1042 = vmatpush1.msra.mxu0 0.0
        %1043 = vmatprep.subr.mxu0 0.0
        %1044 = vmatpush1.msra.mxu0 0.0
        %1045 = vmatprep.subr.mxu0 0.0
        %1046 = vmatpush1.msra.mxu0 0.0
        %1047 = vmatprep.subr.mxu0 0.0
        %1048 = vmatpush1.msra.mxu0 %v1016
        %1049 = vmatprep.subr.mxu0 0.0
        %1050 = vmatpush1.msra.mxu0 %v1011
        %1051 = vmatprep.subr.mxu0 0.0
        %1052 = vmatpush2.msra.mxu0 0.0
        %1053 = vmatprep.subr.mxu0 0.0
        %1054 = vmatpush2.msra.mxu0 0.0
        %1055 = vmatprep.subr.mxu0 0.0
        %1056 = vmatpush2.msra.mxu0 0.0
        %1057 = vmatprep.subr.mxu0 0.0
        %1058 = vmatpush2.msra.mxu0 0.0
        %1059 = vmatprep.subr.mxu0 0.0
        %1060 = vmatpush2.msra.mxu0 0.0
        %1061 = vmatprep.subr.mxu0 0.0
        %1062 = vmatpush2.msra.mxu0 0.0
        %1063 = vmatprep.subr.mxu0 0.0
        %1064 = vmatpush2.msra.mxu0 0.0
        %1065 = vmatprep.subr.mxu0 0.0
        %1066 = vmatpush2.msra.mxu0 0.0
        %1067 = vmatprep.subr.mxu0 0.0
        %1068 = vmatpush2.msra.mxu0 0.0
        %1069 = vmatprep.subr.mxu0 0.0
        %1070 = vmatpush2.msra.mxu0 0.0
        %1071 = vmatprep.subr.mxu0 0.0
        %1072 = vmatpush2.msra.mxu0 0.0
        %1073 = vmatprep.subr.mxu0 0.0
        %1074 = vmatpush2.msra.mxu0 0.0
        %1075 = vmatprep.subr.mxu0 0.0
        %1076 = vmatpush2.msra.mxu0 0.0
        %1077 = vmatprep.subr.mxu0 0.0
        %1078 = vmatpush2.msra.mxu0 0.0
        %1079 = vmatprep.subr.mxu0 0.0
        %1080 = vmatpush2.msra.mxu0 0.0
        %1081 = vmatprep.subr.mxu0 0.0
        %1082 = vmatpush2.msra.mxu0 0.0
        %1083 = vmatprep.mubr.f32.mxu0 0.0
        %1084 = vmatmul.mubr.f32.gmra.mxu0 %v628
        %v1085 = vpop.f32.mrf.mxu0
        %v1086 = vadd.f32 0.0, %v1085
        %v1087 = vpop.f32.mrf.mxu0
        %1088 = vmatprep.mubr.f32.mxu0 0.0
        %1089 = vmatmul.mubr.f32.gmra.mxu0 %v631
        %v1090 = vpop.f32.mrf.mxu0
        %v1091 = vadd.f32 0.0, %v1090
        %v1092 = vpop.f32.mrf.mxu0
        %1093 = vmatprep.mubr.f32.mxu0 0.0
        %1094 = vmatmul.mubr.f32.gmra.mxu0 %v634
        %v1095 = vpop.f32.mrf.mxu0
        %v1096 = vadd.f32 0.0, %v1095
        %v1097 = vpop.f32.mrf.mxu0
        %1098 = vmatprep.mubr.f32.mxu0 0.0
        %1099 = vmatmul.mubr.f32.gmra.mxu0 %v637
        %v1100 = vpop.f32.mrf.mxu0
        %v1101 = vadd.f32 0.0, %v1100
        %v1102 = vpop.f32.mrf.mxu0
        %1103 = vdwg.mxu0
        %1108 = vrot.lane.b32.xlu0 %v1086, 1
        %v1109 = vpop.permute.xlu0 %1108
        %1110 = vrot.lane.b32.xlu0 %v1091, 1
        %v1111 = vpop.permute.xlu0 %1110
        %1112 = vrot.lane.b32.xlu0 %v1096, 1
        %v1113 = vpop.permute.xlu0 %1112
        %1114 = vrot.lane.b32.xlu0 %v1101, 1
        %v1115 = vpop.permute.xlu0 %1114
        %s1120 = scalar_lea.vmem [#allocation2], 80
        %1121 = vst.msk [vmem:[%s1120 + $0x1] sm:$0xff] %vm740, %v1109
        %1122 = vst.msk [vmem:[%s1120 + $0x9] sm:$0xff] %vm740, %v1111
        %1123 = vst.msk [vmem:[%s1120 + $0x11] sm:$0xff] %vm740, %v1113
        %1124 = vst.msk [vmem:[%s1120 + $0x19] sm:$0xff] %vm740, %v1115
        %s1125 = scalar_lea.vmem %s427, 48 [#allocation5]
        %v1126 = vld [vmem:[%s1125] sm:$0xff]
        %v1127 = vld [vmem:[%s1125 + $0x8] sm:$0xff]
        %v1129 = vsel %vm545, %v1126, 0
        %v1132 = vsel %vm545, %v1127, 0
        %1134 = vmatprep.subr.mxu0 0.0
        %1135 = vmatpush1.msra.mxu0 0.0
        %1136 = vmatprep.subr.mxu0 0.0
        %1137 = vmatpush1.msra.mxu0 0.0
        %1138 = vmatprep.subr.mxu0 0.0
        %1139 = vmatpush1.msra.mxu0 0.0
        %1140 = vmatprep.subr.mxu0 0.0
        %1141 = vmatpush1.msra.mxu0 0.0
        %1142 = vmatprep.subr.mxu0 0.0
        %1143 = vmatpush1.msra.mxu0 0.0
        %1144 = vmatprep.subr.mxu0 0.0
        %1145 = vmatpush1.msra.mxu0 0.0
        %1146 = vmatprep.subr.mxu0 0.0
        %1147 = vmatpush1.msra.mxu0 0.0
        %1148 = vmatprep.subr.mxu0 0.0
        %1149 = vmatpush1.msra.mxu0 0.0
        %1150 = vmatprep.subr.mxu0 0.0
        %1151 = vmatpush1.msra.mxu0 0.0
        %1152 = vmatprep.subr.mxu0 0.0
        %1153 = vmatpush1.msra.mxu0 0.0
        %1154 = vmatprep.subr.mxu0 0.0
        %1155 = vmatpush1.msra.mxu0 0.0
        %1156 = vmatprep.subr.mxu0 0.0
        %1157 = vmatpush1.msra.mxu0 0.0
        %1158 = vmatprep.subr.mxu0 0.0
        %1159 = vmatpush1.msra.mxu0 0.0
        %1160 = vmatprep.subr.mxu0 0.0
        %1161 = vmatpush1.msra.mxu0 0.0
        %1162 = vmatprep.subr.mxu0 0.0
        %1163 = vmatpush1.msra.mxu0 %v542
        %1164 = vmatprep.subr.mxu0 0.0
        %1165 = vmatpush1.msra.mxu0 %v541
        %1166 = vmatprep.subr.mxu0 0.0
        %1167 = vmatpush2.msra.mxu0 0.0
        %1168 = vmatprep.subr.mxu0 0.0
        %1169 = vmatpush2.msra.mxu0 0.0
        %1170 = vmatprep.subr.mxu0 0.0
        %1171 = vmatpush2.msra.mxu0 0.0
        %1172 = vmatprep.subr.mxu0 0.0
        %1173 = vmatpush2.msra.mxu0 0.0
        %1174 = vmatprep.subr.mxu0 0.0
        %1175 = vmatpush2.msra.mxu0 0.0
        %1176 = vmatprep.subr.mxu0 0.0
        %1177 = vmatpush2.msra.mxu0 0.0
        %1178 = vmatprep.subr.mxu0 0.0
        %1179 = vmatpush2.msra.mxu0 0.0
        %1180 = vmatprep.subr.mxu0 0.0
        %1181 = vmatpush2.msra.mxu0 0.0
        %1182 = vmatprep.subr.mxu0 0.0
        %1183 = vmatpush2.msra.mxu0 0.0
        %1184 = vmatprep.subr.mxu0 0.0
        %1185 = vmatpush2.msra.mxu0 0.0
        %1186 = vmatprep.subr.mxu0 0.0
        %1187 = vmatpush2.msra.mxu0 0.0
        %1188 = vmatprep.subr.mxu0 0.0
        %1189 = vmatpush2.msra.mxu0 0.0
        %1190 = vmatprep.subr.mxu0 0.0
        %1191 = vmatpush2.msra.mxu0 0.0
        %1192 = vmatprep.subr.mxu0 0.0
        %1193 = vmatpush2.msra.mxu0 0.0
        %1194 = vmatprep.subr.mxu0 0.0
        %1195 = vmatpush2.msra.mxu0 0.0
        %1196 = vmatprep.subr.mxu0 0.0
        %1197 = vmatpush2.msra.mxu0 0.0
        %1198 = vmatprep.mubr.f32.mxu0 0.0
        %1199 = vmatmul.mubr.f32.gmra.mxu0 %v1129
        %v1200 = vpop.f32.mrf.mxu0
        %v1201 = vadd.f32 0.0, %v1200
        %v1202 = vpop.f32.mrf.mxu0
        %1203 = vmatprep.mubr.f32.mxu0 0.0
        %1204 = vmatmul.mubr.f32.gmra.mxu0 %v1132
        %v1205 = vpop.f32.mrf.mxu0
        %v1206 = vadd.f32 0.0, %v1205
        %v1207 = vpop.f32.mrf.mxu0
        %1208 = vdwg.mxu0
        %1209 = vmatprep.subr.mxu0 0.0
        %1210 = vmatpush1.msra.mxu0 0.0
        %1211 = vmatprep.subr.mxu0 0.0
        %1212 = vmatpush1.msra.mxu0 0.0
        %1213 = vmatprep.subr.mxu0 0.0
        %1214 = vmatpush1.msra.mxu0 0.0
        %1215 = vmatprep.subr.mxu0 0.0
        %1216 = vmatpush1.msra.mxu0 0.0
        %1217 = vmatprep.subr.mxu0 0.0
        %1218 = vmatpush1.msra.mxu0 0.0
        %1219 = vmatprep.subr.mxu0 0.0
        %1220 = vmatpush1.msra.mxu0 0.0
        %1221 = vmatprep.subr.mxu0 0.0
        %1222 = vmatpush1.msra.mxu0 0.0
        %1223 = vmatprep.subr.mxu0 0.0
        %1224 = vmatpush1.msra.mxu0 0.0
        %1225 = vmatprep.subr.mxu0 0.0
        %1226 = vmatpush1.msra.mxu0 0.0
        %1227 = vmatprep.subr.mxu0 0.0
        %1228 = vmatpush1.msra.mxu0 0.0
        %1229 = vmatprep.subr.mxu0 0.0
        %1230 = vmatpush1.msra.mxu0 0.0
        %1231 = vmatprep.subr.mxu0 0.0
        %1232 = vmatpush1.msra.mxu0 0.0
        %1233 = vmatprep.subr.mxu0 0.0
        %1234 = vmatpush1.msra.mxu0 0.0
        %1235 = vmatprep.subr.mxu0 0.0
        %1236 = vmatpush1.msra.mxu0 0.0
        %1237 = vmatprep.subr.mxu0 0.0
        %1238 = vmatpush1.msra.mxu0 %v1206
        %1239 = vmatprep.subr.mxu0 0.0
        %1240 = vmatpush1.msra.mxu0 %v1201
        %1241 = vmatprep.subr.mxu0 0.0
        %1242 = vmatpush2.msra.mxu0 0.0
        %1243 = vmatprep.subr.mxu0 0.0
        %1244 = vmatpush2.msra.mxu0 0.0
        %1245 = vmatprep.subr.mxu0 0.0
        %1246 = vmatpush2.msra.mxu0 0.0
        %1247 = vmatprep.subr.mxu0 0.0
        %1248 = vmatpush2.msra.mxu0 0.0
        %1249 = vmatprep.subr.mxu0 0.0
        %1250 = vmatpush2.msra.mxu0 0.0
        %1251 = vmatprep.subr.mxu0 0.0
        %1252 = vmatpush2.msra.mxu0 0.0
        %1253 = vmatprep.subr.mxu0 0.0
        %1254 = vmatpush2.msra.mxu0 0.0
        %1255 = vmatprep.subr.mxu0 0.0
        %1256 = vmatpush2.msra.mxu0 0.0
        %1257 = vmatprep.subr.mxu0 0.0
        %1258 = vmatpush2.msra.mxu0 0.0
        %1259 = vmatprep.subr.mxu0 0.0
        %1260 = vmatpush2.msra.mxu0 0.0
        %1261 = vmatprep.subr.mxu0 0.0
        %1262 = vmatpush2.msra.mxu0 0.0
        %1263 = vmatprep.subr.mxu0 0.0
        %1264 = vmatpush2.msra.mxu0 0.0
        %1265 = vmatprep.subr.mxu0 0.0
        %1266 = vmatpush2.msra.mxu0 0.0
        %1267 = vmatprep.subr.mxu0 0.0
        %1268 = vmatpush2.msra.mxu0 0.0
        %1269 = vmatprep.subr.mxu0 0.0
        %1270 = vmatpush2.msra.mxu0 0.0
        %1271 = vmatprep.subr.mxu0 0.0
        %1272 = vmatpush2.msra.mxu0 0.0
        %1273 = vmatprep.mubr.f32.mxu0 0.0
        %1274 = vmatmul.mubr.f32.gmra.mxu0 %v628
        %v1275 = vpop.f32.mrf.mxu0
        %v1276 = vadd.f32 0.0, %v1275
        %v1277 = vpop.f32.mrf.mxu0
        %1278 = vmatprep.mubr.f32.mxu0 0.0
        %1279 = vmatmul.mubr.f32.gmra.mxu0 %v631
        %v1280 = vpop.f32.mrf.mxu0
        %v1281 = vadd.f32 0.0, %v1280
        %v1282 = vpop.f32.mrf.mxu0
        %1283 = vmatprep.mubr.f32.mxu0 0.0
        %1284 = vmatmul.mubr.f32.gmra.mxu0 %v634
        %v1285 = vpop.f32.mrf.mxu0
        %v1286 = vadd.f32 0.0, %v1285
        %v1287 = vpop.f32.mrf.mxu0
        %1288 = vmatprep.mubr.f32.mxu0 0.0
        %1289 = vmatmul.mubr.f32.gmra.mxu0 %v637
        %v1290 = vpop.f32.mrf.mxu0
        %v1291 = vadd.f32 0.0, %v1290
        %v1292 = vpop.f32.mrf.mxu0
        %1293 = vdwg.mxu0
        %1298 = vrot.lane.b32.xlu0 %v1276, 1
        %v1299 = vpop.permute.xlu0 %1298
        %1300 = vrot.lane.b32.xlu0 %v1281, 1
        %v1301 = vpop.permute.xlu0 %1300
        %1302 = vrot.lane.b32.xlu0 %v1286, 1
        %v1303 = vpop.permute.xlu0 %1302
        %1304 = vrot.lane.b32.xlu0 %v1291, 1
        %v1305 = vpop.permute.xlu0 %1304
        %s1310 = scalar_lea.vmem [#allocation2], 120
        %1311 = vst.msk [vmem:[%s1310 + $0x1] sm:$0xff] %vm740, %v1299
        %1312 = vst.msk [vmem:[%s1310 + $0x9] sm:$0xff] %vm740, %v1301
        %1313 = vst.msk [vmem:[%s1310 + $0x11] sm:$0xff] %vm740, %v1303
        %1314 = vst.msk [vmem:[%s1310 + $0x19] sm:$0xff] %vm740, %v1305
        %v1315 = vld [vmem:[#allocation2] sm:$0xff]
        %v1316 = vld [vmem:[#allocation2 + $0x8] sm:$0xff]
        %v1317 = vld [vmem:[#allocation2 + $0x10] sm:$0xff]
        %v1318 = vld [vmem:[#allocation2 + $0x18] sm:$0xff]
        %s1319 = sld [smem:[#allocation9]]
        %v1320 = vstv %s1319
        %v1321 = vmul.f32 %v1320, %v1315
        %v1322 = vmul.f32 %v1320, %v1316
        %v1323 = vmul.f32 %v1320, %v1317
        %v1324 = vmul.f32 %v1320, %v1318
        %v1325 = vadd.f32 %v1321, 0.0
        %v1326 = vadd.f32 %v1322, 0.0
        %v1327 = vadd.f32 %v1323, 0.0
        %v1328 = vadd.f32 %v1324, 0.0
        %s1329 = sld [smem:[#allocation9 + $0x1]]
        %v1330 = vstv %s1329
        %v1331 = vmul.f32 %v1330, %v1315
        %v1332 = vmul.f32 %v1330, %v1316
        %v1333 = vmul.f32 %v1330, %v1317
        %v1334 = vmul.f32 %v1330, %v1318
        %v1335 = vadd.f32 %v1331, 0.0
        %v1336 = vadd.f32 %v1332, 0.0
        %v1337 = vadd.f32 %v1333, 0.0
        %v1338 = vadd.f32 %v1334, 0.0
        %s1339 = sld [smem:[#allocation9 + $0x2]]
        %v1340 = vstv %s1339
        %v1341 = vmul.f32 %v1340, %v1315
        %v1342 = vmul.f32 %v1340, %v1316
        %v1343 = vmul.f32 %v1340, %v1317
        %v1344 = vmul.f32 %v1340, %v1318
        %v1345 = vadd.f32 %v1341, 0.0
        %v1346 = vadd.f32 %v1342, 0.0
        %v1347 = vadd.f32 %v1343, 0.0
        %v1348 = vadd.f32 %v1344, 0.0
        %s1349 = sld [smem:[#allocation9 + $0x3]]
        %v1350 = vstv %s1349
        %v1351 = vmul.f32 %v1350, %v1315
        %v1352 = vmul.f32 %v1350, %v1316
        %v1353 = vmul.f32 %v1350, %v1317
        %v1354 = vmul.f32 %v1350, %v1318
        %v1355 = vadd.f32 %v1351, 0.0
        %v1356 = vadd.f32 %v1352, 0.0
        %v1357 = vadd.f32 %v1353, 0.0
        %v1358 = vadd.f32 %v1354, 0.0
        %s1359 = sld [smem:[#allocation9 + $0x10]]
        %v1360 = vstv %s1359
        %v1361 = vmul.f32 %v1360, %v1315
        %v1362 = vmul.f32 %v1360, %v1316
        %v1363 = vmul.f32 %v1360, %v1317
        %v1364 = vmul.f32 %v1360, %v1318
        %1369 = vrot.lane.b32.xlu0 %v1361, 127
        %v1370 = vpop.permute.xlu0 %1369
        %1371 = vrot.lane.b32.xlu0 %v1362, 127
        %v1372 = vpop.permute.xlu0 %1371
        %1373 = vrot.lane.b32.xlu0 %v1363, 127
        %v1374 = vpop.permute.xlu0 %1373
        %1375 = vrot.lane.b32.xlu0 %v1364, 127
        %v1376 = vpop.permute.xlu0 %1375
        %v1381 = vadd.f32 %v1325, %v1370
        %v1382 = vadd.f32 %v1326, %v1372
        %v1383 = vadd.f32 %v1327, %v1374
        %v1384 = vadd.f32 %v1328, %v1376
        %s1385 = sld [smem:[#allocation9 + $0x11]]
        %v1386 = vstv %s1385
        %v1387 = vmul.f32 %v1386, %v1315
        %v1388 = vmul.f32 %v1386, %v1316
        %v1389 = vmul.f32 %v1386, %v1317
        %v1390 = vmul.f32 %v1386, %v1318
        %1395 = vrot.lane.b32.xlu0 %v1387, 127
        %v1396 = vpop.permute.xlu0 %1395
        %1397 = vrot.lane.b32.xlu0 %v1388, 127
        %v1398 = vpop.permute.xlu0 %1397
        %1399 = vrot.lane.b32.xlu0 %v1389, 127
        %v1400 = vpop.permute.xlu0 %1399
        %1401 = vrot.lane.b32.xlu0 %v1390, 127
        %v1402 = vpop.permute.xlu0 %1401
        %v1407 = vadd.f32 %v1335, %v1396
        %v1408 = vadd.f32 %v1336, %v1398
        %v1409 = vadd.f32 %v1337, %v1400
        %v1410 = vadd.f32 %v1338, %v1402
        %s1411 = sld [smem:[#allocation9 + $0x12]]
        %v1412 = vstv %s1411
        %v1413 = vmul.f32 %v1412, %v1315
        %v1414 = vmul.f32 %v1412, %v1316
        %v1415 = vmul.f32 %v1412, %v1317
        %v1416 = vmul.f32 %v1412, %v1318
        %1421 = vrot.lane.b32.xlu0 %v1413, 127
        %v1422 = vpop.permute.xlu0 %1421
        %1423 = vrot.lane.b32.xlu0 %v1414, 127
        %v1424 = vpop.permute.xlu0 %1423
        %1425 = vrot.lane.b32.xlu0 %v1415, 127
        %v1426 = vpop.permute.xlu0 %1425
        %1427 = vrot.lane.b32.xlu0 %v1416, 127
        %v1428 = vpop.permute.xlu0 %1427
        %v1433 = vadd.f32 %v1345, %v1422
        %v1434 = vadd.f32 %v1346, %v1424
        %v1435 = vadd.f32 %v1347, %v1426
        %v1436 = vadd.f32 %v1348, %v1428
        %s1437 = sld [smem:[#allocation9 + $0x13]]
        %v1438 = vstv %s1437
        %v1439 = vmul.f32 %v1438, %v1315
        %v1440 = vmul.f32 %v1438, %v1316
        %v1441 = vmul.f32 %v1438, %v1317
        %v1442 = vmul.f32 %v1438, %v1318
        %1447 = vrot.lane.b32.xlu0 %v1439, 127
        %v1448 = vpop.permute.xlu0 %1447
        %1449 = vrot.lane.b32.xlu0 %v1440, 127
        %v1450 = vpop.permute.xlu0 %1449
        %1451 = vrot.lane.b32.xlu0 %v1441, 127
        %v1452 = vpop.permute.xlu0 %1451
        %1453 = vrot.lane.b32.xlu0 %v1442, 127
        %v1454 = vpop.permute.xlu0 %1453
        %v1459 = vadd.f32 %v1355, %v1448
        %v1460 = vadd.f32 %v1356, %v1450
        %v1461 = vadd.f32 %v1357, %v1452
        %v1462 = vadd.f32 %v1358, %v1454
        %s1463 = sld [smem:[#allocation9 + $0x20]]
        %v1464 = vstv %s1463
        %v1465 = vmul.f32 %v1464, %v1315
        %v1466 = vmul.f32 %v1464, %v1316
        %v1467 = vmul.f32 %v1464, %v1317
        %v1468 = vmul.f32 %v1464, %v1318
        %1473 = vrot.lane.b32.xlu0 %v1465, 126
        %v1474 = vpop.permute.xlu0 %1473
        %1475 = vrot.lane.b32.xlu0 %v1466, 126
        %v1476 = vpop.permute.xlu0 %1475
        %1477 = vrot.lane.b32.xlu0 %v1467, 126
        %v1478 = vpop.permute.xlu0 %1477
        %1479 = vrot.lane.b32.xlu0 %v1468, 126
        %v1480 = vpop.permute.xlu0 %1479
        %v1485 = vadd.f32 %v1381, %v1474
        %v1486 = vadd.f32 %v1382, %v1476
        %v1487 = vadd.f32 %v1383, %v1478
        %v1488 = vadd.f32 %v1384, %v1480
        %s1489 = sld [smem:[#allocation9 + $0x21]]
        %v1490 = vstv %s1489
        %v1491 = vmul.f32 %v1490, %v1315
        %v1492 = vmul.f32 %v1490, %v1316
        %v1493 = vmul.f32 %v1490, %v1317
        %v1494 = vmul.f32 %v1490, %v1318
        %1499 = vrot.lane.b32.xlu0 %v1491, 126
        %v1500 = vpop.permute.xlu0 %1499
        %1501 = vrot.lane.b32.xlu0 %v1492, 126
        %v1502 = vpop.permute.xlu0 %1501
        %1503 = vrot.lane.b32.xlu0 %v1493, 126
        %v1504 = vpop.permute.xlu0 %1503
        %1505 = vrot.lane.b32.xlu0 %v1494, 126
        %v1506 = vpop.permute.xlu0 %1505
        %v1511 = vadd.f32 %v1407, %v1500
        %v1512 = vadd.f32 %v1408, %v1502
        %v1513 = vadd.f32 %v1409, %v1504
        %v1514 = vadd.f32 %v1410, %v1506
        %s1515 = sld [smem:[#allocation9 + $0x22]]
        %v1516 = vstv %s1515
        %v1517 = vmul.f32 %v1516, %v1315
        %v1518 = vmul.f32 %v1516, %v1316
        %v1519 = vmul.f32 %v1516, %v1317
        %v1520 = vmul.f32 %v1516, %v1318
        %1525 = vrot.lane.b32.xlu0 %v1517, 126
        %v1526 = vpop.permute.xlu0 %1525
        %1527 = vrot.lane.b32.xlu0 %v1518, 126
        %v1528 = vpop.permute.xlu0 %1527
        %1529 = vrot.lane.b32.xlu0 %v1519, 126
        %v1530 = vpop.permute.xlu0 %1529
        %1531 = vrot.lane.b32.xlu0 %v1520, 126
        %v1532 = vpop.permute.xlu0 %1531
        %v1537 = vadd.f32 %v1433, %v1526
        %v1538 = vadd.f32 %v1434, %v1528
        %v1539 = vadd.f32 %v1435, %v1530
        %v1540 = vadd.f32 %v1436, %v1532
        %s1541 = sld [smem:[#allocation9 + $0x23]]
        %v1542 = vstv %s1541
        %v1543 = vmul.f32 %v1542, %v1315
        %v1544 = vmul.f32 %v1542, %v1316
        %v1545 = vmul.f32 %v1542, %v1317
        %v1546 = vmul.f32 %v1542, %v1318
        %1551 = vrot.lane.b32.xlu0 %v1543, 126
        %v1552 = vpop.permute.xlu0 %1551
        %1553 = vrot.lane.b32.xlu0 %v1544, 126
        %v1554 = vpop.permute.xlu0 %1553
        %1555 = vrot.lane.b32.xlu0 %v1545, 126
        %v1556 = vpop.permute.xlu0 %1555
        %1557 = vrot.lane.b32.xlu0 %v1546, 126
        %v1558 = vpop.permute.xlu0 %1557
        %v1563 = vadd.f32 %v1459, %v1552
        %v1564 = vadd.f32 %v1460, %v1554
        %v1565 = vadd.f32 %v1461, %v1556
        %v1566 = vadd.f32 %v1462, %v1558
        %v1567 = vld [vmem:[#allocation2 + $0x1] sm:$0xff]
        %v1568 = vld [vmem:[#allocation2 + $0x9] sm:$0xff]
        %v1569 = vld [vmem:[#allocation2 + $0x11] sm:$0xff]
        %v1570 = vld [vmem:[#allocation2 + $0x19] sm:$0xff]
        %s1571 = sld [smem:[#allocation9 + $0x30]]
        %v1572 = vstv %s1571
        %v1573 = vmul.f32 %v1572, %v1567
        %v1574 = vmul.f32 %v1572, %v1568
        %v1575 = vmul.f32 %v1572, %v1569
        %v1576 = vmul.f32 %v1572, %v1570
        %v1577 = vadd.f32 %v1485, %v1573
        %v1578 = vadd.f32 %v1486, %v1574
        %v1579 = vadd.f32 %v1487, %v1575
        %v1580 = vadd.f32 %v1488, %v1576
        %s1581 = sld [smem:[#allocation9 + $0x31]]
        %v1582 = vstv %s1581
        %v1583 = vmul.f32 %v1582, %v1567
        %v1584 = vmul.f32 %v1582, %v1568
        %v1585 = vmul.f32 %v1582, %v1569
        %v1586 = vmul.f32 %v1582, %v1570
        %v1587 = vadd.f32 %v1511, %v1583
        %v1588 = vadd.f32 %v1512, %v1584
        %v1589 = vadd.f32 %v1513, %v1585
        %v1590 = vadd.f32 %v1514, %v1586
        %s1591 = sld [smem:[#allocation9 + $0x32]]
        %v1592 = vstv %s1591
        %v1593 = vmul.f32 %v1592, %v1567
        %v1594 = vmul.f32 %v1592, %v1568
        %v1595 = vmul.f32 %v1592, %v1569
        %v1596 = vmul.f32 %v1592, %v1570
        %v1597 = vadd.f32 %v1537, %v1593
        %v1598 = vadd.f32 %v1538, %v1594
        %v1599 = vadd.f32 %v1539, %v1595
        %v1600 = vadd.f32 %v1540, %v1596
        %s1601 = sld [smem:[#allocation9 + $0x33]]
        %v1602 = vstv %s1601
        %v1603 = vmul.f32 %v1602, %v1567
        %v1604 = vmul.f32 %v1602, %v1568
        %v1605 = vmul.f32 %v1602, %v1569
        %v1606 = vmul.f32 %v1602, %v1570
        %v1607 = vadd.f32 %v1563, %v1603
        %v1608 = vadd.f32 %v1564, %v1604
        %v1609 = vadd.f32 %v1565, %v1605
        %v1610 = vadd.f32 %v1566, %v1606
        %s1611 = sld [smem:[#allocation9 + $0x40]]
        %v1612 = vstv %s1611
        %v1613 = vmul.f32 %v1612, %v1567
        %v1614 = vmul.f32 %v1612, %v1568
        %v1615 = vmul.f32 %v1612, %v1569
        %v1616 = vmul.f32 %v1612, %v1570
        %1621 = vrot.lane.b32.xlu0 %v1613, 127
        %v1622 = vpop.permute.xlu0 %1621
        %1623 = vrot.lane.b32.xlu0 %v1614, 127
        %v1624 = vpop.permute.xlu0 %1623
        %1625 = vrot.lane.b32.xlu0 %v1615, 127
        %v1626 = vpop.permute.xlu0 %1625
        %1627 = vrot.lane.b32.xlu0 %v1616, 127
        %v1628 = vpop.permute.xlu0 %1627
        %v1633 = vadd.f32 %v1577, %v1622
        %v1634 = vadd.f32 %v1578, %v1624
        %v1635 = vadd.f32 %v1579, %v1626
        %v1636 = vadd.f32 %v1580, %v1628
        %s1637 = sld [smem:[#allocation9 + $0x41]]
        %v1638 = vstv %s1637
        %v1639 = vmul.f32 %v1638, %v1567
        %v1640 = vmul.f32 %v1638, %v1568
        %v1641 = vmul.f32 %v1638, %v1569
        %v1642 = vmul.f32 %v1638, %v1570
        %1647 = vrot.lane.b32.xlu0 %v1639, 127
        %v1648 = vpop.permute.xlu0 %1647
        %1649 = vrot.lane.b32.xlu0 %v1640, 127
        %v1650 = vpop.permute.xlu0 %1649
        %1651 = vrot.lane.b32.xlu0 %v1641, 127
        %v1652 = vpop.permute.xlu0 %1651
        %1653 = vrot.lane.b32.xlu0 %v1642, 127
        %v1654 = vpop.permute.xlu0 %1653
        %v1659 = vadd.f32 %v1587, %v1648
        %v1660 = vadd.f32 %v1588, %v1650
        %v1661 = vadd.f32 %v1589, %v1652
        %v1662 = vadd.f32 %v1590, %v1654
        %s1663 = sld [smem:[#allocation9 + $0x42]]
        %v1664 = vstv %s1663
        %v1665 = vmul.f32 %v1664, %v1567
        %v1666 = vmul.f32 %v1664, %v1568
        %v1667 = vmul.f32 %v1664, %v1569
        %v1668 = vmul.f32 %v1664, %v1570
        %1673 = vrot.lane.b32.xlu0 %v1665, 127
        %v1674 = vpop.permute.xlu0 %1673
        %1675 = vrot.lane.b32.xlu0 %v1666, 127
        %v1676 = vpop.permute.xlu0 %1675
        %1677 = vrot.lane.b32.xlu0 %v1667, 127
        %v1678 = vpop.permute.xlu0 %1677
        %1679 = vrot.lane.b32.xlu0 %v1668, 127
        %v1680 = vpop.permute.xlu0 %1679
        %v1685 = vadd.f32 %v1597, %v1674
        %v1686 = vadd.f32 %v1598, %v1676
        %v1687 = vadd.f32 %v1599, %v1678
        %v1688 = vadd.f32 %v1600, %v1680
        %s1689 = sld [smem:[#allocation9 + $0x43]]
        %v1690 = vstv %s1689
        %v1691 = vmul.f32 %v1690, %v1567
        %v1692 = vmul.f32 %v1690, %v1568
        %v1693 = vmul.f32 %v1690, %v1569
        %v1694 = vmul.f32 %v1690, %v1570
        %1699 = vrot.lane.b32.xlu0 %v1691, 127
        %v1700 = vpop.permute.xlu0 %1699
        %1701 = vrot.lane.b32.xlu0 %v1692, 127
        %v1702 = vpop.permute.xlu0 %1701
        %1703 = vrot.lane.b32.xlu0 %v1693, 127
        %v1704 = vpop.permute.xlu0 %1703
        %1705 = vrot.lane.b32.xlu0 %v1694, 127
        %v1706 = vpop.permute.xlu0 %1705
        %v1711 = vadd.f32 %v1607, %v1700
        %v1712 = vadd.f32 %v1608, %v1702
        %v1713 = vadd.f32 %v1609, %v1704
        %v1714 = vadd.f32 %v1610, %v1706
        %s1715 = sld [smem:[#allocation9 + $0x50]]
        %v1716 = vstv %s1715
        %v1717 = vmul.f32 %v1716, %v1567
        %v1718 = vmul.f32 %v1716, %v1568
        %v1719 = vmul.f32 %v1716, %v1569
        %v1720 = vmul.f32 %v1716, %v1570
        %1725 = vrot.lane.b32.xlu0 %v1717, 126
        %v1726 = vpop.permute.xlu0 %1725
        %1727 = vrot.lane.b32.xlu0 %v1718, 126
        %v1728 = vpop.permute.xlu0 %1727
        %1729 = vrot.lane.b32.xlu0 %v1719, 126
        %v1730 = vpop.permute.xlu0 %1729
        %1731 = vrot.lane.b32.xlu0 %v1720, 126
        %v1732 = vpop.permute.xlu0 %1731
        %v1737 = vadd.f32 %v1633, %v1726
        %v1738 = vadd.f32 %v1634, %v1728
        %v1739 = vadd.f32 %v1635, %v1730
        %v1740 = vadd.f32 %v1636, %v1732
        %s1741 = sld [smem:[#allocation9 + $0x51]]
        %v1742 = vstv %s1741
        %v1743 = vmul.f32 %v1742, %v1567
        %v1744 = vmul.f32 %v1742, %v1568
        %v1745 = vmul.f32 %v1742, %v1569
        %v1746 = vmul.f32 %v1742, %v1570
        %1751 = vrot.lane.b32.xlu0 %v1743, 126
        %v1752 = vpop.permute.xlu0 %1751
        %1753 = vrot.lane.b32.xlu0 %v1744, 126
        %v1754 = vpop.permute.xlu0 %1753
        %1755 = vrot.lane.b32.xlu0 %v1745, 126
        %v1756 = vpop.permute.xlu0 %1755
        %1757 = vrot.lane.b32.xlu0 %v1746, 126
        %v1758 = vpop.permute.xlu0 %1757
        %v1763 = vadd.f32 %v1659, %v1752
        %v1764 = vadd.f32 %v1660, %v1754
        %v1765 = vadd.f32 %v1661, %v1756
        %v1766 = vadd.f32 %v1662, %v1758
        %s1767 = sld [smem:[#allocation9 + $0x52]]
        %v1768 = vstv %s1767
        %v1769 = vmul.f32 %v1768, %v1567
        %v1770 = vmul.f32 %v1768, %v1568
        %v1771 = vmul.f32 %v1768, %v1569
        %v1772 = vmul.f32 %v1768, %v1570
        %1777 = vrot.lane.b32.xlu0 %v1769, 126
        %v1778 = vpop.permute.xlu0 %1777
        %1779 = vrot.lane.b32.xlu0 %v1770, 126
        %v1780 = vpop.permute.xlu0 %1779
        %1781 = vrot.lane.b32.xlu0 %v1771, 126
        %v1782 = vpop.permute.xlu0 %1781
        %1783 = vrot.lane.b32.xlu0 %v1772, 126
        %v1784 = vpop.permute.xlu0 %1783
        %v1789 = vadd.f32 %v1685, %v1778
        %v1790 = vadd.f32 %v1686, %v1780
        %v1791 = vadd.f32 %v1687, %v1782
        %v1792 = vadd.f32 %v1688, %v1784
        %s1793 = sld [smem:[#allocation9 + $0x53]]
        %v1794 = vstv %s1793
        %v1795 = vmul.f32 %v1794, %v1567
        %v1796 = vmul.f32 %v1794, %v1568
        %v1797 = vmul.f32 %v1794, %v1569
        %v1798 = vmul.f32 %v1794, %v1570
        %1803 = vrot.lane.b32.xlu0 %v1795, 126
        %v1804 = vpop.permute.xlu0 %1803
        %1805 = vrot.lane.b32.xlu0 %v1796, 126
        %v1806 = vpop.permute.xlu0 %1805
        %1807 = vrot.lane.b32.xlu0 %v1797, 126
        %v1808 = vpop.permute.xlu0 %1807
        %1809 = vrot.lane.b32.xlu0 %v1798, 126
        %v1810 = vpop.permute.xlu0 %1809
        %v1815 = vadd.f32 %v1711, %v1804
        %v1816 = vadd.f32 %v1712, %v1806
        %v1817 = vadd.f32 %v1713, %v1808
        %v1818 = vadd.f32 %v1714, %v1810
        %v1819 = vld [vmem:[#allocation2 + $0x2] sm:$0xff]
        %v1820 = vld [vmem:[#allocation2 + $0xa] sm:$0xff]
        %v1821 = vld [vmem:[#allocation2 + $0x12] sm:$0xff]
        %v1822 = vld [vmem:[#allocation2 + $0x1a] sm:$0xff]
        %s1823 = sld [smem:[#allocation9 + $0x60]]
        %v1824 = vstv %s1823
        %v1825 = vmul.f32 %v1824, %v1819
        %v1826 = vmul.f32 %v1824, %v1820
        %v1827 = vmul.f32 %v1824, %v1821
        %v1828 = vmul.f32 %v1824, %v1822
        %v1829 = vadd.f32 %v1737, %v1825
        %v1830 = vadd.f32 %v1738, %v1826
        %v1831 = vadd.f32 %v1739, %v1827
        %v1832 = vadd.f32 %v1740, %v1828
        %s1833 = sld [smem:[#allocation9 + $0x61]]
        %v1834 = vstv %s1833
        %v1835 = vmul.f32 %v1834, %v1819
        %v1836 = vmul.f32 %v1834, %v1820
        %v1837 = vmul.f32 %v1834, %v1821
        %v1838 = vmul.f32 %v1834, %v1822
        %v1839 = vadd.f32 %v1763, %v1835
        %v1840 = vadd.f32 %v1764, %v1836
        %v1841 = vadd.f32 %v1765, %v1837
        %v1842 = vadd.f32 %v1766, %v1838
        %s1843 = sld [smem:[#allocation9 + $0x62]]
        %v1844 = vstv %s1843
        %v1845 = vmul.f32 %v1844, %v1819
        %v1846 = vmul.f32 %v1844, %v1820
        %v1847 = vmul.f32 %v1844, %v1821
        %v1848 = vmul.f32 %v1844, %v1822
        %v1849 = vadd.f32 %v1789, %v1845
        %v1850 = vadd.f32 %v1790, %v1846
        %v1851 = vadd.f32 %v1791, %v1847
        %v1852 = vadd.f32 %v1792, %v1848
        %s1853 = sld [smem:[#allocation9 + $0x63]]
        %v1854 = vstv %s1853
        %v1855 = vmul.f32 %v1854, %v1819
        %v1856 = vmul.f32 %v1854, %v1820
        %v1857 = vmul.f32 %v1854, %v1821
        %v1858 = vmul.f32 %v1854, %v1822
        %v1859 = vadd.f32 %v1815, %v1855
        %v1860 = vadd.f32 %v1816, %v1856
        %v1861 = vadd.f32 %v1817, %v1857
        %v1862 = vadd.f32 %v1818, %v1858
        %s1863 = sld [smem:[#allocation9 + $0x70]]
        %v1864 = vstv %s1863
        %v1865 = vmul.f32 %v1864, %v1819
        %v1866 = vmul.f32 %v1864, %v1820
        %v1867 = vmul.f32 %v1864, %v1821
        %v1868 = vmul.f32 %v1864, %v1822
        %1873 = vrot.lane.b32.xlu0 %v1865, 127
        %v1874 = vpop.permute.xlu0 %1873
        %1875 = vrot.lane.b32.xlu0 %v1866, 127
        %v1876 = vpop.permute.xlu0 %1875
        %1877 = vrot.lane.b32.xlu0 %v1867, 127
        %v1878 = vpop.permute.xlu0 %1877
        %1879 = vrot.lane.b32.xlu0 %v1868, 127
        %v1880 = vpop.permute.xlu0 %1879
        %v1885 = vadd.f32 %v1829, %v1874
        %v1886 = vadd.f32 %v1830, %v1876
        %v1887 = vadd.f32 %v1831, %v1878
        %v1888 = vadd.f32 %v1832, %v1880
        %s1889 = sld [smem:[#allocation9 + $0x71]]
        %v1890 = vstv %s1889
        %v1891 = vmul.f32 %v1890, %v1819
        %v1892 = vmul.f32 %v1890, %v1820
        %v1893 = vmul.f32 %v1890, %v1821
        %v1894 = vmul.f32 %v1890, %v1822
        %1899 = vrot.lane.b32.xlu0 %v1891, 127
        %v1900 = vpop.permute.xlu0 %1899
        %1901 = vrot.lane.b32.xlu0 %v1892, 127
        %v1902 = vpop.permute.xlu0 %1901
        %1903 = vrot.lane.b32.xlu0 %v1893, 127
        %v1904 = vpop.permute.xlu0 %1903
        %1905 = vrot.lane.b32.xlu0 %v1894, 127
        %v1906 = vpop.permute.xlu0 %1905
        %v1911 = vadd.f32 %v1839, %v1900
        %v1912 = vadd.f32 %v1840, %v1902
        %v1913 = vadd.f32 %v1841, %v1904
        %v1914 = vadd.f32 %v1842, %v1906
        %s1915 = sld [smem:[#allocation9 + $0x72]]
        %v1916 = vstv %s1915
        %v1917 = vmul.f32 %v1916, %v1819
        %v1918 = vmul.f32 %v1916, %v1820
        %v1919 = vmul.f32 %v1916, %v1821
        %v1920 = vmul.f32 %v1916, %v1822
        %1925 = vrot.lane.b32.xlu0 %v1917, 127
        %v1926 = vpop.permute.xlu0 %1925
        %1927 = vrot.lane.b32.xlu0 %v1918, 127
        %v1928 = vpop.permute.xlu0 %1927
        %1929 = vrot.lane.b32.xlu0 %v1919, 127
        %v1930 = vpop.permute.xlu0 %1929
        %1931 = vrot.lane.b32.xlu0 %v1920, 127
        %v1932 = vpop.permute.xlu0 %1931
        %v1937 = vadd.f32 %v1849, %v1926
        %v1938 = vadd.f32 %v1850, %v1928
        %v1939 = vadd.f32 %v1851, %v1930
        %v1940 = vadd.f32 %v1852, %v1932
        %s1941 = sld [smem:[#allocation9 + $0x73]]
        %v1942 = vstv %s1941
        %v1943 = vmul.f32 %v1942, %v1819
        %v1944 = vmul.f32 %v1942, %v1820
        %v1945 = vmul.f32 %v1942, %v1821
        %v1946 = vmul.f32 %v1942, %v1822
        %1951 = vrot.lane.b32.xlu0 %v1943, 127
        %v1952 = vpop.permute.xlu0 %1951
        %1953 = vrot.lane.b32.xlu0 %v1944, 127
        %v1954 = vpop.permute.xlu0 %1953
        %1955 = vrot.lane.b32.xlu0 %v1945, 127
        %v1956 = vpop.permute.xlu0 %1955
        %1957 = vrot.lane.b32.xlu0 %v1946, 127
        %v1958 = vpop.permute.xlu0 %1957
        %v1963 = vadd.f32 %v1859, %v1952
        %v1964 = vadd.f32 %v1860, %v1954
        %v1965 = vadd.f32 %v1861, %v1956
        %v1966 = vadd.f32 %v1862, %v1958
        %s1967 = sld [smem:[#allocation9 + $0x80]]
        %v1968 = vstv %s1967
        %v1969 = vmul.f32 %v1968, %v1819
        %v1970 = vmul.f32 %v1968, %v1820
        %v1971 = vmul.f32 %v1968, %v1821
        %v1972 = vmul.f32 %v1968, %v1822
        %1977 = vrot.lane.b32.xlu0 %v1969, 126
        %v1978 = vpop.permute.xlu0 %1977
        %1979 = vrot.lane.b32.xlu0 %v1970, 126
        %v1980 = vpop.permute.xlu0 %1979
        %1981 = vrot.lane.b32.xlu0 %v1971, 126
        %v1982 = vpop.permute.xlu0 %1981
        %1983 = vrot.lane.b32.xlu0 %v1972, 126
        %v1984 = vpop.permute.xlu0 %1983
        %v1989 = vadd.f32 %v1885, %v1978
        %v1990 = vadd.f32 %v1886, %v1980
        %v1991 = vadd.f32 %v1887, %v1982
        %v1992 = vadd.f32 %v1888, %v1984
        %s1993 = sld [smem:[#allocation9 + $0x81]]
        %v1994 = vstv %s1993
        %v1995 = vmul.f32 %v1994, %v1819
        %v1996 = vmul.f32 %v1994, %v1820
        %v1997 = vmul.f32 %v1994, %v1821
        %v1998 = vmul.f32 %v1994, %v1822
        %2003 = vrot.lane.b32.xlu0 %v1995, 126
        %v2004 = vpop.permute.xlu0 %2003
        %2005 = vrot.lane.b32.xlu0 %v1996, 126
        %v2006 = vpop.permute.xlu0 %2005
        %2007 = vrot.lane.b32.xlu0 %v1997, 126
        %v2008 = vpop.permute.xlu0 %2007
        %2009 = vrot.lane.b32.xlu0 %v1998, 126
        %v2010 = vpop.permute.xlu0 %2009
        %v2015 = vadd.f32 %v1911, %v2004
        %v2016 = vadd.f32 %v1912, %v2006
        %v2017 = vadd.f32 %v1913, %v2008
        %v2018 = vadd.f32 %v1914, %v2010
        %s2019 = sld [smem:[#allocation9 + $0x82]]
        %v2020 = vstv %s2019
        %v2021 = vmul.f32 %v2020, %v1819
        %v2022 = vmul.f32 %v2020, %v1820
        %v2023 = vmul.f32 %v2020, %v1821
        %v2024 = vmul.f32 %v2020, %v1822
        %2029 = vrot.lane.b32.xlu0 %v2021, 126
        %v2030 = vpop.permute.xlu0 %2029
        %2031 = vrot.lane.b32.xlu0 %v2022, 126
        %v2032 = vpop.permute.xlu0 %2031
        %2033 = vrot.lane.b32.xlu0 %v2023, 126
        %v2034 = vpop.permute.xlu0 %2033
        %2035 = vrot.lane.b32.xlu0 %v2024, 126
        %v2036 = vpop.permute.xlu0 %2035
        %v2041 = vadd.f32 %v1937, %v2030
        %v2042 = vadd.f32 %v1938, %v2032
        %v2043 = vadd.f32 %v1939, %v2034
        %v2044 = vadd.f32 %v1940, %v2036
        %s2045 = sld [smem:[#allocation9 + $0x83]]
        %v2046 = vstv %s2045
        %v2047 = vmul.f32 %v2046, %v1819
        %v2048 = vmul.f32 %v2046, %v1820
        %v2049 = vmul.f32 %v2046, %v1821
        %v2050 = vmul.f32 %v2046, %v1822
        %2055 = vrot.lane.b32.xlu0 %v2047, 126
        %v2056 = vpop.permute.xlu0 %2055
        %2057 = vrot.lane.b32.xlu0 %v2048, 126
        %v2058 = vpop.permute.xlu0 %2057
        %2059 = vrot.lane.b32.xlu0 %v2049, 126
        %v2060 = vpop.permute.xlu0 %2059
        %2061 = vrot.lane.b32.xlu0 %v2050, 126
        %v2062 = vpop.permute.xlu0 %2061
        %v2067 = vadd.f32 %v1963, %v2056
        %v2068 = vadd.f32 %v1964, %v2058
        %v2069 = vadd.f32 %v1965, %v2060
        %v2070 = vadd.f32 %v1966, %v2062
        %v2071 = vld [vmem:[%s930] sm:$0xff]
        %v2072 = vld [vmem:[%s930 + $0x8] sm:$0xff]
        %v2073 = vld [vmem:[%s930 + $0x10] sm:$0xff]
        %v2074 = vld [vmem:[%s930 + $0x18] sm:$0xff]
        %s2075 = sld [smem:[#allocation9 + $0x4]]
        %v2076 = vstv %s2075
        %v2077 = vmul.f32 %v2076, %v2071
        %v2078 = vmul.f32 %v2076, %v2072
        %v2079 = vmul.f32 %v2076, %v2073
        %v2080 = vmul.f32 %v2076, %v2074
        %v2081 = vadd.f32 %v1989, %v2077
        %v2082 = vadd.f32 %v1990, %v2078
        %v2083 = vadd.f32 %v1991, %v2079
        %v2084 = vadd.f32 %v1992, %v2080
        %s2085 = sld [smem:[#allocation9 + $0x5]]
        %v2086 = vstv %s2085
        %v2087 = vmul.f32 %v2086, %v2071
        %v2088 = vmul.f32 %v2086, %v2072
        %v2089 = vmul.f32 %v2086, %v2073
        %v2090 = vmul.f32 %v2086, %v2074
        %v2091 = vadd.f32 %v2015, %v2087
        %v2092 = vadd.f32 %v2016, %v2088
        %v2093 = vadd.f32 %v2017, %v2089
        %v2094 = vadd.f32 %v2018, %v2090
        %s2095 = sld [smem:[#allocation9 + $0x6]]
        %v2096 = vstv %s2095
        %v2097 = vmul.f32 %v2096, %v2071
        %v2098 = vmul.f32 %v2096, %v2072
        %v2099 = vmul.f32 %v2096, %v2073
        %v2100 = vmul.f32 %v2096, %v2074
        %v2101 = vadd.f32 %v2041, %v2097
        %v2102 = vadd.f32 %v2042, %v2098
        %v2103 = vadd.f32 %v2043, %v2099
        %v2104 = vadd.f32 %v2044, %v2100
        %s2105 = sld [smem:[#allocation9 + $0x7]]
        %v2106 = vstv %s2105
        %v2107 = vmul.f32 %v2106, %v2071
        %v2108 = vmul.f32 %v2106, %v2072
        %v2109 = vmul.f32 %v2106, %v2073
        %v2110 = vmul.f32 %v2106, %v2074
        %v2111 = vadd.f32 %v2067, %v2107
        %v2112 = vadd.f32 %v2068, %v2108
        %v2113 = vadd.f32 %v2069, %v2109
        %v2114 = vadd.f32 %v2070, %v2110
        %s2115 = sld [smem:[#allocation9 + $0x14]]
        %v2116 = vstv %s2115
        %v2117 = vmul.f32 %v2116, %v2071
        %v2118 = vmul.f32 %v2116, %v2072
        %v2119 = vmul.f32 %v2116, %v2073
        %v2120 = vmul.f32 %v2116, %v2074
        %2125 = vrot.lane.b32.xlu0 %v2117, 127
        %v2126 = vpop.permute.xlu0 %2125
        %2127 = vrot.lane.b32.xlu0 %v2118, 127
        %v2128 = vpop.permute.xlu0 %2127
        %2129 = vrot.lane.b32.xlu0 %v2119, 127
        %v2130 = vpop.permute.xlu0 %2129
        %2131 = vrot.lane.b32.xlu0 %v2120, 127
        %v2132 = vpop.permute.xlu0 %2131
        %v2137 = vadd.f32 %v2081, %v2126
        %v2138 = vadd.f32 %v2082, %v2128
        %v2139 = vadd.f32 %v2083, %v2130
        %v2140 = vadd.f32 %v2084, %v2132
        %s2141 = sld [smem:[#allocation9 + $0x15]]
        %v2142 = vstv %s2141
        %v2143 = vmul.f32 %v2142, %v2071
        %v2144 = vmul.f32 %v2142, %v2072
        %v2145 = vmul.f32 %v2142, %v2073
        %v2146 = vmul.f32 %v2142, %v2074
        %2151 = vrot.lane.b32.xlu0 %v2143, 127
        %v2152 = vpop.permute.xlu0 %2151
        %2153 = vrot.lane.b32.xlu0 %v2144, 127
        %v2154 = vpop.permute.xlu0 %2153
        %2155 = vrot.lane.b32.xlu0 %v2145, 127
        %v2156 = vpop.permute.xlu0 %2155
        %2157 = vrot.lane.b32.xlu0 %v2146, 127
        %v2158 = vpop.permute.xlu0 %2157
        %v2163 = vadd.f32 %v2091, %v2152
        %v2164 = vadd.f32 %v2092, %v2154
        %v2165 = vadd.f32 %v2093, %v2156
        %v2166 = vadd.f32 %v2094, %v2158
        %s2167 = sld [smem:[#allocation9 + $0x16]]
        %v2168 = vstv %s2167
        %v2169 = vmul.f32 %v2168, %v2071
        %v2170 = vmul.f32 %v2168, %v2072
        %v2171 = vmul.f32 %v2168, %v2073
        %v2172 = vmul.f32 %v2168, %v2074
        %2177 = vrot.lane.b32.xlu0 %v2169, 127
        %v2178 = vpop.permute.xlu0 %2177
        %2179 = vrot.lane.b32.xlu0 %v2170, 127
        %v2180 = vpop.permute.xlu0 %2179
        %2181 = vrot.lane.b32.xlu0 %v2171, 127
        %v2182 = vpop.permute.xlu0 %2181
        %2183 = vrot.lane.b32.xlu0 %v2172, 127
        %v2184 = vpop.permute.xlu0 %2183
        %v2189 = vadd.f32 %v2101, %v2178
        %v2190 = vadd.f32 %v2102, %v2180
        %v2191 = vadd.f32 %v2103, %v2182
        %v2192 = vadd.f32 %v2104, %v2184
        %s2193 = sld [smem:[#allocation9 + $0x17]]
        %v2194 = vstv %s2193
        %v2195 = vmul.f32 %v2194, %v2071
        %v2196 = vmul.f32 %v2194, %v2072
        %v2197 = vmul.f32 %v2194, %v2073
        %v2198 = vmul.f32 %v2194, %v2074
        %2203 = vrot.lane.b32.xlu0 %v2195, 127
        %v2204 = vpop.permute.xlu0 %2203
        %2205 = vrot.lane.b32.xlu0 %v2196, 127
        %v2206 = vpop.permute.xlu0 %2205
        %2207 = vrot.lane.b32.xlu0 %v2197, 127
        %v2208 = vpop.permute.xlu0 %2207
        %2209 = vrot.lane.b32.xlu0 %v2198, 127
        %v2210 = vpop.permute.xlu0 %2209
        %v2215 = vadd.f32 %v2111, %v2204
        %v2216 = vadd.f32 %v2112, %v2206
        %v2217 = vadd.f32 %v2113, %v2208
        %v2218 = vadd.f32 %v2114, %v2210
        %s2219 = sld [smem:[#allocation9 + $0x24]]
        %v2220 = vstv %s2219
        %v2221 = vmul.f32 %v2220, %v2071
        %v2222 = vmul.f32 %v2220, %v2072
        %v2223 = vmul.f32 %v2220, %v2073
        %v2224 = vmul.f32 %v2220, %v2074
        %2229 = vrot.lane.b32.xlu0 %v2221, 126
        %v2230 = vpop.permute.xlu0 %2229
        %2231 = vrot.lane.b32.xlu0 %v2222, 126
        %v2232 = vpop.permute.xlu0 %2231
        %2233 = vrot.lane.b32.xlu0 %v2223, 126
        %v2234 = vpop.permute.xlu0 %2233
        %2235 = vrot.lane.b32.xlu0 %v2224, 126
        %v2236 = vpop.permute.xlu0 %2235
        %v2241 = vadd.f32 %v2137, %v2230
        %v2242 = vadd.f32 %v2138, %v2232
        %v2243 = vadd.f32 %v2139, %v2234
        %v2244 = vadd.f32 %v2140, %v2236
        %s2245 = sld [smem:[#allocation9 + $0x25]]
        %v2246 = vstv %s2245
        %v2247 = vmul.f32 %v2246, %v2071
        %v2248 = vmul.f32 %v2246, %v2072
        %v2249 = vmul.f32 %v2246, %v2073
        %v2250 = vmul.f32 %v2246, %v2074
        %2255 = vrot.lane.b32.xlu0 %v2247, 126
        %v2256 = vpop.permute.xlu0 %2255
        %2257 = vrot.lane.b32.xlu0 %v2248, 126
        %v2258 = vpop.permute.xlu0 %2257
        %2259 = vrot.lane.b32.xlu0 %v2249, 126
        %v2260 = vpop.permute.xlu0 %2259
        %2261 = vrot.lane.b32.xlu0 %v2250, 126
        %v2262 = vpop.permute.xlu0 %2261
        %v2267 = vadd.f32 %v2163, %v2256
        %v2268 = vadd.f32 %v2164, %v2258
        %v2269 = vadd.f32 %v2165, %v2260
        %v2270 = vadd.f32 %v2166, %v2262
        %s2271 = sld [smem:[#allocation9 + $0x26]]
        %v2272 = vstv %s2271
        %v2273 = vmul.f32 %v2272, %v2071
        %v2274 = vmul.f32 %v2272, %v2072
        %v2275 = vmul.f32 %v2272, %v2073
        %v2276 = vmul.f32 %v2272, %v2074
        %2281 = vrot.lane.b32.xlu0 %v2273, 126
        %v2282 = vpop.permute.xlu0 %2281
        %2283 = vrot.lane.b32.xlu0 %v2274, 126
        %v2284 = vpop.permute.xlu0 %2283
        %2285 = vrot.lane.b32.xlu0 %v2275, 126
        %v2286 = vpop.permute.xlu0 %2285
        %2287 = vrot.lane.b32.xlu0 %v2276, 126
        %v2288 = vpop.permute.xlu0 %2287
        %v2293 = vadd.f32 %v2189, %v2282
        %v2294 = vadd.f32 %v2190, %v2284
        %v2295 = vadd.f32 %v2191, %v2286
        %v2296 = vadd.f32 %v2192, %v2288
        %s2297 = sld [smem:[#allocation9 + $0x27]]
        %v2298 = vstv %s2297
        %v2299 = vmul.f32 %v2298, %v2071
        %v2300 = vmul.f32 %v2298, %v2072
        %v2301 = vmul.f32 %v2298, %v2073
        %v2302 = vmul.f32 %v2298, %v2074
        %2307 = vrot.lane.b32.xlu0 %v2299, 126
        %v2308 = vpop.permute.xlu0 %2307
        %2309 = vrot.lane.b32.xlu0 %v2300, 126
        %v2310 = vpop.permute.xlu0 %2309
        %2311 = vrot.lane.b32.xlu0 %v2301, 126
        %v2312 = vpop.permute.xlu0 %2311
        %2313 = vrot.lane.b32.xlu0 %v2302, 126
        %v2314 = vpop.permute.xlu0 %2313
        %v2319 = vadd.f32 %v2215, %v2308
        %v2320 = vadd.f32 %v2216, %v2310
        %v2321 = vadd.f32 %v2217, %v2312
        %v2322 = vadd.f32 %v2218, %v2314
        %v2323 = vld [vmem:[%s930 + $0x1] sm:$0xff]
        %v2324 = vld [vmem:[%s930 + $0x9] sm:$0xff]
        %v2325 = vld [vmem:[%s930 + $0x11] sm:$0xff]
        %v2326 = vld [vmem:[%s930 + $0x19] sm:$0xff]
        %s2327 = sld [smem:[#allocation9 + $0x34]]
        %v2328 = vstv %s2327
        %v2329 = vmul.f32 %v2328, %v2323
        %v2330 = vmul.f32 %v2328, %v2324
        %v2331 = vmul.f32 %v2328, %v2325
        %v2332 = vmul.f32 %v2328, %v2326
        %v2333 = vadd.f32 %v2241, %v2329
        %v2334 = vadd.f32 %v2242, %v2330
        %v2335 = vadd.f32 %v2243, %v2331
        %v2336 = vadd.f32 %v2244, %v2332
        %s2337 = sld [smem:[#allocation9 + $0x35]]
        %v2338 = vstv %s2337
        %v2339 = vmul.f32 %v2338, %v2323
        %v2340 = vmul.f32 %v2338, %v2324
        %v2341 = vmul.f32 %v2338, %v2325
        %v2342 = vmul.f32 %v2338, %v2326
        %v2343 = vadd.f32 %v2267, %v2339
        %v2344 = vadd.f32 %v2268, %v2340
        %v2345 = vadd.f32 %v2269, %v2341
        %v2346 = vadd.f32 %v2270, %v2342
        %s2347 = sld [smem:[#allocation9 + $0x36]]
        %v2348 = vstv %s2347
        %v2349 = vmul.f32 %v2348, %v2323
        %v2350 = vmul.f32 %v2348, %v2324
        %v2351 = vmul.f32 %v2348, %v2325
        %v2352 = vmul.f32 %v2348, %v2326
        %v2353 = vadd.f32 %v2293, %v2349
        %v2354 = vadd.f32 %v2294, %v2350
        %v2355 = vadd.f32 %v2295, %v2351
        %v2356 = vadd.f32 %v2296, %v2352
        %s2357 = sld [smem:[#allocation9 + $0x37]]
        %v2358 = vstv %s2357
        %v2359 = vmul.f32 %v2358, %v2323
        %v2360 = vmul.f32 %v2358, %v2324
        %v2361 = vmul.f32 %v2358, %v2325
        %v2362 = vmul.f32 %v2358, %v2326
        %v2363 = vadd.f32 %v2319, %v2359
        %v2364 = vadd.f32 %v2320, %v2360
        %v2365 = vadd.f32 %v2321, %v2361
        %v2366 = vadd.f32 %v2322, %v2362
        %s2367 = sld [smem:[#allocation9 + $0x44]]
        %v2368 = vstv %s2367
        %v2369 = vmul.f32 %v2368, %v2323
        %v2370 = vmul.f32 %v2368, %v2324
        %v2371 = vmul.f32 %v2368, %v2325
        %v2372 = vmul.f32 %v2368, %v2326
        %2377 = vrot.lane.b32.xlu0 %v2369, 127
        %v2378 = vpop.permute.xlu0 %2377
        %2379 = vrot.lane.b32.xlu0 %v2370, 127
        %v2380 = vpop.permute.xlu0 %2379
        %2381 = vrot.lane.b32.xlu0 %v2371, 127
        %v2382 = vpop.permute.xlu0 %2381
        %2383 = vrot.lane.b32.xlu0 %v2372, 127
        %v2384 = vpop.permute.xlu0 %2383
        %v2389 = vadd.f32 %v2333, %v2378
        %v2390 = vadd.f32 %v2334, %v2380
        %v2391 = vadd.f32 %v2335, %v2382
        %v2392 = vadd.f32 %v2336, %v2384
        %s2393 = sld [smem:[#allocation9 + $0x45]]
        %v2394 = vstv %s2393
        %v2395 = vmul.f32 %v2394, %v2323
        %v2396 = vmul.f32 %v2394, %v2324
        %v2397 = vmul.f32 %v2394, %v2325
        %v2398 = vmul.f32 %v2394, %v2326
        %2403 = vrot.lane.b32.xlu0 %v2395, 127
        %v2404 = vpop.permute.xlu0 %2403
        %2405 = vrot.lane.b32.xlu0 %v2396, 127
        %v2406 = vpop.permute.xlu0 %2405
        %2407 = vrot.lane.b32.xlu0 %v2397, 127
        %v2408 = vpop.permute.xlu0 %2407
        %2409 = vrot.lane.b32.xlu0 %v2398, 127
        %v2410 = vpop.permute.xlu0 %2409
        %v2415 = vadd.f32 %v2343, %v2404
        %v2416 = vadd.f32 %v2344, %v2406
        %v2417 = vadd.f32 %v2345, %v2408
        %v2418 = vadd.f32 %v2346, %v2410
        %s2419 = sld [smem:[#allocation9 + $0x46]]
        %v2420 = vstv %s2419
        %v2421 = vmul.f32 %v2420, %v2323
        %v2422 = vmul.f32 %v2420, %v2324
        %v2423 = vmul.f32 %v2420, %v2325
        %v2424 = vmul.f32 %v2420, %v2326
        %2429 = vrot.lane.b32.xlu0 %v2421, 127
        %v2430 = vpop.permute.xlu0 %2429
        %2431 = vrot.lane.b32.xlu0 %v2422, 127
        %v2432 = vpop.permute.xlu0 %2431
        %2433 = vrot.lane.b32.xlu0 %v2423, 127
        %v2434 = vpop.permute.xlu0 %2433
        %2435 = vrot.lane.b32.xlu0 %v2424, 127
        %v2436 = vpop.permute.xlu0 %2435
        %v2441 = vadd.f32 %v2353, %v2430
        %v2442 = vadd.f32 %v2354, %v2432
        %v2443 = vadd.f32 %v2355, %v2434
        %v2444 = vadd.f32 %v2356, %v2436
        %s2445 = sld [smem:[#allocation9 + $0x47]]
        %v2446 = vstv %s2445
        %v2447 = vmul.f32 %v2446, %v2323
        %v2448 = vmul.f32 %v2446, %v2324
        %v2449 = vmul.f32 %v2446, %v2325
        %v2450 = vmul.f32 %v2446, %v2326
        %2455 = vrot.lane.b32.xlu0 %v2447, 127
        %v2456 = vpop.permute.xlu0 %2455
        %2457 = vrot.lane.b32.xlu0 %v2448, 127
        %v2458 = vpop.permute.xlu0 %2457
        %2459 = vrot.lane.b32.xlu0 %v2449, 127
        %v2460 = vpop.permute.xlu0 %2459
        %2461 = vrot.lane.b32.xlu0 %v2450, 127
        %v2462 = vpop.permute.xlu0 %2461
        %v2467 = vadd.f32 %v2363, %v2456
        %v2468 = vadd.f32 %v2364, %v2458
        %v2469 = vadd.f32 %v2365, %v2460
        %v2470 = vadd.f32 %v2366, %v2462
        %s2471 = sld [smem:[#allocation9 + $0x54]]
        %v2472 = vstv %s2471
        %v2473 = vmul.f32 %v2472, %v2323
        %v2474 = vmul.f32 %v2472, %v2324
        %v2475 = vmul.f32 %v2472, %v2325
        %v2476 = vmul.f32 %v2472, %v2326
        %2481 = vrot.lane.b32.xlu0 %v2473, 126
        %v2482 = vpop.permute.xlu0 %2481
        %2483 = vrot.lane.b32.xlu0 %v2474, 126
        %v2484 = vpop.permute.xlu0 %2483
        %2485 = vrot.lane.b32.xlu0 %v2475, 126
        %v2486 = vpop.permute.xlu0 %2485
        %2487 = vrot.lane.b32.xlu0 %v2476, 126
        %v2488 = vpop.permute.xlu0 %2487
        %v2493 = vadd.f32 %v2389, %v2482
        %v2494 = vadd.f32 %v2390, %v2484
        %v2495 = vadd.f32 %v2391, %v2486
        %v2496 = vadd.f32 %v2392, %v2488
        %s2497 = sld [smem:[#allocation9 + $0x55]]
        %v2498 = vstv %s2497
        %v2499 = vmul.f32 %v2498, %v2323
        %v2500 = vmul.f32 %v2498, %v2324
        %v2501 = vmul.f32 %v2498, %v2325
        %v2502 = vmul.f32 %v2498, %v2326
        %2507 = vrot.lane.b32.xlu0 %v2499, 126
        %v2508 = vpop.permute.xlu0 %2507
        %2509 = vrot.lane.b32.xlu0 %v2500, 126
        %v2510 = vpop.permute.xlu0 %2509
        %2511 = vrot.lane.b32.xlu0 %v2501, 126
        %v2512 = vpop.permute.xlu0 %2511
        %2513 = vrot.lane.b32.xlu0 %v2502, 126
        %v2514 = vpop.permute.xlu0 %2513
        %v2519 = vadd.f32 %v2415, %v2508
        %v2520 = vadd.f32 %v2416, %v2510
        %v2521 = vadd.f32 %v2417, %v2512
        %v2522 = vadd.f32 %v2418, %v2514
        %s2523 = sld [smem:[#allocation9 + $0x56]]
        %v2524 = vstv %s2523
        %v2525 = vmul.f32 %v2524, %v2323
        %v2526 = vmul.f32 %v2524, %v2324
        %v2527 = vmul.f32 %v2524, %v2325
        %v2528 = vmul.f32 %v2524, %v2326
        %2533 = vrot.lane.b32.xlu0 %v2525, 126
        %v2534 = vpop.permute.xlu0 %2533
        %2535 = vrot.lane.b32.xlu0 %v2526, 126
        %v2536 = vpop.permute.xlu0 %2535
        %2537 = vrot.lane.b32.xlu0 %v2527, 126
        %v2538 = vpop.permute.xlu0 %2537
        %2539 = vrot.lane.b32.xlu0 %v2528, 126
        %v2540 = vpop.permute.xlu0 %2539
        %v2545 = vadd.f32 %v2441, %v2534
        %v2546 = vadd.f32 %v2442, %v2536
        %v2547 = vadd.f32 %v2443, %v2538
        %v2548 = vadd.f32 %v2444, %v2540
        %s2549 = sld [smem:[#allocation9 + $0x57]]
        %v2550 = vstv %s2549
        %v2551 = vmul.f32 %v2550, %v2323
        %v2552 = vmul.f32 %v2550, %v2324
        %v2553 = vmul.f32 %v2550, %v2325
        %v2554 = vmul.f32 %v2550, %v2326
        %2559 = vrot.lane.b32.xlu0 %v2551, 126
        %v2560 = vpop.permute.xlu0 %2559
        %2561 = vrot.lane.b32.xlu0 %v2552, 126
        %v2562 = vpop.permute.xlu0 %2561
        %2563 = vrot.lane.b32.xlu0 %v2553, 126
        %v2564 = vpop.permute.xlu0 %2563
        %2565 = vrot.lane.b32.xlu0 %v2554, 126
        %v2566 = vpop.permute.xlu0 %2565
        %v2571 = vadd.f32 %v2467, %v2560
        %v2572 = vadd.f32 %v2468, %v2562
        %v2573 = vadd.f32 %v2469, %v2564
        %v2574 = vadd.f32 %v2470, %v2566
        %v2575 = vld [vmem:[%s930 + $0x2] sm:$0xff]
        %v2576 = vld [vmem:[%s930 + $0xa] sm:$0xff]
        %v2577 = vld [vmem:[%s930 + $0x12] sm:$0xff]
        %v2578 = vld [vmem:[%s930 + $0x1a] sm:$0xff]
        %s2579 = sld [smem:[#allocation9 + $0x64]]
        %v2580 = vstv %s2579
        %v2581 = vmul.f32 %v2580, %v2575
        %v2582 = vmul.f32 %v2580, %v2576
        %v2583 = vmul.f32 %v2580, %v2577
        %v2584 = vmul.f32 %v2580, %v2578
        %v2585 = vadd.f32 %v2493, %v2581
        %v2586 = vadd.f32 %v2494, %v2582
        %v2587 = vadd.f32 %v2495, %v2583
        %v2588 = vadd.f32 %v2496, %v2584
        %s2589 = sld [smem:[#allocation9 + $0x65]]
        %v2590 = vstv %s2589
        %v2591 = vmul.f32 %v2590, %v2575
        %v2592 = vmul.f32 %v2590, %v2576
        %v2593 = vmul.f32 %v2590, %v2577
        %v2594 = vmul.f32 %v2590, %v2578
        %v2595 = vadd.f32 %v2519, %v2591
        %v2596 = vadd.f32 %v2520, %v2592
        %v2597 = vadd.f32 %v2521, %v2593
        %v2598 = vadd.f32 %v2522, %v2594
        %s2599 = sld [smem:[#allocation9 + $0x66]]
        %v2600 = vstv %s2599
        %v2601 = vmul.f32 %v2600, %v2575
        %v2602 = vmul.f32 %v2600, %v2576
        %v2603 = vmul.f32 %v2600, %v2577
        %v2604 = vmul.f32 %v2600, %v2578
        %v2605 = vadd.f32 %v2545, %v2601
        %v2606 = vadd.f32 %v2546, %v2602
        %v2607 = vadd.f32 %v2547, %v2603
        %v2608 = vadd.f32 %v2548, %v2604
        %s2609 = sld [smem:[#allocation9 + $0x67]]
        %v2610 = vstv %s2609
        %v2611 = vmul.f32 %v2610, %v2575
        %v2612 = vmul.f32 %v2610, %v2576
        %v2613 = vmul.f32 %v2610, %v2577
        %v2614 = vmul.f32 %v2610, %v2578
        %v2615 = vadd.f32 %v2571, %v2611
        %v2616 = vadd.f32 %v2572, %v2612
        %v2617 = vadd.f32 %v2573, %v2613
        %v2618 = vadd.f32 %v2574, %v2614
        %s2619 = sld [smem:[#allocation9 + $0x74]]
        %v2620 = vstv %s2619
        %v2621 = vmul.f32 %v2620, %v2575
        %v2622 = vmul.f32 %v2620, %v2576
        %v2623 = vmul.f32 %v2620, %v2577
        %v2624 = vmul.f32 %v2620, %v2578
        %2629 = vrot.lane.b32.xlu0 %v2621, 127
        %v2630 = vpop.permute.xlu0 %2629
        %2631 = vrot.lane.b32.xlu0 %v2622, 127
        %v2632 = vpop.permute.xlu0 %2631
        %2633 = vrot.lane.b32.xlu0 %v2623, 127
        %v2634 = vpop.permute.xlu0 %2633
        %2635 = vrot.lane.b32.xlu0 %v2624, 127
        %v2636 = vpop.permute.xlu0 %2635
        %v2641 = vadd.f32 %v2585, %v2630
        %v2642 = vadd.f32 %v2586, %v2632
        %v2643 = vadd.f32 %v2587, %v2634
        %v2644 = vadd.f32 %v2588, %v2636
        %s2645 = sld [smem:[#allocation9 + $0x75]]
        %v2646 = vstv %s2645
        %v2647 = vmul.f32 %v2646, %v2575
        %v2648 = vmul.f32 %v2646, %v2576
        %v2649 = vmul.f32 %v2646, %v2577
        %v2650 = vmul.f32 %v2646, %v2578
        %2655 = vrot.lane.b32.xlu0 %v2647, 127
        %v2656 = vpop.permute.xlu0 %2655
        %2657 = vrot.lane.b32.xlu0 %v2648, 127
        %v2658 = vpop.permute.xlu0 %2657
        %2659 = vrot.lane.b32.xlu0 %v2649, 127
        %v2660 = vpop.permute.xlu0 %2659
        %2661 = vrot.lane.b32.xlu0 %v2650, 127
        %v2662 = vpop.permute.xlu0 %2661
        %v2667 = vadd.f32 %v2595, %v2656
        %v2668 = vadd.f32 %v2596, %v2658
        %v2669 = vadd.f32 %v2597, %v2660
        %v2670 = vadd.f32 %v2598, %v2662
        %s2671 = sld [smem:[#allocation9 + $0x76]]
        %v2672 = vstv %s2671
        %v2673 = vmul.f32 %v2672, %v2575
        %v2674 = vmul.f32 %v2672, %v2576
        %v2675 = vmul.f32 %v2672, %v2577
        %v2676 = vmul.f32 %v2672, %v2578
        %2681 = vrot.lane.b32.xlu0 %v2673, 127
        %v2682 = vpop.permute.xlu0 %2681
        %2683 = vrot.lane.b32.xlu0 %v2674, 127
        %v2684 = vpop.permute.xlu0 %2683
        %2685 = vrot.lane.b32.xlu0 %v2675, 127
        %v2686 = vpop.permute.xlu0 %2685
        %2687 = vrot.lane.b32.xlu0 %v2676, 127
        %v2688 = vpop.permute.xlu0 %2687
        %v2693 = vadd.f32 %v2605, %v2682
        %v2694 = vadd.f32 %v2606, %v2684
        %v2695 = vadd.f32 %v2607, %v2686
        %v2696 = vadd.f32 %v2608, %v2688
        %s2697 = sld [smem:[#allocation9 + $0x77]]
        %v2698 = vstv %s2697
        %v2699 = vmul.f32 %v2698, %v2575
        %v2700 = vmul.f32 %v2698, %v2576
        %v2701 = vmul.f32 %v2698, %v2577
        %v2702 = vmul.f32 %v2698, %v2578
        %2707 = vrot.lane.b32.xlu0 %v2699, 127
        %v2708 = vpop.permute.xlu0 %2707
        %2709 = vrot.lane.b32.xlu0 %v2700, 127
        %v2710 = vpop.permute.xlu0 %2709
        %2711 = vrot.lane.b32.xlu0 %v2701, 127
        %v2712 = vpop.permute.xlu0 %2711
        %2713 = vrot.lane.b32.xlu0 %v2702, 127
        %v2714 = vpop.permute.xlu0 %2713
        %v2719 = vadd.f32 %v2615, %v2708
        %v2720 = vadd.f32 %v2616, %v2710
        %v2721 = vadd.f32 %v2617, %v2712
        %v2722 = vadd.f32 %v2618, %v2714
        %s2723 = sld [smem:[#allocation9 + $0x84]]
        %v2724 = vstv %s2723
        %v2725 = vmul.f32 %v2724, %v2575
        %v2726 = vmul.f32 %v2724, %v2576
        %v2727 = vmul.f32 %v2724, %v2577
        %v2728 = vmul.f32 %v2724, %v2578
        %2733 = vrot.lane.b32.xlu0 %v2725, 126
        %v2734 = vpop.permute.xlu0 %2733
        %2735 = vrot.lane.b32.xlu0 %v2726, 126
        %v2736 = vpop.permute.xlu0 %2735
        %2737 = vrot.lane.b32.xlu0 %v2727, 126
        %v2738 = vpop.permute.xlu0 %2737
        %2739 = vrot.lane.b32.xlu0 %v2728, 126
        %v2740 = vpop.permute.xlu0 %2739
        %v2745 = vadd.f32 %v2641, %v2734
        %v2746 = vadd.f32 %v2642, %v2736
        %v2747 = vadd.f32 %v2643, %v2738
        %v2748 = vadd.f32 %v2644, %v2740
        %s2749 = sld [smem:[#allocation9 + $0x85]]
        %v2750 = vstv %s2749
        %v2751 = vmul.f32 %v2750, %v2575
        %v2752 = vmul.f32 %v2750, %v2576
        %v2753 = vmul.f32 %v2750, %v2577
        %v2754 = vmul.f32 %v2750, %v2578
        %2759 = vrot.lane.b32.xlu0 %v2751, 126
        %v2760 = vpop.permute.xlu0 %2759
        %2761 = vrot.lane.b32.xlu0 %v2752, 126
        %v2762 = vpop.permute.xlu0 %2761
        %2763 = vrot.lane.b32.xlu0 %v2753, 126
        %v2764 = vpop.permute.xlu0 %2763
        %2765 = vrot.lane.b32.xlu0 %v2754, 126
        %v2766 = vpop.permute.xlu0 %2765
        %v2771 = vadd.f32 %v2667, %v2760
        %v2772 = vadd.f32 %v2668, %v2762
        %v2773 = vadd.f32 %v2669, %v2764
        %v2774 = vadd.f32 %v2670, %v2766
        %s2775 = sld [smem:[#allocation9 + $0x86]]
        %v2776 = vstv %s2775
        %v2777 = vmul.f32 %v2776, %v2575
        %v2778 = vmul.f32 %v2776, %v2576
        %v2779 = vmul.f32 %v2776, %v2577
        %v2780 = vmul.f32 %v2776, %v2578
        %2785 = vrot.lane.b32.xlu0 %v2777, 126
        %v2786 = vpop.permute.xlu0 %2785
        %2787 = vrot.lane.b32.xlu0 %v2778, 126
        %v2788 = vpop.permute.xlu0 %2787
        %2789 = vrot.lane.b32.xlu0 %v2779, 126
        %v2790 = vpop.permute.xlu0 %2789
        %2791 = vrot.lane.b32.xlu0 %v2780, 126
        %v2792 = vpop.permute.xlu0 %2791
        %v2797 = vadd.f32 %v2693, %v2786
        %v2798 = vadd.f32 %v2694, %v2788
        %v2799 = vadd.f32 %v2695, %v2790
        %v2800 = vadd.f32 %v2696, %v2792
        %s2801 = sld [smem:[#allocation9 + $0x87]]
        %v2802 = vstv %s2801
        %v2803 = vmul.f32 %v2802, %v2575
        %v2804 = vmul.f32 %v2802, %v2576
        %v2805 = vmul.f32 %v2802, %v2577
        %v2806 = vmul.f32 %v2802, %v2578
        %2811 = vrot.lane.b32.xlu0 %v2803, 126
        %v2812 = vpop.permute.xlu0 %2811
        %2813 = vrot.lane.b32.xlu0 %v2804, 126
        %v2814 = vpop.permute.xlu0 %2813
        %2815 = vrot.lane.b32.xlu0 %v2805, 126
        %v2816 = vpop.permute.xlu0 %2815
        %2817 = vrot.lane.b32.xlu0 %v2806, 126
        %v2818 = vpop.permute.xlu0 %2817
        %v2823 = vadd.f32 %v2719, %v2812
        %v2824 = vadd.f32 %v2720, %v2814
        %v2825 = vadd.f32 %v2721, %v2816
        %v2826 = vadd.f32 %v2722, %v2818
        %v2827 = vld [vmem:[%s1120] sm:$0xff]
        %v2828 = vld [vmem:[%s1120 + $0x8] sm:$0xff]
        %v2829 = vld [vmem:[%s1120 + $0x10] sm:$0xff]
        %v2830 = vld [vmem:[%s1120 + $0x18] sm:$0xff]
        %s2831 = sld [smem:[#allocation9 + $0x8]]
        %v2832 = vstv %s2831
        %v2833 = vmul.f32 %v2832, %v2827
        %v2834 = vmul.f32 %v2832, %v2828
        %v2835 = vmul.f32 %v2832, %v2829
        %v2836 = vmul.f32 %v2832, %v2830
        %v2837 = vadd.f32 %v2745, %v2833
        %v2838 = vadd.f32 %v2746, %v2834
        %v2839 = vadd.f32 %v2747, %v2835
        %v2840 = vadd.f32 %v2748, %v2836
        %s2841 = sld [smem:[#allocation9 + $0x9]]
        %v2842 = vstv %s2841
        %v2843 = vmul.f32 %v2842, %v2827
        %v2844 = vmul.f32 %v2842, %v2828
        %v2845 = vmul.f32 %v2842, %v2829
        %v2846 = vmul.f32 %v2842, %v2830
        %v2847 = vadd.f32 %v2771, %v2843
        %v2848 = vadd.f32 %v2772, %v2844
        %v2849 = vadd.f32 %v2773, %v2845
        %v2850 = vadd.f32 %v2774, %v2846
        %s2851 = sld [smem:[#allocation9 + $0xa]]
        %v2852 = vstv %s2851
        %v2853 = vmul.f32 %v2852, %v2827
        %v2854 = vmul.f32 %v2852, %v2828
        %v2855 = vmul.f32 %v2852, %v2829
        %v2856 = vmul.f32 %v2852, %v2830
        %v2857 = vadd.f32 %v2797, %v2853
        %v2858 = vadd.f32 %v2798, %v2854
        %v2859 = vadd.f32 %v2799, %v2855
        %v2860 = vadd.f32 %v2800, %v2856
        %s2861 = sld [smem:[#allocation9 + $0xb]]
        %v2862 = vstv %s2861
        %v2863 = vmul.f32 %v2862, %v2827
        %v2864 = vmul.f32 %v2862, %v2828
        %v2865 = vmul.f32 %v2862, %v2829
        %v2866 = vmul.f32 %v2862, %v2830
        %v2867 = vadd.f32 %v2823, %v2863
        %v2868 = vadd.f32 %v2824, %v2864
        %v2869 = vadd.f32 %v2825, %v2865
        %v2870 = vadd.f32 %v2826, %v2866
        %s2871 = sld [smem:[#allocation9 + $0x18]]
        %v2872 = vstv %s2871
        %v2873 = vmul.f32 %v2872, %v2827
        %v2874 = vmul.f32 %v2872, %v2828
        %v2875 = vmul.f32 %v2872, %v2829
        %v2876 = vmul.f32 %v2872, %v2830
        %2881 = vrot.lane.b32.xlu0 %v2873, 127
        %v2882 = vpop.permute.xlu0 %2881
        %2883 = vrot.lane.b32.xlu0 %v2874, 127
        %v2884 = vpop.permute.xlu0 %2883
        %2885 = vrot.lane.b32.xlu0 %v2875, 127
        %v2886 = vpop.permute.xlu0 %2885
        %2887 = vrot.lane.b32.xlu0 %v2876, 127
        %v2888 = vpop.permute.xlu0 %2887
        %v2893 = vadd.f32 %v2837, %v2882
        %v2894 = vadd.f32 %v2838, %v2884
        %v2895 = vadd.f32 %v2839, %v2886
        %v2896 = vadd.f32 %v2840, %v2888
        %s2897 = sld [smem:[#allocation9 + $0x19]]
        %v2898 = vstv %s2897
        %v2899 = vmul.f32 %v2898, %v2827
        %v2900 = vmul.f32 %v2898, %v2828
        %v2901 = vmul.f32 %v2898, %v2829
        %v2902 = vmul.f32 %v2898, %v2830
        %2907 = vrot.lane.b32.xlu0 %v2899, 127
        %v2908 = vpop.permute.xlu0 %2907
        %2909 = vrot.lane.b32.xlu0 %v2900, 127
        %v2910 = vpop.permute.xlu0 %2909
        %2911 = vrot.lane.b32.xlu0 %v2901, 127
        %v2912 = vpop.permute.xlu0 %2911
        %2913 = vrot.lane.b32.xlu0 %v2902, 127
        %v2914 = vpop.permute.xlu0 %2913
        %v2919 = vadd.f32 %v2847, %v2908
        %v2920 = vadd.f32 %v2848, %v2910
        %v2921 = vadd.f32 %v2849, %v2912
        %v2922 = vadd.f32 %v2850, %v2914
        %s2923 = sld [smem:[#allocation9 + $0x1a]]
        %v2924 = vstv %s2923
        %v2925 = vmul.f32 %v2924, %v2827
        %v2926 = vmul.f32 %v2924, %v2828
        %v2927 = vmul.f32 %v2924, %v2829
        %v2928 = vmul.f32 %v2924, %v2830
        %2933 = vrot.lane.b32.xlu0 %v2925, 127
        %v2934 = vpop.permute.xlu0 %2933
        %2935 = vrot.lane.b32.xlu0 %v2926, 127
        %v2936 = vpop.permute.xlu0 %2935
        %2937 = vrot.lane.b32.xlu0 %v2927, 127
        %v2938 = vpop.permute.xlu0 %2937
        %2939 = vrot.lane.b32.xlu0 %v2928, 127
        %v2940 = vpop.permute.xlu0 %2939
        %v2945 = vadd.f32 %v2857, %v2934
        %v2946 = vadd.f32 %v2858, %v2936
        %v2947 = vadd.f32 %v2859, %v2938
        %v2948 = vadd.f32 %v2860, %v2940
        %s2949 = sld [smem:[#allocation9 + $0x1b]]
        %v2950 = vstv %s2949
        %v2951 = vmul.f32 %v2950, %v2827
        %v2952 = vmul.f32 %v2950, %v2828
        %v2953 = vmul.f32 %v2950, %v2829
        %v2954 = vmul.f32 %v2950, %v2830
        %2959 = vrot.lane.b32.xlu0 %v2951, 127
        %v2960 = vpop.permute.xlu0 %2959
        %2961 = vrot.lane.b32.xlu0 %v2952, 127
        %v2962 = vpop.permute.xlu0 %2961
        %2963 = vrot.lane.b32.xlu0 %v2953, 127
        %v2964 = vpop.permute.xlu0 %2963
        %2965 = vrot.lane.b32.xlu0 %v2954, 127
        %v2966 = vpop.permute.xlu0 %2965
        %v2971 = vadd.f32 %v2867, %v2960
        %v2972 = vadd.f32 %v2868, %v2962
        %v2973 = vadd.f32 %v2869, %v2964
        %v2974 = vadd.f32 %v2870, %v2966
        %s2975 = sld [smem:[#allocation9 + $0x28]]
        %v2976 = vstv %s2975
        %v2977 = vmul.f32 %v2976, %v2827
        %v2978 = vmul.f32 %v2976, %v2828
        %v2979 = vmul.f32 %v2976, %v2829
        %v2980 = vmul.f32 %v2976, %v2830
        %2985 = vrot.lane.b32.xlu0 %v2977, 126
        %v2986 = vpop.permute.xlu0 %2985
        %2987 = vrot.lane.b32.xlu0 %v2978, 126
        %v2988 = vpop.permute.xlu0 %2987
        %2989 = vrot.lane.b32.xlu0 %v2979, 126
        %v2990 = vpop.permute.xlu0 %2989
        %2991 = vrot.lane.b32.xlu0 %v2980, 126
        %v2992 = vpop.permute.xlu0 %2991
        %v2997 = vadd.f32 %v2893, %v2986
        %v2998 = vadd.f32 %v2894, %v2988
        %v2999 = vadd.f32 %v2895, %v2990
        %v3000 = vadd.f32 %v2896, %v2992
        %s3001 = sld [smem:[#allocation9 + $0x29]]
        %v3002 = vstv %s3001
        %v3003 = vmul.f32 %v3002, %v2827
        %v3004 = vmul.f32 %v3002, %v2828
        %v3005 = vmul.f32 %v3002, %v2829
        %v3006 = vmul.f32 %v3002, %v2830
        %3011 = vrot.lane.b32.xlu0 %v3003, 126
        %v3012 = vpop.permute.xlu0 %3011
        %3013 = vrot.lane.b32.xlu0 %v3004, 126
        %v3014 = vpop.permute.xlu0 %3013
        %3015 = vrot.lane.b32.xlu0 %v3005, 126
        %v3016 = vpop.permute.xlu0 %3015
        %3017 = vrot.lane.b32.xlu0 %v3006, 126
        %v3018 = vpop.permute.xlu0 %3017
        %v3023 = vadd.f32 %v2919, %v3012
        %v3024 = vadd.f32 %v2920, %v3014
        %v3025 = vadd.f32 %v2921, %v3016
        %v3026 = vadd.f32 %v2922, %v3018
        %s3027 = sld [smem:[#allocation9 + $0x2a]]
        %v3028 = vstv %s3027
        %v3029 = vmul.f32 %v3028, %v2827
        %v3030 = vmul.f32 %v3028, %v2828
        %v3031 = vmul.f32 %v3028, %v2829
        %v3032 = vmul.f32 %v3028, %v2830
        %3037 = vrot.lane.b32.xlu0 %v3029, 126
        %v3038 = vpop.permute.xlu0 %3037
        %3039 = vrot.lane.b32.xlu0 %v3030, 126
        %v3040 = vpop.permute.xlu0 %3039
        %3041 = vrot.lane.b32.xlu0 %v3031, 126
        %v3042 = vpop.permute.xlu0 %3041
        %3043 = vrot.lane.b32.xlu0 %v3032, 126
        %v3044 = vpop.permute.xlu0 %3043
        %v3049 = vadd.f32 %v2945, %v3038
        %v3050 = vadd.f32 %v2946, %v3040
        %v3051 = vadd.f32 %v2947, %v3042
        %v3052 = vadd.f32 %v2948, %v3044
        %s3053 = sld [smem:[#allocation9 + $0x2b]]
        %v3054 = vstv %s3053
        %v3055 = vmul.f32 %v3054, %v2827
        %v3056 = vmul.f32 %v3054, %v2828
        %v3057 = vmul.f32 %v3054, %v2829
        %v3058 = vmul.f32 %v3054, %v2830
        %3063 = vrot.lane.b32.xlu0 %v3055, 126
        %v3064 = vpop.permute.xlu0 %3063
        %3065 = vrot.lane.b32.xlu0 %v3056, 126
        %v3066 = vpop.permute.xlu0 %3065
        %3067 = vrot.lane.b32.xlu0 %v3057, 126
        %v3068 = vpop.permute.xlu0 %3067
        %3069 = vrot.lane.b32.xlu0 %v3058, 126
        %v3070 = vpop.permute.xlu0 %3069
        %v3075 = vadd.f32 %v2971, %v3064
        %v3076 = vadd.f32 %v2972, %v3066
        %v3077 = vadd.f32 %v2973, %v3068
        %v3078 = vadd.f32 %v2974, %v3070
        %v3079 = vld [vmem:[%s1120 + $0x1] sm:$0xff]
        %v3080 = vld [vmem:[%s1120 + $0x9] sm:$0xff]
        %v3081 = vld [vmem:[%s1120 + $0x11] sm:$0xff]
        %v3082 = vld [vmem:[%s1120 + $0x19] sm:$0xff]
        %s3083 = sld [smem:[#allocation9 + $0x38]]
        %v3084 = vstv %s3083
        %v3085 = vmul.f32 %v3084, %v3079
        %v3086 = vmul.f32 %v3084, %v3080
        %v3087 = vmul.f32 %v3084, %v3081
        %v3088 = vmul.f32 %v3084, %v3082
        %v3089 = vadd.f32 %v2997, %v3085
        %v3090 = vadd.f32 %v2998, %v3086
        %v3091 = vadd.f32 %v2999, %v3087
        %v3092 = vadd.f32 %v3000, %v3088
        %s3093 = sld [smem:[#allocation9 + $0x39]]
        %v3094 = vstv %s3093
        %v3095 = vmul.f32 %v3094, %v3079
        %v3096 = vmul.f32 %v3094, %v3080
        %v3097 = vmul.f32 %v3094, %v3081
        %v3098 = vmul.f32 %v3094, %v3082
        %v3099 = vadd.f32 %v3023, %v3095
        %v3100 = vadd.f32 %v3024, %v3096
        %v3101 = vadd.f32 %v3025, %v3097
        %v3102 = vadd.f32 %v3026, %v3098
        %s3103 = sld [smem:[#allocation9 + $0x3a]]
        %v3104 = vstv %s3103
        %v3105 = vmul.f32 %v3104, %v3079
        %v3106 = vmul.f32 %v3104, %v3080
        %v3107 = vmul.f32 %v3104, %v3081
        %v3108 = vmul.f32 %v3104, %v3082
        %v3109 = vadd.f32 %v3049, %v3105
        %v3110 = vadd.f32 %v3050, %v3106
        %v3111 = vadd.f32 %v3051, %v3107
        %v3112 = vadd.f32 %v3052, %v3108
        %s3113 = sld [smem:[#allocation9 + $0x3b]]
        %v3114 = vstv %s3113
        %v3115 = vmul.f32 %v3114, %v3079
        %v3116 = vmul.f32 %v3114, %v3080
        %v3117 = vmul.f32 %v3114, %v3081
        %v3118 = vmul.f32 %v3114, %v3082
        %v3119 = vadd.f32 %v3075, %v3115
        %v3120 = vadd.f32 %v3076, %v3116
        %v3121 = vadd.f32 %v3077, %v3117
        %v3122 = vadd.f32 %v3078, %v3118
        %s3123 = sld [smem:[#allocation9 + $0x48]]
        %v3124 = vstv %s3123
        %v3125 = vmul.f32 %v3124, %v3079
        %v3126 = vmul.f32 %v3124, %v3080
        %v3127 = vmul.f32 %v3124, %v3081
        %v3128 = vmul.f32 %v3124, %v3082
        %3133 = vrot.lane.b32.xlu0 %v3125, 127
        %v3134 = vpop.permute.xlu0 %3133
        %3135 = vrot.lane.b32.xlu0 %v3126, 127
        %v3136 = vpop.permute.xlu0 %3135
        %3137 = vrot.lane.b32.xlu0 %v3127, 127
        %v3138 = vpop.permute.xlu0 %3137
        %3139 = vrot.lane.b32.xlu0 %v3128, 127
        %v3140 = vpop.permute.xlu0 %3139
        %v3145 = vadd.f32 %v3089, %v3134
        %v3146 = vadd.f32 %v3090, %v3136
        %v3147 = vadd.f32 %v3091, %v3138
        %v3148 = vadd.f32 %v3092, %v3140
        %s3149 = sld [smem:[#allocation9 + $0x49]]
        %v3150 = vstv %s3149
        %v3151 = vmul.f32 %v3150, %v3079
        %v3152 = vmul.f32 %v3150, %v3080
        %v3153 = vmul.f32 %v3150, %v3081
        %v3154 = vmul.f32 %v3150, %v3082
        %3159 = vrot.lane.b32.xlu0 %v3151, 127
        %v3160 = vpop.permute.xlu0 %3159
        %3161 = vrot.lane.b32.xlu0 %v3152, 127
        %v3162 = vpop.permute.xlu0 %3161
        %3163 = vrot.lane.b32.xlu0 %v3153, 127
        %v3164 = vpop.permute.xlu0 %3163
        %3165 = vrot.lane.b32.xlu0 %v3154, 127
        %v3166 = vpop.permute.xlu0 %3165
        %v3171 = vadd.f32 %v3099, %v3160
        %v3172 = vadd.f32 %v3100, %v3162
        %v3173 = vadd.f32 %v3101, %v3164
        %v3174 = vadd.f32 %v3102, %v3166
        %s3175 = sld [smem:[#allocation9 + $0x4a]]
        %v3176 = vstv %s3175
        %v3177 = vmul.f32 %v3176, %v3079
        %v3178 = vmul.f32 %v3176, %v3080
        %v3179 = vmul.f32 %v3176, %v3081
        %v3180 = vmul.f32 %v3176, %v3082
        %3185 = vrot.lane.b32.xlu0 %v3177, 127
        %v3186 = vpop.permute.xlu0 %3185
        %3187 = vrot.lane.b32.xlu0 %v3178, 127
        %v3188 = vpop.permute.xlu0 %3187
        %3189 = vrot.lane.b32.xlu0 %v3179, 127
        %v3190 = vpop.permute.xlu0 %3189
        %3191 = vrot.lane.b32.xlu0 %v3180, 127
        %v3192 = vpop.permute.xlu0 %3191
        %v3197 = vadd.f32 %v3109, %v3186
        %v3198 = vadd.f32 %v3110, %v3188
        %v3199 = vadd.f32 %v3111, %v3190
        %v3200 = vadd.f32 %v3112, %v3192
        %s3201 = sld [smem:[#allocation9 + $0x4b]]
        %v3202 = vstv %s3201
        %v3203 = vmul.f32 %v3202, %v3079
        %v3204 = vmul.f32 %v3202, %v3080
        %v3205 = vmul.f32 %v3202, %v3081
        %v3206 = vmul.f32 %v3202, %v3082
        %3211 = vrot.lane.b32.xlu0 %v3203, 127
        %v3212 = vpop.permute.xlu0 %3211
        %3213 = vrot.lane.b32.xlu0 %v3204, 127
        %v3214 = vpop.permute.xlu0 %3213
        %3215 = vrot.lane.b32.xlu0 %v3205, 127
        %v3216 = vpop.permute.xlu0 %3215
        %3217 = vrot.lane.b32.xlu0 %v3206, 127
        %v3218 = vpop.permute.xlu0 %3217
        %v3223 = vadd.f32 %v3119, %v3212
        %v3224 = vadd.f32 %v3120, %v3214
        %v3225 = vadd.f32 %v3121, %v3216
        %v3226 = vadd.f32 %v3122, %v3218
        %s3227 = sld [smem:[#allocation9 + $0x58]]
        %v3228 = vstv %s3227
        %v3229 = vmul.f32 %v3228, %v3079
        %v3230 = vmul.f32 %v3228, %v3080
        %v3231 = vmul.f32 %v3228, %v3081
        %v3232 = vmul.f32 %v3228, %v3082
        %3237 = vrot.lane.b32.xlu0 %v3229, 126
        %v3238 = vpop.permute.xlu0 %3237
        %3239 = vrot.lane.b32.xlu0 %v3230, 126
        %v3240 = vpop.permute.xlu0 %3239
        %3241 = vrot.lane.b32.xlu0 %v3231, 126
        %v3242 = vpop.permute.xlu0 %3241
        %3243 = vrot.lane.b32.xlu0 %v3232, 126
        %v3244 = vpop.permute.xlu0 %3243
        %v3249 = vadd.f32 %v3145, %v3238
        %v3250 = vadd.f32 %v3146, %v3240
        %v3251 = vadd.f32 %v3147, %v3242
        %v3252 = vadd.f32 %v3148, %v3244
        %s3253 = sld [smem:[#allocation9 + $0x59]]
        %v3254 = vstv %s3253
        %v3255 = vmul.f32 %v3254, %v3079
        %v3256 = vmul.f32 %v3254, %v3080
        %v3257 = vmul.f32 %v3254, %v3081
        %v3258 = vmul.f32 %v3254, %v3082
        %3263 = vrot.lane.b32.xlu0 %v3255, 126
        %v3264 = vpop.permute.xlu0 %3263
        %3265 = vrot.lane.b32.xlu0 %v3256, 126
        %v3266 = vpop.permute.xlu0 %3265
        %3267 = vrot.lane.b32.xlu0 %v3257, 126
        %v3268 = vpop.permute.xlu0 %3267
        %3269 = vrot.lane.b32.xlu0 %v3258, 126
        %v3270 = vpop.permute.xlu0 %3269
        %v3275 = vadd.f32 %v3171, %v3264
        %v3276 = vadd.f32 %v3172, %v3266
        %v3277 = vadd.f32 %v3173, %v3268
        %v3278 = vadd.f32 %v3174, %v3270
        %s3279 = sld [smem:[#allocation9 + $0x5a]]
        %v3280 = vstv %s3279
        %v3281 = vmul.f32 %v3280, %v3079
        %v3282 = vmul.f32 %v3280, %v3080
        %v3283 = vmul.f32 %v3280, %v3081
        %v3284 = vmul.f32 %v3280, %v3082
        %3289 = vrot.lane.b32.xlu0 %v3281, 126
        %v3290 = vpop.permute.xlu0 %3289
        %3291 = vrot.lane.b32.xlu0 %v3282, 126
        %v3292 = vpop.permute.xlu0 %3291
        %3293 = vrot.lane.b32.xlu0 %v3283, 126
        %v3294 = vpop.permute.xlu0 %3293
        %3295 = vrot.lane.b32.xlu0 %v3284, 126
        %v3296 = vpop.permute.xlu0 %3295
        %v3301 = vadd.f32 %v3197, %v3290
        %v3302 = vadd.f32 %v3198, %v3292
        %v3303 = vadd.f32 %v3199, %v3294
        %v3304 = vadd.f32 %v3200, %v3296
        %s3305 = sld [smem:[#allocation9 + $0x5b]]
        %v3306 = vstv %s3305
        %v3307 = vmul.f32 %v3306, %v3079
        %v3308 = vmul.f32 %v3306, %v3080
        %v3309 = vmul.f32 %v3306, %v3081
        %v3310 = vmul.f32 %v3306, %v3082
        %3315 = vrot.lane.b32.xlu0 %v3307, 126
        %v3316 = vpop.permute.xlu0 %3315
        %3317 = vrot.lane.b32.xlu0 %v3308, 126
        %v3318 = vpop.permute.xlu0 %3317
        %3319 = vrot.lane.b32.xlu0 %v3309, 126
        %v3320 = vpop.permute.xlu0 %3319
        %3321 = vrot.lane.b32.xlu0 %v3310, 126
        %v3322 = vpop.permute.xlu0 %3321
        %v3327 = vadd.f32 %v3223, %v3316
        %v3328 = vadd.f32 %v3224, %v3318
        %v3329 = vadd.f32 %v3225, %v3320
        %v3330 = vadd.f32 %v3226, %v3322
        %v3331 = vld [vmem:[%s1120 + $0x2] sm:$0xff]
        %v3332 = vld [vmem:[%s1120 + $0xa] sm:$0xff]
        %v3333 = vld [vmem:[%s1120 + $0x12] sm:$0xff]
        %v3334 = vld [vmem:[%s1120 + $0x1a] sm:$0xff]
        %s3335 = sld [smem:[#allocation9 + $0x68]]
        %v3336 = vstv %s3335
        %v3337 = vmul.f32 %v3336, %v3331
        %v3338 = vmul.f32 %v3336, %v3332
        %v3339 = vmul.f32 %v3336, %v3333
        %v3340 = vmul.f32 %v3336, %v3334
        %v3341 = vadd.f32 %v3249, %v3337
        %v3342 = vadd.f32 %v3250, %v3338
        %v3343 = vadd.f32 %v3251, %v3339
        %v3344 = vadd.f32 %v3252, %v3340
        %s3345 = sld [smem:[#allocation9 + $0x69]]
        %v3346 = vstv %s3345
        %v3347 = vmul.f32 %v3346, %v3331
        %v3348 = vmul.f32 %v3346, %v3332
        %v3349 = vmul.f32 %v3346, %v3333
        %v3350 = vmul.f32 %v3346, %v3334
        %v3351 = vadd.f32 %v3275, %v3347
        %v3352 = vadd.f32 %v3276, %v3348
        %v3353 = vadd.f32 %v3277, %v3349
        %v3354 = vadd.f32 %v3278, %v3350
        %s3355 = sld [smem:[#allocation9 + $0x6a]]
        %v3356 = vstv %s3355
        %v3357 = vmul.f32 %v3356, %v3331
        %v3358 = vmul.f32 %v3356, %v3332
        %v3359 = vmul.f32 %v3356, %v3333
        %v3360 = vmul.f32 %v3356, %v3334
        %v3361 = vadd.f32 %v3301, %v3357
        %v3362 = vadd.f32 %v3302, %v3358
        %v3363 = vadd.f32 %v3303, %v3359
        %v3364 = vadd.f32 %v3304, %v3360
        %s3365 = sld [smem:[#allocation9 + $0x6b]]
        %v3366 = vstv %s3365
        %v3367 = vmul.f32 %v3366, %v3331
        %v3368 = vmul.f32 %v3366, %v3332
        %v3369 = vmul.f32 %v3366, %v3333
        %v3370 = vmul.f32 %v3366, %v3334
        %v3371 = vadd.f32 %v3327, %v3367
        %v3372 = vadd.f32 %v3328, %v3368
        %v3373 = vadd.f32 %v3329, %v3369
        %v3374 = vadd.f32 %v3330, %v3370
        %s3375 = sld [smem:[#allocation9 + $0x78]]
        %v3376 = vstv %s3375
        %v3377 = vmul.f32 %v3376, %v3331
        %v3378 = vmul.f32 %v3376, %v3332
        %v3379 = vmul.f32 %v3376, %v3333
        %v3380 = vmul.f32 %v3376, %v3334
        %3385 = vrot.lane.b32.xlu0 %v3377, 127
        %v3386 = vpop.permute.xlu0 %3385
        %3387 = vrot.lane.b32.xlu0 %v3378, 127
        %v3388 = vpop.permute.xlu0 %3387
        %3389 = vrot.lane.b32.xlu0 %v3379, 127
        %v3390 = vpop.permute.xlu0 %3389
        %3391 = vrot.lane.b32.xlu0 %v3380, 127
        %v3392 = vpop.permute.xlu0 %3391
        %v3397 = vadd.f32 %v3341, %v3386
        %v3398 = vadd.f32 %v3342, %v3388
        %v3399 = vadd.f32 %v3343, %v3390
        %v3400 = vadd.f32 %v3344, %v3392
        %s3401 = sld [smem:[#allocation9 + $0x79]]
        %v3402 = vstv %s3401
        %v3403 = vmul.f32 %v3402, %v3331
        %v3404 = vmul.f32 %v3402, %v3332
        %v3405 = vmul.f32 %v3402, %v3333
        %v3406 = vmul.f32 %v3402, %v3334
        %3411 = vrot.lane.b32.xlu0 %v3403, 127
        %v3412 = vpop.permute.xlu0 %3411
        %3413 = vrot.lane.b32.xlu0 %v3404, 127
        %v3414 = vpop.permute.xlu0 %3413
        %3415 = vrot.lane.b32.xlu0 %v3405, 127
        %v3416 = vpop.permute.xlu0 %3415
        %3417 = vrot.lane.b32.xlu0 %v3406, 127
        %v3418 = vpop.permute.xlu0 %3417
        %v3423 = vadd.f32 %v3351, %v3412
        %v3424 = vadd.f32 %v3352, %v3414
        %v3425 = vadd.f32 %v3353, %v3416
        %v3426 = vadd.f32 %v3354, %v3418
        %s3427 = sld [smem:[#allocation9 + $0x7a]]
        %v3428 = vstv %s3427
        %v3429 = vmul.f32 %v3428, %v3331
        %v3430 = vmul.f32 %v3428, %v3332
        %v3431 = vmul.f32 %v3428, %v3333
        %v3432 = vmul.f32 %v3428, %v3334
        %3437 = vrot.lane.b32.xlu0 %v3429, 127
        %v3438 = vpop.permute.xlu0 %3437
        %3439 = vrot.lane.b32.xlu0 %v3430, 127
        %v3440 = vpop.permute.xlu0 %3439
        %3441 = vrot.lane.b32.xlu0 %v3431, 127
        %v3442 = vpop.permute.xlu0 %3441
        %3443 = vrot.lane.b32.xlu0 %v3432, 127
        %v3444 = vpop.permute.xlu0 %3443
        %v3449 = vadd.f32 %v3361, %v3438
        %v3450 = vadd.f32 %v3362, %v3440
        %v3451 = vadd.f32 %v3363, %v3442
        %v3452 = vadd.f32 %v3364, %v3444
        %s3453 = sld [smem:[#allocation9 + $0x7b]]
        %v3454 = vstv %s3453
        %v3455 = vmul.f32 %v3454, %v3331
        %v3456 = vmul.f32 %v3454, %v3332
        %v3457 = vmul.f32 %v3454, %v3333
        %v3458 = vmul.f32 %v3454, %v3334
        %3463 = vrot.lane.b32.xlu0 %v3455, 127
        %v3464 = vpop.permute.xlu0 %3463
        %3465 = vrot.lane.b32.xlu0 %v3456, 127
        %v3466 = vpop.permute.xlu0 %3465
        %3467 = vrot.lane.b32.xlu0 %v3457, 127
        %v3468 = vpop.permute.xlu0 %3467
        %3469 = vrot.lane.b32.xlu0 %v3458, 127
        %v3470 = vpop.permute.xlu0 %3469
        %v3475 = vadd.f32 %v3371, %v3464
        %v3476 = vadd.f32 %v3372, %v3466
        %v3477 = vadd.f32 %v3373, %v3468
        %v3478 = vadd.f32 %v3374, %v3470
        %s3479 = sld [smem:[#allocation9 + $0x88]]
        %v3480 = vstv %s3479
        %v3481 = vmul.f32 %v3480, %v3331
        %v3482 = vmul.f32 %v3480, %v3332
        %v3483 = vmul.f32 %v3480, %v3333
        %v3484 = vmul.f32 %v3480, %v3334
        %3489 = vrot.lane.b32.xlu0 %v3481, 126
        %v3490 = vpop.permute.xlu0 %3489
        %3491 = vrot.lane.b32.xlu0 %v3482, 126
        %v3492 = vpop.permute.xlu0 %3491
        %3493 = vrot.lane.b32.xlu0 %v3483, 126
        %v3494 = vpop.permute.xlu0 %3493
        %3495 = vrot.lane.b32.xlu0 %v3484, 126
        %v3496 = vpop.permute.xlu0 %3495
        %v3501 = vadd.f32 %v3397, %v3490
        %v3502 = vadd.f32 %v3398, %v3492
        %v3503 = vadd.f32 %v3399, %v3494
        %v3504 = vadd.f32 %v3400, %v3496
        %s3505 = sld [smem:[#allocation9 + $0x89]]
        %v3506 = vstv %s3505
        %v3507 = vmul.f32 %v3506, %v3331
        %v3508 = vmul.f32 %v3506, %v3332
        %v3509 = vmul.f32 %v3506, %v3333
        %v3510 = vmul.f32 %v3506, %v3334
        %3515 = vrot.lane.b32.xlu0 %v3507, 126
        %v3516 = vpop.permute.xlu0 %3515
        %3517 = vrot.lane.b32.xlu0 %v3508, 126
        %v3518 = vpop.permute.xlu0 %3517
        %3519 = vrot.lane.b32.xlu0 %v3509, 126
        %v3520 = vpop.permute.xlu0 %3519
        %3521 = vrot.lane.b32.xlu0 %v3510, 126
        %v3522 = vpop.permute.xlu0 %3521
        %v3527 = vadd.f32 %v3423, %v3516
        %v3528 = vadd.f32 %v3424, %v3518
        %v3529 = vadd.f32 %v3425, %v3520
        %v3530 = vadd.f32 %v3426, %v3522
        %s3531 = sld [smem:[#allocation9 + $0x8a]]
        %v3532 = vstv %s3531
        %v3533 = vmul.f32 %v3532, %v3331
        %v3534 = vmul.f32 %v3532, %v3332
        %v3535 = vmul.f32 %v3532, %v3333
        %v3536 = vmul.f32 %v3532, %v3334
        %3541 = vrot.lane.b32.xlu0 %v3533, 126
        %v3542 = vpop.permute.xlu0 %3541
        %3543 = vrot.lane.b32.xlu0 %v3534, 126
        %v3544 = vpop.permute.xlu0 %3543
        %3545 = vrot.lane.b32.xlu0 %v3535, 126
        %v3546 = vpop.permute.xlu0 %3545
        %3547 = vrot.lane.b32.xlu0 %v3536, 126
        %v3548 = vpop.permute.xlu0 %3547
        %v3553 = vadd.f32 %v3449, %v3542
        %v3554 = vadd.f32 %v3450, %v3544
        %v3555 = vadd.f32 %v3451, %v3546
        %v3556 = vadd.f32 %v3452, %v3548
        %s3557 = sld [smem:[#allocation9 + $0x8b]]
        %v3558 = vstv %s3557
        %v3559 = vmul.f32 %v3558, %v3331
        %v3560 = vmul.f32 %v3558, %v3332
        %v3561 = vmul.f32 %v3558, %v3333
        %v3562 = vmul.f32 %v3558, %v3334
        %3567 = vrot.lane.b32.xlu0 %v3559, 126
        %v3568 = vpop.permute.xlu0 %3567
        %3569 = vrot.lane.b32.xlu0 %v3560, 126
        %v3570 = vpop.permute.xlu0 %3569
        %3571 = vrot.lane.b32.xlu0 %v3561, 126
        %v3572 = vpop.permute.xlu0 %3571
        %3573 = vrot.lane.b32.xlu0 %v3562, 126
        %v3574 = vpop.permute.xlu0 %3573
        %v3579 = vadd.f32 %v3475, %v3568
        %v3580 = vadd.f32 %v3476, %v3570
        %v3581 = vadd.f32 %v3477, %v3572
        %v3582 = vadd.f32 %v3478, %v3574
        %v3583 = vld [vmem:[%s1310] sm:$0xff]
        %v3584 = vld [vmem:[%s1310 + $0x8] sm:$0xff]
        %v3585 = vld [vmem:[%s1310 + $0x10] sm:$0xff]
        %v3586 = vld [vmem:[%s1310 + $0x18] sm:$0xff]
        %s3587 = sld [smem:[#allocation9 + $0xc]]
        %v3588 = vstv %s3587
        %v3589 = vmul.f32 %v3588, %v3583
        %v3590 = vmul.f32 %v3588, %v3584
        %v3591 = vmul.f32 %v3588, %v3585
        %v3592 = vmul.f32 %v3588, %v3586
        %v3593 = vadd.f32 %v3501, %v3589
        %v3594 = vadd.f32 %v3502, %v3590
        %v3595 = vadd.f32 %v3503, %v3591
        %v3596 = vadd.f32 %v3504, %v3592
        %s3597 = sld [smem:[#allocation9 + $0xd]]
        %v3598 = vstv %s3597
        %v3599 = vmul.f32 %v3598, %v3583
        %v3600 = vmul.f32 %v3598, %v3584
        %v3601 = vmul.f32 %v3598, %v3585
        %v3602 = vmul.f32 %v3598, %v3586
        %v3603 = vadd.f32 %v3527, %v3599
        %v3604 = vadd.f32 %v3528, %v3600
        %v3605 = vadd.f32 %v3529, %v3601
        %v3606 = vadd.f32 %v3530, %v3602
        %s3607 = sld [smem:[#allocation9 + $0xe]]
        %v3608 = vstv %s3607
        %v3609 = vmul.f32 %v3608, %v3583
        %v3610 = vmul.f32 %v3608, %v3584
        %v3611 = vmul.f32 %v3608, %v3585
        %v3612 = vmul.f32 %v3608, %v3586
        %v3613 = vadd.f32 %v3553, %v3609
        %v3614 = vadd.f32 %v3554, %v3610
        %v3615 = vadd.f32 %v3555, %v3611
        %v3616 = vadd.f32 %v3556, %v3612
        %s3617 = sld [smem:[#allocation9 + $0xf]]
        %v3618 = vstv %s3617
        %v3619 = vmul.f32 %v3618, %v3583
        %v3620 = vmul.f32 %v3618, %v3584
        %v3621 = vmul.f32 %v3618, %v3585
        %v3622 = vmul.f32 %v3618, %v3586
        %v3623 = vadd.f32 %v3579, %v3619
        %v3624 = vadd.f32 %v3580, %v3620
        %v3625 = vadd.f32 %v3581, %v3621
        %v3626 = vadd.f32 %v3582, %v3622
        %s3627 = sld [smem:[#allocation9 + $0x1c]]
        %v3628 = vstv %s3627
        %v3629 = vmul.f32 %v3628, %v3583
        %v3630 = vmul.f32 %v3628, %v3584
        %v3631 = vmul.f32 %v3628, %v3585
        %v3632 = vmul.f32 %v3628, %v3586
        %3637 = vrot.lane.b32.xlu0 %v3629, 127
        %v3638 = vpop.permute.xlu0 %3637
        %3639 = vrot.lane.b32.xlu0 %v3630, 127
        %v3640 = vpop.permute.xlu0 %3639
        %3641 = vrot.lane.b32.xlu0 %v3631, 127
        %v3642 = vpop.permute.xlu0 %3641
        %3643 = vrot.lane.b32.xlu0 %v3632, 127
        %v3644 = vpop.permute.xlu0 %3643
        %v3649 = vadd.f32 %v3593, %v3638
        %v3650 = vadd.f32 %v3594, %v3640
        %v3651 = vadd.f32 %v3595, %v3642
        %v3652 = vadd.f32 %v3596, %v3644
        %s3653 = sld [smem:[#allocation9 + $0x1d]]
        %v3654 = vstv %s3653
        %v3655 = vmul.f32 %v3654, %v3583
        %v3656 = vmul.f32 %v3654, %v3584
        %v3657 = vmul.f32 %v3654, %v3585
        %v3658 = vmul.f32 %v3654, %v3586
        %3663 = vrot.lane.b32.xlu0 %v3655, 127
        %v3664 = vpop.permute.xlu0 %3663
        %3665 = vrot.lane.b32.xlu0 %v3656, 127
        %v3666 = vpop.permute.xlu0 %3665
        %3667 = vrot.lane.b32.xlu0 %v3657, 127
        %v3668 = vpop.permute.xlu0 %3667
        %3669 = vrot.lane.b32.xlu0 %v3658, 127
        %v3670 = vpop.permute.xlu0 %3669
        %v3675 = vadd.f32 %v3603, %v3664
        %v3676 = vadd.f32 %v3604, %v3666
        %v3677 = vadd.f32 %v3605, %v3668
        %v3678 = vadd.f32 %v3606, %v3670
        %s3679 = sld [smem:[#allocation9 + $0x1e]]
        %v3680 = vstv %s3679
        %v3681 = vmul.f32 %v3680, %v3583
        %v3682 = vmul.f32 %v3680, %v3584
        %v3683 = vmul.f32 %v3680, %v3585
        %v3684 = vmul.f32 %v3680, %v3586
        %3689 = vrot.lane.b32.xlu0 %v3681, 127
        %v3690 = vpop.permute.xlu0 %3689
        %3691 = vrot.lane.b32.xlu0 %v3682, 127
        %v3692 = vpop.permute.xlu0 %3691
        %3693 = vrot.lane.b32.xlu0 %v3683, 127
        %v3694 = vpop.permute.xlu0 %3693
        %3695 = vrot.lane.b32.xlu0 %v3684, 127
        %v3696 = vpop.permute.xlu0 %3695
        %v3701 = vadd.f32 %v3613, %v3690
        %v3702 = vadd.f32 %v3614, %v3692
        %v3703 = vadd.f32 %v3615, %v3694
        %v3704 = vadd.f32 %v3616, %v3696
        %s3705 = sld [smem:[#allocation9 + $0x1f]]
        %v3706 = vstv %s3705
        %v3707 = vmul.f32 %v3706, %v3583
        %v3708 = vmul.f32 %v3706, %v3584
        %v3709 = vmul.f32 %v3706, %v3585
        %v3710 = vmul.f32 %v3706, %v3586
        %3715 = vrot.lane.b32.xlu0 %v3707, 127
        %v3716 = vpop.permute.xlu0 %3715
        %3717 = vrot.lane.b32.xlu0 %v3708, 127
        %v3718 = vpop.permute.xlu0 %3717
        %3719 = vrot.lane.b32.xlu0 %v3709, 127
        %v3720 = vpop.permute.xlu0 %3719
        %3721 = vrot.lane.b32.xlu0 %v3710, 127
        %v3722 = vpop.permute.xlu0 %3721
        %v3727 = vadd.f32 %v3623, %v3716
        %v3728 = vadd.f32 %v3624, %v3718
        %v3729 = vadd.f32 %v3625, %v3720
        %v3730 = vadd.f32 %v3626, %v3722
        %s3731 = sld [smem:[#allocation9 + $0x2c]]
        %v3732 = vstv %s3731
        %v3733 = vmul.f32 %v3732, %v3583
        %v3734 = vmul.f32 %v3732, %v3584
        %v3735 = vmul.f32 %v3732, %v3585
        %v3736 = vmul.f32 %v3732, %v3586
        %3741 = vrot.lane.b32.xlu0 %v3733, 126
        %v3742 = vpop.permute.xlu0 %3741
        %3743 = vrot.lane.b32.xlu0 %v3734, 126
        %v3744 = vpop.permute.xlu0 %3743
        %3745 = vrot.lane.b32.xlu0 %v3735, 126
        %v3746 = vpop.permute.xlu0 %3745
        %3747 = vrot.lane.b32.xlu0 %v3736, 126
        %v3748 = vpop.permute.xlu0 %3747
        %v3753 = vadd.f32 %v3649, %v3742
        %v3754 = vadd.f32 %v3650, %v3744
        %v3755 = vadd.f32 %v3651, %v3746
        %v3756 = vadd.f32 %v3652, %v3748
        %s3757 = sld [smem:[#allocation9 + $0x2d]]
        %v3758 = vstv %s3757
        %v3759 = vmul.f32 %v3758, %v3583
        %v3760 = vmul.f32 %v3758, %v3584
        %v3761 = vmul.f32 %v3758, %v3585
        %v3762 = vmul.f32 %v3758, %v3586
        %3767 = vrot.lane.b32.xlu0 %v3759, 126
        %v3768 = vpop.permute.xlu0 %3767
        %3769 = vrot.lane.b32.xlu0 %v3760, 126
        %v3770 = vpop.permute.xlu0 %3769
        %3771 = vrot.lane.b32.xlu0 %v3761, 126
        %v3772 = vpop.permute.xlu0 %3771
        %3773 = vrot.lane.b32.xlu0 %v3762, 126
        %v3774 = vpop.permute.xlu0 %3773
        %v3779 = vadd.f32 %v3675, %v3768
        %v3780 = vadd.f32 %v3676, %v3770
        %v3781 = vadd.f32 %v3677, %v3772
        %v3782 = vadd.f32 %v3678, %v3774
        %s3783 = sld [smem:[#allocation9 + $0x2e]]
        %v3784 = vstv %s3783
        %v3785 = vmul.f32 %v3784, %v3583
        %v3786 = vmul.f32 %v3784, %v3584
        %v3787 = vmul.f32 %v3784, %v3585
        %v3788 = vmul.f32 %v3784, %v3586
        %3793 = vrot.lane.b32.xlu0 %v3785, 126
        %v3794 = vpop.permute.xlu0 %3793
        %3795 = vrot.lane.b32.xlu0 %v3786, 126
        %v3796 = vpop.permute.xlu0 %3795
        %3797 = vrot.lane.b32.xlu0 %v3787, 126
        %v3798 = vpop.permute.xlu0 %3797
        %3799 = vrot.lane.b32.xlu0 %v3788, 126
        %v3800 = vpop.permute.xlu0 %3799
        %v3805 = vadd.f32 %v3701, %v3794
        %v3806 = vadd.f32 %v3702, %v3796
        %v3807 = vadd.f32 %v3703, %v3798
        %v3808 = vadd.f32 %v3704, %v3800
        %s3809 = sld [smem:[#allocation9 + $0x2f]]
        %v3810 = vstv %s3809
        %v3811 = vmul.f32 %v3810, %v3583
        %v3812 = vmul.f32 %v3810, %v3584
        %v3813 = vmul.f32 %v3810, %v3585
        %v3814 = vmul.f32 %v3810, %v3586
        %3819 = vrot.lane.b32.xlu0 %v3811, 126
        %v3820 = vpop.permute.xlu0 %3819
        %3821 = vrot.lane.b32.xlu0 %v3812, 126
        %v3822 = vpop.permute.xlu0 %3821
        %3823 = vrot.lane.b32.xlu0 %v3813, 126
        %v3824 = vpop.permute.xlu0 %3823
        %3825 = vrot.lane.b32.xlu0 %v3814, 126
        %v3826 = vpop.permute.xlu0 %3825
        %v3831 = vadd.f32 %v3727, %v3820
        %v3832 = vadd.f32 %v3728, %v3822
        %v3833 = vadd.f32 %v3729, %v3824
        %v3834 = vadd.f32 %v3730, %v3826
        %v3835 = vld [vmem:[%s1310 + $0x1] sm:$0xff]
        %v3836 = vld [vmem:[%s1310 + $0x9] sm:$0xff]
        %v3837 = vld [vmem:[%s1310 + $0x11] sm:$0xff]
        %v3838 = vld [vmem:[%s1310 + $0x19] sm:$0xff]
        %s3839 = sld [smem:[#allocation9 + $0x3c]]
        %v3840 = vstv %s3839
        %v3841 = vmul.f32 %v3840, %v3835
        %v3842 = vmul.f32 %v3840, %v3836
        %v3843 = vmul.f32 %v3840, %v3837
        %v3844 = vmul.f32 %v3840, %v3838
        %v3845 = vadd.f32 %v3753, %v3841
        %v3846 = vadd.f32 %v3754, %v3842
        %v3847 = vadd.f32 %v3755, %v3843
        %v3848 = vadd.f32 %v3756, %v3844
        %s3849 = sld [smem:[#allocation9 + $0x3d]]
        %v3850 = vstv %s3849
        %v3851 = vmul.f32 %v3850, %v3835
        %v3852 = vmul.f32 %v3850, %v3836
        %v3853 = vmul.f32 %v3850, %v3837
        %v3854 = vmul.f32 %v3850, %v3838
        %v3855 = vadd.f32 %v3779, %v3851
        %v3856 = vadd.f32 %v3780, %v3852
        %v3857 = vadd.f32 %v3781, %v3853
        %v3858 = vadd.f32 %v3782, %v3854
        %s3859 = sld [smem:[#allocation9 + $0x3e]]
        %v3860 = vstv %s3859
        %v3861 = vmul.f32 %v3860, %v3835
        %v3862 = vmul.f32 %v3860, %v3836
        %v3863 = vmul.f32 %v3860, %v3837
        %v3864 = vmul.f32 %v3860, %v3838
        %v3865 = vadd.f32 %v3805, %v3861
        %v3866 = vadd.f32 %v3806, %v3862
        %v3867 = vadd.f32 %v3807, %v3863
        %v3868 = vadd.f32 %v3808, %v3864
        %s3869 = sld [smem:[#allocation9 + $0x3f]]
        %v3870 = vstv %s3869
        %v3871 = vmul.f32 %v3870, %v3835
        %v3872 = vmul.f32 %v3870, %v3836
        %v3873 = vmul.f32 %v3870, %v3837
        %v3874 = vmul.f32 %v3870, %v3838
        %v3875 = vadd.f32 %v3831, %v3871
        %v3876 = vadd.f32 %v3832, %v3872
        %v3877 = vadd.f32 %v3833, %v3873
        %v3878 = vadd.f32 %v3834, %v3874
        %s3879 = sld [smem:[#allocation9 + $0x4c]]
        %v3880 = vstv %s3879
        %v3881 = vmul.f32 %v3880, %v3835
        %v3882 = vmul.f32 %v3880, %v3836
        %v3883 = vmul.f32 %v3880, %v3837
        %v3884 = vmul.f32 %v3880, %v3838
        %3889 = vrot.lane.b32.xlu0 %v3881, 127
        %v3890 = vpop.permute.xlu0 %3889
        %3891 = vrot.lane.b32.xlu0 %v3882, 127
        %v3892 = vpop.permute.xlu0 %3891
        %3893 = vrot.lane.b32.xlu0 %v3883, 127
        %v3894 = vpop.permute.xlu0 %3893
        %3895 = vrot.lane.b32.xlu0 %v3884, 127
        %v3896 = vpop.permute.xlu0 %3895
        %v3901 = vadd.f32 %v3845, %v3890
        %v3902 = vadd.f32 %v3846, %v3892
        %v3903 = vadd.f32 %v3847, %v3894
        %v3904 = vadd.f32 %v3848, %v3896
        %s3905 = sld [smem:[#allocation9 + $0x4d]]
        %v3906 = vstv %s3905
        %v3907 = vmul.f32 %v3906, %v3835
        %v3908 = vmul.f32 %v3906, %v3836
        %v3909 = vmul.f32 %v3906, %v3837
        %v3910 = vmul.f32 %v3906, %v3838
        %3915 = vrot.lane.b32.xlu0 %v3907, 127
        %v3916 = vpop.permute.xlu0 %3915
        %3917 = vrot.lane.b32.xlu0 %v3908, 127
        %v3918 = vpop.permute.xlu0 %3917
        %3919 = vrot.lane.b32.xlu0 %v3909, 127
        %v3920 = vpop.permute.xlu0 %3919
        %3921 = vrot.lane.b32.xlu0 %v3910, 127
        %v3922 = vpop.permute.xlu0 %3921
        %v3927 = vadd.f32 %v3855, %v3916
        %v3928 = vadd.f32 %v3856, %v3918
        %v3929 = vadd.f32 %v3857, %v3920
        %v3930 = vadd.f32 %v3858, %v3922
        %s3931 = sld [smem:[#allocation9 + $0x4e]]
        %v3932 = vstv %s3931
        %v3933 = vmul.f32 %v3932, %v3835
        %v3934 = vmul.f32 %v3932, %v3836
        %v3935 = vmul.f32 %v3932, %v3837
        %v3936 = vmul.f32 %v3932, %v3838
        %3941 = vrot.lane.b32.xlu0 %v3933, 127
        %v3942 = vpop.permute.xlu0 %3941
        %3943 = vrot.lane.b32.xlu0 %v3934, 127
        %v3944 = vpop.permute.xlu0 %3943
        %3945 = vrot.lane.b32.xlu0 %v3935, 127
        %v3946 = vpop.permute.xlu0 %3945
        %3947 = vrot.lane.b32.xlu0 %v3936, 127
        %v3948 = vpop.permute.xlu0 %3947
        %v3953 = vadd.f32 %v3865, %v3942
        %v3954 = vadd.f32 %v3866, %v3944
        %v3955 = vadd.f32 %v3867, %v3946
        %v3956 = vadd.f32 %v3868, %v3948
        %s3957 = sld [smem:[#allocation9 + $0x4f]]
        %v3958 = vstv %s3957
        %v3959 = vmul.f32 %v3958, %v3835
        %v3960 = vmul.f32 %v3958, %v3836
        %v3961 = vmul.f32 %v3958, %v3837
        %v3962 = vmul.f32 %v3958, %v3838
        %3967 = vrot.lane.b32.xlu0 %v3959, 127
        %v3968 = vpop.permute.xlu0 %3967
        %3969 = vrot.lane.b32.xlu0 %v3960, 127
        %v3970 = vpop.permute.xlu0 %3969
        %3971 = vrot.lane.b32.xlu0 %v3961, 127
        %v3972 = vpop.permute.xlu0 %3971
        %3973 = vrot.lane.b32.xlu0 %v3962, 127
        %v3974 = vpop.permute.xlu0 %3973
        %v3979 = vadd.f32 %v3875, %v3968
        %v3980 = vadd.f32 %v3876, %v3970
        %v3981 = vadd.f32 %v3877, %v3972
        %v3982 = vadd.f32 %v3878, %v3974
        %s3983 = sld [smem:[#allocation9 + $0x5c]]
        %v3984 = vstv %s3983
        %v3985 = vmul.f32 %v3984, %v3835
        %v3986 = vmul.f32 %v3984, %v3836
        %v3987 = vmul.f32 %v3984, %v3837
        %v3988 = vmul.f32 %v3984, %v3838
        %3993 = vrot.lane.b32.xlu0 %v3985, 126
        %v3994 = vpop.permute.xlu0 %3993
        %3995 = vrot.lane.b32.xlu0 %v3986, 126
        %v3996 = vpop.permute.xlu0 %3995
        %3997 = vrot.lane.b32.xlu0 %v3987, 126
        %v3998 = vpop.permute.xlu0 %3997
        %3999 = vrot.lane.b32.xlu0 %v3988, 126
        %v4000 = vpop.permute.xlu0 %3999
        %v4005 = vadd.f32 %v3901, %v3994
        %v4006 = vadd.f32 %v3902, %v3996
        %v4007 = vadd.f32 %v3903, %v3998
        %v4008 = vadd.f32 %v3904, %v4000
        %s4009 = sld [smem:[#allocation9 + $0x5d]]
        %v4010 = vstv %s4009
        %v4011 = vmul.f32 %v4010, %v3835
        %v4012 = vmul.f32 %v4010, %v3836
        %v4013 = vmul.f32 %v4010, %v3837
        %v4014 = vmul.f32 %v4010, %v3838
        %4019 = vrot.lane.b32.xlu0 %v4011, 126
        %v4020 = vpop.permute.xlu0 %4019
        %4021 = vrot.lane.b32.xlu0 %v4012, 126
        %v4022 = vpop.permute.xlu0 %4021
        %4023 = vrot.lane.b32.xlu0 %v4013, 126
        %v4024 = vpop.permute.xlu0 %4023
        %4025 = vrot.lane.b32.xlu0 %v4014, 126
        %v4026 = vpop.permute.xlu0 %4025
        %v4031 = vadd.f32 %v3927, %v4020
        %v4032 = vadd.f32 %v3928, %v4022
        %v4033 = vadd.f32 %v3929, %v4024
        %v4034 = vadd.f32 %v3930, %v4026
        %s4035 = sld [smem:[#allocation9 + $0x5e]]
        %v4036 = vstv %s4035
        %v4037 = vmul.f32 %v4036, %v3835
        %v4038 = vmul.f32 %v4036, %v3836
        %v4039 = vmul.f32 %v4036, %v3837
        %v4040 = vmul.f32 %v4036, %v3838
        %4045 = vrot.lane.b32.xlu0 %v4037, 126
        %v4046 = vpop.permute.xlu0 %4045
        %4047 = vrot.lane.b32.xlu0 %v4038, 126
        %v4048 = vpop.permute.xlu0 %4047
        %4049 = vrot.lane.b32.xlu0 %v4039, 126
        %v4050 = vpop.permute.xlu0 %4049
        %4051 = vrot.lane.b32.xlu0 %v4040, 126
        %v4052 = vpop.permute.xlu0 %4051
        %v4057 = vadd.f32 %v3953, %v4046
        %v4058 = vadd.f32 %v3954, %v4048
        %v4059 = vadd.f32 %v3955, %v4050
        %v4060 = vadd.f32 %v3956, %v4052
        %s4061 = sld [smem:[#allocation9 + $0x5f]]
        %v4062 = vstv %s4061
        %v4063 = vmul.f32 %v4062, %v3835
        %v4064 = vmul.f32 %v4062, %v3836
        %v4065 = vmul.f32 %v4062, %v3837
        %v4066 = vmul.f32 %v4062, %v3838
        %4071 = vrot.lane.b32.xlu0 %v4063, 126
        %v4072 = vpop.permute.xlu0 %4071
        %4073 = vrot.lane.b32.xlu0 %v4064, 126
        %v4074 = vpop.permute.xlu0 %4073
        %4075 = vrot.lane.b32.xlu0 %v4065, 126
        %v4076 = vpop.permute.xlu0 %4075
        %4077 = vrot.lane.b32.xlu0 %v4066, 126
        %v4078 = vpop.permute.xlu0 %4077
        %v4083 = vadd.f32 %v3979, %v4072
        %v4084 = vadd.f32 %v3980, %v4074
        %v4085 = vadd.f32 %v3981, %v4076
        %v4086 = vadd.f32 %v3982, %v4078
        %v4087 = vld [vmem:[%s1310 + $0x2] sm:$0xff]
        %v4088 = vld [vmem:[%s1310 + $0xa] sm:$0xff]
        %v4089 = vld [vmem:[%s1310 + $0x12] sm:$0xff]
        %v4090 = vld [vmem:[%s1310 + $0x1a] sm:$0xff]
        %s4091 = sld [smem:[#allocation9 + $0x6c]]
        %v4092 = vstv %s4091
        %v4093 = vmul.f32 %v4092, %v4087
        %v4094 = vmul.f32 %v4092, %v4088
        %v4095 = vmul.f32 %v4092, %v4089
        %v4096 = vmul.f32 %v4092, %v4090
        %v4097 = vadd.f32 %v4005, %v4093
        %v4098 = vadd.f32 %v4006, %v4094
        %v4099 = vadd.f32 %v4007, %v4095
        %v4100 = vadd.f32 %v4008, %v4096
        %s4101 = sld [smem:[#allocation9 + $0x6d]]
        %v4102 = vstv %s4101
        %v4103 = vmul.f32 %v4102, %v4087
        %v4104 = vmul.f32 %v4102, %v4088
        %v4105 = vmul.f32 %v4102, %v4089
        %v4106 = vmul.f32 %v4102, %v4090
        %v4107 = vadd.f32 %v4031, %v4103
        %v4108 = vadd.f32 %v4032, %v4104
        %v4109 = vadd.f32 %v4033, %v4105
        %v4110 = vadd.f32 %v4034, %v4106
        %s4111 = sld [smem:[#allocation9 + $0x6e]]
        %v4112 = vstv %s4111
        %v4113 = vmul.f32 %v4112, %v4087
        %v4114 = vmul.f32 %v4112, %v4088
        %v4115 = vmul.f32 %v4112, %v4089
        %v4116 = vmul.f32 %v4112, %v4090
        %v4117 = vadd.f32 %v4057, %v4113
        %v4118 = vadd.f32 %v4058, %v4114
        %v4119 = vadd.f32 %v4059, %v4115
        %v4120 = vadd.f32 %v4060, %v4116
        %s4121 = sld [smem:[#allocation9 + $0x6f]]
        %v4122 = vstv %s4121
        %v4123 = vmul.f32 %v4122, %v4087
        %v4124 = vmul.f32 %v4122, %v4088
        %v4125 = vmul.f32 %v4122, %v4089
        %v4126 = vmul.f32 %v4122, %v4090
        %v4127 = vadd.f32 %v4083, %v4123
        %v4128 = vadd.f32 %v4084, %v4124
        %v4129 = vadd.f32 %v4085, %v4125
        %v4130 = vadd.f32 %v4086, %v4126
        %s4131 = sld [smem:[#allocation9 + $0x7c]]
        %v4132 = vstv %s4131
        %v4133 = vmul.f32 %v4132, %v4087
        %v4134 = vmul.f32 %v4132, %v4088
        %v4135 = vmul.f32 %v4132, %v4089
        %v4136 = vmul.f32 %v4132, %v4090
        %4141 = vrot.lane.b32.xlu0 %v4133, 127
        %v4142 = vpop.permute.xlu0 %4141
        %4143 = vrot.lane.b32.xlu0 %v4134, 127
        %v4144 = vpop.permute.xlu0 %4143
        %4145 = vrot.lane.b32.xlu0 %v4135, 127
        %v4146 = vpop.permute.xlu0 %4145
        %4147 = vrot.lane.b32.xlu0 %v4136, 127
        %v4148 = vpop.permute.xlu0 %4147
        %v4153 = vadd.f32 %v4097, %v4142
        %v4154 = vadd.f32 %v4098, %v4144
        %v4155 = vadd.f32 %v4099, %v4146
        %v4156 = vadd.f32 %v4100, %v4148
        %s4157 = sld [smem:[#allocation9 + $0x7d]]
        %v4158 = vstv %s4157
        %v4159 = vmul.f32 %v4158, %v4087
        %v4160 = vmul.f32 %v4158, %v4088
        %v4161 = vmul.f32 %v4158, %v4089
        %v4162 = vmul.f32 %v4158, %v4090
        %4167 = vrot.lane.b32.xlu0 %v4159, 127
        %v4168 = vpop.permute.xlu0 %4167
        %4169 = vrot.lane.b32.xlu0 %v4160, 127
        %v4170 = vpop.permute.xlu0 %4169
        %4171 = vrot.lane.b32.xlu0 %v4161, 127
        %v4172 = vpop.permute.xlu0 %4171
        %4173 = vrot.lane.b32.xlu0 %v4162, 127
        %v4174 = vpop.permute.xlu0 %4173
        %v4179 = vadd.f32 %v4107, %v4168
        %v4180 = vadd.f32 %v4108, %v4170
        %v4181 = vadd.f32 %v4109, %v4172
        %v4182 = vadd.f32 %v4110, %v4174
        %s4183 = sld [smem:[#allocation9 + $0x7e]]
        %v4184 = vstv %s4183
        %v4185 = vmul.f32 %v4184, %v4087
        %v4186 = vmul.f32 %v4184, %v4088
        %v4187 = vmul.f32 %v4184, %v4089
        %v4188 = vmul.f32 %v4184, %v4090
        %4193 = vrot.lane.b32.xlu0 %v4185, 127
        %v4194 = vpop.permute.xlu0 %4193
        %4195 = vrot.lane.b32.xlu0 %v4186, 127
        %v4196 = vpop.permute.xlu0 %4195
        %4197 = vrot.lane.b32.xlu0 %v4187, 127
        %v4198 = vpop.permute.xlu0 %4197
        %4199 = vrot.lane.b32.xlu0 %v4188, 127
        %v4200 = vpop.permute.xlu0 %4199
        %v4205 = vadd.f32 %v4117, %v4194
        %v4206 = vadd.f32 %v4118, %v4196
        %v4207 = vadd.f32 %v4119, %v4198
        %v4208 = vadd.f32 %v4120, %v4200
        %s4209 = sld [smem:[#allocation9 + $0x7f]]
        %v4210 = vstv %s4209
        %v4211 = vmul.f32 %v4210, %v4087
        %v4212 = vmul.f32 %v4210, %v4088
        %v4213 = vmul.f32 %v4210, %v4089
        %v4214 = vmul.f32 %v4210, %v4090
        %4219 = vrot.lane.b32.xlu0 %v4211, 127
        %v4220 = vpop.permute.xlu0 %4219
        %4221 = vrot.lane.b32.xlu0 %v4212, 127
        %v4222 = vpop.permute.xlu0 %4221
        %4223 = vrot.lane.b32.xlu0 %v4213, 127
        %v4224 = vpop.permute.xlu0 %4223
        %4225 = vrot.lane.b32.xlu0 %v4214, 127
        %v4226 = vpop.permute.xlu0 %4225
        %v4231 = vadd.f32 %v4127, %v4220
        %v4232 = vadd.f32 %v4128, %v4222
        %v4233 = vadd.f32 %v4129, %v4224
        %v4234 = vadd.f32 %v4130, %v4226
        %s4235 = sld [smem:[#allocation9 + $0x8c]]
        %v4236 = vstv %s4235
        %v4237 = vmul.f32 %v4236, %v4087
        %v4238 = vmul.f32 %v4236, %v4088
        %v4239 = vmul.f32 %v4236, %v4089
        %v4240 = vmul.f32 %v4236, %v4090
        %4245 = vrot.lane.b32.xlu0 %v4237, 126
        %v4246 = vpop.permute.xlu0 %4245
        %4247 = vrot.lane.b32.xlu0 %v4238, 126
        %v4248 = vpop.permute.xlu0 %4247
        %4249 = vrot.lane.b32.xlu0 %v4239, 126
        %v4250 = vpop.permute.xlu0 %4249
        %4251 = vrot.lane.b32.xlu0 %v4240, 126
        %v4252 = vpop.permute.xlu0 %4251
        %v4257 = vadd.f32 %v4153, %v4246
        %v4258 = vadd.f32 %v4154, %v4248
        %v4259 = vadd.f32 %v4155, %v4250
        %v4260 = vadd.f32 %v4156, %v4252
        %s4261 = sld [smem:[#allocation9 + $0x8d]]
        %v4262 = vstv %s4261
        %v4263 = vmul.f32 %v4262, %v4087
        %v4264 = vmul.f32 %v4262, %v4088
        %v4265 = vmul.f32 %v4262, %v4089
        %v4266 = vmul.f32 %v4262, %v4090
        %4271 = vrot.lane.b32.xlu0 %v4263, 126
        %v4272 = vpop.permute.xlu0 %4271
        %4273 = vrot.lane.b32.xlu0 %v4264, 126
        %v4274 = vpop.permute.xlu0 %4273
        %4275 = vrot.lane.b32.xlu0 %v4265, 126
        %v4276 = vpop.permute.xlu0 %4275
        %4277 = vrot.lane.b32.xlu0 %v4266, 126
        %v4278 = vpop.permute.xlu0 %4277
        %v4283 = vadd.f32 %v4179, %v4272
        %v4284 = vadd.f32 %v4180, %v4274
        %v4285 = vadd.f32 %v4181, %v4276
        %v4286 = vadd.f32 %v4182, %v4278
        %s4287 = sld [smem:[#allocation9 + $0x8e]]
        %v4288 = vstv %s4287
        %v4289 = vmul.f32 %v4288, %v4087
        %v4290 = vmul.f32 %v4288, %v4088
        %v4291 = vmul.f32 %v4288, %v4089
        %v4292 = vmul.f32 %v4288, %v4090
        %4297 = vrot.lane.b32.xlu0 %v4289, 126
        %v4298 = vpop.permute.xlu0 %4297
        %4299 = vrot.lane.b32.xlu0 %v4290, 126
        %v4300 = vpop.permute.xlu0 %4299
        %4301 = vrot.lane.b32.xlu0 %v4291, 126
        %v4302 = vpop.permute.xlu0 %4301
        %4303 = vrot.lane.b32.xlu0 %v4292, 126
        %v4304 = vpop.permute.xlu0 %4303
        %v4309 = vadd.f32 %v4205, %v4298
        %v4310 = vadd.f32 %v4206, %v4300
        %v4311 = vadd.f32 %v4207, %v4302
        %v4312 = vadd.f32 %v4208, %v4304
        %s4313 = sld [smem:[#allocation9 + $0x8f]]
        %v4314 = vstv %s4313
        %v4315 = vmul.f32 %v4314, %v4087
        %v4316 = vmul.f32 %v4314, %v4088
        %v4317 = vmul.f32 %v4314, %v4089
        %v4318 = vmul.f32 %v4314, %v4090
        %4323 = vrot.lane.b32.xlu0 %v4315, 126
        %v4324 = vpop.permute.xlu0 %4323
        %4325 = vrot.lane.b32.xlu0 %v4316, 126
        %v4326 = vpop.permute.xlu0 %4325
        %4327 = vrot.lane.b32.xlu0 %v4317, 126
        %v4328 = vpop.permute.xlu0 %4327
        %4329 = vrot.lane.b32.xlu0 %v4318, 126
        %v4330 = vpop.permute.xlu0 %4329
        %v4335 = vadd.f32 %v4231, %v4324
        %v4336 = vadd.f32 %v4232, %v4326
        %v4337 = vadd.f32 %v4233, %v4328
        %v4338 = vadd.f32 %v4234, %v4330
        %s4339 = sld [smem:[#allocation10]]
        %v4340 = vstv %s4339
        %v4341 = vmul.f32 %v4257, %v4340
        %v4342 = vmul.f32 %v4258, %v4340
        %v4343 = vmul.f32 %v4259, %v4340
        %v4344 = vmul.f32 %v4260, %v4340
        %s4345 = sld [smem:[#allocation12]]
        %v4346 = vstv %s4345
        %v4347 = vadd.f32 %v4341, %v4346
        %v4348 = vadd.f32 %v4342, %v4346
        %v4349 = vadd.f32 %v4343, %v4346
        %v4350 = vadd.f32 %v4344, %v4346
        %v4351 = vmax.f32 %v4347, 0.0
        %v4352 = vmax.f32 %v4348, 0.0
        %v4353 = vmax.f32 %v4349, 0.0
        %v4354 = vmax.f32 %v4350, 0.0
        %v4355 = vand.u32 2147483647, %v4347
        %v4356 = vand.u32 2147483647, %v4348
        %v4357 = vand.u32 2147483647, %v4349
        %v4358 = vand.u32 2147483647, %v4350
        %v4359 = vsub.f32 0.0, %v4355
        %v4360 = vsub.f32 0.0, %v4356
        %v4361 = vsub.f32 0.0, %v4357
        %v4362 = vsub.f32 0.0, %v4358
        %v4363 = vmul.f32 %v4359, 1.442695
        %v4364 = vpow.pop %v4363
        %v4365 = vmul.f32 %v4360, 1.442695
        %v4366 = vpow.pop %v4365
        %v4367 = vmul.f32 %v4361, 1.442695
        %v4368 = vpow.pop %v4367
        %v4369 = vmul.f32 %v4362, 1.442695
        %v4370 = vpow.pop %v4369
        %v4371 = vadd.f32 %v4364, 1.0
        %v4372 = vlog2.pop %v4371
        %v4373 = vmul.f32 %v4372, 0.6931472
        %v4374 = vmul.f32 -0.5, %v4364
        %v4375 = vadd.f32 %v4374, 1.0
        %v4376 = vmul.f32 %v4375, %v4364
        %v4377 = vand.u32 2147483647, %v4364
        %vm4378 = vcmp.lt.f32.partialorder %v4377, 0.0004427343
        %v4379 = vsel %vm4378, %v4376, %v4373
        %v4380 = vadd.f32 %v4366, 1.0
        %v4381 = vlog2.pop %v4380
        %v4382 = vmul.f32 %v4381, 0.6931472
        %v4383 = vmul.f32 -0.5, %v4366
        %v4384 = vadd.f32 %v4383, 1.0
        %v4385 = vmul.f32 %v4384, %v4366
        %v4386 = vand.u32 2147483647, %v4366
        %vm4387 = vcmp.lt.f32.partialorder %v4386, 0.0004427343
        %v4388 = vsel %vm4387, %v4385, %v4382
        %v4389 = vadd.f32 %v4368, 1.0
        %v4390 = vlog2.pop %v4389
        %v4391 = vmul.f32 %v4390, 0.6931472
        %v4392 = vmul.f32 -0.5, %v4368
        %v4393 = vadd.f32 %v4392, 1.0
        %v4394 = vmul.f32 %v4393, %v4368
        %v4395 = vand.u32 2147483647, %v4368
        %vm4396 = vcmp.lt.f32.partialorder %v4395, 0.0004427343
        %v4397 = vsel %vm4396, %v4394, %v4391
        %v4398 = vadd.f32 %v4370, 1.0
        %v4399 = vlog2.pop %v4398
        %v4400 = vmul.f32 %v4399, 0.6931472
        %v4401 = vmul.f32 -0.5, %v4370
        %v4402 = vadd.f32 %v4401, 1.0
        %v4403 = vmul.f32 %v4402, %v4370
        %v4404 = vand.u32 2147483647, %v4370
        %vm4405 = vcmp.lt.f32.partialorder %v4404, 0.0004427343
        %v4406 = vsel %vm4405, %v4403, %v4400
        %v4407 = vadd.f32 %v4351, %v4379
        %v4408 = vadd.f32 %v4352, %v4388
        %v4409 = vadd.f32 %v4353, %v4397
        %v4410 = vadd.f32 %v4354, %v4406
        %v4411 = vtanh.pop %v4407
        %v4412 = vtanh.pop %v4408
        %v4413 = vtanh.pop %v4409
        %v4414 = vtanh.pop %v4410
        %v4415 = vmul.f32 %v4347, %v4411
        %v4416 = vmul.f32 %v4348, %v4412
        %v4417 = vmul.f32 %v4349, %v4413
        %v4418 = vmul.f32 %v4350, %v4414
        %4423 = vrot.lane.b32.xlu0 %v4415, 1
        %v4424 = vpop.permute.xlu0 %4423
        %4425 = vrot.lane.b32.xlu0 %v4416, 1
        %v4426 = vpop.permute.xlu0 %4425
        %4427 = vrot.lane.b32.xlu0 %v4417, 1
        %v4428 = vpop.permute.xlu0 %4427
        %4429 = vrot.lane.b32.xlu0 %v4418, 1
        %v4430 = vpop.permute.xlu0 %4429
        %4435 = vst.msk [vmem:[#allocation3 + $0x1] sm:$0xff] %vm740, %v4424
        %4436 = vst.msk [vmem:[#allocation3 + $0x9] sm:$0xff] %vm740, %v4426
        %4437 = vst.msk [vmem:[#allocation3 + $0x11] sm:$0xff] %vm740, %v4428
        %4438 = vst.msk [vmem:[#allocation3 + $0x19] sm:$0xff] %vm740, %v4430
        %s4439 = sld [smem:[#allocation10 + $0x1]]
        %v4440 = vstv %s4439
        %v4441 = vmul.f32 %v4283, %v4440
        %v4442 = vmul.f32 %v4284, %v4440
        %v4443 = vmul.f32 %v4285, %v4440
        %v4444 = vmul.f32 %v4286, %v4440
        %s4445 = sld [smem:[#allocation12 + $0x1]]
        %v4446 = vstv %s4445
        %v4447 = vadd.f32 %v4441, %v4446
        %v4448 = vadd.f32 %v4442, %v4446
        %v4449 = vadd.f32 %v4443, %v4446
        %v4450 = vadd.f32 %v4444, %v4446
        %v4451 = vmax.f32 %v4447, 0.0
        %v4452 = vmax.f32 %v4448, 0.0
        %v4453 = vmax.f32 %v4449, 0.0
        %v4454 = vmax.f32 %v4450, 0.0
        %v4455 = vand.u32 2147483647, %v4447
        %v4456 = vand.u32 2147483647, %v4448
        %v4457 = vand.u32 2147483647, %v4449
        %v4458 = vand.u32 2147483647, %v4450
        %v4459 = vsub.f32 0.0, %v4455
        %v4460 = vsub.f32 0.0, %v4456
        %v4461 = vsub.f32 0.0, %v4457
        %v4462 = vsub.f32 0.0, %v4458
        %v4463 = vmul.f32 %v4459, 1.442695
        %v4464 = vpow.pop %v4463
        %v4465 = vmul.f32 %v4460, 1.442695
        %v4466 = vpow.pop %v4465
        %v4467 = vmul.f32 %v4461, 1.442695
        %v4468 = vpow.pop %v4467
        %v4469 = vmul.f32 %v4462, 1.442695
        %v4470 = vpow.pop %v4469
        %v4471 = vadd.f32 %v4464, 1.0
        %v4472 = vlog2.pop %v4471
        %v4473 = vmul.f32 %v4472, 0.6931472
        %v4474 = vmul.f32 -0.5, %v4464
        %v4475 = vadd.f32 %v4474, 1.0
        %v4476 = vmul.f32 %v4475, %v4464
        %v4477 = vand.u32 2147483647, %v4464
        %vm4478 = vcmp.lt.f32.partialorder %v4477, 0.0004427343
        %v4479 = vsel %vm4478, %v4476, %v4473
        %v4480 = vadd.f32 %v4466, 1.0
        %v4481 = vlog2.pop %v4480
        %v4482 = vmul.f32 %v4481, 0.6931472
        %v4483 = vmul.f32 -0.5, %v4466
        %v4484 = vadd.f32 %v4483, 1.0
        %v4485 = vmul.f32 %v4484, %v4466
        %v4486 = vand.u32 2147483647, %v4466
        %vm4487 = vcmp.lt.f32.partialorder %v4486, 0.0004427343
        %v4488 = vsel %vm4487, %v4485, %v4482
        %v4489 = vadd.f32 %v4468, 1.0
        %v4490 = vlog2.pop %v4489
        %v4491 = vmul.f32 %v4490, 0.6931472
        %v4492 = vmul.f32 -0.5, %v4468
        %v4493 = vadd.f32 %v4492, 1.0
        %v4494 = vmul.f32 %v4493, %v4468
        %v4495 = vand.u32 2147483647, %v4468
        %vm4496 = vcmp.lt.f32.partialorder %v4495, 0.0004427343
        %v4497 = vsel %vm4496, %v4494, %v4491
        %v4498 = vadd.f32 %v4470, 1.0
        %v4499 = vlog2.pop %v4498
        %v4500 = vmul.f32 %v4499, 0.6931472
        %v4501 = vmul.f32 -0.5, %v4470
        %v4502 = vadd.f32 %v4501, 1.0
        %v4503 = vmul.f32 %v4502, %v4470
        %v4504 = vand.u32 2147483647, %v4470
        %vm4505 = vcmp.lt.f32.partialorder %v4504, 0.0004427343
        %v4506 = vsel %vm4505, %v4503, %v4500
        %v4507 = vadd.f32 %v4451, %v4479
        %v4508 = vadd.f32 %v4452, %v4488
        %v4509 = vadd.f32 %v4453, %v4497
        %v4510 = vadd.f32 %v4454, %v4506
        %v4511 = vtanh.pop %v4507
        %v4512 = vtanh.pop %v4508
        %v4513 = vtanh.pop %v4509
        %v4514 = vtanh.pop %v4510
        %v4515 = vmul.f32 %v4447, %v4511
        %v4516 = vmul.f32 %v4448, %v4512
        %v4517 = vmul.f32 %v4449, %v4513
        %v4518 = vmul.f32 %v4450, %v4514
        %4523 = vrot.lane.b32.xlu0 %v4515, 1
        %v4524 = vpop.permute.xlu0 %4523
        %4525 = vrot.lane.b32.xlu0 %v4516, 1
        %v4526 = vpop.permute.xlu0 %4525
        %4527 = vrot.lane.b32.xlu0 %v4517, 1
        %v4528 = vpop.permute.xlu0 %4527
        %4529 = vrot.lane.b32.xlu0 %v4518, 1
        %v4530 = vpop.permute.xlu0 %4529
        %s4535 = scalar_lea.vmem [#allocation3], 40
        %4536 = vst.msk [vmem:[%s4535 + $0x1] sm:$0xff] %vm740, %v4524
        %4537 = vst.msk [vmem:[%s4535 + $0x9] sm:$0xff] %vm740, %v4526
        %4538 = vst.msk [vmem:[%s4535 + $0x11] sm:$0xff] %vm740, %v4528
        %4539 = vst.msk [vmem:[%s4535 + $0x19] sm:$0xff] %vm740, %v4530
        %s4540 = sld [smem:[#allocation10 + $0x2]]
        %v4541 = vstv %s4540
        %v4542 = vmul.f32 %v4309, %v4541
        %v4543 = vmul.f32 %v4310, %v4541
        %v4544 = vmul.f32 %v4311, %v4541
        %v4545 = vmul.f32 %v4312, %v4541
        %s4546 = sld [smem:[#allocation12 + $0x2]]
        %v4547 = vstv %s4546
        %v4548 = vadd.f32 %v4542, %v4547
        %v4549 = vadd.f32 %v4543, %v4547
        %v4550 = vadd.f32 %v4544, %v4547
        %v4551 = vadd.f32 %v4545, %v4547
        %v4552 = vmax.f32 %v4548, 0.0
        %v4553 = vmax.f32 %v4549, 0.0
        %v4554 = vmax.f32 %v4550, 0.0
        %v4555 = vmax.f32 %v4551, 0.0
        %v4556 = vand.u32 2147483647, %v4548
        %v4557 = vand.u32 2147483647, %v4549
        %v4558 = vand.u32 2147483647, %v4550
        %v4559 = vand.u32 2147483647, %v4551
        %v4560 = vsub.f32 0.0, %v4556
        %v4561 = vsub.f32 0.0, %v4557
        %v4562 = vsub.f32 0.0, %v4558
        %v4563 = vsub.f32 0.0, %v4559
        %v4564 = vmul.f32 %v4560, 1.442695
        %v4565 = vpow.pop %v4564
        %v4566 = vmul.f32 %v4561, 1.442695
        %v4567 = vpow.pop %v4566
        %v4568 = vmul.f32 %v4562, 1.442695
        %v4569 = vpow.pop %v4568
        %v4570 = vmul.f32 %v4563, 1.442695
        %v4571 = vpow.pop %v4570
        %v4572 = vadd.f32 %v4565, 1.0
        %v4573 = vlog2.pop %v4572
        %v4574 = vmul.f32 %v4573, 0.6931472
        %v4575 = vmul.f32 -0.5, %v4565
        %v4576 = vadd.f32 %v4575, 1.0
        %v4577 = vmul.f32 %v4576, %v4565
        %v4578 = vand.u32 2147483647, %v4565
        %vm4579 = vcmp.lt.f32.partialorder %v4578, 0.0004427343
        %v4580 = vsel %vm4579, %v4577, %v4574
        %v4581 = vadd.f32 %v4567, 1.0
        %v4582 = vlog2.pop %v4581
        %v4583 = vmul.f32 %v4582, 0.6931472
        %v4584 = vmul.f32 -0.5, %v4567
        %v4585 = vadd.f32 %v4584, 1.0
        %v4586 = vmul.f32 %v4585, %v4567
        %v4587 = vand.u32 2147483647, %v4567
        %vm4588 = vcmp.lt.f32.partialorder %v4587, 0.0004427343
        %v4589 = vsel %vm4588, %v4586, %v4583
        %v4590 = vadd.f32 %v4569, 1.0
        %v4591 = vlog2.pop %v4590
        %v4592 = vmul.f32 %v4591, 0.6931472
        %v4593 = vmul.f32 -0.5, %v4569
        %v4594 = vadd.f32 %v4593, 1.0
        %v4595 = vmul.f32 %v4594, %v4569
        %v4596 = vand.u32 2147483647, %v4569
        %vm4597 = vcmp.lt.f32.partialorder %v4596, 0.0004427343
        %v4598 = vsel %vm4597, %v4595, %v4592
        %v4599 = vadd.f32 %v4571, 1.0
        %v4600 = vlog2.pop %v4599
        %v4601 = vmul.f32 %v4600, 0.6931472
        %v4602 = vmul.f32 -0.5, %v4571
        %v4603 = vadd.f32 %v4602, 1.0
        %v4604 = vmul.f32 %v4603, %v4571
        %v4605 = vand.u32 2147483647, %v4571
        %vm4606 = vcmp.lt.f32.partialorder %v4605, 0.0004427343
        %v4607 = vsel %vm4606, %v4604, %v4601
        %v4608 = vadd.f32 %v4552, %v4580
        %v4609 = vadd.f32 %v4553, %v4589
        %v4610 = vadd.f32 %v4554, %v4598
        %v4611 = vadd.f32 %v4555, %v4607
        %v4612 = vtanh.pop %v4608
        %v4613 = vtanh.pop %v4609
        %v4614 = vtanh.pop %v4610
        %v4615 = vtanh.pop %v4611
        %v4616 = vmul.f32 %v4548, %v4612
        %v4617 = vmul.f32 %v4549, %v4613
        %v4618 = vmul.f32 %v4550, %v4614
        %v4619 = vmul.f32 %v4551, %v4615
        %4624 = vrot.lane.b32.xlu0 %v4616, 1
        %v4625 = vpop.permute.xlu0 %4624
        %4626 = vrot.lane.b32.xlu0 %v4617, 1
        %v4627 = vpop.permute.xlu0 %4626
        %4628 = vrot.lane.b32.xlu0 %v4618, 1
        %v4629 = vpop.permute.xlu0 %4628
        %4630 = vrot.lane.b32.xlu0 %v4619, 1
        %v4631 = vpop.permute.xlu0 %4630
        %s4636 = scalar_lea.vmem [#allocation3], 80
        %4637 = vst.msk [vmem:[%s4636 + $0x1] sm:$0xff] %vm740, %v4625
        %4638 = vst.msk [vmem:[%s4636 + $0x9] sm:$0xff] %vm740, %v4627
        %4639 = vst.msk [vmem:[%s4636 + $0x11] sm:$0xff] %vm740, %v4629
        %4640 = vst.msk [vmem:[%s4636 + $0x19] sm:$0xff] %vm740, %v4631
        %s4641 = sld [smem:[#allocation10 + $0x3]]
        %v4642 = vstv %s4641
        %v4643 = vmul.f32 %v4335, %v4642
        %v4644 = vmul.f32 %v4336, %v4642
        %v4645 = vmul.f32 %v4337, %v4642
        %v4646 = vmul.f32 %v4338, %v4642
        %s4647 = sld [smem:[#allocation12 + $0x3]]
        %v4648 = vstv %s4647
        %v4649 = vadd.f32 %v4643, %v4648
        %v4650 = vadd.f32 %v4644, %v4648
        %v4651 = vadd.f32 %v4645, %v4648
        %v4652 = vadd.f32 %v4646, %v4648
        %v4653 = vmax.f32 %v4649, 0.0
        %v4654 = vmax.f32 %v4650, 0.0
        %v4655 = vmax.f32 %v4651, 0.0
        %v4656 = vmax.f32 %v4652, 0.0
        %v4657 = vand.u32 2147483647, %v4649
        %v4658 = vand.u32 2147483647, %v4650
        %v4659 = vand.u32 2147483647, %v4651
        %v4660 = vand.u32 2147483647, %v4652
        %v4661 = vsub.f32 0.0, %v4657
        %v4662 = vsub.f32 0.0, %v4658
        %v4663 = vsub.f32 0.0, %v4659
        %v4664 = vsub.f32 0.0, %v4660
        %v4665 = vmul.f32 %v4661, 1.442695
        %v4666 = vpow.pop %v4665
        %v4667 = vmul.f32 %v4662, 1.442695
        %v4668 = vpow.pop %v4667
        %v4669 = vmul.f32 %v4663, 1.442695
        %v4670 = vpow.pop %v4669
        %v4671 = vmul.f32 %v4664, 1.442695
        %v4672 = vpow.pop %v4671
        %v4673 = vadd.f32 %v4666, 1.0
        %v4674 = vlog2.pop %v4673
        %v4675 = vmul.f32 %v4674, 0.6931472
        %v4676 = vmul.f32 -0.5, %v4666
        %v4677 = vadd.f32 %v4676, 1.0
        %v4678 = vmul.f32 %v4677, %v4666
        %v4679 = vand.u32 2147483647, %v4666
        %vm4680 = vcmp.lt.f32.partialorder %v4679, 0.0004427343
        %v4681 = vsel %vm4680, %v4678, %v4675
        %v4682 = vadd.f32 %v4668, 1.0
        %v4683 = vlog2.pop %v4682
        %v4684 = vmul.f32 %v4683, 0.6931472
        %v4685 = vmul.f32 -0.5, %v4668
        %v4686 = vadd.f32 %v4685, 1.0
        %v4687 = vmul.f32 %v4686, %v4668
        %v4688 = vand.u32 2147483647, %v4668
        %vm4689 = vcmp.lt.f32.partialorder %v4688, 0.0004427343
        %v4690 = vsel %vm4689, %v4687, %v4684
        %v4691 = vadd.f32 %v4670, 1.0
        %v4692 = vlog2.pop %v4691
        %v4693 = vmul.f32 %v4692, 0.6931472
        %v4694 = vmul.f32 -0.5, %v4670
        %v4695 = vadd.f32 %v4694, 1.0
        %v4696 = vmul.f32 %v4695, %v4670
        %v4697 = vand.u32 2147483647, %v4670
        %vm4698 = vcmp.lt.f32.partialorder %v4697, 0.0004427343
        %v4699 = vsel %vm4698, %v4696, %v4693
        %v4700 = vadd.f32 %v4672, 1.0
        %v4701 = vlog2.pop %v4700
        %v4702 = vmul.f32 %v4701, 0.6931472
        %v4703 = vmul.f32 -0.5, %v4672
        %v4704 = vadd.f32 %v4703, 1.0
        %v4705 = vmul.f32 %v4704, %v4672
        %v4706 = vand.u32 2147483647, %v4672
        %vm4707 = vcmp.lt.f32.partialorder %v4706, 0.0004427343
        %v4708 = vsel %vm4707, %v4705, %v4702
        %v4709 = vadd.f32 %v4653, %v4681
        %v4710 = vadd.f32 %v4654, %v4690
        %v4711 = vadd.f32 %v4655, %v4699
        %v4712 = vadd.f32 %v4656, %v4708
        %v4713 = vtanh.pop %v4709
        %v4714 = vtanh.pop %v4710
        %v4715 = vtanh.pop %v4711
        %v4716 = vtanh.pop %v4712
        %v4717 = vmul.f32 %v4649, %v4713
        %v4718 = vmul.f32 %v4650, %v4714
        %v4719 = vmul.f32 %v4651, %v4715
        %v4720 = vmul.f32 %v4652, %v4716
        %4725 = vrot.lane.b32.xlu0 %v4717, 1
        %v4726 = vpop.permute.xlu0 %4725
        %4727 = vrot.lane.b32.xlu0 %v4718, 1
        %v4728 = vpop.permute.xlu0 %4727
        %4729 = vrot.lane.b32.xlu0 %v4719, 1
        %v4730 = vpop.permute.xlu0 %4729
        %4731 = vrot.lane.b32.xlu0 %v4720, 1
        %v4732 = vpop.permute.xlu0 %4731
        %s4737 = scalar_lea.vmem [#allocation3], 120
        %4738 = vst.msk [vmem:[%s4737 + $0x1] sm:$0xff] %vm740, %v4726
        %4739 = vst.msk [vmem:[%s4737 + $0x9] sm:$0xff] %vm740, %v4728
        %4740 = vst.msk [vmem:[%s4737 + $0x11] sm:$0xff] %vm740, %v4730
        %4741 = vst.msk [vmem:[%s4737 + $0x19] sm:$0xff] %vm740, %v4732
        %v4742 = vld [vmem:[#allocation3] sm:$0xff]
        %v4743 = vld [vmem:[#allocation3 + $0x8] sm:$0xff]
        %v4744 = vld [vmem:[#allocation3 + $0x10] sm:$0xff]
        %v4745 = vld [vmem:[#allocation3 + $0x18] sm:$0xff]
        %s4746 = sld [smem:[#allocation13]]
        %v4747 = vstv %s4746
        %v4748 = vmul.f32 %v4747, %v4742
        %v4749 = vmul.f32 %v4747, %v4743
        %v4750 = vmul.f32 %v4747, %v4744
        %v4751 = vmul.f32 %v4747, %v4745
        %v4752 = vadd.f32 %v4748, 0.0
        %v4753 = vadd.f32 %v4749, 0.0
        %v4754 = vadd.f32 %v4750, 0.0
        %v4755 = vadd.f32 %v4751, 0.0
        %s4756 = sld [smem:[#allocation13 + $0x1]]
        %v4757 = vstv %s4756
        %v4758 = vmul.f32 %v4757, %v4742
        %v4759 = vmul.f32 %v4757, %v4743
        %v4760 = vmul.f32 %v4757, %v4744
        %v4761 = vmul.f32 %v4757, %v4745
        %v4762 = vadd.f32 %v4758, 0.0
        %v4763 = vadd.f32 %v4759, 0.0
        %v4764 = vadd.f32 %v4760, 0.0
        %v4765 = vadd.f32 %v4761, 0.0
        %s4766 = sld [smem:[#allocation13 + $0x2]]
        %v4767 = vstv %s4766
        %v4768 = vmul.f32 %v4767, %v4742
        %v4769 = vmul.f32 %v4767, %v4743
        %v4770 = vmul.f32 %v4767, %v4744
        %v4771 = vmul.f32 %v4767, %v4745
        %v4772 = vadd.f32 %v4768, 0.0
        %v4773 = vadd.f32 %v4769, 0.0
        %v4774 = vadd.f32 %v4770, 0.0
        %v4775 = vadd.f32 %v4771, 0.0
        %s4776 = sld [smem:[#allocation13 + $0x3]]
        %v4777 = vstv %s4776
        %v4778 = vmul.f32 %v4777, %v4742
        %v4779 = vmul.f32 %v4777, %v4743
        %v4780 = vmul.f32 %v4777, %v4744
        %v4781 = vmul.f32 %v4777, %v4745
        %v4782 = vadd.f32 %v4778, 0.0
        %v4783 = vadd.f32 %v4779, 0.0
        %v4784 = vadd.f32 %v4780, 0.0
        %v4785 = vadd.f32 %v4781, 0.0
        %s4786 = sld [smem:[#allocation13 + $0x10]]
        %v4787 = vstv %s4786
        %v4788 = vmul.f32 %v4787, %v4742
        %v4789 = vmul.f32 %v4787, %v4743
        %v4790 = vmul.f32 %v4787, %v4744
        %v4791 = vmul.f32 %v4787, %v4745
        %4796 = vrot.lane.b32.xlu0 %v4788, 127
        %v4797 = vpop.permute.xlu0 %4796
        %4798 = vrot.lane.b32.xlu0 %v4789, 127
        %v4799 = vpop.permute.xlu0 %4798
        %4800 = vrot.lane.b32.xlu0 %v4790, 127
        %v4801 = vpop.permute.xlu0 %4800
        %4802 = vrot.lane.b32.xlu0 %v4791, 127
        %v4803 = vpop.permute.xlu0 %4802
        %v4808 = vadd.f32 %v4752, %v4797
        %v4809 = vadd.f32 %v4753, %v4799
        %v4810 = vadd.f32 %v4754, %v4801
        %v4811 = vadd.f32 %v4755, %v4803
        %s4812 = sld [smem:[#allocation13 + $0x11]]
        %v4813 = vstv %s4812
        %v4814 = vmul.f32 %v4813, %v4742
        %v4815 = vmul.f32 %v4813, %v4743
        %v4816 = vmul.f32 %v4813, %v4744
        %v4817 = vmul.f32 %v4813, %v4745
        %4822 = vrot.lane.b32.xlu0 %v4814, 127
        %v4823 = vpop.permute.xlu0 %4822
        %4824 = vrot.lane.b32.xlu0 %v4815, 127
        %v4825 = vpop.permute.xlu0 %4824
        %4826 = vrot.lane.b32.xlu0 %v4816, 127
        %v4827 = vpop.permute.xlu0 %4826
        %4828 = vrot.lane.b32.xlu0 %v4817, 127
        %v4829 = vpop.permute.xlu0 %4828
        %v4834 = vadd.f32 %v4762, %v4823
        %v4835 = vadd.f32 %v4763, %v4825
        %v4836 = vadd.f32 %v4764, %v4827
        %v4837 = vadd.f32 %v4765, %v4829
        %s4838 = sld [smem:[#allocation13 + $0x12]]
        %v4839 = vstv %s4838
        %v4840 = vmul.f32 %v4839, %v4742
        %v4841 = vmul.f32 %v4839, %v4743
        %v4842 = vmul.f32 %v4839, %v4744
        %v4843 = vmul.f32 %v4839, %v4745
        %4848 = vrot.lane.b32.xlu0 %v4840, 127
        %v4849 = vpop.permute.xlu0 %4848
        %4850 = vrot.lane.b32.xlu0 %v4841, 127
        %v4851 = vpop.permute.xlu0 %4850
        %4852 = vrot.lane.b32.xlu0 %v4842, 127
        %v4853 = vpop.permute.xlu0 %4852
        %4854 = vrot.lane.b32.xlu0 %v4843, 127
        %v4855 = vpop.permute.xlu0 %4854
        %v4860 = vadd.f32 %v4772, %v4849
        %v4861 = vadd.f32 %v4773, %v4851
        %v4862 = vadd.f32 %v4774, %v4853
        %v4863 = vadd.f32 %v4775, %v4855
        %s4864 = sld [smem:[#allocation13 + $0x13]]
        %v4865 = vstv %s4864
        %v4866 = vmul.f32 %v4865, %v4742
        %v4867 = vmul.f32 %v4865, %v4743
        %v4868 = vmul.f32 %v4865, %v4744
        %v4869 = vmul.f32 %v4865, %v4745
        %4874 = vrot.lane.b32.xlu0 %v4866, 127
        %v4875 = vpop.permute.xlu0 %4874
        %4876 = vrot.lane.b32.xlu0 %v4867, 127
        %v4877 = vpop.permute.xlu0 %4876
        %4878 = vrot.lane.b32.xlu0 %v4868, 127
        %v4879 = vpop.permute.xlu0 %4878
        %4880 = vrot.lane.b32.xlu0 %v4869, 127
        %v4881 = vpop.permute.xlu0 %4880
        %v4886 = vadd.f32 %v4782, %v4875
        %v4887 = vadd.f32 %v4783, %v4877
        %v4888 = vadd.f32 %v4784, %v4879
        %v4889 = vadd.f32 %v4785, %v4881
        %s4890 = sld [smem:[#allocation13 + $0x20]]
        %v4891 = vstv %s4890
        %v4892 = vmul.f32 %v4891, %v4742
        %v4893 = vmul.f32 %v4891, %v4743
        %v4894 = vmul.f32 %v4891, %v4744
        %v4895 = vmul.f32 %v4891, %v4745
        %4900 = vrot.lane.b32.xlu0 %v4892, 126
        %v4901 = vpop.permute.xlu0 %4900
        %4902 = vrot.lane.b32.xlu0 %v4893, 126
        %v4903 = vpop.permute.xlu0 %4902
        %4904 = vrot.lane.b32.xlu0 %v4894, 126
        %v4905 = vpop.permute.xlu0 %4904
        %4906 = vrot.lane.b32.xlu0 %v4895, 126
        %v4907 = vpop.permute.xlu0 %4906
        %v4912 = vadd.f32 %v4808, %v4901
        %v4913 = vadd.f32 %v4809, %v4903
        %v4914 = vadd.f32 %v4810, %v4905
        %v4915 = vadd.f32 %v4811, %v4907
        %s4916 = sld [smem:[#allocation13 + $0x21]]
        %v4917 = vstv %s4916
        %v4918 = vmul.f32 %v4917, %v4742
        %v4919 = vmul.f32 %v4917, %v4743
        %v4920 = vmul.f32 %v4917, %v4744
        %v4921 = vmul.f32 %v4917, %v4745
        %4926 = vrot.lane.b32.xlu0 %v4918, 126
        %v4927 = vpop.permute.xlu0 %4926
        %4928 = vrot.lane.b32.xlu0 %v4919, 126
        %v4929 = vpop.permute.xlu0 %4928
        %4930 = vrot.lane.b32.xlu0 %v4920, 126
        %v4931 = vpop.permute.xlu0 %4930
        %4932 = vrot.lane.b32.xlu0 %v4921, 126
        %v4933 = vpop.permute.xlu0 %4932
        %v4938 = vadd.f32 %v4834, %v4927
        %v4939 = vadd.f32 %v4835, %v4929
        %v4940 = vadd.f32 %v4836, %v4931
        %v4941 = vadd.f32 %v4837, %v4933
        %s4942 = sld [smem:[#allocation13 + $0x22]]
        %v4943 = vstv %s4942
        %v4944 = vmul.f32 %v4943, %v4742
        %v4945 = vmul.f32 %v4943, %v4743
        %v4946 = vmul.f32 %v4943, %v4744
        %v4947 = vmul.f32 %v4943, %v4745
        %4952 = vrot.lane.b32.xlu0 %v4944, 126
        %v4953 = vpop.permute.xlu0 %4952
        %4954 = vrot.lane.b32.xlu0 %v4945, 126
        %v4955 = vpop.permute.xlu0 %4954
        %4956 = vrot.lane.b32.xlu0 %v4946, 126
        %v4957 = vpop.permute.xlu0 %4956
        %4958 = vrot.lane.b32.xlu0 %v4947, 126
        %v4959 = vpop.permute.xlu0 %4958
        %v4964 = vadd.f32 %v4860, %v4953
        %v4965 = vadd.f32 %v4861, %v4955
        %v4966 = vadd.f32 %v4862, %v4957
        %v4967 = vadd.f32 %v4863, %v4959
        %s4968 = sld [smem:[#allocation13 + $0x23]]
        %v4969 = vstv %s4968
        %v4970 = vmul.f32 %v4969, %v4742
        %v4971 = vmul.f32 %v4969, %v4743
        %v4972 = vmul.f32 %v4969, %v4744
        %v4973 = vmul.f32 %v4969, %v4745
        %4978 = vrot.lane.b32.xlu0 %v4970, 126
        %v4979 = vpop.permute.xlu0 %4978
        %4980 = vrot.lane.b32.xlu0 %v4971, 126
        %v4981 = vpop.permute.xlu0 %4980
        %4982 = vrot.lane.b32.xlu0 %v4972, 126
        %v4983 = vpop.permute.xlu0 %4982
        %4984 = vrot.lane.b32.xlu0 %v4973, 126
        %v4985 = vpop.permute.xlu0 %4984
        %v4990 = vadd.f32 %v4886, %v4979
        %v4991 = vadd.f32 %v4887, %v4981
        %v4992 = vadd.f32 %v4888, %v4983
        %v4993 = vadd.f32 %v4889, %v4985
        %v4994 = vld [vmem:[#allocation3 + $0x1] sm:$0xff]
        %v4995 = vld [vmem:[#allocation3 + $0x9] sm:$0xff]
        %v4996 = vld [vmem:[#allocation3 + $0x11] sm:$0xff]
        %v4997 = vld [vmem:[#allocation3 + $0x19] sm:$0xff]
        %s4998 = sld [smem:[#allocation13 + $0x30]]
        %v4999 = vstv %s4998
        %v5000 = vmul.f32 %v4999, %v4994
        %v5001 = vmul.f32 %v4999, %v4995
        %v5002 = vmul.f32 %v4999, %v4996
        %v5003 = vmul.f32 %v4999, %v4997
        %v5004 = vadd.f32 %v4912, %v5000
        %v5005 = vadd.f32 %v4913, %v5001
        %v5006 = vadd.f32 %v4914, %v5002
        %v5007 = vadd.f32 %v4915, %v5003
        %s5008 = sld [smem:[#allocation13 + $0x31]]
        %v5009 = vstv %s5008
        %v5010 = vmul.f32 %v5009, %v4994
        %v5011 = vmul.f32 %v5009, %v4995
        %v5012 = vmul.f32 %v5009, %v4996
        %v5013 = vmul.f32 %v5009, %v4997
        %v5014 = vadd.f32 %v4938, %v5010
        %v5015 = vadd.f32 %v4939, %v5011
        %v5016 = vadd.f32 %v4940, %v5012
        %v5017 = vadd.f32 %v4941, %v5013
        %s5018 = sld [smem:[#allocation13 + $0x32]]
        %v5019 = vstv %s5018
        %v5020 = vmul.f32 %v5019, %v4994
        %v5021 = vmul.f32 %v5019, %v4995
        %v5022 = vmul.f32 %v5019, %v4996
        %v5023 = vmul.f32 %v5019, %v4997
        %v5024 = vadd.f32 %v4964, %v5020
        %v5025 = vadd.f32 %v4965, %v5021
        %v5026 = vadd.f32 %v4966, %v5022
        %v5027 = vadd.f32 %v4967, %v5023
        %s5028 = sld [smem:[#allocation13 + $0x33]]
        %v5029 = vstv %s5028
        %v5030 = vmul.f32 %v5029, %v4994
        %v5031 = vmul.f32 %v5029, %v4995
        %v5032 = vmul.f32 %v5029, %v4996
        %v5033 = vmul.f32 %v5029, %v4997
        %v5034 = vadd.f32 %v4990, %v5030
        %v5035 = vadd.f32 %v4991, %v5031
        %v5036 = vadd.f32 %v4992, %v5032
        %v5037 = vadd.f32 %v4993, %v5033
        %s5038 = sld [smem:[#allocation13 + $0x40]]
        %v5039 = vstv %s5038
        %v5040 = vmul.f32 %v5039, %v4994
        %v5041 = vmul.f32 %v5039, %v4995
        %v5042 = vmul.f32 %v5039, %v4996
        %v5043 = vmul.f32 %v5039, %v4997
        %5048 = vrot.lane.b32.xlu0 %v5040, 127
        %v5049 = vpop.permute.xlu0 %5048
        %5050 = vrot.lane.b32.xlu0 %v5041, 127
        %v5051 = vpop.permute.xlu0 %5050
        %5052 = vrot.lane.b32.xlu0 %v5042, 127
        %v5053 = vpop.permute.xlu0 %5052
        %5054 = vrot.lane.b32.xlu0 %v5043, 127
        %v5055 = vpop.permute.xlu0 %5054
        %v5060 = vadd.f32 %v5004, %v5049
        %v5061 = vadd.f32 %v5005, %v5051
        %v5062 = vadd.f32 %v5006, %v5053
        %v5063 = vadd.f32 %v5007, %v5055
        %s5064 = sld [smem:[#allocation13 + $0x41]]
        %v5065 = vstv %s5064
        %v5066 = vmul.f32 %v5065, %v4994
        %v5067 = vmul.f32 %v5065, %v4995
        %v5068 = vmul.f32 %v5065, %v4996
        %v5069 = vmul.f32 %v5065, %v4997
        %5074 = vrot.lane.b32.xlu0 %v5066, 127
        %v5075 = vpop.permute.xlu0 %5074
        %5076 = vrot.lane.b32.xlu0 %v5067, 127
        %v5077 = vpop.permute.xlu0 %5076
        %5078 = vrot.lane.b32.xlu0 %v5068, 127
        %v5079 = vpop.permute.xlu0 %5078
        %5080 = vrot.lane.b32.xlu0 %v5069, 127
        %v5081 = vpop.permute.xlu0 %5080
        %v5086 = vadd.f32 %v5014, %v5075
        %v5087 = vadd.f32 %v5015, %v5077
        %v5088 = vadd.f32 %v5016, %v5079
        %v5089 = vadd.f32 %v5017, %v5081
        %s5090 = sld [smem:[#allocation13 + $0x42]]
        %v5091 = vstv %s5090
        %v5092 = vmul.f32 %v5091, %v4994
        %v5093 = vmul.f32 %v5091, %v4995
        %v5094 = vmul.f32 %v5091, %v4996
        %v5095 = vmul.f32 %v5091, %v4997
        %5100 = vrot.lane.b32.xlu0 %v5092, 127
        %v5101 = vpop.permute.xlu0 %5100
        %5102 = vrot.lane.b32.xlu0 %v5093, 127
        %v5103 = vpop.permute.xlu0 %5102
        %5104 = vrot.lane.b32.xlu0 %v5094, 127
        %v5105 = vpop.permute.xlu0 %5104
        %5106 = vrot.lane.b32.xlu0 %v5095, 127
        %v5107 = vpop.permute.xlu0 %5106
        %v5112 = vadd.f32 %v5024, %v5101
        %v5113 = vadd.f32 %v5025, %v5103
        %v5114 = vadd.f32 %v5026, %v5105
        %v5115 = vadd.f32 %v5027, %v5107
        %s5116 = sld [smem:[#allocation13 + $0x43]]
        %v5117 = vstv %s5116
        %v5118 = vmul.f32 %v5117, %v4994
        %v5119 = vmul.f32 %v5117, %v4995
        %v5120 = vmul.f32 %v5117, %v4996
        %v5121 = vmul.f32 %v5117, %v4997
        %5126 = vrot.lane.b32.xlu0 %v5118, 127
        %v5127 = vpop.permute.xlu0 %5126
        %5128 = vrot.lane.b32.xlu0 %v5119, 127
        %v5129 = vpop.permute.xlu0 %5128
        %5130 = vrot.lane.b32.xlu0 %v5120, 127
        %v5131 = vpop.permute.xlu0 %5130
        %5132 = vrot.lane.b32.xlu0 %v5121, 127
        %v5133 = vpop.permute.xlu0 %5132
        %v5138 = vadd.f32 %v5034, %v5127
        %v5139 = vadd.f32 %v5035, %v5129
        %v5140 = vadd.f32 %v5036, %v5131
        %v5141 = vadd.f32 %v5037, %v5133
        %s5142 = sld [smem:[#allocation13 + $0x50]]
        %v5143 = vstv %s5142
        %v5144 = vmul.f32 %v5143, %v4994
        %v5145 = vmul.f32 %v5143, %v4995
        %v5146 = vmul.f32 %v5143, %v4996
        %v5147 = vmul.f32 %v5143, %v4997
        %5152 = vrot.lane.b32.xlu0 %v5144, 126
        %v5153 = vpop.permute.xlu0 %5152
        %5154 = vrot.lane.b32.xlu0 %v5145, 126
        %v5155 = vpop.permute.xlu0 %5154
        %5156 = vrot.lane.b32.xlu0 %v5146, 126
        %v5157 = vpop.permute.xlu0 %5156
        %5158 = vrot.lane.b32.xlu0 %v5147, 126
        %v5159 = vpop.permute.xlu0 %5158
        %v5164 = vadd.f32 %v5060, %v5153
        %v5165 = vadd.f32 %v5061, %v5155
        %v5166 = vadd.f32 %v5062, %v5157
        %v5167 = vadd.f32 %v5063, %v5159
        %s5168 = sld [smem:[#allocation13 + $0x51]]
        %v5169 = vstv %s5168
        %v5170 = vmul.f32 %v5169, %v4994
        %v5171 = vmul.f32 %v5169, %v4995
        %v5172 = vmul.f32 %v5169, %v4996
        %v5173 = vmul.f32 %v5169, %v4997
        %5178 = vrot.lane.b32.xlu0 %v5170, 126
        %v5179 = vpop.permute.xlu0 %5178
        %5180 = vrot.lane.b32.xlu0 %v5171, 126
        %v5181 = vpop.permute.xlu0 %5180
        %5182 = vrot.lane.b32.xlu0 %v5172, 126
        %v5183 = vpop.permute.xlu0 %5182
        %5184 = vrot.lane.b32.xlu0 %v5173, 126
        %v5185 = vpop.permute.xlu0 %5184
        %v5190 = vadd.f32 %v5086, %v5179
        %v5191 = vadd.f32 %v5087, %v5181
        %v5192 = vadd.f32 %v5088, %v5183
        %v5193 = vadd.f32 %v5089, %v5185
        %s5194 = sld [smem:[#allocation13 + $0x52]]
        %v5195 = vstv %s5194
        %v5196 = vmul.f32 %v5195, %v4994
        %v5197 = vmul.f32 %v5195, %v4995
        %v5198 = vmul.f32 %v5195, %v4996
        %v5199 = vmul.f32 %v5195, %v4997
        %5204 = vrot.lane.b32.xlu0 %v5196, 126
        %v5205 = vpop.permute.xlu0 %5204
        %5206 = vrot.lane.b32.xlu0 %v5197, 126
        %v5207 = vpop.permute.xlu0 %5206
        %5208 = vrot.lane.b32.xlu0 %v5198, 126
        %v5209 = vpop.permute.xlu0 %5208
        %5210 = vrot.lane.b32.xlu0 %v5199, 126
        %v5211 = vpop.permute.xlu0 %5210
        %v5216 = vadd.f32 %v5112, %v5205
        %v5217 = vadd.f32 %v5113, %v5207
        %v5218 = vadd.f32 %v5114, %v5209
        %v5219 = vadd.f32 %v5115, %v5211
        %s5220 = sld [smem:[#allocation13 + $0x53]]
        %v5221 = vstv %s5220
        %v5222 = vmul.f32 %v5221, %v4994
        %v5223 = vmul.f32 %v5221, %v4995
        %v5224 = vmul.f32 %v5221, %v4996
        %v5225 = vmul.f32 %v5221, %v4997
        %5230 = vrot.lane.b32.xlu0 %v5222, 126
        %v5231 = vpop.permute.xlu0 %5230
        %5232 = vrot.lane.b32.xlu0 %v5223, 126
        %v5233 = vpop.permute.xlu0 %5232
        %5234 = vrot.lane.b32.xlu0 %v5224, 126
        %v5235 = vpop.permute.xlu0 %5234
        %5236 = vrot.lane.b32.xlu0 %v5225, 126
        %v5237 = vpop.permute.xlu0 %5236
        %v5242 = vadd.f32 %v5138, %v5231
        %v5243 = vadd.f32 %v5139, %v5233
        %v5244 = vadd.f32 %v5140, %v5235
        %v5245 = vadd.f32 %v5141, %v5237
        %v5246 = vld [vmem:[#allocation3 + $0x2] sm:$0xff]
        %v5247 = vld [vmem:[#allocation3 + $0xa] sm:$0xff]
        %v5248 = vld [vmem:[#allocation3 + $0x12] sm:$0xff]
        %v5249 = vld [vmem:[#allocation3 + $0x1a] sm:$0xff]
        %s5250 = sld [smem:[#allocation13 + $0x60]]
        %v5251 = vstv %s5250
        %v5252 = vmul.f32 %v5251, %v5246
        %v5253 = vmul.f32 %v5251, %v5247
        %v5254 = vmul.f32 %v5251, %v5248
        %v5255 = vmul.f32 %v5251, %v5249
        %v5256 = vadd.f32 %v5164, %v5252
        %v5257 = vadd.f32 %v5165, %v5253
        %v5258 = vadd.f32 %v5166, %v5254
        %v5259 = vadd.f32 %v5167, %v5255
        %s5260 = sld [smem:[#allocation13 + $0x61]]
        %v5261 = vstv %s5260
        %v5262 = vmul.f32 %v5261, %v5246
        %v5263 = vmul.f32 %v5261, %v5247
        %v5264 = vmul.f32 %v5261, %v5248
        %v5265 = vmul.f32 %v5261, %v5249
        %v5266 = vadd.f32 %v5190, %v5262
        %v5267 = vadd.f32 %v5191, %v5263
        %v5268 = vadd.f32 %v5192, %v5264
        %v5269 = vadd.f32 %v5193, %v5265
        %s5270 = sld [smem:[#allocation13 + $0x62]]
        %v5271 = vstv %s5270
        %v5272 = vmul.f32 %v5271, %v5246
        %v5273 = vmul.f32 %v5271, %v5247
        %v5274 = vmul.f32 %v5271, %v5248
        %v5275 = vmul.f32 %v5271, %v5249
        %v5276 = vadd.f32 %v5216, %v5272
        %v5277 = vadd.f32 %v5217, %v5273
        %v5278 = vadd.f32 %v5218, %v5274
        %v5279 = vadd.f32 %v5219, %v5275
        %s5280 = sld [smem:[#allocation13 + $0x63]]
        %v5281 = vstv %s5280
        %v5282 = vmul.f32 %v5281, %v5246
        %v5283 = vmul.f32 %v5281, %v5247
        %v5284 = vmul.f32 %v5281, %v5248
        %v5285 = vmul.f32 %v5281, %v5249
        %v5286 = vadd.f32 %v5242, %v5282
        %v5287 = vadd.f32 %v5243, %v5283
        %v5288 = vadd.f32 %v5244, %v5284
        %v5289 = vadd.f32 %v5245, %v5285
        %s5290 = sld [smem:[#allocation13 + $0x70]]
        %v5291 = vstv %s5290
        %v5292 = vmul.f32 %v5291, %v5246
        %v5293 = vmul.f32 %v5291, %v5247
        %v5294 = vmul.f32 %v5291, %v5248
        %v5295 = vmul.f32 %v5291, %v5249
        %5300 = vrot.lane.b32.xlu0 %v5292, 127
        %v5301 = vpop.permute.xlu0 %5300
        %5302 = vrot.lane.b32.xlu0 %v5293, 127
        %v5303 = vpop.permute.xlu0 %5302
        %5304 = vrot.lane.b32.xlu0 %v5294, 127
        %v5305 = vpop.permute.xlu0 %5304
        %5306 = vrot.lane.b32.xlu0 %v5295, 127
        %v5307 = vpop.permute.xlu0 %5306
        %v5312 = vadd.f32 %v5256, %v5301
        %v5313 = vadd.f32 %v5257, %v5303
        %v5314 = vadd.f32 %v5258, %v5305
        %v5315 = vadd.f32 %v5259, %v5307
        %s5316 = sld [smem:[#allocation13 + $0x71]]
        %v5317 = vstv %s5316
        %v5318 = vmul.f32 %v5317, %v5246
        %v5319 = vmul.f32 %v5317, %v5247
        %v5320 = vmul.f32 %v5317, %v5248
        %v5321 = vmul.f32 %v5317, %v5249
        %5326 = vrot.lane.b32.xlu0 %v5318, 127
        %v5327 = vpop.permute.xlu0 %5326
        %5328 = vrot.lane.b32.xlu0 %v5319, 127
        %v5329 = vpop.permute.xlu0 %5328
        %5330 = vrot.lane.b32.xlu0 %v5320, 127
        %v5331 = vpop.permute.xlu0 %5330
        %5332 = vrot.lane.b32.xlu0 %v5321, 127
        %v5333 = vpop.permute.xlu0 %5332
        %v5338 = vadd.f32 %v5266, %v5327
        %v5339 = vadd.f32 %v5267, %v5329
        %v5340 = vadd.f32 %v5268, %v5331
        %v5341 = vadd.f32 %v5269, %v5333
        %s5342 = sld [smem:[#allocation13 + $0x72]]
        %v5343 = vstv %s5342
        %v5344 = vmul.f32 %v5343, %v5246
        %v5345 = vmul.f32 %v5343, %v5247
        %v5346 = vmul.f32 %v5343, %v5248
        %v5347 = vmul.f32 %v5343, %v5249
        %5352 = vrot.lane.b32.xlu0 %v5344, 127
        %v5353 = vpop.permute.xlu0 %5352
        %5354 = vrot.lane.b32.xlu0 %v5345, 127
        %v5355 = vpop.permute.xlu0 %5354
        %5356 = vrot.lane.b32.xlu0 %v5346, 127
        %v5357 = vpop.permute.xlu0 %5356
        %5358 = vrot.lane.b32.xlu0 %v5347, 127
        %v5359 = vpop.permute.xlu0 %5358
        %v5364 = vadd.f32 %v5276, %v5353
        %v5365 = vadd.f32 %v5277, %v5355
        %v5366 = vadd.f32 %v5278, %v5357
        %v5367 = vadd.f32 %v5279, %v5359
        %s5368 = sld [smem:[#allocation13 + $0x73]]
        %v5369 = vstv %s5368
        %v5370 = vmul.f32 %v5369, %v5246
        %v5371 = vmul.f32 %v5369, %v5247
        %v5372 = vmul.f32 %v5369, %v5248
        %v5373 = vmul.f32 %v5369, %v5249
        %5378 = vrot.lane.b32.xlu0 %v5370, 127
        %v5379 = vpop.permute.xlu0 %5378
        %5380 = vrot.lane.b32.xlu0 %v5371, 127
        %v5381 = vpop.permute.xlu0 %5380
        %5382 = vrot.lane.b32.xlu0 %v5372, 127
        %v5383 = vpop.permute.xlu0 %5382
        %5384 = vrot.lane.b32.xlu0 %v5373, 127
        %v5385 = vpop.permute.xlu0 %5384
        %v5390 = vadd.f32 %v5286, %v5379
        %v5391 = vadd.f32 %v5287, %v5381
        %v5392 = vadd.f32 %v5288, %v5383
        %v5393 = vadd.f32 %v5289, %v5385
        %s5394 = sld [smem:[#allocation13 + $0x80]]
        %v5395 = vstv %s5394
        %v5396 = vmul.f32 %v5395, %v5246
        %v5397 = vmul.f32 %v5395, %v5247
        %v5398 = vmul.f32 %v5395, %v5248
        %v5399 = vmul.f32 %v5395, %v5249
        %5404 = vrot.lane.b32.xlu0 %v5396, 126
        %v5405 = vpop.permute.xlu0 %5404
        %5406 = vrot.lane.b32.xlu0 %v5397, 126
        %v5407 = vpop.permute.xlu0 %5406
        %5408 = vrot.lane.b32.xlu0 %v5398, 126
        %v5409 = vpop.permute.xlu0 %5408
        %5410 = vrot.lane.b32.xlu0 %v5399, 126
        %v5411 = vpop.permute.xlu0 %5410
        %v5416 = vadd.f32 %v5312, %v5405
        %v5417 = vadd.f32 %v5313, %v5407
        %v5418 = vadd.f32 %v5314, %v5409
        %v5419 = vadd.f32 %v5315, %v5411
        %s5420 = sld [smem:[#allocation13 + $0x81]]
        %v5421 = vstv %s5420
        %v5422 = vmul.f32 %v5421, %v5246
        %v5423 = vmul.f32 %v5421, %v5247
        %v5424 = vmul.f32 %v5421, %v5248
        %v5425 = vmul.f32 %v5421, %v5249
        %5430 = vrot.lane.b32.xlu0 %v5422, 126
        %v5431 = vpop.permute.xlu0 %5430
        %5432 = vrot.lane.b32.xlu0 %v5423, 126
        %v5433 = vpop.permute.xlu0 %5432
        %5434 = vrot.lane.b32.xlu0 %v5424, 126
        %v5435 = vpop.permute.xlu0 %5434
        %5436 = vrot.lane.b32.xlu0 %v5425, 126
        %v5437 = vpop.permute.xlu0 %5436
        %v5442 = vadd.f32 %v5338, %v5431
        %v5443 = vadd.f32 %v5339, %v5433
        %v5444 = vadd.f32 %v5340, %v5435
        %v5445 = vadd.f32 %v5341, %v5437
        %s5446 = sld [smem:[#allocation13 + $0x82]]
        %v5447 = vstv %s5446
        %v5448 = vmul.f32 %v5447, %v5246
        %v5449 = vmul.f32 %v5447, %v5247
        %v5450 = vmul.f32 %v5447, %v5248
        %v5451 = vmul.f32 %v5447, %v5249
        %5456 = vrot.lane.b32.xlu0 %v5448, 126
        %v5457 = vpop.permute.xlu0 %5456
        %5458 = vrot.lane.b32.xlu0 %v5449, 126
        %v5459 = vpop.permute.xlu0 %5458
        %5460 = vrot.lane.b32.xlu0 %v5450, 126
        %v5461 = vpop.permute.xlu0 %5460
        %5462 = vrot.lane.b32.xlu0 %v5451, 126
        %v5463 = vpop.permute.xlu0 %5462
        %v5468 = vadd.f32 %v5364, %v5457
        %v5469 = vadd.f32 %v5365, %v5459
        %v5470 = vadd.f32 %v5366, %v5461
        %v5471 = vadd.f32 %v5367, %v5463
        %s5472 = sld [smem:[#allocation13 + $0x83]]
        %v5473 = vstv %s5472
        %v5474 = vmul.f32 %v5473, %v5246
        %v5475 = vmul.f32 %v5473, %v5247
        %v5476 = vmul.f32 %v5473, %v5248
        %v5477 = vmul.f32 %v5473, %v5249
        %5482 = vrot.lane.b32.xlu0 %v5474, 126
        %v5483 = vpop.permute.xlu0 %5482
        %5484 = vrot.lane.b32.xlu0 %v5475, 126
        %v5485 = vpop.permute.xlu0 %5484
        %5486 = vrot.lane.b32.xlu0 %v5476, 126
        %v5487 = vpop.permute.xlu0 %5486
        %5488 = vrot.lane.b32.xlu0 %v5477, 126
        %v5489 = vpop.permute.xlu0 %5488
        %v5494 = vadd.f32 %v5390, %v5483
        %v5495 = vadd.f32 %v5391, %v5485
        %v5496 = vadd.f32 %v5392, %v5487
        %v5497 = vadd.f32 %v5393, %v5489
        %v5498 = vld [vmem:[%s4535] sm:$0xff]
        %v5499 = vld [vmem:[%s4535 + $0x8] sm:$0xff]
        %v5500 = vld [vmem:[%s4535 + $0x10] sm:$0xff]
        %v5501 = vld [vmem:[%s4535 + $0x18] sm:$0xff]
        %s5502 = sld [smem:[#allocation13 + $0x4]]
        %v5503 = vstv %s5502
        %v5504 = vmul.f32 %v5503, %v5498
        %v5505 = vmul.f32 %v5503, %v5499
        %v5506 = vmul.f32 %v5503, %v5500
        %v5507 = vmul.f32 %v5503, %v5501
        %v5508 = vadd.f32 %v5416, %v5504
        %v5509 = vadd.f32 %v5417, %v5505
        %v5510 = vadd.f32 %v5418, %v5506
        %v5511 = vadd.f32 %v5419, %v5507
        %s5512 = sld [smem:[#allocation13 + $0x5]]
        %v5513 = vstv %s5512
        %v5514 = vmul.f32 %v5513, %v5498
        %v5515 = vmul.f32 %v5513, %v5499
        %v5516 = vmul.f32 %v5513, %v5500
        %v5517 = vmul.f32 %v5513, %v5501
        %v5518 = vadd.f32 %v5442, %v5514
        %v5519 = vadd.f32 %v5443, %v5515
        %v5520 = vadd.f32 %v5444, %v5516
        %v5521 = vadd.f32 %v5445, %v5517
        %s5522 = sld [smem:[#allocation13 + $0x6]]
        %v5523 = vstv %s5522
        %v5524 = vmul.f32 %v5523, %v5498
        %v5525 = vmul.f32 %v5523, %v5499
        %v5526 = vmul.f32 %v5523, %v5500
        %v5527 = vmul.f32 %v5523, %v5501
        %v5528 = vadd.f32 %v5468, %v5524
        %v5529 = vadd.f32 %v5469, %v5525
        %v5530 = vadd.f32 %v5470, %v5526
        %v5531 = vadd.f32 %v5471, %v5527
        %s5532 = sld [smem:[#allocation13 + $0x7]]
        %v5533 = vstv %s5532
        %v5534 = vmul.f32 %v5533, %v5498
        %v5535 = vmul.f32 %v5533, %v5499
        %v5536 = vmul.f32 %v5533, %v5500
        %v5537 = vmul.f32 %v5533, %v5501
        %v5538 = vadd.f32 %v5494, %v5534
        %v5539 = vadd.f32 %v5495, %v5535
        %v5540 = vadd.f32 %v5496, %v5536
        %v5541 = vadd.f32 %v5497, %v5537
        %s5542 = sld [smem:[#allocation13 + $0x14]]
        %v5543 = vstv %s5542
        %v5544 = vmul.f32 %v5543, %v5498
        %v5545 = vmul.f32 %v5543, %v5499
        %v5546 = vmul.f32 %v5543, %v5500
        %v5547 = vmul.f32 %v5543, %v5501
        %5552 = vrot.lane.b32.xlu0 %v5544, 127
        %v5553 = vpop.permute.xlu0 %5552
        %5554 = vrot.lane.b32.xlu0 %v5545, 127
        %v5555 = vpop.permute.xlu0 %5554
        %5556 = vrot.lane.b32.xlu0 %v5546, 127
        %v5557 = vpop.permute.xlu0 %5556
        %5558 = vrot.lane.b32.xlu0 %v5547, 127
        %v5559 = vpop.permute.xlu0 %5558
        %v5564 = vadd.f32 %v5508, %v5553
        %v5565 = vadd.f32 %v5509, %v5555
        %v5566 = vadd.f32 %v5510, %v5557
        %v5567 = vadd.f32 %v5511, %v5559
        %s5568 = sld [smem:[#allocation13 + $0x15]]
        %v5569 = vstv %s5568
        %v5570 = vmul.f32 %v5569, %v5498
        %v5571 = vmul.f32 %v5569, %v5499
        %v5572 = vmul.f32 %v5569, %v5500
        %v5573 = vmul.f32 %v5569, %v5501
        %5578 = vrot.lane.b32.xlu0 %v5570, 127
        %v5579 = vpop.permute.xlu0 %5578
        %5580 = vrot.lane.b32.xlu0 %v5571, 127
        %v5581 = vpop.permute.xlu0 %5580
        %5582 = vrot.lane.b32.xlu0 %v5572, 127
        %v5583 = vpop.permute.xlu0 %5582
        %5584 = vrot.lane.b32.xlu0 %v5573, 127
        %v5585 = vpop.permute.xlu0 %5584
        %v5590 = vadd.f32 %v5518, %v5579
        %v5591 = vadd.f32 %v5519, %v5581
        %v5592 = vadd.f32 %v5520, %v5583
        %v5593 = vadd.f32 %v5521, %v5585
        %s5594 = sld [smem:[#allocation13 + $0x16]]
        %v5595 = vstv %s5594
        %v5596 = vmul.f32 %v5595, %v5498
        %v5597 = vmul.f32 %v5595, %v5499
        %v5598 = vmul.f32 %v5595, %v5500
        %v5599 = vmul.f32 %v5595, %v5501
        %5604 = vrot.lane.b32.xlu0 %v5596, 127
        %v5605 = vpop.permute.xlu0 %5604
        %5606 = vrot.lane.b32.xlu0 %v5597, 127
        %v5607 = vpop.permute.xlu0 %5606
        %5608 = vrot.lane.b32.xlu0 %v5598, 127
        %v5609 = vpop.permute.xlu0 %5608
        %5610 = vrot.lane.b32.xlu0 %v5599, 127
        %v5611 = vpop.permute.xlu0 %5610
        %v5616 = vadd.f32 %v5528, %v5605
        %v5617 = vadd.f32 %v5529, %v5607
        %v5618 = vadd.f32 %v5530, %v5609
        %v5619 = vadd.f32 %v5531, %v5611
        %s5620 = sld [smem:[#allocation13 + $0x17]]
        %v5621 = vstv %s5620
        %v5622 = vmul.f32 %v5621, %v5498
        %v5623 = vmul.f32 %v5621, %v5499
        %v5624 = vmul.f32 %v5621, %v5500
        %v5625 = vmul.f32 %v5621, %v5501
        %5630 = vrot.lane.b32.xlu0 %v5622, 127
        %v5631 = vpop.permute.xlu0 %5630
        %5632 = vrot.lane.b32.xlu0 %v5623, 127
        %v5633 = vpop.permute.xlu0 %5632
        %5634 = vrot.lane.b32.xlu0 %v5624, 127
        %v5635 = vpop.permute.xlu0 %5634
        %5636 = vrot.lane.b32.xlu0 %v5625, 127
        %v5637 = vpop.permute.xlu0 %5636
        %v5642 = vadd.f32 %v5538, %v5631
        %v5643 = vadd.f32 %v5539, %v5633
        %v5644 = vadd.f32 %v5540, %v5635
        %v5645 = vadd.f32 %v5541, %v5637
        %s5646 = sld [smem:[#allocation13 + $0x24]]
        %v5647 = vstv %s5646
        %v5648 = vmul.f32 %v5647, %v5498
        %v5649 = vmul.f32 %v5647, %v5499
        %v5650 = vmul.f32 %v5647, %v5500
        %v5651 = vmul.f32 %v5647, %v5501
        %5656 = vrot.lane.b32.xlu0 %v5648, 126
        %v5657 = vpop.permute.xlu0 %5656
        %5658 = vrot.lane.b32.xlu0 %v5649, 126
        %v5659 = vpop.permute.xlu0 %5658
        %5660 = vrot.lane.b32.xlu0 %v5650, 126
        %v5661 = vpop.permute.xlu0 %5660
        %5662 = vrot.lane.b32.xlu0 %v5651, 126
        %v5663 = vpop.permute.xlu0 %5662
        %v5668 = vadd.f32 %v5564, %v5657
        %v5669 = vadd.f32 %v5565, %v5659
        %v5670 = vadd.f32 %v5566, %v5661
        %v5671 = vadd.f32 %v5567, %v5663
        %s5672 = sld [smem:[#allocation13 + $0x25]]
        %v5673 = vstv %s5672
        %v5674 = vmul.f32 %v5673, %v5498
        %v5675 = vmul.f32 %v5673, %v5499
        %v5676 = vmul.f32 %v5673, %v5500
        %v5677 = vmul.f32 %v5673, %v5501
        %5682 = vrot.lane.b32.xlu0 %v5674, 126
        %v5683 = vpop.permute.xlu0 %5682
        %5684 = vrot.lane.b32.xlu0 %v5675, 126
        %v5685 = vpop.permute.xlu0 %5684
        %5686 = vrot.lane.b32.xlu0 %v5676, 126
        %v5687 = vpop.permute.xlu0 %5686
        %5688 = vrot.lane.b32.xlu0 %v5677, 126
        %v5689 = vpop.permute.xlu0 %5688
        %v5694 = vadd.f32 %v5590, %v5683
        %v5695 = vadd.f32 %v5591, %v5685
        %v5696 = vadd.f32 %v5592, %v5687
        %v5697 = vadd.f32 %v5593, %v5689
        %s5698 = sld [smem:[#allocation13 + $0x26]]
        %v5699 = vstv %s5698
        %v5700 = vmul.f32 %v5699, %v5498
        %v5701 = vmul.f32 %v5699, %v5499
        %v5702 = vmul.f32 %v5699, %v5500
        %v5703 = vmul.f32 %v5699, %v5501
        %5708 = vrot.lane.b32.xlu0 %v5700, 126
        %v5709 = vpop.permute.xlu0 %5708
        %5710 = vrot.lane.b32.xlu0 %v5701, 126
        %v5711 = vpop.permute.xlu0 %5710
        %5712 = vrot.lane.b32.xlu0 %v5702, 126
        %v5713 = vpop.permute.xlu0 %5712
        %5714 = vrot.lane.b32.xlu0 %v5703, 126
        %v5715 = vpop.permute.xlu0 %5714
        %v5720 = vadd.f32 %v5616, %v5709
        %v5721 = vadd.f32 %v5617, %v5711
        %v5722 = vadd.f32 %v5618, %v5713
        %v5723 = vadd.f32 %v5619, %v5715
        %s5724 = sld [smem:[#allocation13 + $0x27]]
        %v5725 = vstv %s5724
        %v5726 = vmul.f32 %v5725, %v5498
        %v5727 = vmul.f32 %v5725, %v5499
        %v5728 = vmul.f32 %v5725, %v5500
        %v5729 = vmul.f32 %v5725, %v5501
        %5734 = vrot.lane.b32.xlu0 %v5726, 126
        %v5735 = vpop.permute.xlu0 %5734
        %5736 = vrot.lane.b32.xlu0 %v5727, 126
        %v5737 = vpop.permute.xlu0 %5736
        %5738 = vrot.lane.b32.xlu0 %v5728, 126
        %v5739 = vpop.permute.xlu0 %5738
        %5740 = vrot.lane.b32.xlu0 %v5729, 126
        %v5741 = vpop.permute.xlu0 %5740
        %v5746 = vadd.f32 %v5642, %v5735
        %v5747 = vadd.f32 %v5643, %v5737
        %v5748 = vadd.f32 %v5644, %v5739
        %v5749 = vadd.f32 %v5645, %v5741
        %v5750 = vld [vmem:[%s4535 + $0x1] sm:$0xff]
        %v5751 = vld [vmem:[%s4535 + $0x9] sm:$0xff]
        %v5752 = vld [vmem:[%s4535 + $0x11] sm:$0xff]
        %v5753 = vld [vmem:[%s4535 + $0x19] sm:$0xff]
        %s5754 = sld [smem:[#allocation13 + $0x34]]
        %v5755 = vstv %s5754
        %v5756 = vmul.f32 %v5755, %v5750
        %v5757 = vmul.f32 %v5755, %v5751
        %v5758 = vmul.f32 %v5755, %v5752
        %v5759 = vmul.f32 %v5755, %v5753
        %v5760 = vadd.f32 %v5668, %v5756
        %v5761 = vadd.f32 %v5669, %v5757
        %v5762 = vadd.f32 %v5670, %v5758
        %v5763 = vadd.f32 %v5671, %v5759
        %s5764 = sld [smem:[#allocation13 + $0x35]]
        %v5765 = vstv %s5764
        %v5766 = vmul.f32 %v5765, %v5750
        %v5767 = vmul.f32 %v5765, %v5751
        %v5768 = vmul.f32 %v5765, %v5752
        %v5769 = vmul.f32 %v5765, %v5753
        %v5770 = vadd.f32 %v5694, %v5766
        %v5771 = vadd.f32 %v5695, %v5767
        %v5772 = vadd.f32 %v5696, %v5768
        %v5773 = vadd.f32 %v5697, %v5769
        %s5774 = sld [smem:[#allocation13 + $0x36]]
        %v5775 = vstv %s5774
        %v5776 = vmul.f32 %v5775, %v5750
        %v5777 = vmul.f32 %v5775, %v5751
        %v5778 = vmul.f32 %v5775, %v5752
        %v5779 = vmul.f32 %v5775, %v5753
        %v5780 = vadd.f32 %v5720, %v5776
        %v5781 = vadd.f32 %v5721, %v5777
        %v5782 = vadd.f32 %v5722, %v5778
        %v5783 = vadd.f32 %v5723, %v5779
        %s5784 = sld [smem:[#allocation13 + $0x37]]
        %v5785 = vstv %s5784
        %v5786 = vmul.f32 %v5785, %v5750
        %v5787 = vmul.f32 %v5785, %v5751
        %v5788 = vmul.f32 %v5785, %v5752
        %v5789 = vmul.f32 %v5785, %v5753
        %v5790 = vadd.f32 %v5746, %v5786
        %v5791 = vadd.f32 %v5747, %v5787
        %v5792 = vadd.f32 %v5748, %v5788
        %v5793 = vadd.f32 %v5749, %v5789
        %s5794 = sld [smem:[#allocation13 + $0x44]]
        %v5795 = vstv %s5794
        %v5796 = vmul.f32 %v5795, %v5750
        %v5797 = vmul.f32 %v5795, %v5751
        %v5798 = vmul.f32 %v5795, %v5752
        %v5799 = vmul.f32 %v5795, %v5753
        %5804 = vrot.lane.b32.xlu0 %v5796, 127
        %v5805 = vpop.permute.xlu0 %5804
        %5806 = vrot.lane.b32.xlu0 %v5797, 127
        %v5807 = vpop.permute.xlu0 %5806
        %5808 = vrot.lane.b32.xlu0 %v5798, 127
        %v5809 = vpop.permute.xlu0 %5808
        %5810 = vrot.lane.b32.xlu0 %v5799, 127
        %v5811 = vpop.permute.xlu0 %5810
        %v5816 = vadd.f32 %v5760, %v5805
        %v5817 = vadd.f32 %v5761, %v5807
        %v5818 = vadd.f32 %v5762, %v5809
        %v5819 = vadd.f32 %v5763, %v5811
        %s5820 = sld [smem:[#allocation13 + $0x45]]
        %v5821 = vstv %s5820
        %v5822 = vmul.f32 %v5821, %v5750
        %v5823 = vmul.f32 %v5821, %v5751
        %v5824 = vmul.f32 %v5821, %v5752
        %v5825 = vmul.f32 %v5821, %v5753
        %5830 = vrot.lane.b32.xlu0 %v5822, 127
        %v5831 = vpop.permute.xlu0 %5830
        %5832 = vrot.lane.b32.xlu0 %v5823, 127
        %v5833 = vpop.permute.xlu0 %5832
        %5834 = vrot.lane.b32.xlu0 %v5824, 127
        %v5835 = vpop.permute.xlu0 %5834
        %5836 = vrot.lane.b32.xlu0 %v5825, 127
        %v5837 = vpop.permute.xlu0 %5836
        %v5842 = vadd.f32 %v5770, %v5831
        %v5843 = vadd.f32 %v5771, %v5833
        %v5844 = vadd.f32 %v5772, %v5835
        %v5845 = vadd.f32 %v5773, %v5837
        %s5846 = sld [smem:[#allocation13 + $0x46]]
        %v5847 = vstv %s5846
        %v5848 = vmul.f32 %v5847, %v5750
        %v5849 = vmul.f32 %v5847, %v5751
        %v5850 = vmul.f32 %v5847, %v5752
        %v5851 = vmul.f32 %v5847, %v5753
        %5856 = vrot.lane.b32.xlu0 %v5848, 127
        %v5857 = vpop.permute.xlu0 %5856
        %5858 = vrot.lane.b32.xlu0 %v5849, 127
        %v5859 = vpop.permute.xlu0 %5858
        %5860 = vrot.lane.b32.xlu0 %v5850, 127
        %v5861 = vpop.permute.xlu0 %5860
        %5862 = vrot.lane.b32.xlu0 %v5851, 127
        %v5863 = vpop.permute.xlu0 %5862
        %v5868 = vadd.f32 %v5780, %v5857
        %v5869 = vadd.f32 %v5781, %v5859
        %v5870 = vadd.f32 %v5782, %v5861
        %v5871 = vadd.f32 %v5783, %v5863
        %s5872 = sld [smem:[#allocation13 + $0x47]]
        %v5873 = vstv %s5872
        %v5874 = vmul.f32 %v5873, %v5750
        %v5875 = vmul.f32 %v5873, %v5751
        %v5876 = vmul.f32 %v5873, %v5752
        %v5877 = vmul.f32 %v5873, %v5753
        %5882 = vrot.lane.b32.xlu0 %v5874, 127
        %v5883 = vpop.permute.xlu0 %5882
        %5884 = vrot.lane.b32.xlu0 %v5875, 127
        %v5885 = vpop.permute.xlu0 %5884
        %5886 = vrot.lane.b32.xlu0 %v5876, 127
        %v5887 = vpop.permute.xlu0 %5886
        %5888 = vrot.lane.b32.xlu0 %v5877, 127
        %v5889 = vpop.permute.xlu0 %5888
        %v5894 = vadd.f32 %v5790, %v5883
        %v5895 = vadd.f32 %v5791, %v5885
        %v5896 = vadd.f32 %v5792, %v5887
        %v5897 = vadd.f32 %v5793, %v5889
        %s5898 = sld [smem:[#allocation13 + $0x54]]
        %v5899 = vstv %s5898
        %v5900 = vmul.f32 %v5899, %v5750
        %v5901 = vmul.f32 %v5899, %v5751
        %v5902 = vmul.f32 %v5899, %v5752
        %v5903 = vmul.f32 %v5899, %v5753
        %5908 = vrot.lane.b32.xlu0 %v5900, 126
        %v5909 = vpop.permute.xlu0 %5908
        %5910 = vrot.lane.b32.xlu0 %v5901, 126
        %v5911 = vpop.permute.xlu0 %5910
        %5912 = vrot.lane.b32.xlu0 %v5902, 126
        %v5913 = vpop.permute.xlu0 %5912
        %5914 = vrot.lane.b32.xlu0 %v5903, 126
        %v5915 = vpop.permute.xlu0 %5914
        %v5920 = vadd.f32 %v5816, %v5909
        %v5921 = vadd.f32 %v5817, %v5911
        %v5922 = vadd.f32 %v5818, %v5913
        %v5923 = vadd.f32 %v5819, %v5915
        %s5924 = sld [smem:[#allocation13 + $0x55]]
        %v5925 = vstv %s5924
        %v5926 = vmul.f32 %v5925, %v5750
        %v5927 = vmul.f32 %v5925, %v5751
        %v5928 = vmul.f32 %v5925, %v5752
        %v5929 = vmul.f32 %v5925, %v5753
        %5934 = vrot.lane.b32.xlu0 %v5926, 126
        %v5935 = vpop.permute.xlu0 %5934
        %5936 = vrot.lane.b32.xlu0 %v5927, 126
        %v5937 = vpop.permute.xlu0 %5936
        %5938 = vrot.lane.b32.xlu0 %v5928, 126
        %v5939 = vpop.permute.xlu0 %5938
        %5940 = vrot.lane.b32.xlu0 %v5929, 126
        %v5941 = vpop.permute.xlu0 %5940
        %v5946 = vadd.f32 %v5842, %v5935
        %v5947 = vadd.f32 %v5843, %v5937
        %v5948 = vadd.f32 %v5844, %v5939
        %v5949 = vadd.f32 %v5845, %v5941
        %s5950 = sld [smem:[#allocation13 + $0x56]]
        %v5951 = vstv %s5950
        %v5952 = vmul.f32 %v5951, %v5750
        %v5953 = vmul.f32 %v5951, %v5751
        %v5954 = vmul.f32 %v5951, %v5752
        %v5955 = vmul.f32 %v5951, %v5753
        %5960 = vrot.lane.b32.xlu0 %v5952, 126
        %v5961 = vpop.permute.xlu0 %5960
        %5962 = vrot.lane.b32.xlu0 %v5953, 126
        %v5963 = vpop.permute.xlu0 %5962
        %5964 = vrot.lane.b32.xlu0 %v5954, 126
        %v5965 = vpop.permute.xlu0 %5964
        %5966 = vrot.lane.b32.xlu0 %v5955, 126
        %v5967 = vpop.permute.xlu0 %5966
        %v5972 = vadd.f32 %v5868, %v5961
        %v5973 = vadd.f32 %v5869, %v5963
        %v5974 = vadd.f32 %v5870, %v5965
        %v5975 = vadd.f32 %v5871, %v5967
        %s5976 = sld [smem:[#allocation13 + $0x57]]
        %v5977 = vstv %s5976
        %v5978 = vmul.f32 %v5977, %v5750
        %v5979 = vmul.f32 %v5977, %v5751
        %v5980 = vmul.f32 %v5977, %v5752
        %v5981 = vmul.f32 %v5977, %v5753
        %5986 = vrot.lane.b32.xlu0 %v5978, 126
        %v5987 = vpop.permute.xlu0 %5986
        %5988 = vrot.lane.b32.xlu0 %v5979, 126
        %v5989 = vpop.permute.xlu0 %5988
        %5990 = vrot.lane.b32.xlu0 %v5980, 126
        %v5991 = vpop.permute.xlu0 %5990
        %5992 = vrot.lane.b32.xlu0 %v5981, 126
        %v5993 = vpop.permute.xlu0 %5992
        %v5998 = vadd.f32 %v5894, %v5987
        %v5999 = vadd.f32 %v5895, %v5989
        %v6000 = vadd.f32 %v5896, %v5991
        %v6001 = vadd.f32 %v5897, %v5993
        %v6002 = vld [vmem:[%s4535 + $0x2] sm:$0xff]
        %v6003 = vld [vmem:[%s4535 + $0xa] sm:$0xff]
        %v6004 = vld [vmem:[%s4535 + $0x12] sm:$0xff]
        %v6005 = vld [vmem:[%s4535 + $0x1a] sm:$0xff]
        %s6006 = sld [smem:[#allocation13 + $0x64]]
        %v6007 = vstv %s6006
        %v6008 = vmul.f32 %v6007, %v6002
        %v6009 = vmul.f32 %v6007, %v6003
        %v6010 = vmul.f32 %v6007, %v6004
        %v6011 = vmul.f32 %v6007, %v6005
        %v6012 = vadd.f32 %v5920, %v6008
        %v6013 = vadd.f32 %v5921, %v6009
        %v6014 = vadd.f32 %v5922, %v6010
        %v6015 = vadd.f32 %v5923, %v6011
        %s6016 = sld [smem:[#allocation13 + $0x65]]
        %v6017 = vstv %s6016
        %v6018 = vmul.f32 %v6017, %v6002
        %v6019 = vmul.f32 %v6017, %v6003
        %v6020 = vmul.f32 %v6017, %v6004
        %v6021 = vmul.f32 %v6017, %v6005
        %v6022 = vadd.f32 %v5946, %v6018
        %v6023 = vadd.f32 %v5947, %v6019
        %v6024 = vadd.f32 %v5948, %v6020
        %v6025 = vadd.f32 %v5949, %v6021
        %s6026 = sld [smem:[#allocation13 + $0x66]]
        %v6027 = vstv %s6026
        %v6028 = vmul.f32 %v6027, %v6002
        %v6029 = vmul.f32 %v6027, %v6003
        %v6030 = vmul.f32 %v6027, %v6004
        %v6031 = vmul.f32 %v6027, %v6005
        %v6032 = vadd.f32 %v5972, %v6028
        %v6033 = vadd.f32 %v5973, %v6029
        %v6034 = vadd.f32 %v5974, %v6030
        %v6035 = vadd.f32 %v5975, %v6031
        %s6036 = sld [smem:[#allocation13 + $0x67]]
        %v6037 = vstv %s6036
        %v6038 = vmul.f32 %v6037, %v6002
        %v6039 = vmul.f32 %v6037, %v6003
        %v6040 = vmul.f32 %v6037, %v6004
        %v6041 = vmul.f32 %v6037, %v6005
        %v6042 = vadd.f32 %v5998, %v6038
        %v6043 = vadd.f32 %v5999, %v6039
        %v6044 = vadd.f32 %v6000, %v6040
        %v6045 = vadd.f32 %v6001, %v6041
        %s6046 = sld [smem:[#allocation13 + $0x74]]
        %v6047 = vstv %s6046
        %v6048 = vmul.f32 %v6047, %v6002
        %v6049 = vmul.f32 %v6047, %v6003
        %v6050 = vmul.f32 %v6047, %v6004
        %v6051 = vmul.f32 %v6047, %v6005
        %6056 = vrot.lane.b32.xlu0 %v6048, 127
        %v6057 = vpop.permute.xlu0 %6056
        %6058 = vrot.lane.b32.xlu0 %v6049, 127
        %v6059 = vpop.permute.xlu0 %6058
        %6060 = vrot.lane.b32.xlu0 %v6050, 127
        %v6061 = vpop.permute.xlu0 %6060
        %6062 = vrot.lane.b32.xlu0 %v6051, 127
        %v6063 = vpop.permute.xlu0 %6062
        %v6068 = vadd.f32 %v6012, %v6057
        %v6069 = vadd.f32 %v6013, %v6059
        %v6070 = vadd.f32 %v6014, %v6061
        %v6071 = vadd.f32 %v6015, %v6063
        %s6072 = sld [smem:[#allocation13 + $0x75]]
        %v6073 = vstv %s6072
        %v6074 = vmul.f32 %v6073, %v6002
        %v6075 = vmul.f32 %v6073, %v6003
        %v6076 = vmul.f32 %v6073, %v6004
        %v6077 = vmul.f32 %v6073, %v6005
        %6082 = vrot.lane.b32.xlu0 %v6074, 127
        %v6083 = vpop.permute.xlu0 %6082
        %6084 = vrot.lane.b32.xlu0 %v6075, 127
        %v6085 = vpop.permute.xlu0 %6084
        %6086 = vrot.lane.b32.xlu0 %v6076, 127
        %v6087 = vpop.permute.xlu0 %6086
        %6088 = vrot.lane.b32.xlu0 %v6077, 127
        %v6089 = vpop.permute.xlu0 %6088
        %v6094 = vadd.f32 %v6022, %v6083
        %v6095 = vadd.f32 %v6023, %v6085
        %v6096 = vadd.f32 %v6024, %v6087
        %v6097 = vadd.f32 %v6025, %v6089
        %s6098 = sld [smem:[#allocation13 + $0x76]]
        %v6099 = vstv %s6098
        %v6100 = vmul.f32 %v6099, %v6002
        %v6101 = vmul.f32 %v6099, %v6003
        %v6102 = vmul.f32 %v6099, %v6004
        %v6103 = vmul.f32 %v6099, %v6005
        %6108 = vrot.lane.b32.xlu0 %v6100, 127
        %v6109 = vpop.permute.xlu0 %6108
        %6110 = vrot.lane.b32.xlu0 %v6101, 127
        %v6111 = vpop.permute.xlu0 %6110
        %6112 = vrot.lane.b32.xlu0 %v6102, 127
        %v6113 = vpop.permute.xlu0 %6112
        %6114 = vrot.lane.b32.xlu0 %v6103, 127
        %v6115 = vpop.permute.xlu0 %6114
        %v6120 = vadd.f32 %v6032, %v6109
        %v6121 = vadd.f32 %v6033, %v6111
        %v6122 = vadd.f32 %v6034, %v6113
        %v6123 = vadd.f32 %v6035, %v6115
        %s6124 = sld [smem:[#allocation13 + $0x77]]
        %v6125 = vstv %s6124
        %v6126 = vmul.f32 %v6125, %v6002
        %v6127 = vmul.f32 %v6125, %v6003
        %v6128 = vmul.f32 %v6125, %v6004
        %v6129 = vmul.f32 %v6125, %v6005
        %6134 = vrot.lane.b32.xlu0 %v6126, 127
        %v6135 = vpop.permute.xlu0 %6134
        %6136 = vrot.lane.b32.xlu0 %v6127, 127
        %v6137 = vpop.permute.xlu0 %6136
        %6138 = vrot.lane.b32.xlu0 %v6128, 127
        %v6139 = vpop.permute.xlu0 %6138
        %6140 = vrot.lane.b32.xlu0 %v6129, 127
        %v6141 = vpop.permute.xlu0 %6140
        %v6146 = vadd.f32 %v6042, %v6135
        %v6147 = vadd.f32 %v6043, %v6137
        %v6148 = vadd.f32 %v6044, %v6139
        %v6149 = vadd.f32 %v6045, %v6141
        %s6150 = sld [smem:[#allocation13 + $0x84]]
        %v6151 = vstv %s6150
        %v6152 = vmul.f32 %v6151, %v6002
        %v6153 = vmul.f32 %v6151, %v6003
        %v6154 = vmul.f32 %v6151, %v6004
        %v6155 = vmul.f32 %v6151, %v6005
        %6160 = vrot.lane.b32.xlu0 %v6152, 126
        %v6161 = vpop.permute.xlu0 %6160
        %6162 = vrot.lane.b32.xlu0 %v6153, 126
        %v6163 = vpop.permute.xlu0 %6162
        %6164 = vrot.lane.b32.xlu0 %v6154, 126
        %v6165 = vpop.permute.xlu0 %6164
        %6166 = vrot.lane.b32.xlu0 %v6155, 126
        %v6167 = vpop.permute.xlu0 %6166
        %v6172 = vadd.f32 %v6068, %v6161
        %v6173 = vadd.f32 %v6069, %v6163
        %v6174 = vadd.f32 %v6070, %v6165
        %v6175 = vadd.f32 %v6071, %v6167
        %s6176 = sld [smem:[#allocation13 + $0x85]]
        %v6177 = vstv %s6176
        %v6178 = vmul.f32 %v6177, %v6002
        %v6179 = vmul.f32 %v6177, %v6003
        %v6180 = vmul.f32 %v6177, %v6004
        %v6181 = vmul.f32 %v6177, %v6005
        %6186 = vrot.lane.b32.xlu0 %v6178, 126
        %v6187 = vpop.permute.xlu0 %6186
        %6188 = vrot.lane.b32.xlu0 %v6179, 126
        %v6189 = vpop.permute.xlu0 %6188
        %6190 = vrot.lane.b32.xlu0 %v6180, 126
        %v6191 = vpop.permute.xlu0 %6190
        %6192 = vrot.lane.b32.xlu0 %v6181, 126
        %v6193 = vpop.permute.xlu0 %6192
        %v6198 = vadd.f32 %v6094, %v6187
        %v6199 = vadd.f32 %v6095, %v6189
        %v6200 = vadd.f32 %v6096, %v6191
        %v6201 = vadd.f32 %v6097, %v6193
        %s6202 = sld [smem:[#allocation13 + $0x86]]
        %v6203 = vstv %s6202
        %v6204 = vmul.f32 %v6203, %v6002
        %v6205 = vmul.f32 %v6203, %v6003
        %v6206 = vmul.f32 %v6203, %v6004
        %v6207 = vmul.f32 %v6203, %v6005
        %6212 = vrot.lane.b32.xlu0 %v6204, 126
        %v6213 = vpop.permute.xlu0 %6212
        %6214 = vrot.lane.b32.xlu0 %v6205, 126
        %v6215 = vpop.permute.xlu0 %6214
        %6216 = vrot.lane.b32.xlu0 %v6206, 126
        %v6217 = vpop.permute.xlu0 %6216
        %6218 = vrot.lane.b32.xlu0 %v6207, 126
        %v6219 = vpop.permute.xlu0 %6218
        %v6224 = vadd.f32 %v6120, %v6213
        %v6225 = vadd.f32 %v6121, %v6215
        %v6226 = vadd.f32 %v6122, %v6217
        %v6227 = vadd.f32 %v6123, %v6219
        %s6228 = sld [smem:[#allocation13 + $0x87]]
        %v6229 = vstv %s6228
        %v6230 = vmul.f32 %v6229, %v6002
        %v6231 = vmul.f32 %v6229, %v6003
        %v6232 = vmul.f32 %v6229, %v6004
        %v6233 = vmul.f32 %v6229, %v6005
        %6238 = vrot.lane.b32.xlu0 %v6230, 126
        %v6239 = vpop.permute.xlu0 %6238
        %6240 = vrot.lane.b32.xlu0 %v6231, 126
        %v6241 = vpop.permute.xlu0 %6240
        %6242 = vrot.lane.b32.xlu0 %v6232, 126
        %v6243 = vpop.permute.xlu0 %6242
        %6244 = vrot.lane.b32.xlu0 %v6233, 126
        %v6245 = vpop.permute.xlu0 %6244
        %v6250 = vadd.f32 %v6146, %v6239
        %v6251 = vadd.f32 %v6147, %v6241
        %v6252 = vadd.f32 %v6148, %v6243
        %v6253 = vadd.f32 %v6149, %v6245
        %v6254 = vld [vmem:[%s4636] sm:$0xff]
        %v6255 = vld [vmem:[%s4636 + $0x8] sm:$0xff]
        %v6256 = vld [vmem:[%s4636 + $0x10] sm:$0xff]
        %v6257 = vld [vmem:[%s4636 + $0x18] sm:$0xff]
        %s6258 = sld [smem:[#allocation13 + $0x8]]
        %v6259 = vstv %s6258
        %v6260 = vmul.f32 %v6259, %v6254
        %v6261 = vmul.f32 %v6259, %v6255
        %v6262 = vmul.f32 %v6259, %v6256
        %v6263 = vmul.f32 %v6259, %v6257
        %v6264 = vadd.f32 %v6172, %v6260
        %v6265 = vadd.f32 %v6173, %v6261
        %v6266 = vadd.f32 %v6174, %v6262
        %v6267 = vadd.f32 %v6175, %v6263
        %s6268 = sld [smem:[#allocation13 + $0x9]]
        %v6269 = vstv %s6268
        %v6270 = vmul.f32 %v6269, %v6254
        %v6271 = vmul.f32 %v6269, %v6255
        %v6272 = vmul.f32 %v6269, %v6256
        %v6273 = vmul.f32 %v6269, %v6257
        %v6274 = vadd.f32 %v6198, %v6270
        %v6275 = vadd.f32 %v6199, %v6271
        %v6276 = vadd.f32 %v6200, %v6272
        %v6277 = vadd.f32 %v6201, %v6273
        %s6278 = sld [smem:[#allocation13 + $0xa]]
        %v6279 = vstv %s6278
        %v6280 = vmul.f32 %v6279, %v6254
        %v6281 = vmul.f32 %v6279, %v6255
        %v6282 = vmul.f32 %v6279, %v6256
        %v6283 = vmul.f32 %v6279, %v6257
        %v6284 = vadd.f32 %v6224, %v6280
        %v6285 = vadd.f32 %v6225, %v6281
        %v6286 = vadd.f32 %v6226, %v6282
        %v6287 = vadd.f32 %v6227, %v6283
        %s6288 = sld [smem:[#allocation13 + $0xb]]
        %v6289 = vstv %s6288
        %v6290 = vmul.f32 %v6289, %v6254
        %v6291 = vmul.f32 %v6289, %v6255
        %v6292 = vmul.f32 %v6289, %v6256
        %v6293 = vmul.f32 %v6289, %v6257
        %v6294 = vadd.f32 %v6250, %v6290
        %v6295 = vadd.f32 %v6251, %v6291
        %v6296 = vadd.f32 %v6252, %v6292
        %v6297 = vadd.f32 %v6253, %v6293
        %s6298 = sld [smem:[#allocation13 + $0x18]]
        %v6299 = vstv %s6298
        %v6300 = vmul.f32 %v6299, %v6254
        %v6301 = vmul.f32 %v6299, %v6255
        %v6302 = vmul.f32 %v6299, %v6256
        %v6303 = vmul.f32 %v6299, %v6257
        %6308 = vrot.lane.b32.xlu0 %v6300, 127
        %v6309 = vpop.permute.xlu0 %6308
        %6310 = vrot.lane.b32.xlu0 %v6301, 127
        %v6311 = vpop.permute.xlu0 %6310
        %6312 = vrot.lane.b32.xlu0 %v6302, 127
        %v6313 = vpop.permute.xlu0 %6312
        %6314 = vrot.lane.b32.xlu0 %v6303, 127
        %v6315 = vpop.permute.xlu0 %6314
        %v6320 = vadd.f32 %v6264, %v6309
        %v6321 = vadd.f32 %v6265, %v6311
        %v6322 = vadd.f32 %v6266, %v6313
        %v6323 = vadd.f32 %v6267, %v6315
        %s6324 = sld [smem:[#allocation13 + $0x19]]
        %v6325 = vstv %s6324
        %v6326 = vmul.f32 %v6325, %v6254
        %v6327 = vmul.f32 %v6325, %v6255
        %v6328 = vmul.f32 %v6325, %v6256
        %v6329 = vmul.f32 %v6325, %v6257
        %6334 = vrot.lane.b32.xlu0 %v6326, 127
        %v6335 = vpop.permute.xlu0 %6334
        %6336 = vrot.lane.b32.xlu0 %v6327, 127
        %v6337 = vpop.permute.xlu0 %6336
        %6338 = vrot.lane.b32.xlu0 %v6328, 127
        %v6339 = vpop.permute.xlu0 %6338
        %6340 = vrot.lane.b32.xlu0 %v6329, 127
        %v6341 = vpop.permute.xlu0 %6340
        %v6346 = vadd.f32 %v6274, %v6335
        %v6347 = vadd.f32 %v6275, %v6337
        %v6348 = vadd.f32 %v6276, %v6339
        %v6349 = vadd.f32 %v6277, %v6341
        %s6350 = sld [smem:[#allocation13 + $0x1a]]
        %v6351 = vstv %s6350
        %v6352 = vmul.f32 %v6351, %v6254
        %v6353 = vmul.f32 %v6351, %v6255
        %v6354 = vmul.f32 %v6351, %v6256
        %v6355 = vmul.f32 %v6351, %v6257
        %6360 = vrot.lane.b32.xlu0 %v6352, 127
        %v6361 = vpop.permute.xlu0 %6360
        %6362 = vrot.lane.b32.xlu0 %v6353, 127
        %v6363 = vpop.permute.xlu0 %6362
        %6364 = vrot.lane.b32.xlu0 %v6354, 127
        %v6365 = vpop.permute.xlu0 %6364
        %6366 = vrot.lane.b32.xlu0 %v6355, 127
        %v6367 = vpop.permute.xlu0 %6366
        %v6372 = vadd.f32 %v6284, %v6361
        %v6373 = vadd.f32 %v6285, %v6363
        %v6374 = vadd.f32 %v6286, %v6365
        %v6375 = vadd.f32 %v6287, %v6367
        %s6376 = sld [smem:[#allocation13 + $0x1b]]
        %v6377 = vstv %s6376
        %v6378 = vmul.f32 %v6377, %v6254
        %v6379 = vmul.f32 %v6377, %v6255
        %v6380 = vmul.f32 %v6377, %v6256
        %v6381 = vmul.f32 %v6377, %v6257
        %6386 = vrot.lane.b32.xlu0 %v6378, 127
        %v6387 = vpop.permute.xlu0 %6386
        %6388 = vrot.lane.b32.xlu0 %v6379, 127
        %v6389 = vpop.permute.xlu0 %6388
        %6390 = vrot.lane.b32.xlu0 %v6380, 127
        %v6391 = vpop.permute.xlu0 %6390
        %6392 = vrot.lane.b32.xlu0 %v6381, 127
        %v6393 = vpop.permute.xlu0 %6392
        %v6398 = vadd.f32 %v6294, %v6387
        %v6399 = vadd.f32 %v6295, %v6389
        %v6400 = vadd.f32 %v6296, %v6391
        %v6401 = vadd.f32 %v6297, %v6393
        %s6402 = sld [smem:[#allocation13 + $0x28]]
        %v6403 = vstv %s6402
        %v6404 = vmul.f32 %v6403, %v6254
        %v6405 = vmul.f32 %v6403, %v6255
        %v6406 = vmul.f32 %v6403, %v6256
        %v6407 = vmul.f32 %v6403, %v6257
        %6412 = vrot.lane.b32.xlu0 %v6404, 126
        %v6413 = vpop.permute.xlu0 %6412
        %6414 = vrot.lane.b32.xlu0 %v6405, 126
        %v6415 = vpop.permute.xlu0 %6414
        %6416 = vrot.lane.b32.xlu0 %v6406, 126
        %v6417 = vpop.permute.xlu0 %6416
        %6418 = vrot.lane.b32.xlu0 %v6407, 126
        %v6419 = vpop.permute.xlu0 %6418
        %v6424 = vadd.f32 %v6320, %v6413
        %v6425 = vadd.f32 %v6321, %v6415
        %v6426 = vadd.f32 %v6322, %v6417
        %v6427 = vadd.f32 %v6323, %v6419
        %s6428 = sld [smem:[#allocation13 + $0x29]]
        %v6429 = vstv %s6428
        %v6430 = vmul.f32 %v6429, %v6254
        %v6431 = vmul.f32 %v6429, %v6255
        %v6432 = vmul.f32 %v6429, %v6256
        %v6433 = vmul.f32 %v6429, %v6257
        %6438 = vrot.lane.b32.xlu0 %v6430, 126
        %v6439 = vpop.permute.xlu0 %6438
        %6440 = vrot.lane.b32.xlu0 %v6431, 126
        %v6441 = vpop.permute.xlu0 %6440
        %6442 = vrot.lane.b32.xlu0 %v6432, 126
        %v6443 = vpop.permute.xlu0 %6442
        %6444 = vrot.lane.b32.xlu0 %v6433, 126
        %v6445 = vpop.permute.xlu0 %6444
        %v6450 = vadd.f32 %v6346, %v6439
        %v6451 = vadd.f32 %v6347, %v6441
        %v6452 = vadd.f32 %v6348, %v6443
        %v6453 = vadd.f32 %v6349, %v6445
        %s6454 = sld [smem:[#allocation13 + $0x2a]]
        %v6455 = vstv %s6454
        %v6456 = vmul.f32 %v6455, %v6254
        %v6457 = vmul.f32 %v6455, %v6255
        %v6458 = vmul.f32 %v6455, %v6256
        %v6459 = vmul.f32 %v6455, %v6257
        %6464 = vrot.lane.b32.xlu0 %v6456, 126
        %v6465 = vpop.permute.xlu0 %6464
        %6466 = vrot.lane.b32.xlu0 %v6457, 126
        %v6467 = vpop.permute.xlu0 %6466
        %6468 = vrot.lane.b32.xlu0 %v6458, 126
        %v6469 = vpop.permute.xlu0 %6468
        %6470 = vrot.lane.b32.xlu0 %v6459, 126
        %v6471 = vpop.permute.xlu0 %6470
        %v6476 = vadd.f32 %v6372, %v6465
        %v6477 = vadd.f32 %v6373, %v6467
        %v6478 = vadd.f32 %v6374, %v6469
        %v6479 = vadd.f32 %v6375, %v6471
        %s6480 = sld [smem:[#allocation13 + $0x2b]]
        %v6481 = vstv %s6480
        %v6482 = vmul.f32 %v6481, %v6254
        %v6483 = vmul.f32 %v6481, %v6255
        %v6484 = vmul.f32 %v6481, %v6256
        %v6485 = vmul.f32 %v6481, %v6257
        %6490 = vrot.lane.b32.xlu0 %v6482, 126
        %v6491 = vpop.permute.xlu0 %6490
        %6492 = vrot.lane.b32.xlu0 %v6483, 126
        %v6493 = vpop.permute.xlu0 %6492
        %6494 = vrot.lane.b32.xlu0 %v6484, 126
        %v6495 = vpop.permute.xlu0 %6494
        %6496 = vrot.lane.b32.xlu0 %v6485, 126
        %v6497 = vpop.permute.xlu0 %6496
        %v6502 = vadd.f32 %v6398, %v6491
        %v6503 = vadd.f32 %v6399, %v6493
        %v6504 = vadd.f32 %v6400, %v6495
        %v6505 = vadd.f32 %v6401, %v6497
        %v6506 = vld [vmem:[%s4636 + $0x1] sm:$0xff]
        %v6507 = vld [vmem:[%s4636 + $0x9] sm:$0xff]
        %v6508 = vld [vmem:[%s4636 + $0x11] sm:$0xff]
        %v6509 = vld [vmem:[%s4636 + $0x19] sm:$0xff]
        %s6510 = sld [smem:[#allocation13 + $0x38]]
        %v6511 = vstv %s6510
        %v6512 = vmul.f32 %v6511, %v6506
        %v6513 = vmul.f32 %v6511, %v6507
        %v6514 = vmul.f32 %v6511, %v6508
        %v6515 = vmul.f32 %v6511, %v6509
        %v6516 = vadd.f32 %v6424, %v6512
        %v6517 = vadd.f32 %v6425, %v6513
        %v6518 = vadd.f32 %v6426, %v6514
        %v6519 = vadd.f32 %v6427, %v6515
        %s6520 = sld [smem:[#allocation13 + $0x39]]
        %v6521 = vstv %s6520
        %v6522 = vmul.f32 %v6521, %v6506
        %v6523 = vmul.f32 %v6521, %v6507
        %v6524 = vmul.f32 %v6521, %v6508
        %v6525 = vmul.f32 %v6521, %v6509
        %v6526 = vadd.f32 %v6450, %v6522
        %v6527 = vadd.f32 %v6451, %v6523
        %v6528 = vadd.f32 %v6452, %v6524
        %v6529 = vadd.f32 %v6453, %v6525
        %s6530 = sld [smem:[#allocation13 + $0x3a]]
        %v6531 = vstv %s6530
        %v6532 = vmul.f32 %v6531, %v6506
        %v6533 = vmul.f32 %v6531, %v6507
        %v6534 = vmul.f32 %v6531, %v6508
        %v6535 = vmul.f32 %v6531, %v6509
        %v6536 = vadd.f32 %v6476, %v6532
        %v6537 = vadd.f32 %v6477, %v6533
        %v6538 = vadd.f32 %v6478, %v6534
        %v6539 = vadd.f32 %v6479, %v6535
        %s6540 = sld [smem:[#allocation13 + $0x3b]]
        %v6541 = vstv %s6540
        %v6542 = vmul.f32 %v6541, %v6506
        %v6543 = vmul.f32 %v6541, %v6507
        %v6544 = vmul.f32 %v6541, %v6508
        %v6545 = vmul.f32 %v6541, %v6509
        %v6546 = vadd.f32 %v6502, %v6542
        %v6547 = vadd.f32 %v6503, %v6543
        %v6548 = vadd.f32 %v6504, %v6544
        %v6549 = vadd.f32 %v6505, %v6545
        %s6550 = sld [smem:[#allocation13 + $0x48]]
        %v6551 = vstv %s6550
        %v6552 = vmul.f32 %v6551, %v6506
        %v6553 = vmul.f32 %v6551, %v6507
        %v6554 = vmul.f32 %v6551, %v6508
        %v6555 = vmul.f32 %v6551, %v6509
        %6560 = vrot.lane.b32.xlu0 %v6552, 127
        %v6561 = vpop.permute.xlu0 %6560
        %6562 = vrot.lane.b32.xlu0 %v6553, 127
        %v6563 = vpop.permute.xlu0 %6562
        %6564 = vrot.lane.b32.xlu0 %v6554, 127
        %v6565 = vpop.permute.xlu0 %6564
        %6566 = vrot.lane.b32.xlu0 %v6555, 127
        %v6567 = vpop.permute.xlu0 %6566
        %v6572 = vadd.f32 %v6516, %v6561
        %v6573 = vadd.f32 %v6517, %v6563
        %v6574 = vadd.f32 %v6518, %v6565
        %v6575 = vadd.f32 %v6519, %v6567
        %s6576 = sld [smem:[#allocation13 + $0x49]]
        %v6577 = vstv %s6576
        %v6578 = vmul.f32 %v6577, %v6506
        %v6579 = vmul.f32 %v6577, %v6507
        %v6580 = vmul.f32 %v6577, %v6508
        %v6581 = vmul.f32 %v6577, %v6509
        %6586 = vrot.lane.b32.xlu0 %v6578, 127
        %v6587 = vpop.permute.xlu0 %6586
        %6588 = vrot.lane.b32.xlu0 %v6579, 127
        %v6589 = vpop.permute.xlu0 %6588
        %6590 = vrot.lane.b32.xlu0 %v6580, 127
        %v6591 = vpop.permute.xlu0 %6590
        %6592 = vrot.lane.b32.xlu0 %v6581, 127
        %v6593 = vpop.permute.xlu0 %6592
        %v6598 = vadd.f32 %v6526, %v6587
        %v6599 = vadd.f32 %v6527, %v6589
        %v6600 = vadd.f32 %v6528, %v6591
        %v6601 = vadd.f32 %v6529, %v6593
        %s6602 = sld [smem:[#allocation13 + $0x4a]]
        %v6603 = vstv %s6602
        %v6604 = vmul.f32 %v6603, %v6506
        %v6605 = vmul.f32 %v6603, %v6507
        %v6606 = vmul.f32 %v6603, %v6508
        %v6607 = vmul.f32 %v6603, %v6509
        %6612 = vrot.lane.b32.xlu0 %v6604, 127
        %v6613 = vpop.permute.xlu0 %6612
        %6614 = vrot.lane.b32.xlu0 %v6605, 127
        %v6615 = vpop.permute.xlu0 %6614
        %6616 = vrot.lane.b32.xlu0 %v6606, 127
        %v6617 = vpop.permute.xlu0 %6616
        %6618 = vrot.lane.b32.xlu0 %v6607, 127
        %v6619 = vpop.permute.xlu0 %6618
        %v6624 = vadd.f32 %v6536, %v6613
        %v6625 = vadd.f32 %v6537, %v6615
        %v6626 = vadd.f32 %v6538, %v6617
        %v6627 = vadd.f32 %v6539, %v6619
        %s6628 = sld [smem:[#allocation13 + $0x4b]]
        %v6629 = vstv %s6628
        %v6630 = vmul.f32 %v6629, %v6506
        %v6631 = vmul.f32 %v6629, %v6507
        %v6632 = vmul.f32 %v6629, %v6508
        %v6633 = vmul.f32 %v6629, %v6509
        %6638 = vrot.lane.b32.xlu0 %v6630, 127
        %v6639 = vpop.permute.xlu0 %6638
        %6640 = vrot.lane.b32.xlu0 %v6631, 127
        %v6641 = vpop.permute.xlu0 %6640
        %6642 = vrot.lane.b32.xlu0 %v6632, 127
        %v6643 = vpop.permute.xlu0 %6642
        %6644 = vrot.lane.b32.xlu0 %v6633, 127
        %v6645 = vpop.permute.xlu0 %6644
        %v6650 = vadd.f32 %v6546, %v6639
        %v6651 = vadd.f32 %v6547, %v6641
        %v6652 = vadd.f32 %v6548, %v6643
        %v6653 = vadd.f32 %v6549, %v6645
        %s6654 = sld [smem:[#allocation13 + $0x58]]
        %v6655 = vstv %s6654
        %v6656 = vmul.f32 %v6655, %v6506
        %v6657 = vmul.f32 %v6655, %v6507
        %v6658 = vmul.f32 %v6655, %v6508
        %v6659 = vmul.f32 %v6655, %v6509
        %6664 = vrot.lane.b32.xlu0 %v6656, 126
        %v6665 = vpop.permute.xlu0 %6664
        %6666 = vrot.lane.b32.xlu0 %v6657, 126
        %v6667 = vpop.permute.xlu0 %6666
        %6668 = vrot.lane.b32.xlu0 %v6658, 126
        %v6669 = vpop.permute.xlu0 %6668
        %6670 = vrot.lane.b32.xlu0 %v6659, 126
        %v6671 = vpop.permute.xlu0 %6670
        %v6676 = vadd.f32 %v6572, %v6665
        %v6677 = vadd.f32 %v6573, %v6667
        %v6678 = vadd.f32 %v6574, %v6669
        %v6679 = vadd.f32 %v6575, %v6671
        %s6680 = sld [smem:[#allocation13 + $0x59]]
        %v6681 = vstv %s6680
        %v6682 = vmul.f32 %v6681, %v6506
        %v6683 = vmul.f32 %v6681, %v6507
        %v6684 = vmul.f32 %v6681, %v6508
        %v6685 = vmul.f32 %v6681, %v6509
        %6690 = vrot.lane.b32.xlu0 %v6682, 126
        %v6691 = vpop.permute.xlu0 %6690
        %6692 = vrot.lane.b32.xlu0 %v6683, 126
        %v6693 = vpop.permute.xlu0 %6692
        %6694 = vrot.lane.b32.xlu0 %v6684, 126
        %v6695 = vpop.permute.xlu0 %6694
        %6696 = vrot.lane.b32.xlu0 %v6685, 126
        %v6697 = vpop.permute.xlu0 %6696
        %v6702 = vadd.f32 %v6598, %v6691
        %v6703 = vadd.f32 %v6599, %v6693
        %v6704 = vadd.f32 %v6600, %v6695
        %v6705 = vadd.f32 %v6601, %v6697
        %s6706 = sld [smem:[#allocation13 + $0x5a]]
        %v6707 = vstv %s6706
        %v6708 = vmul.f32 %v6707, %v6506
        %v6709 = vmul.f32 %v6707, %v6507
        %v6710 = vmul.f32 %v6707, %v6508
        %v6711 = vmul.f32 %v6707, %v6509
        %6716 = vrot.lane.b32.xlu0 %v6708, 126
        %v6717 = vpop.permute.xlu0 %6716
        %6718 = vrot.lane.b32.xlu0 %v6709, 126
        %v6719 = vpop.permute.xlu0 %6718
        %6720 = vrot.lane.b32.xlu0 %v6710, 126
        %v6721 = vpop.permute.xlu0 %6720
        %6722 = vrot.lane.b32.xlu0 %v6711, 126
        %v6723 = vpop.permute.xlu0 %6722
        %v6728 = vadd.f32 %v6624, %v6717
        %v6729 = vadd.f32 %v6625, %v6719
        %v6730 = vadd.f32 %v6626, %v6721
        %v6731 = vadd.f32 %v6627, %v6723
        %s6732 = sld [smem:[#allocation13 + $0x5b]]
        %v6733 = vstv %s6732
        %v6734 = vmul.f32 %v6733, %v6506
        %v6735 = vmul.f32 %v6733, %v6507
        %v6736 = vmul.f32 %v6733, %v6508
        %v6737 = vmul.f32 %v6733, %v6509
        %6742 = vrot.lane.b32.xlu0 %v6734, 126
        %v6743 = vpop.permute.xlu0 %6742
        %6744 = vrot.lane.b32.xlu0 %v6735, 126
        %v6745 = vpop.permute.xlu0 %6744
        %6746 = vrot.lane.b32.xlu0 %v6736, 126
        %v6747 = vpop.permute.xlu0 %6746
        %6748 = vrot.lane.b32.xlu0 %v6737, 126
        %v6749 = vpop.permute.xlu0 %6748
        %v6754 = vadd.f32 %v6650, %v6743
        %v6755 = vadd.f32 %v6651, %v6745
        %v6756 = vadd.f32 %v6652, %v6747
        %v6757 = vadd.f32 %v6653, %v6749
        %v6758 = vld [vmem:[%s4636 + $0x2] sm:$0xff]
        %v6759 = vld [vmem:[%s4636 + $0xa] sm:$0xff]
        %v6760 = vld [vmem:[%s4636 + $0x12] sm:$0xff]
        %v6761 = vld [vmem:[%s4636 + $0x1a] sm:$0xff]
        %s6762 = sld [smem:[#allocation13 + $0x68]]
        %v6763 = vstv %s6762
        %v6764 = vmul.f32 %v6763, %v6758
        %v6765 = vmul.f32 %v6763, %v6759
        %v6766 = vmul.f32 %v6763, %v6760
        %v6767 = vmul.f32 %v6763, %v6761
        %v6768 = vadd.f32 %v6676, %v6764
        %v6769 = vadd.f32 %v6677, %v6765
        %v6770 = vadd.f32 %v6678, %v6766
        %v6771 = vadd.f32 %v6679, %v6767
        %s6772 = sld [smem:[#allocation13 + $0x69]]
        %v6773 = vstv %s6772
        %v6774 = vmul.f32 %v6773, %v6758
        %v6775 = vmul.f32 %v6773, %v6759
        %v6776 = vmul.f32 %v6773, %v6760
        %v6777 = vmul.f32 %v6773, %v6761
        %v6778 = vadd.f32 %v6702, %v6774
        %v6779 = vadd.f32 %v6703, %v6775
        %v6780 = vadd.f32 %v6704, %v6776
        %v6781 = vadd.f32 %v6705, %v6777
        %s6782 = sld [smem:[#allocation13 + $0x6a]]
        %v6783 = vstv %s6782
        %v6784 = vmul.f32 %v6783, %v6758
        %v6785 = vmul.f32 %v6783, %v6759
        %v6786 = vmul.f32 %v6783, %v6760
        %v6787 = vmul.f32 %v6783, %v6761
        %v6788 = vadd.f32 %v6728, %v6784
        %v6789 = vadd.f32 %v6729, %v6785
        %v6790 = vadd.f32 %v6730, %v6786
        %v6791 = vadd.f32 %v6731, %v6787
        %s6792 = sld [smem:[#allocation13 + $0x6b]]
        %v6793 = vstv %s6792
        %v6794 = vmul.f32 %v6793, %v6758
        %v6795 = vmul.f32 %v6793, %v6759
        %v6796 = vmul.f32 %v6793, %v6760
        %v6797 = vmul.f32 %v6793, %v6761
        %v6798 = vadd.f32 %v6754, %v6794
        %v6799 = vadd.f32 %v6755, %v6795
        %v6800 = vadd.f32 %v6756, %v6796
        %v6801 = vadd.f32 %v6757, %v6797
        %s6802 = sld [smem:[#allocation13 + $0x78]]
        %v6803 = vstv %s6802
        %v6804 = vmul.f32 %v6803, %v6758
        %v6805 = vmul.f32 %v6803, %v6759
        %v6806 = vmul.f32 %v6803, %v6760
        %v6807 = vmul.f32 %v6803, %v6761
        %6812 = vrot.lane.b32.xlu0 %v6804, 127
        %v6813 = vpop.permute.xlu0 %6812
        %6814 = vrot.lane.b32.xlu0 %v6805, 127
        %v6815 = vpop.permute.xlu0 %6814
        %6816 = vrot.lane.b32.xlu0 %v6806, 127
        %v6817 = vpop.permute.xlu0 %6816
        %6818 = vrot.lane.b32.xlu0 %v6807, 127
        %v6819 = vpop.permute.xlu0 %6818
        %v6824 = vadd.f32 %v6768, %v6813
        %v6825 = vadd.f32 %v6769, %v6815
        %v6826 = vadd.f32 %v6770, %v6817
        %v6827 = vadd.f32 %v6771, %v6819
        %s6828 = sld [smem:[#allocation13 + $0x79]]
        %v6829 = vstv %s6828
        %v6830 = vmul.f32 %v6829, %v6758
        %v6831 = vmul.f32 %v6829, %v6759
        %v6832 = vmul.f32 %v6829, %v6760
        %v6833 = vmul.f32 %v6829, %v6761
        %6838 = vrot.lane.b32.xlu0 %v6830, 127
        %v6839 = vpop.permute.xlu0 %6838
        %6840 = vrot.lane.b32.xlu0 %v6831, 127
        %v6841 = vpop.permute.xlu0 %6840
        %6842 = vrot.lane.b32.xlu0 %v6832, 127
        %v6843 = vpop.permute.xlu0 %6842
        %6844 = vrot.lane.b32.xlu0 %v6833, 127
        %v6845 = vpop.permute.xlu0 %6844
        %v6850 = vadd.f32 %v6778, %v6839
        %v6851 = vadd.f32 %v6779, %v6841
        %v6852 = vadd.f32 %v6780, %v6843
        %v6853 = vadd.f32 %v6781, %v6845
        %s6854 = sld [smem:[#allocation13 + $0x7a]]
        %v6855 = vstv %s6854
        %v6856 = vmul.f32 %v6855, %v6758
        %v6857 = vmul.f32 %v6855, %v6759
        %v6858 = vmul.f32 %v6855, %v6760
        %v6859 = vmul.f32 %v6855, %v6761
        %6864 = vrot.lane.b32.xlu0 %v6856, 127
        %v6865 = vpop.permute.xlu0 %6864
        %6866 = vrot.lane.b32.xlu0 %v6857, 127
        %v6867 = vpop.permute.xlu0 %6866
        %6868 = vrot.lane.b32.xlu0 %v6858, 127
        %v6869 = vpop.permute.xlu0 %6868
        %6870 = vrot.lane.b32.xlu0 %v6859, 127
        %v6871 = vpop.permute.xlu0 %6870
        %v6876 = vadd.f32 %v6788, %v6865
        %v6877 = vadd.f32 %v6789, %v6867
        %v6878 = vadd.f32 %v6790, %v6869
        %v6879 = vadd.f32 %v6791, %v6871
        %s6880 = sld [smem:[#allocation13 + $0x7b]]
        %v6881 = vstv %s6880
        %v6882 = vmul.f32 %v6881, %v6758
        %v6883 = vmul.f32 %v6881, %v6759
        %v6884 = vmul.f32 %v6881, %v6760
        %v6885 = vmul.f32 %v6881, %v6761
        %6890 = vrot.lane.b32.xlu0 %v6882, 127
        %v6891 = vpop.permute.xlu0 %6890
        %6892 = vrot.lane.b32.xlu0 %v6883, 127
        %v6893 = vpop.permute.xlu0 %6892
        %6894 = vrot.lane.b32.xlu0 %v6884, 127
        %v6895 = vpop.permute.xlu0 %6894
        %6896 = vrot.lane.b32.xlu0 %v6885, 127
        %v6897 = vpop.permute.xlu0 %6896
        %v6902 = vadd.f32 %v6798, %v6891
        %v6903 = vadd.f32 %v6799, %v6893
        %v6904 = vadd.f32 %v6800, %v6895
        %v6905 = vadd.f32 %v6801, %v6897
        %s6906 = sld [smem:[#allocation13 + $0x88]]
        %v6907 = vstv %s6906
        %v6908 = vmul.f32 %v6907, %v6758
        %v6909 = vmul.f32 %v6907, %v6759
        %v6910 = vmul.f32 %v6907, %v6760
        %v6911 = vmul.f32 %v6907, %v6761
        %6916 = vrot.lane.b32.xlu0 %v6908, 126
        %v6917 = vpop.permute.xlu0 %6916
        %6918 = vrot.lane.b32.xlu0 %v6909, 126
        %v6919 = vpop.permute.xlu0 %6918
        %6920 = vrot.lane.b32.xlu0 %v6910, 126
        %v6921 = vpop.permute.xlu0 %6920
        %6922 = vrot.lane.b32.xlu0 %v6911, 126
        %v6923 = vpop.permute.xlu0 %6922
        %v6928 = vadd.f32 %v6824, %v6917
        %v6929 = vadd.f32 %v6825, %v6919
        %v6930 = vadd.f32 %v6826, %v6921
        %v6931 = vadd.f32 %v6827, %v6923
        %s6932 = sld [smem:[#allocation13 + $0x89]]
        %v6933 = vstv %s6932
        %v6934 = vmul.f32 %v6933, %v6758
        %v6935 = vmul.f32 %v6933, %v6759
        %v6936 = vmul.f32 %v6933, %v6760
        %v6937 = vmul.f32 %v6933, %v6761
        %6942 = vrot.lane.b32.xlu0 %v6934, 126
        %v6943 = vpop.permute.xlu0 %6942
        %6944 = vrot.lane.b32.xlu0 %v6935, 126
        %v6945 = vpop.permute.xlu0 %6944
        %6946 = vrot.lane.b32.xlu0 %v6936, 126
        %v6947 = vpop.permute.xlu0 %6946
        %6948 = vrot.lane.b32.xlu0 %v6937, 126
        %v6949 = vpop.permute.xlu0 %6948
        %v6954 = vadd.f32 %v6850, %v6943
        %v6955 = vadd.f32 %v6851, %v6945
        %v6956 = vadd.f32 %v6852, %v6947
        %v6957 = vadd.f32 %v6853, %v6949
        %s6958 = sld [smem:[#allocation13 + $0x8a]]
        %v6959 = vstv %s6958
        %v6960 = vmul.f32 %v6959, %v6758
        %v6961 = vmul.f32 %v6959, %v6759
        %v6962 = vmul.f32 %v6959, %v6760
        %v6963 = vmul.f32 %v6959, %v6761
        %6968 = vrot.lane.b32.xlu0 %v6960, 126
        %v6969 = vpop.permute.xlu0 %6968
        %6970 = vrot.lane.b32.xlu0 %v6961, 126
        %v6971 = vpop.permute.xlu0 %6970
        %6972 = vrot.lane.b32.xlu0 %v6962, 126
        %v6973 = vpop.permute.xlu0 %6972
        %6974 = vrot.lane.b32.xlu0 %v6963, 126
        %v6975 = vpop.permute.xlu0 %6974
        %v6980 = vadd.f32 %v6876, %v6969
        %v6981 = vadd.f32 %v6877, %v6971
        %v6982 = vadd.f32 %v6878, %v6973
        %v6983 = vadd.f32 %v6879, %v6975
        %s6984 = sld [smem:[#allocation13 + $0x8b]]
        %v6985 = vstv %s6984
        %v6986 = vmul.f32 %v6985, %v6758
        %v6987 = vmul.f32 %v6985, %v6759
        %v6988 = vmul.f32 %v6985, %v6760
        %v6989 = vmul.f32 %v6985, %v6761
        %6994 = vrot.lane.b32.xlu0 %v6986, 126
        %v6995 = vpop.permute.xlu0 %6994
        %6996 = vrot.lane.b32.xlu0 %v6987, 126
        %v6997 = vpop.permute.xlu0 %6996
        %6998 = vrot.lane.b32.xlu0 %v6988, 126
        %v6999 = vpop.permute.xlu0 %6998
        %7000 = vrot.lane.b32.xlu0 %v6989, 126
        %v7001 = vpop.permute.xlu0 %7000
        %v7006 = vadd.f32 %v6902, %v6995
        %v7007 = vadd.f32 %v6903, %v6997
        %v7008 = vadd.f32 %v6904, %v6999
        %v7009 = vadd.f32 %v6905, %v7001
        %v7010 = vld [vmem:[%s4737] sm:$0xff]
        %v7011 = vld [vmem:[%s4737 + $0x8] sm:$0xff]
        %v7012 = vld [vmem:[%s4737 + $0x10] sm:$0xff]
        %v7013 = vld [vmem:[%s4737 + $0x18] sm:$0xff]
        %s7014 = sld [smem:[#allocation13 + $0xc]]
        %v7015 = vstv %s7014
        %v7016 = vmul.f32 %v7015, %v7010
        %v7017 = vmul.f32 %v7015, %v7011
        %v7018 = vmul.f32 %v7015, %v7012
        %v7019 = vmul.f32 %v7015, %v7013
        %v7020 = vadd.f32 %v6928, %v7016
        %v7021 = vadd.f32 %v6929, %v7017
        %v7022 = vadd.f32 %v6930, %v7018
        %v7023 = vadd.f32 %v6931, %v7019
        %s7024 = sld [smem:[#allocation13 + $0xd]]
        %v7025 = vstv %s7024
        %v7026 = vmul.f32 %v7025, %v7010
        %v7027 = vmul.f32 %v7025, %v7011
        %v7028 = vmul.f32 %v7025, %v7012
        %v7029 = vmul.f32 %v7025, %v7013
        %v7030 = vadd.f32 %v6954, %v7026
        %v7031 = vadd.f32 %v6955, %v7027
        %v7032 = vadd.f32 %v6956, %v7028
        %v7033 = vadd.f32 %v6957, %v7029
        %s7034 = sld [smem:[#allocation13 + $0xe]]
        %v7035 = vstv %s7034
        %v7036 = vmul.f32 %v7035, %v7010
        %v7037 = vmul.f32 %v7035, %v7011
        %v7038 = vmul.f32 %v7035, %v7012
        %v7039 = vmul.f32 %v7035, %v7013
        %v7040 = vadd.f32 %v6980, %v7036
        %v7041 = vadd.f32 %v6981, %v7037
        %v7042 = vadd.f32 %v6982, %v7038
        %v7043 = vadd.f32 %v6983, %v7039
        %s7044 = sld [smem:[#allocation13 + $0xf]]
        %v7045 = vstv %s7044
        %v7046 = vmul.f32 %v7045, %v7010
        %v7047 = vmul.f32 %v7045, %v7011
        %v7048 = vmul.f32 %v7045, %v7012
        %v7049 = vmul.f32 %v7045, %v7013
        %v7050 = vadd.f32 %v7006, %v7046
        %v7051 = vadd.f32 %v7007, %v7047
        %v7052 = vadd.f32 %v7008, %v7048
        %v7053 = vadd.f32 %v7009, %v7049
        %s7054 = sld [smem:[#allocation13 + $0x1c]]
        %v7055 = vstv %s7054
        %v7056 = vmul.f32 %v7055, %v7010
        %v7057 = vmul.f32 %v7055, %v7011
        %v7058 = vmul.f32 %v7055, %v7012
        %v7059 = vmul.f32 %v7055, %v7013
        %7064 = vrot.lane.b32.xlu0 %v7056, 127
        %v7065 = vpop.permute.xlu0 %7064
        %7066 = vrot.lane.b32.xlu0 %v7057, 127
        %v7067 = vpop.permute.xlu0 %7066
        %7068 = vrot.lane.b32.xlu0 %v7058, 127
        %v7069 = vpop.permute.xlu0 %7068
        %7070 = vrot.lane.b32.xlu0 %v7059, 127
        %v7071 = vpop.permute.xlu0 %7070
        %v7076 = vadd.f32 %v7020, %v7065
        %v7077 = vadd.f32 %v7021, %v7067
        %v7078 = vadd.f32 %v7022, %v7069
        %v7079 = vadd.f32 %v7023, %v7071
        %s7080 = sld [smem:[#allocation13 + $0x1d]]
        %v7081 = vstv %s7080
        %v7082 = vmul.f32 %v7081, %v7010
        %v7083 = vmul.f32 %v7081, %v7011
        %v7084 = vmul.f32 %v7081, %v7012
        %v7085 = vmul.f32 %v7081, %v7013
        %7090 = vrot.lane.b32.xlu0 %v7082, 127
        %v7091 = vpop.permute.xlu0 %7090
        %7092 = vrot.lane.b32.xlu0 %v7083, 127
        %v7093 = vpop.permute.xlu0 %7092
        %7094 = vrot.lane.b32.xlu0 %v7084, 127
        %v7095 = vpop.permute.xlu0 %7094
        %7096 = vrot.lane.b32.xlu0 %v7085, 127
        %v7097 = vpop.permute.xlu0 %7096
        %v7102 = vadd.f32 %v7030, %v7091
        %v7103 = vadd.f32 %v7031, %v7093
        %v7104 = vadd.f32 %v7032, %v7095
        %v7105 = vadd.f32 %v7033, %v7097
        %s7106 = sld [smem:[#allocation13 + $0x1e]]
        %v7107 = vstv %s7106
        %v7108 = vmul.f32 %v7107, %v7010
        %v7109 = vmul.f32 %v7107, %v7011
        %v7110 = vmul.f32 %v7107, %v7012
        %v7111 = vmul.f32 %v7107, %v7013
        %7116 = vrot.lane.b32.xlu0 %v7108, 127
        %v7117 = vpop.permute.xlu0 %7116
        %7118 = vrot.lane.b32.xlu0 %v7109, 127
        %v7119 = vpop.permute.xlu0 %7118
        %7120 = vrot.lane.b32.xlu0 %v7110, 127
        %v7121 = vpop.permute.xlu0 %7120
        %7122 = vrot.lane.b32.xlu0 %v7111, 127
        %v7123 = vpop.permute.xlu0 %7122
        %v7128 = vadd.f32 %v7040, %v7117
        %v7129 = vadd.f32 %v7041, %v7119
        %v7130 = vadd.f32 %v7042, %v7121
        %v7131 = vadd.f32 %v7043, %v7123
        %s7132 = sld [smem:[#allocation13 + $0x1f]]
        %v7133 = vstv %s7132
        %v7134 = vmul.f32 %v7133, %v7010
        %v7135 = vmul.f32 %v7133, %v7011
        %v7136 = vmul.f32 %v7133, %v7012
        %v7137 = vmul.f32 %v7133, %v7013
        %7142 = vrot.lane.b32.xlu0 %v7134, 127
        %v7143 = vpop.permute.xlu0 %7142
        %7144 = vrot.lane.b32.xlu0 %v7135, 127
        %v7145 = vpop.permute.xlu0 %7144
        %7146 = vrot.lane.b32.xlu0 %v7136, 127
        %v7147 = vpop.permute.xlu0 %7146
        %7148 = vrot.lane.b32.xlu0 %v7137, 127
        %v7149 = vpop.permute.xlu0 %7148
        %v7154 = vadd.f32 %v7050, %v7143
        %v7155 = vadd.f32 %v7051, %v7145
        %v7156 = vadd.f32 %v7052, %v7147
        %v7157 = vadd.f32 %v7053, %v7149
        %s7158 = sld [smem:[#allocation13 + $0x2c]]
        %v7159 = vstv %s7158
        %v7160 = vmul.f32 %v7159, %v7010
        %v7161 = vmul.f32 %v7159, %v7011
        %v7162 = vmul.f32 %v7159, %v7012
        %v7163 = vmul.f32 %v7159, %v7013
        %7168 = vrot.lane.b32.xlu0 %v7160, 126
        %v7169 = vpop.permute.xlu0 %7168
        %7170 = vrot.lane.b32.xlu0 %v7161, 126
        %v7171 = vpop.permute.xlu0 %7170
        %7172 = vrot.lane.b32.xlu0 %v7162, 126
        %v7173 = vpop.permute.xlu0 %7172
        %7174 = vrot.lane.b32.xlu0 %v7163, 126
        %v7175 = vpop.permute.xlu0 %7174
        %v7180 = vadd.f32 %v7076, %v7169
        %v7181 = vadd.f32 %v7077, %v7171
        %v7182 = vadd.f32 %v7078, %v7173
        %v7183 = vadd.f32 %v7079, %v7175
        %s7184 = sld [smem:[#allocation13 + $0x2d]]
        %v7185 = vstv %s7184
        %v7186 = vmul.f32 %v7185, %v7010
        %v7187 = vmul.f32 %v7185, %v7011
        %v7188 = vmul.f32 %v7185, %v7012
        %v7189 = vmul.f32 %v7185, %v7013
        %7194 = vrot.lane.b32.xlu0 %v7186, 126
        %v7195 = vpop.permute.xlu0 %7194
        %7196 = vrot.lane.b32.xlu0 %v7187, 126
        %v7197 = vpop.permute.xlu0 %7196
        %7198 = vrot.lane.b32.xlu0 %v7188, 126
        %v7199 = vpop.permute.xlu0 %7198
        %7200 = vrot.lane.b32.xlu0 %v7189, 126
        %v7201 = vpop.permute.xlu0 %7200
        %v7206 = vadd.f32 %v7102, %v7195
        %v7207 = vadd.f32 %v7103, %v7197
        %v7208 = vadd.f32 %v7104, %v7199
        %v7209 = vadd.f32 %v7105, %v7201
        %s7210 = sld [smem:[#allocation13 + $0x2e]]
        %v7211 = vstv %s7210
        %v7212 = vmul.f32 %v7211, %v7010
        %v7213 = vmul.f32 %v7211, %v7011
        %v7214 = vmul.f32 %v7211, %v7012
        %v7215 = vmul.f32 %v7211, %v7013
        %7220 = vrot.lane.b32.xlu0 %v7212, 126
        %v7221 = vpop.permute.xlu0 %7220
        %7222 = vrot.lane.b32.xlu0 %v7213, 126
        %v7223 = vpop.permute.xlu0 %7222
        %7224 = vrot.lane.b32.xlu0 %v7214, 126
        %v7225 = vpop.permute.xlu0 %7224
        %7226 = vrot.lane.b32.xlu0 %v7215, 126
        %v7227 = vpop.permute.xlu0 %7226
        %v7232 = vadd.f32 %v7128, %v7221
        %v7233 = vadd.f32 %v7129, %v7223
        %v7234 = vadd.f32 %v7130, %v7225
        %v7235 = vadd.f32 %v7131, %v7227
        %s7236 = sld [smem:[#allocation13 + $0x2f]]
        %v7237 = vstv %s7236
        %v7238 = vmul.f32 %v7237, %v7010
        %v7239 = vmul.f32 %v7237, %v7011
        %v7240 = vmul.f32 %v7237, %v7012
        %v7241 = vmul.f32 %v7237, %v7013
        %7246 = vrot.lane.b32.xlu0 %v7238, 126
        %v7247 = vpop.permute.xlu0 %7246
        %7248 = vrot.lane.b32.xlu0 %v7239, 126
        %v7249 = vpop.permute.xlu0 %7248
        %7250 = vrot.lane.b32.xlu0 %v7240, 126
        %v7251 = vpop.permute.xlu0 %7250
        %7252 = vrot.lane.b32.xlu0 %v7241, 126
        %v7253 = vpop.permute.xlu0 %7252
        %v7258 = vadd.f32 %v7154, %v7247
        %v7259 = vadd.f32 %v7155, %v7249
        %v7260 = vadd.f32 %v7156, %v7251
        %v7261 = vadd.f32 %v7157, %v7253
        %v7262 = vld [vmem:[%s4737 + $0x1] sm:$0xff]
        %v7263 = vld [vmem:[%s4737 + $0x9] sm:$0xff]
        %v7264 = vld [vmem:[%s4737 + $0x11] sm:$0xff]
        %v7265 = vld [vmem:[%s4737 + $0x19] sm:$0xff]
        %s7266 = sld [smem:[#allocation13 + $0x3c]]
        %v7267 = vstv %s7266
        %v7268 = vmul.f32 %v7267, %v7262
        %v7269 = vmul.f32 %v7267, %v7263
        %v7270 = vmul.f32 %v7267, %v7264
        %v7271 = vmul.f32 %v7267, %v7265
        %v7272 = vadd.f32 %v7180, %v7268
        %v7273 = vadd.f32 %v7181, %v7269
        %v7274 = vadd.f32 %v7182, %v7270
        %v7275 = vadd.f32 %v7183, %v7271
        %s7276 = sld [smem:[#allocation13 + $0x3d]]
        %v7277 = vstv %s7276
        %v7278 = vmul.f32 %v7277, %v7262
        %v7279 = vmul.f32 %v7277, %v7263
        %v7280 = vmul.f32 %v7277, %v7264
        %v7281 = vmul.f32 %v7277, %v7265
        %v7282 = vadd.f32 %v7206, %v7278
        %v7283 = vadd.f32 %v7207, %v7279
        %v7284 = vadd.f32 %v7208, %v7280
        %v7285 = vadd.f32 %v7209, %v7281
        %s7286 = sld [smem:[#allocation13 + $0x3e]]
        %v7287 = vstv %s7286
        %v7288 = vmul.f32 %v7287, %v7262
        %v7289 = vmul.f32 %v7287, %v7263
        %v7290 = vmul.f32 %v7287, %v7264
        %v7291 = vmul.f32 %v7287, %v7265
        %v7292 = vadd.f32 %v7232, %v7288
        %v7293 = vadd.f32 %v7233, %v7289
        %v7294 = vadd.f32 %v7234, %v7290
        %v7295 = vadd.f32 %v7235, %v7291
        %s7296 = sld [smem:[#allocation13 + $0x3f]]
        %v7297 = vstv %s7296
        %v7298 = vmul.f32 %v7297, %v7262
        %v7299 = vmul.f32 %v7297, %v7263
        %v7300 = vmul.f32 %v7297, %v7264
        %v7301 = vmul.f32 %v7297, %v7265
        %v7302 = vadd.f32 %v7258, %v7298
        %v7303 = vadd.f32 %v7259, %v7299
        %v7304 = vadd.f32 %v7260, %v7300
        %v7305 = vadd.f32 %v7261, %v7301
        %s7306 = sld [smem:[#allocation13 + $0x4c]]
        %v7307 = vstv %s7306
        %v7308 = vmul.f32 %v7307, %v7262
        %v7309 = vmul.f32 %v7307, %v7263
        %v7310 = vmul.f32 %v7307, %v7264
        %v7311 = vmul.f32 %v7307, %v7265
        %7316 = vrot.lane.b32.xlu0 %v7308, 127
        %v7317 = vpop.permute.xlu0 %7316
        %7318 = vrot.lane.b32.xlu0 %v7309, 127
        %v7319 = vpop.permute.xlu0 %7318
        %7320 = vrot.lane.b32.xlu0 %v7310, 127
        %v7321 = vpop.permute.xlu0 %7320
        %7322 = vrot.lane.b32.xlu0 %v7311, 127
        %v7323 = vpop.permute.xlu0 %7322
        %v7328 = vadd.f32 %v7272, %v7317
        %v7329 = vadd.f32 %v7273, %v7319
        %v7330 = vadd.f32 %v7274, %v7321
        %v7331 = vadd.f32 %v7275, %v7323
        %s7332 = sld [smem:[#allocation13 + $0x4d]]
        %v7333 = vstv %s7332
        %v7334 = vmul.f32 %v7333, %v7262
        %v7335 = vmul.f32 %v7333, %v7263
        %v7336 = vmul.f32 %v7333, %v7264
        %v7337 = vmul.f32 %v7333, %v7265
        %7342 = vrot.lane.b32.xlu0 %v7334, 127
        %v7343 = vpop.permute.xlu0 %7342
        %7344 = vrot.lane.b32.xlu0 %v7335, 127
        %v7345 = vpop.permute.xlu0 %7344
        %7346 = vrot.lane.b32.xlu0 %v7336, 127
        %v7347 = vpop.permute.xlu0 %7346
        %7348 = vrot.lane.b32.xlu0 %v7337, 127
        %v7349 = vpop.permute.xlu0 %7348
        %v7354 = vadd.f32 %v7282, %v7343
        %v7355 = vadd.f32 %v7283, %v7345
        %v7356 = vadd.f32 %v7284, %v7347
        %v7357 = vadd.f32 %v7285, %v7349
        %s7358 = sld [smem:[#allocation13 + $0x4e]]
        %v7359 = vstv %s7358
        %v7360 = vmul.f32 %v7359, %v7262
        %v7361 = vmul.f32 %v7359, %v7263
        %v7362 = vmul.f32 %v7359, %v7264
        %v7363 = vmul.f32 %v7359, %v7265
        %7368 = vrot.lane.b32.xlu0 %v7360, 127
        %v7369 = vpop.permute.xlu0 %7368
        %7370 = vrot.lane.b32.xlu0 %v7361, 127
        %v7371 = vpop.permute.xlu0 %7370
        %7372 = vrot.lane.b32.xlu0 %v7362, 127
        %v7373 = vpop.permute.xlu0 %7372
        %7374 = vrot.lane.b32.xlu0 %v7363, 127
        %v7375 = vpop.permute.xlu0 %7374
        %v7380 = vadd.f32 %v7292, %v7369
        %v7381 = vadd.f32 %v7293, %v7371
        %v7382 = vadd.f32 %v7294, %v7373
        %v7383 = vadd.f32 %v7295, %v7375
        %s7384 = sld [smem:[#allocation13 + $0x4f]]
        %v7385 = vstv %s7384
        %v7386 = vmul.f32 %v7385, %v7262
        %v7387 = vmul.f32 %v7385, %v7263
        %v7388 = vmul.f32 %v7385, %v7264
        %v7389 = vmul.f32 %v7385, %v7265
        %7394 = vrot.lane.b32.xlu0 %v7386, 127
        %v7395 = vpop.permute.xlu0 %7394
        %7396 = vrot.lane.b32.xlu0 %v7387, 127
        %v7397 = vpop.permute.xlu0 %7396
        %7398 = vrot.lane.b32.xlu0 %v7388, 127
        %v7399 = vpop.permute.xlu0 %7398
        %7400 = vrot.lane.b32.xlu0 %v7389, 127
        %v7401 = vpop.permute.xlu0 %7400
        %v7406 = vadd.f32 %v7302, %v7395
        %v7407 = vadd.f32 %v7303, %v7397
        %v7408 = vadd.f32 %v7304, %v7399
        %v7409 = vadd.f32 %v7305, %v7401
        %s7410 = sld [smem:[#allocation13 + $0x5c]]
        %v7411 = vstv %s7410
        %v7412 = vmul.f32 %v7411, %v7262
        %v7413 = vmul.f32 %v7411, %v7263
        %v7414 = vmul.f32 %v7411, %v7264
        %v7415 = vmul.f32 %v7411, %v7265
        %7420 = vrot.lane.b32.xlu0 %v7412, 126
        %v7421 = vpop.permute.xlu0 %7420
        %7422 = vrot.lane.b32.xlu0 %v7413, 126
        %v7423 = vpop.permute.xlu0 %7422
        %7424 = vrot.lane.b32.xlu0 %v7414, 126
        %v7425 = vpop.permute.xlu0 %7424
        %7426 = vrot.lane.b32.xlu0 %v7415, 126
        %v7427 = vpop.permute.xlu0 %7426
        %v7432 = vadd.f32 %v7328, %v7421
        %v7433 = vadd.f32 %v7329, %v7423
        %v7434 = vadd.f32 %v7330, %v7425
        %v7435 = vadd.f32 %v7331, %v7427
        %s7436 = sld [smem:[#allocation13 + $0x5d]]
        %v7437 = vstv %s7436
        %v7438 = vmul.f32 %v7437, %v7262
        %v7439 = vmul.f32 %v7437, %v7263
        %v7440 = vmul.f32 %v7437, %v7264
        %v7441 = vmul.f32 %v7437, %v7265
        %7446 = vrot.lane.b32.xlu0 %v7438, 126
        %v7447 = vpop.permute.xlu0 %7446
        %7448 = vrot.lane.b32.xlu0 %v7439, 126
        %v7449 = vpop.permute.xlu0 %7448
        %7450 = vrot.lane.b32.xlu0 %v7440, 126
        %v7451 = vpop.permute.xlu0 %7450
        %7452 = vrot.lane.b32.xlu0 %v7441, 126
        %v7453 = vpop.permute.xlu0 %7452
        %v7458 = vadd.f32 %v7354, %v7447
        %v7459 = vadd.f32 %v7355, %v7449
        %v7460 = vadd.f32 %v7356, %v7451
        %v7461 = vadd.f32 %v7357, %v7453
        %s7462 = sld [smem:[#allocation13 + $0x5e]]
        %v7463 = vstv %s7462
        %v7464 = vmul.f32 %v7463, %v7262
        %v7465 = vmul.f32 %v7463, %v7263
        %v7466 = vmul.f32 %v7463, %v7264
        %v7467 = vmul.f32 %v7463, %v7265
        %7472 = vrot.lane.b32.xlu0 %v7464, 126
        %v7473 = vpop.permute.xlu0 %7472
        %7474 = vrot.lane.b32.xlu0 %v7465, 126
        %v7475 = vpop.permute.xlu0 %7474
        %7476 = vrot.lane.b32.xlu0 %v7466, 126
        %v7477 = vpop.permute.xlu0 %7476
        %7478 = vrot.lane.b32.xlu0 %v7467, 126
        %v7479 = vpop.permute.xlu0 %7478
        %v7484 = vadd.f32 %v7380, %v7473
        %v7485 = vadd.f32 %v7381, %v7475
        %v7486 = vadd.f32 %v7382, %v7477
        %v7487 = vadd.f32 %v7383, %v7479
        %s7488 = sld [smem:[#allocation13 + $0x5f]]
        %v7489 = vstv %s7488
        %v7490 = vmul.f32 %v7489, %v7262
        %v7491 = vmul.f32 %v7489, %v7263
        %v7492 = vmul.f32 %v7489, %v7264
        %v7493 = vmul.f32 %v7489, %v7265
        %7498 = vrot.lane.b32.xlu0 %v7490, 126
        %v7499 = vpop.permute.xlu0 %7498
        %7500 = vrot.lane.b32.xlu0 %v7491, 126
        %v7501 = vpop.permute.xlu0 %7500
        %7502 = vrot.lane.b32.xlu0 %v7492, 126
        %v7503 = vpop.permute.xlu0 %7502
        %7504 = vrot.lane.b32.xlu0 %v7493, 126
        %v7505 = vpop.permute.xlu0 %7504
        %v7510 = vadd.f32 %v7406, %v7499
        %v7511 = vadd.f32 %v7407, %v7501
        %v7512 = vadd.f32 %v7408, %v7503
        %v7513 = vadd.f32 %v7409, %v7505
        %v7514 = vld [vmem:[%s4737 + $0x2] sm:$0xff]
        %v7515 = vld [vmem:[%s4737 + $0xa] sm:$0xff]
        %v7516 = vld [vmem:[%s4737 + $0x12] sm:$0xff]
        %v7517 = vld [vmem:[%s4737 + $0x1a] sm:$0xff]
        %s7518 = sld [smem:[#allocation13 + $0x6c]]
        %v7519 = vstv %s7518
        %v7520 = vmul.f32 %v7519, %v7514
        %v7521 = vmul.f32 %v7519, %v7515
        %v7522 = vmul.f32 %v7519, %v7516
        %v7523 = vmul.f32 %v7519, %v7517
        %v7524 = vadd.f32 %v7432, %v7520
        %v7525 = vadd.f32 %v7433, %v7521
        %v7526 = vadd.f32 %v7434, %v7522
        %v7527 = vadd.f32 %v7435, %v7523
        %s7528 = sld [smem:[#allocation13 + $0x6d]]
        %v7529 = vstv %s7528
        %v7530 = vmul.f32 %v7529, %v7514
        %v7531 = vmul.f32 %v7529, %v7515
        %v7532 = vmul.f32 %v7529, %v7516
        %v7533 = vmul.f32 %v7529, %v7517
        %v7534 = vadd.f32 %v7458, %v7530
        %v7535 = vadd.f32 %v7459, %v7531
        %v7536 = vadd.f32 %v7460, %v7532
        %v7537 = vadd.f32 %v7461, %v7533
        %s7538 = sld [smem:[#allocation13 + $0x6e]]
        %v7539 = vstv %s7538
        %v7540 = vmul.f32 %v7539, %v7514
        %v7541 = vmul.f32 %v7539, %v7515
        %v7542 = vmul.f32 %v7539, %v7516
        %v7543 = vmul.f32 %v7539, %v7517
        %v7544 = vadd.f32 %v7484, %v7540
        %v7545 = vadd.f32 %v7485, %v7541
        %v7546 = vadd.f32 %v7486, %v7542
        %v7547 = vadd.f32 %v7487, %v7543
        %s7548 = sld [smem:[#allocation13 + $0x6f]]
        %v7549 = vstv %s7548
        %v7550 = vmul.f32 %v7549, %v7514
        %v7551 = vmul.f32 %v7549, %v7515
        %v7552 = vmul.f32 %v7549, %v7516
        %v7553 = vmul.f32 %v7549, %v7517
        %v7554 = vadd.f32 %v7510, %v7550
        %v7555 = vadd.f32 %v7511, %v7551
        %v7556 = vadd.f32 %v7512, %v7552
        %v7557 = vadd.f32 %v7513, %v7553
        %s7558 = sld [smem:[#allocation13 + $0x7c]]
        %v7559 = vstv %s7558
        %v7560 = vmul.f32 %v7559, %v7514
        %v7561 = vmul.f32 %v7559, %v7515
        %v7562 = vmul.f32 %v7559, %v7516
        %v7563 = vmul.f32 %v7559, %v7517
        %7568 = vrot.lane.b32.xlu0 %v7560, 127
        %v7569 = vpop.permute.xlu0 %7568
        %7570 = vrot.lane.b32.xlu0 %v7561, 127
        %v7571 = vpop.permute.xlu0 %7570
        %7572 = vrot.lane.b32.xlu0 %v7562, 127
        %v7573 = vpop.permute.xlu0 %7572
        %7574 = vrot.lane.b32.xlu0 %v7563, 127
        %v7575 = vpop.permute.xlu0 %7574
        %v7580 = vadd.f32 %v7524, %v7569
        %v7581 = vadd.f32 %v7525, %v7571
        %v7582 = vadd.f32 %v7526, %v7573
        %v7583 = vadd.f32 %v7527, %v7575
        %s7584 = sld [smem:[#allocation13 + $0x7d]]
        %v7585 = vstv %s7584
        %v7586 = vmul.f32 %v7585, %v7514
        %v7587 = vmul.f32 %v7585, %v7515
        %v7588 = vmul.f32 %v7585, %v7516
        %v7589 = vmul.f32 %v7585, %v7517
        %7594 = vrot.lane.b32.xlu0 %v7586, 127
        %v7595 = vpop.permute.xlu0 %7594
        %7596 = vrot.lane.b32.xlu0 %v7587, 127
        %v7597 = vpop.permute.xlu0 %7596
        %7598 = vrot.lane.b32.xlu0 %v7588, 127
        %v7599 = vpop.permute.xlu0 %7598
        %7600 = vrot.lane.b32.xlu0 %v7589, 127
        %v7601 = vpop.permute.xlu0 %7600
        %v7606 = vadd.f32 %v7534, %v7595
        %v7607 = vadd.f32 %v7535, %v7597
        %v7608 = vadd.f32 %v7536, %v7599
        %v7609 = vadd.f32 %v7537, %v7601
        %s7610 = sld [smem:[#allocation13 + $0x7e]]
        %v7611 = vstv %s7610
        %v7612 = vmul.f32 %v7611, %v7514
        %v7613 = vmul.f32 %v7611, %v7515
        %v7614 = vmul.f32 %v7611, %v7516
        %v7615 = vmul.f32 %v7611, %v7517
        %7620 = vrot.lane.b32.xlu0 %v7612, 127
        %v7621 = vpop.permute.xlu0 %7620
        %7622 = vrot.lane.b32.xlu0 %v7613, 127
        %v7623 = vpop.permute.xlu0 %7622
        %7624 = vrot.lane.b32.xlu0 %v7614, 127
        %v7625 = vpop.permute.xlu0 %7624
        %7626 = vrot.lane.b32.xlu0 %v7615, 127
        %v7627 = vpop.permute.xlu0 %7626
        %v7632 = vadd.f32 %v7544, %v7621
        %v7633 = vadd.f32 %v7545, %v7623
        %v7634 = vadd.f32 %v7546, %v7625
        %v7635 = vadd.f32 %v7547, %v7627
        %s7636 = sld [smem:[#allocation13 + $0x7f]]
        %v7637 = vstv %s7636
        %v7638 = vmul.f32 %v7637, %v7514
        %v7639 = vmul.f32 %v7637, %v7515
        %v7640 = vmul.f32 %v7637, %v7516
        %v7641 = vmul.f32 %v7637, %v7517
        %7646 = vrot.lane.b32.xlu0 %v7638, 127
        %v7647 = vpop.permute.xlu0 %7646
        %7648 = vrot.lane.b32.xlu0 %v7639, 127
        %v7649 = vpop.permute.xlu0 %7648
        %7650 = vrot.lane.b32.xlu0 %v7640, 127
        %v7651 = vpop.permute.xlu0 %7650
        %7652 = vrot.lane.b32.xlu0 %v7641, 127
        %v7653 = vpop.permute.xlu0 %7652
        %v7658 = vadd.f32 %v7554, %v7647
        %v7659 = vadd.f32 %v7555, %v7649
        %v7660 = vadd.f32 %v7556, %v7651
        %v7661 = vadd.f32 %v7557, %v7653
        %s7662 = sld [smem:[#allocation13 + $0x8c]]
        %v7663 = vstv %s7662
        %v7664 = vmul.f32 %v7663, %v7514
        %v7665 = vmul.f32 %v7663, %v7515
        %v7666 = vmul.f32 %v7663, %v7516
        %v7667 = vmul.f32 %v7663, %v7517
        %7672 = vrot.lane.b32.xlu0 %v7664, 126
        %v7673 = vpop.permute.xlu0 %7672
        %7674 = vrot.lane.b32.xlu0 %v7665, 126
        %v7675 = vpop.permute.xlu0 %7674
        %7676 = vrot.lane.b32.xlu0 %v7666, 126
        %v7677 = vpop.permute.xlu0 %7676
        %7678 = vrot.lane.b32.xlu0 %v7667, 126
        %v7679 = vpop.permute.xlu0 %7678
        %v7684 = vadd.f32 %v7580, %v7673
        %v7685 = vadd.f32 %v7581, %v7675
        %v7686 = vadd.f32 %v7582, %v7677
        %v7687 = vadd.f32 %v7583, %v7679
        %s7688 = sld [smem:[#allocation13 + $0x8d]]
        %v7689 = vstv %s7688
        %v7690 = vmul.f32 %v7689, %v7514
        %v7691 = vmul.f32 %v7689, %v7515
        %v7692 = vmul.f32 %v7689, %v7516
        %v7693 = vmul.f32 %v7689, %v7517
        %7698 = vrot.lane.b32.xlu0 %v7690, 126
        %v7699 = vpop.permute.xlu0 %7698
        %7700 = vrot.lane.b32.xlu0 %v7691, 126
        %v7701 = vpop.permute.xlu0 %7700
        %7702 = vrot.lane.b32.xlu0 %v7692, 126
        %v7703 = vpop.permute.xlu0 %7702
        %7704 = vrot.lane.b32.xlu0 %v7693, 126
        %v7705 = vpop.permute.xlu0 %7704
        %v7710 = vadd.f32 %v7606, %v7699
        %v7711 = vadd.f32 %v7607, %v7701
        %v7712 = vadd.f32 %v7608, %v7703
        %v7713 = vadd.f32 %v7609, %v7705
        %s7714 = sld [smem:[#allocation13 + $0x8e]]
        %v7715 = vstv %s7714
        %v7716 = vmul.f32 %v7715, %v7514
        %v7717 = vmul.f32 %v7715, %v7515
        %v7718 = vmul.f32 %v7715, %v7516
        %v7719 = vmul.f32 %v7715, %v7517
        %7724 = vrot.lane.b32.xlu0 %v7716, 126
        %v7725 = vpop.permute.xlu0 %7724
        %7726 = vrot.lane.b32.xlu0 %v7717, 126
        %v7727 = vpop.permute.xlu0 %7726
        %7728 = vrot.lane.b32.xlu0 %v7718, 126
        %v7729 = vpop.permute.xlu0 %7728
        %7730 = vrot.lane.b32.xlu0 %v7719, 126
        %v7731 = vpop.permute.xlu0 %7730
        %v7736 = vadd.f32 %v7632, %v7725
        %v7737 = vadd.f32 %v7633, %v7727
        %v7738 = vadd.f32 %v7634, %v7729
        %v7739 = vadd.f32 %v7635, %v7731
        %s7740 = sld [smem:[#allocation13 + $0x8f]]
        %v7741 = vstv %s7740
        %v7742 = vmul.f32 %v7741, %v7514
        %v7743 = vmul.f32 %v7741, %v7515
        %v7744 = vmul.f32 %v7741, %v7516
        %v7745 = vmul.f32 %v7741, %v7517
        %7750 = vrot.lane.b32.xlu0 %v7742, 126
        %v7751 = vpop.permute.xlu0 %7750
        %7752 = vrot.lane.b32.xlu0 %v7743, 126
        %v7753 = vpop.permute.xlu0 %7752
        %7754 = vrot.lane.b32.xlu0 %v7744, 126
        %v7755 = vpop.permute.xlu0 %7754
        %7756 = vrot.lane.b32.xlu0 %v7745, 126
        %v7757 = vpop.permute.xlu0 %7756
        %v7762 = vadd.f32 %v7658, %v7751
        %v7763 = vadd.f32 %v7659, %v7753
        %v7764 = vadd.f32 %v7660, %v7755
        %v7765 = vadd.f32 %v7661, %v7757
        %s7766 = sld [smem:[#allocation4]]
        %v7767 = vstv %s7766
        %v7768 = vadd.f32 %v7767, 0.0
        %s7769 = sld [smem:[#allocation15]]
        %v7770 = vstv %s7769
        %v7771 = vmul.f32 %v7684, %v7770
        %v7772 = vmul.f32 %v7685, %v7770
        %v7773 = vmul.f32 %v7686, %v7770
        %v7774 = vmul.f32 %v7687, %v7770
        %s7775 = sld [smem:[#allocation16]]
        %v7776 = vstv %s7775
        %v7777 = vadd.f32 %v7771, %v7776
        %v7778 = vadd.f32 %v7772, %v7776
        %v7779 = vadd.f32 %v7773, %v7776
        %v7780 = vadd.f32 %v7774, %v7776
        %v7781 = vmax.f32 %v7777, 0.0
        %v7782 = vmax.f32 %v7778, 0.0
        %v7783 = vmax.f32 %v7779, 0.0
        %v7784 = vmax.f32 %v7780, 0.0
        %v7785 = vand.u32 2147483647, %v7777
        %v7786 = vand.u32 2147483647, %v7778
        %v7787 = vand.u32 2147483647, %v7779
        %v7788 = vand.u32 2147483647, %v7780
        %v7789 = vsub.f32 0.0, %v7785
        %v7790 = vsub.f32 0.0, %v7786
        %v7791 = vsub.f32 0.0, %v7787
        %v7792 = vsub.f32 0.0, %v7788
        %v7793 = vmul.f32 %v7789, 1.442695
        %v7794 = vpow.pop %v7793
        %v7795 = vmul.f32 %v7790, 1.442695
        %v7796 = vpow.pop %v7795
        %v7797 = vmul.f32 %v7791, 1.442695
        %v7798 = vpow.pop %v7797
        %v7799 = vmul.f32 %v7792, 1.442695
        %v7800 = vpow.pop %v7799
        %v7801 = vadd.f32 %v7794, 1.0
        %v7802 = vlog2.pop %v7801
        %v7803 = vmul.f32 %v7802, 0.6931472
        %v7804 = vmul.f32 -0.5, %v7794
        %v7805 = vadd.f32 %v7804, 1.0
        %v7806 = vmul.f32 %v7805, %v7794
        %v7807 = vand.u32 2147483647, %v7794
        %vm7808 = vcmp.lt.f32.partialorder %v7807, 0.0004427343
        %v7809 = vsel %vm7808, %v7806, %v7803
        %v7810 = vadd.f32 %v7796, 1.0
        %v7811 = vlog2.pop %v7810
        %v7812 = vmul.f32 %v7811, 0.6931472
        %v7813 = vmul.f32 -0.5, %v7796
        %v7814 = vadd.f32 %v7813, 1.0
        %v7815 = vmul.f32 %v7814, %v7796
        %v7816 = vand.u32 2147483647, %v7796
        %vm7817 = vcmp.lt.f32.partialorder %v7816, 0.0004427343
        %v7818 = vsel %vm7817, %v7815, %v7812
        %v7819 = vadd.f32 %v7798, 1.0
        %v7820 = vlog2.pop %v7819
        %v7821 = vmul.f32 %v7820, 0.6931472
        %v7822 = vmul.f32 -0.5, %v7798
        %v7823 = vadd.f32 %v7822, 1.0
        %v7824 = vmul.f32 %v7823, %v7798
        %v7825 = vand.u32 2147483647, %v7798
        %vm7826 = vcmp.lt.f32.partialorder %v7825, 0.0004427343
        %v7827 = vsel %vm7826, %v7824, %v7821
        %v7828 = vadd.f32 %v7800, 1.0
        %v7829 = vlog2.pop %v7828
        %v7830 = vmul.f32 %v7829, 0.6931472
        %v7831 = vmul.f32 -0.5, %v7800
        %v7832 = vadd.f32 %v7831, 1.0
        %v7833 = vmul.f32 %v7832, %v7800
        %v7834 = vand.u32 2147483647, %v7800
        %vm7835 = vcmp.lt.f32.partialorder %v7834, 0.0004427343
        %v7836 = vsel %vm7835, %v7833, %v7830
        %v7837 = vadd.f32 %v7781, %v7809
        %v7838 = vadd.f32 %v7782, %v7818
        %v7839 = vadd.f32 %v7783, %v7827
        %v7840 = vadd.f32 %v7784, %v7836
        %v7841 = vtanh.pop %v7837
        %v7842 = vtanh.pop %v7838
        %v7843 = vtanh.pop %v7839
        %v7844 = vtanh.pop %v7840
        %v7845 = vmul.f32 %v7777, %v7841
        %v7846 = vmul.f32 %v7778, %v7842
        %v7847 = vmul.f32 %v7779, %v7843
        %v7848 = vmul.f32 %v7780, %v7844
        %s7849 = sld [smem:[#allocation18]]
        %v7850 = vstv %s7849
        %v7851 = vmul.f32 %v7850, %v7845
        %v7852 = vmul.f32 %v7850, %v7846
        %v7853 = vmul.f32 %v7850, %v7847
        %v7854 = vmul.f32 %v7850, %v7848
        %v7855 = vadd.f32 %v7768, %v7851
        %v7856 = vadd.f32 %v7768, %v7852
        %v7857 = vadd.f32 %v7768, %v7853
        %v7858 = vadd.f32 %v7768, %v7854
        %s7859 = sld [smem:[#allocation15 + $0x1]]
        %v7860 = vstv %s7859
        %v7861 = vmul.f32 %v7710, %v7860
        %v7862 = vmul.f32 %v7711, %v7860
        %v7863 = vmul.f32 %v7712, %v7860
        %v7864 = vmul.f32 %v7713, %v7860
        %s7865 = sld [smem:[#allocation16 + $0x1]]
        %v7866 = vstv %s7865
        %v7867 = vadd.f32 %v7861, %v7866
        %v7868 = vadd.f32 %v7862, %v7866
        %v7869 = vadd.f32 %v7863, %v7866
        %v7870 = vadd.f32 %v7864, %v7866
        %v7871 = vmax.f32 %v7867, 0.0
        %v7872 = vmax.f32 %v7868, 0.0
        %v7873 = vmax.f32 %v7869, 0.0
        %v7874 = vmax.f32 %v7870, 0.0
        %v7875 = vand.u32 2147483647, %v7867
        %v7876 = vand.u32 2147483647, %v7868
        %v7877 = vand.u32 2147483647, %v7869
        %v7878 = vand.u32 2147483647, %v7870
        %v7879 = vsub.f32 0.0, %v7875
        %v7880 = vsub.f32 0.0, %v7876
        %v7881 = vsub.f32 0.0, %v7877
        %v7882 = vsub.f32 0.0, %v7878
        %v7883 = vmul.f32 %v7879, 1.442695
        %v7884 = vpow.pop %v7883
        %v7885 = vmul.f32 %v7880, 1.442695
        %v7886 = vpow.pop %v7885
        %v7887 = vmul.f32 %v7881, 1.442695
        %v7888 = vpow.pop %v7887
        %v7889 = vmul.f32 %v7882, 1.442695
        %v7890 = vpow.pop %v7889
        %v7891 = vadd.f32 %v7884, 1.0
        %v7892 = vlog2.pop %v7891
        %v7893 = vmul.f32 %v7892, 0.6931472
        %v7894 = vmul.f32 -0.5, %v7884
        %v7895 = vadd.f32 %v7894, 1.0
        %v7896 = vmul.f32 %v7895, %v7884
        %v7897 = vand.u32 2147483647, %v7884
        %vm7898 = vcmp.lt.f32.partialorder %v7897, 0.0004427343
        %v7899 = vsel %vm7898, %v7896, %v7893
        %v7900 = vadd.f32 %v7886, 1.0
        %v7901 = vlog2.pop %v7900
        %v7902 = vmul.f32 %v7901, 0.6931472
        %v7903 = vmul.f32 -0.5, %v7886
        %v7904 = vadd.f32 %v7903, 1.0
        %v7905 = vmul.f32 %v7904, %v7886
        %v7906 = vand.u32 2147483647, %v7886
        %vm7907 = vcmp.lt.f32.partialorder %v7906, 0.0004427343
        %v7908 = vsel %vm7907, %v7905, %v7902
        %v7909 = vadd.f32 %v7888, 1.0
        %v7910 = vlog2.pop %v7909
        %v7911 = vmul.f32 %v7910, 0.6931472
        %v7912 = vmul.f32 -0.5, %v7888
        %v7913 = vadd.f32 %v7912, 1.0
        %v7914 = vmul.f32 %v7913, %v7888
        %v7915 = vand.u32 2147483647, %v7888
        %vm7916 = vcmp.lt.f32.partialorder %v7915, 0.0004427343
        %v7917 = vsel %vm7916, %v7914, %v7911
        %v7918 = vadd.f32 %v7890, 1.0
        %v7919 = vlog2.pop %v7918
        %v7920 = vmul.f32 %v7919, 0.6931472
        %v7921 = vmul.f32 -0.5, %v7890
        %v7922 = vadd.f32 %v7921, 1.0
        %v7923 = vmul.f32 %v7922, %v7890
        %v7924 = vand.u32 2147483647, %v7890
        %vm7925 = vcmp.lt.f32.partialorder %v7924, 0.0004427343
        %v7926 = vsel %vm7925, %v7923, %v7920
        %v7927 = vadd.f32 %v7871, %v7899
        %v7928 = vadd.f32 %v7872, %v7908
        %v7929 = vadd.f32 %v7873, %v7917
        %v7930 = vadd.f32 %v7874, %v7926
        %v7931 = vtanh.pop %v7927
        %v7932 = vtanh.pop %v7928
        %v7933 = vtanh.pop %v7929
        %v7934 = vtanh.pop %v7930
        %v7935 = vmul.f32 %v7867, %v7931
        %v7936 = vmul.f32 %v7868, %v7932
        %v7937 = vmul.f32 %v7869, %v7933
        %v7938 = vmul.f32 %v7870, %v7934
        %s7939 = sld [smem:[#allocation18 + $0x1]]
        %v7940 = vstv %s7939
        %v7941 = vmul.f32 %v7940, %v7935
        %v7942 = vmul.f32 %v7940, %v7936
        %v7943 = vmul.f32 %v7940, %v7937
        %v7944 = vmul.f32 %v7940, %v7938
        %v7945 = vadd.f32 %v7855, %v7941
        %v7946 = vadd.f32 %v7856, %v7942
        %v7947 = vadd.f32 %v7857, %v7943
        %v7948 = vadd.f32 %v7858, %v7944
        %s7949 = sld [smem:[#allocation15 + $0x2]]
        %v7950 = vstv %s7949
        %v7951 = vmul.f32 %v7736, %v7950
        %v7952 = vmul.f32 %v7737, %v7950
        %v7953 = vmul.f32 %v7738, %v7950
        %v7954 = vmul.f32 %v7739, %v7950
        %s7955 = sld [smem:[#allocation16 + $0x2]]
        %v7956 = vstv %s7955
        %v7957 = vadd.f32 %v7951, %v7956
        %v7958 = vadd.f32 %v7952, %v7956
        %v7959 = vadd.f32 %v7953, %v7956
        %v7960 = vadd.f32 %v7954, %v7956
        %v7961 = vmax.f32 %v7957, 0.0
        %v7962 = vmax.f32 %v7958, 0.0
        %v7963 = vmax.f32 %v7959, 0.0
        %v7964 = vmax.f32 %v7960, 0.0
        %v7965 = vand.u32 2147483647, %v7957
        %v7966 = vand.u32 2147483647, %v7958
        %v7967 = vand.u32 2147483647, %v7959
        %v7968 = vand.u32 2147483647, %v7960
        %v7969 = vsub.f32 0.0, %v7965
        %v7970 = vsub.f32 0.0, %v7966
        %v7971 = vsub.f32 0.0, %v7967
        %v7972 = vsub.f32 0.0, %v7968
        %v7973 = vmul.f32 %v7969, 1.442695
        %v7974 = vpow.pop %v7973
        %v7975 = vmul.f32 %v7970, 1.442695
        %v7976 = vpow.pop %v7975
        %v7977 = vmul.f32 %v7971, 1.442695
        %v7978 = vpow.pop %v7977
        %v7979 = vmul.f32 %v7972, 1.442695
        %v7980 = vpow.pop %v7979
        %v7981 = vadd.f32 %v7974, 1.0
        %v7982 = vlog2.pop %v7981
        %v7983 = vmul.f32 %v7982, 0.6931472
        %v7984 = vmul.f32 -0.5, %v7974
        %v7985 = vadd.f32 %v7984, 1.0
        %v7986 = vmul.f32 %v7985, %v7974
        %v7987 = vand.u32 2147483647, %v7974
        %vm7988 = vcmp.lt.f32.partialorder %v7987, 0.0004427343
        %v7989 = vsel %vm7988, %v7986, %v7983
        %v7990 = vadd.f32 %v7976, 1.0
        %v7991 = vlog2.pop %v7990
        %v7992 = vmul.f32 %v7991, 0.6931472
        %v7993 = vmul.f32 -0.5, %v7976
        %v7994 = vadd.f32 %v7993, 1.0
        %v7995 = vmul.f32 %v7994, %v7976
        %v7996 = vand.u32 2147483647, %v7976
        %vm7997 = vcmp.lt.f32.partialorder %v7996, 0.0004427343
        %v7998 = vsel %vm7997, %v7995, %v7992
        %v7999 = vadd.f32 %v7978, 1.0
        %v8000 = vlog2.pop %v7999
        %v8001 = vmul.f32 %v8000, 0.6931472
        %v8002 = vmul.f32 -0.5, %v7978
        %v8003 = vadd.f32 %v8002, 1.0
        %v8004 = vmul.f32 %v8003, %v7978
        %v8005 = vand.u32 2147483647, %v7978
        %vm8006 = vcmp.lt.f32.partialorder %v8005, 0.0004427343
        %v8007 = vsel %vm8006, %v8004, %v8001
        %v8008 = vadd.f32 %v7980, 1.0
        %v8009 = vlog2.pop %v8008
        %v8010 = vmul.f32 %v8009, 0.6931472
        %v8011 = vmul.f32 -0.5, %v7980
        %v8012 = vadd.f32 %v8011, 1.0
        %v8013 = vmul.f32 %v8012, %v7980
        %v8014 = vand.u32 2147483647, %v7980
        %vm8015 = vcmp.lt.f32.partialorder %v8014, 0.0004427343
        %v8016 = vsel %vm8015, %v8013, %v8010
        %v8017 = vadd.f32 %v7961, %v7989
        %v8018 = vadd.f32 %v7962, %v7998
        %v8019 = vadd.f32 %v7963, %v8007
        %v8020 = vadd.f32 %v7964, %v8016
        %v8021 = vtanh.pop %v8017
        %v8022 = vtanh.pop %v8018
        %v8023 = vtanh.pop %v8019
        %v8024 = vtanh.pop %v8020
        %v8025 = vmul.f32 %v7957, %v8021
        %v8026 = vmul.f32 %v7958, %v8022
        %v8027 = vmul.f32 %v7959, %v8023
        %v8028 = vmul.f32 %v7960, %v8024
        %s8029 = sld [smem:[#allocation18 + $0x2]]
        %v8030 = vstv %s8029
        %v8031 = vmul.f32 %v8030, %v8025
        %v8032 = vmul.f32 %v8030, %v8026
        %v8033 = vmul.f32 %v8030, %v8027
        %v8034 = vmul.f32 %v8030, %v8028
        %v8035 = vadd.f32 %v7945, %v8031
        %v8036 = vadd.f32 %v7946, %v8032
        %v8037 = vadd.f32 %v7947, %v8033
        %v8038 = vadd.f32 %v7948, %v8034
        %s8039 = sld [smem:[#allocation15 + $0x3]]
        %v8040 = vstv %s8039
        %v8041 = vmul.f32 %v7762, %v8040
        %v8042 = vmul.f32 %v7763, %v8040
        %v8043 = vmul.f32 %v7764, %v8040
        %v8044 = vmul.f32 %v7765, %v8040
        %s8045 = sld [smem:[#allocation16 + $0x3]]
        %v8046 = vstv %s8045
        %v8047 = vadd.f32 %v8041, %v8046
        %v8048 = vadd.f32 %v8042, %v8046
        %v8049 = vadd.f32 %v8043, %v8046
        %v8050 = vadd.f32 %v8044, %v8046
        %v8051 = vmax.f32 %v8047, 0.0
        %v8052 = vmax.f32 %v8048, 0.0
        %v8053 = vmax.f32 %v8049, 0.0
        %v8054 = vmax.f32 %v8050, 0.0
        %v8055 = vand.u32 2147483647, %v8047
        %v8056 = vand.u32 2147483647, %v8048
        %v8057 = vand.u32 2147483647, %v8049
        %v8058 = vand.u32 2147483647, %v8050
        %v8059 = vsub.f32 0.0, %v8055
        %v8060 = vsub.f32 0.0, %v8056
        %v8061 = vsub.f32 0.0, %v8057
        %v8062 = vsub.f32 0.0, %v8058
        %v8063 = vmul.f32 %v8059, 1.442695
        %v8064 = vpow.pop %v8063
        %v8065 = vmul.f32 %v8060, 1.442695
        %v8066 = vpow.pop %v8065
        %v8067 = vmul.f32 %v8061, 1.442695
        %v8068 = vpow.pop %v8067
        %v8069 = vmul.f32 %v8062, 1.442695
        %v8070 = vpow.pop %v8069
        %v8071 = vadd.f32 %v8064, 1.0
        %v8072 = vlog2.pop %v8071
        %v8073 = vmul.f32 %v8072, 0.6931472
        %v8074 = vmul.f32 -0.5, %v8064
        %v8075 = vadd.f32 %v8074, 1.0
        %v8076 = vmul.f32 %v8075, %v8064
        %v8077 = vand.u32 2147483647, %v8064
        %vm8078 = vcmp.lt.f32.partialorder %v8077, 0.0004427343
        %v8079 = vsel %vm8078, %v8076, %v8073
        %v8080 = vadd.f32 %v8066, 1.0
        %v8081 = vlog2.pop %v8080
        %v8082 = vmul.f32 %v8081, 0.6931472
        %v8083 = vmul.f32 -0.5, %v8066
        %v8084 = vadd.f32 %v8083, 1.0
        %v8085 = vmul.f32 %v8084, %v8066
        %v8086 = vand.u32 2147483647, %v8066
        %vm8087 = vcmp.lt.f32.partialorder %v8086, 0.0004427343
        %v8088 = vsel %vm8087, %v8085, %v8082
        %v8089 = vadd.f32 %v8068, 1.0
        %v8090 = vlog2.pop %v8089
        %v8091 = vmul.f32 %v8090, 0.6931472
        %v8092 = vmul.f32 -0.5, %v8068
        %v8093 = vadd.f32 %v8092, 1.0
        %v8094 = vmul.f32 %v8093, %v8068
        %v8095 = vand.u32 2147483647, %v8068
        %vm8096 = vcmp.lt.f32.partialorder %v8095, 0.0004427343
        %v8097 = vsel %vm8096, %v8094, %v8091
        %v8098 = vadd.f32 %v8070, 1.0
        %v8099 = vlog2.pop %v8098
        %v8100 = vmul.f32 %v8099, 0.6931472
        %v8101 = vmul.f32 -0.5, %v8070
        %v8102 = vadd.f32 %v8101, 1.0
        %v8103 = vmul.f32 %v8102, %v8070
        %v8104 = vand.u32 2147483647, %v8070
        %vm8105 = vcmp.lt.f32.partialorder %v8104, 0.0004427343
        %v8106 = vsel %vm8105, %v8103, %v8100
        %v8107 = vadd.f32 %v8051, %v8079
        %v8108 = vadd.f32 %v8052, %v8088
        %v8109 = vadd.f32 %v8053, %v8097
        %v8110 = vadd.f32 %v8054, %v8106
        %v8111 = vtanh.pop %v8107
        %v8112 = vtanh.pop %v8108
        %v8113 = vtanh.pop %v8109
        %v8114 = vtanh.pop %v8110
        %v8115 = vmul.f32 %v8047, %v8111
        %v8116 = vmul.f32 %v8048, %v8112
        %v8117 = vmul.f32 %v8049, %v8113
        %v8118 = vmul.f32 %v8050, %v8114
        %s8119 = sld [smem:[#allocation18 + $0x3]]
        %v8120 = vstv %s8119
        %v8121 = vmul.f32 %v8120, %v8115
        %v8122 = vmul.f32 %v8120, %v8116
        %v8123 = vmul.f32 %v8120, %v8117
        %v8124 = vmul.f32 %v8120, %v8118
        %v8125 = vadd.f32 %v8035, %v8121
        %v8126 = vadd.f32 %v8036, %v8122
        %v8127 = vadd.f32 %v8037, %v8123
        %v8128 = vadd.f32 %v8038, %v8124
        %v8129 = vsub.f32 0.0, %v8125
        %v8130 = vsub.f32 0.0, %v8126
        %v8131 = vsub.f32 0.0, %v8127
        %v8132 = vsub.f32 0.0, %v8128
        %v8133 = vmul.f32 %v8129, 1.442695
        %v8134 = vpow.pop %v8133
        %v8135 = vmul.f32 %v8130, 1.442695
        %v8136 = vpow.pop %v8135
        %v8137 = vmul.f32 %v8131, 1.442695
        %v8138 = vpow.pop %v8137
        %v8139 = vmul.f32 %v8132, 1.442695
        %v8140 = vpow.pop %v8139
        %v8141 = vadd.f32 %v8134, 1.0
        %v8142 = vadd.f32 %v8136, 1.0
        %v8143 = vadd.f32 %v8138, 1.0
        %v8144 = vadd.f32 %v8140, 1.0
        %v8145 = vrcp.pop %v8141
        %v8146 = vmul.f32 1.0, %v8145
        %v8147 = vrcp.pop %v8142
        %v8148 = vmul.f32 1.0, %v8147
        %v8149 = vrcp.pop %v8143
        %v8150 = vmul.f32 1.0, %v8149
        %v8151 = vrcp.pop %v8144
        %v8152 = vmul.f32 1.0, %v8151
        %vm8153 = vcmask 261120
        %8154 = vst.msk [vmem:[%s494] sm:$0xff] %vm8153, %v8146
        %8155 = vst.msk [vmem:[%s494 + $0x8] sm:$0xff] %vm8153, %v8148
        %8156 = vst.msk [vmem:[%s494 + $0x10] sm:$0xff] %vm8153, %v8150
        %8157 = vst.msk [vmem:[%s494 + $0x18] sm:$0xff] %vm8153, %v8152
        %s8158 = sand.u32 %s277, 1
        %s8159 = scalar_lea.sflag [#allocation7], %s8158
        %s8160 = sand.u32 %s277, 1
        %s8161 = smul.addr %s8160, 32
        %s8162 = scalar_lea.vmem [#allocation19], %s8161
        // Predicated region
        $region97: #{tpu_custom_call.1} parent=63 // pred_check
          %p8163 = pneg %p287
        $region98: #{tpu_custom_call.1} parent=63 // pred_check_branch
          %8165 = sbr.rel (%p8163) target = $region100
        $region99: #{tpu_custom_call.1} parent=63 // pred_region
          %s8167 = ssub.s32 512, 512
          %8168 = vsyncadd %s8159, %s8167
          %s8169 = smul.addr %s33, 4
          %s8170 = smul.addr %s8169, 128
          %s8171 = scalar_lea.hbm %s11, %s8170
          %s8172 = sshll.u32 %s8162, 4
          %s8173 = int_to_ptr.vmem [resolvable:$true] %s8172
          %8178 = dma.vmem_to_hbm [thread:$0]  %s8173, 512, %s8171, %s8159, 128, 128, 8
        $region100: #{tpu_custom_call.1} parent=63 // pred_fallthru
          _
      $region64: #{tpu_custom_call.1} parent=5 // pred_fallthru
        _
      %p8179 = scmp.le.s32.totalorder 2, %s28
      // Predicated region
      $region101: #{tpu_custom_call.1} parent=5 // pred_check
        %p8180 = pneg %p8179
      $region102: #{tpu_custom_call.1} parent=5 // pred_check_branch
        %8182 = sbr.rel (%p8180) target = $region104
      $region103: #{tpu_custom_call.1} parent=5 // pred_region
        %s8183 = ssub.s32 %s28, 2
        // Predicated region
        $region105: #{tpu_custom_call.1} parent=103 // pred_check
          %p8184 = pneg %p293
        $region106: #{tpu_custom_call.1} parent=103 // pred_check_branch
          %8186 = sbr.rel (%p8184) target = $region108
        $region107: #{tpu_custom_call.1} parent=103 // pred_region
          %s8187 = sand.u32 %s278, 1
          %s8188 = scalar_lea.sflag [#allocation7], %s8187
          %s8189 = sand.u32 %s278, 1
          %s8190 = smul.addr %s8189, 32
          %s8191 = scalar_lea.vmem [#allocation19], %s8190
          %8192 = dma.done %s8188, 512
        $region108: #{tpu_custom_call.1} parent=103 // pred_fallthru
          _
      $region104: #{tpu_custom_call.1} parent=5 // pred_fallthru
        _
    $region6: #{tpu_custom_call.1} parent=1 // loop_footer
      %s32 = sadd.s32 1, %s28
    $region7: #{tpu_custom_call.1} parent=1 // loop_footer_branch
      %27 = sbr.rel target = $region3
    $region8: #{tpu_custom_call.1} parent=1 // loop_exit
      _
    %8193 = vsyncpa [#allocation6], 1
    %s8194 = scalar_lea.sflag [#allocation6], 1
    %8195 = vsyncpa %s8194, 1
    %8196 = vsyncpa [#allocation7], 1
    %s8197 = scalar_lea.sflag [#allocation7], 1
    %8198 = vsyncpa %s8197, 1
    %8199 = vsyncpa [#allocation8], 1
    %s8200 = scalar_lea.sflag [#allocation8], 1
    %8201 = vsyncpa %s8200, 1
    %8202 = vsyncpa [#allocation11], 1
    %8203 = vsyncpa [#allocation14], 1
    %8204 = vsyncpa [#allocation17], 1

</llo_original>
